<compile_context>
chip_gen: v7x
topology: tpu7x:2x2x1
jax: 0.10.0
libtpu: 0.0.40
codegen_flags: <defaults>
</compile_context>

<pallas_src>
import functools
import numpy as np
import jax
import jax.numpy as jnp
from jax.experimental import pallas as pl
from jax.experimental.pallas import tpu as pltpu

LEAKY_SLOPE = 0.2
BN_EPS = 1e-5
TM_MAX = 512                     # row tile ceiling (fits VMEM for all layer widths here)
COMPUTE_DTYPE = jnp.bfloat16     # HBM / MXU dtype; accumulation & elementwise stay f32


def _round_up(v, m):
    return ((v + m - 1) // m) * m


def _pick_row_tile(m):
    """Largest row tile <= TM_MAX, keeping >=2 grid steps when rows allow it
    (so v7x's second TensorCore gets work) and never over-padding tiny inputs."""
    m8 = _round_up(max(m, 1), 8)
    if m8 >= 2 * TM_MAX:
        return TM_MAX
    if m8 >= 16:
        return _round_up(m8 // 2, 8)
    return m8


# ----------------------------------------------------------------------------
# Fused-MLP Pallas kernel
# ----------------------------------------------------------------------------
def _dense_f32(h32, w_ref):
    """h32 (f32, rows x K) times w_ref (bf16, K x N) -> f32.
    Tiny-K layers use a VPU broadcast-FMA (skips the MXU push/pop);
    otherwise a bf16 MXU matmul with f32 accumulation."""
    k = w_ref.shape[0]
    if k <= 8:
        w32 = w_ref[...].astype(jnp.float32)
        out = h32[:, 0:1] * w32[0:1, :]
        for c in range(1, k):
            out = out + h32[:, c:c + 1] * w32[c:c + 1, :]
        return out
    return jnp.dot(h32.astype(COMPUTE_DTYPE), w_ref[...],
                   preferred_element_type=jnp.float32)


def _mlp_kernel(*refs, n_inputs, plan, n_layers, epilogue):
    n_blocks = len(plan)
    x_refs = refs[:n_inputs]
    w0_refs = refs[n_inputs:n_inputs + n_blocks]
    rest = refs[n_inputs + n_blocks:-1]      # [b0, W1, b1, ..., W_{L-1}, b_{L-1}]
    o_ref = refs[-1]

    raw = [r[...] for r in x_refs]           # bf16 row tiles

    # ---- layer 0: in-kernel "concat" -> sum of partial dots over the plan ----
    h = rest[0][...].astype(jnp.float32)     # bias b0, shape (1, N0), broadcasts
    for (src, power), wref in zip(plan, w0_refs):
        f = raw[src].astype(jnp.float32)
        fp = f
        for _ in range(power - 1):           # powers computed in f32 on the VPU
            fp = fp * f
        h = h + _dense_f32(fp, wref)

    # ---- remaining layers: LeakyReLU(0.2) in f32, then bf16 matmul, f32 acc ----
    for li in range(1, n_layers):
        h = jnp.where(h > 0, h, LEAKY_SLOPE * h)
        w_ref = rest[2 * li - 1]
        b = rest[2 * li][...].astype(jnp.float32)
        h = _dense_f32(h, w_ref) + b
    # last layer: Identity

    if epilogue == "alpha":
        # Predictor tail: 1 + tanh(residual - 1 + bn(alpha_fit));
        # the last column of the (only) input is bn(alpha_fit).
        a = raw[0][:, -1:].astype(jnp.float32)
        h = 1.0 + jnp.tanh(h - 1.0 + a)

    o_ref[...] = h.astype(o_ref.dtype)


def pallas_mlp(inputs, layers, plan=None, epilogue=None, pad_out_lanes=False):
    """Fused Linear(+folded BN)+LeakyReLU stack applied to rows.

    inputs : list of (M, C_i) arrays (same M).
    plan   : list of (input_index, power); the first-layer input is the virtual
             concatenation of inputs[idx] ** power in plan order (built in-kernel).
    layers : list of (W, b); W0 has sum(plan block widths) rows.
    """
    if not isinstance(inputs, (list, tuple)):
        inputs = [inputs]
    if plan is None:
        plan = [(0, 1)]
    layers = list(layers)
    n_layers = len(layers)

    M = inputs[0].shape[0]
    tm = _pick_row_tile(M)
    Mp = _round_up(M, tm)

    # Final layer, optionally zero-padded to a lane-dense (multiple-of-128) width.
    Wl, bl = layers[-1]
    n_out = Wl.shape[1]
    n_out_p = _round_up(n_out, 128) if pad_out_lanes else n_out
    if n_out_p != n_out:
        Wl = jnp.pad(Wl, ((0, 0), (0, n_out_p - n_out)))
        bl = jnp.pad(bl, (0, n_out_p - n_out))
    layers[-1] = (Wl, bl)

    # Split the layer-0 weight rows per plan block (the in-kernel concat).
    W0, b0 = layers[0]
    widths = [inputs[src].shape[1] for (src, _p) in plan]
    assert sum(widths) == W0.shape[0], "plan widths must match first-layer weight rows"
    w0_chunks, off = [], 0
    for w in widths:
        w0_chunks.append(W0[off:off + w, :])
        off += w

    args, in_specs = [], []
    bytes_acc = 0
    for x in inputs:
        C = x.shape[1]
        xp = jnp.pad(x.astype(COMPUTE_DTYPE), ((0, Mp - M), (0, 0)))
        args.append(xp)
        in_specs.append(pl.BlockSpec((tm, C), lambda i: (i, 0)))
        bytes_acc += Mp * C * 2

    weight_args = [wc.astype(COMPUTE_DTYPE) for wc in w0_chunks]
    weight_args.append(b0.reshape(1, -1).astype(jnp.float32))
    for (W, b) in layers[1:]:
        weight_args.append(W.astype(COMPUTE_DTYPE))
        weight_args.append(b.reshape(1, -1).astype(jnp.float32))
    for a in weight_args:
        args.append(a)
        # grid-invariant: whole array resident in VMEM, no per-step double-buffering
        in_specs.append(pl.BlockSpec(memory_space=pltpu.MemorySpace.VMEM))
        bytes_acc += int(a.size) * a.dtype.itemsize
    bytes_acc += Mp * n_out_p * 4  # f32 output

    flops = 2 * Mp * sum(int(W.shape[0]) * int(W.shape[1]) for (W, _b) in layers)
    transc = Mp * n_out_p if epilogue == "alpha" else 0

    kernel = functools.partial(_mlp_kernel, n_inputs=len(inputs), plan=tuple(plan),
                               n_layers=n_layers, epilogue=epilogue)
    out = pl.pallas_call(
        kernel,
        out_shape=jax.ShapeDtypeStruct((Mp, n_out_p), jnp.float32),
        grid=(Mp // tm,),
        in_specs=in_specs,
        out_specs=pl.BlockSpec((tm, n_out_p), lambda i: (i, 0)),
        compiler_params=pltpu.CompilerParams(dimension_semantics=("parallel",)),
        cost_estimate=pl.CostEstimate(flops=flops, transcendentals=transc,
                                      bytes_accessed=bytes_acc),
    )(*args)
    return out[:M, :n_out]


# ----------------------------------------------------------------------------
# Deterministic parameter init (synthetic weights; eval-mode BN folded to affine)
# ----------------------------------------------------------------------------
def _init_linear(key, cin, cout):
    kw, kb = jax.random.split(key)
    lim = 1.0 / np.sqrt(cin)
    W = jax.random.uniform(kw, (cin, cout), minval=-lim, maxval=lim, dtype=jnp.float32)
    b = jax.random.uniform(kb, (cout,), minval=-lim, maxval=lim, dtype=jnp.float32)
    return W, b


def _init_bn_affine(key, c):
    kg, kb, km, kv = jax.random.split(key, 4)
    gamma = jax.random.uniform(kg, (c,), minval=0.5, maxval=1.5, dtype=jnp.float32)
    beta = 0.1 * jax.random.normal(kb, (c,), dtype=jnp.float32)
    rmean = 0.1 * jax.random.normal(km, (c,), dtype=jnp.float32)
    rvar = jax.random.uniform(kv, (c,), minval=0.5, maxval=1.5, dtype=jnp.float32)
    scale = gamma / jnp.sqrt(rvar + BN_EPS)
    shift = beta - rmean * scale
    return scale, shift


def _init_mlp(key, channels):
    # MLP([c0,...,cn]) = [ Dropout(eval), Linear(ci-1,ci), BatchNorm1d(ci), act ]
    n = len(channels) - 1
    keys = jax.random.split(key, n)
    layers = []
    for i in range(n):
        kl, kn = jax.random.split(keys[i])
        W, b = _init_linear(kl, channels[i], channels[i + 1])
        s, t = _init_bn_affine(kn, channels[i + 1])
        layers.append((W * s[None, :], b * s + t))      # fold post-Linear BN (f32)
    return layers


def _fold_pre_affine(layers, pre_affine):
    """Fold an elementwise BN affine applied *before* the first Linear (f32, exact)."""
    if pre_affine is None:
        return layers
    s, t = pre_affine
    W0, b0 = layers[0]
    return [(s[:, None] * W0, b0 + t @ W0)] + list(layers[1:])


def _init_jumpsconv(key, out_channels, x_dim, e_dim, moments):
    keys = jax.random.split(key, 7)
    M = len(moments)
    return {
        'bn_x': _init_bn_affine(keys[0], 2 * x_dim),
        'bn_e': _init_bn_affine(keys[1], 2 * e_dim),
        'moment_net_x': _init_mlp(keys[2], [2 * x_dim, 2 * x_dim, x_dim]),
        'moment_net_e': _init_mlp(keys[3], [2 * e_dim, 2 * e_dim, e_dim]),
        'g': _init_mlp(keys[4], [e_dim + 2 * x_dim, 128, 64, 32, out_channels]),
        'f': _init_mlp(keys[5], [M * out_channels, 128, 64, out_channels]),
        'bn_f': _init_bn_affine(keys[6], M * out_channels) if M > 1 else None,
    }


def init_trajsnet(key, n_c=64, latent_dim=128, x_dim=1, e_dim=1):
    keys = jax.random.split(key, 7)
    return {
        'jc1': _init_jumpsconv(keys[0], n_c, x_dim, e_dim, [1, 2, 4]),
        'jc2': _init_jumpsconv(keys[1], n_c, n_c, e_dim, [1]),
        'jcf': _init_jumpsconv(keys[2], n_c, 2 * n_c, e_dim, [1, 2, 4]),
        'gate_nn': _init_mlp(keys[3], [3 * n_c, n_c, n_c // 2, 1]),
        'enc_mlp': _init_mlp(keys[4], [3 * n_c, 2 * n_c, 2 * latent_dim, latent_dim - 1]),
        'bn_alpha_fit': _init_bn_affine(keys[5], 1),
        'pred_mlp': _init_mlp(keys[6], [latent_dim, 128, 128, 64, 16, 1]),
    }


# ----------------------------------------------------------------------------
# Forward pass
# ----------------------------------------------------------------------------
def jumps_conv_forward(p, x_parts, edge_src, edge_dst, edge_attr, n_nodes, aggr, moments):
    # x <- moment_net_x(bn_x(cat(x, x^2))); the concat + squares happen in-kernel
    P = len(x_parts)
    plan_x = [(i, 1) for i in range(P)] + [(i, 2) for i in range(P)]
    x2 = pallas_mlp(x_parts, _fold_pre_affine(p['moment_net_x'], p['bn_x']), plan=plan_x)
    e2 = pallas_mlp([edge_attr], _fold_pre_affine(p['moment_net_e'], p['bn_e']),
                    plan=[(0, 1), (0, 2)])

    # message: g(cat([edge_attr, x_j, x_i])) — three inputs, concat done in-kernel
    x_j = x2[edge_src]
    x_i = x2[edge_dst]
    msg = pallas_mlp([e2, x_j, x_i], p['g'], plan=[(0, 1), (1, 1), (2, 1)])

    # TODO(synk): segment mean/max aggregation stays in JAX (data-dependent scatter).
    if aggr == 'mean':
        summed = jax.ops.segment_sum(msg, edge_dst, num_segments=n_nodes)
        counts = jax.ops.segment_sum(jnp.ones((msg.shape[0], 1), jnp.float32),
                                     edge_dst, num_segments=n_nodes)
        agg = summed / jnp.maximum(counts, 1.0)
    else:  # 'max'
        agg = jax.ops.segment_max(msg, edge_dst, num_segments=n_nodes)
        agg = jnp.where(jnp.isfinite(agg), agg, 0.0)

    # moments (agg, agg^2, agg^4) built in-kernel; bn_f folded into the first Linear
    return pallas_mlp([agg], _fold_pre_affine(p['f'], p['bn_f']),
                      plan=[(0, m) for m in moments])


def trajsnet_forward(params, x, edge_index, edge_attr, batch, alpha_fit, alpha, n_graphs):
    n_nodes = x.shape[0]
    edge_src, edge_dst = edge_index[0], edge_index[1]

    # --- TrajsEncoder ---
    x1 = jumps_conv_forward(params['jc1'], [x], edge_src, edge_dst, edge_attr,
                            n_nodes, 'mean', [1, 2, 4])
    x2 = jumps_conv_forward(params['jc2'], [x1], edge_src, edge_dst, edge_attr,
                            n_nodes, 'max', [1])
    xf = jumps_conv_forward(params['jcf'], [x1, x2], edge_src, edge_dst, edge_attr,
                            n_nodes, 'mean', [1, 2, 4])

    # GlobalAttention pooling over xcat = [xf, x1, x2] (never materialized in HBM)
    gate = pallas_mlp([xf, x1, x2], params['gate_nn'],
                      plan=[(0, 1), (1, 1), (2, 1)])[:, 0]
    gmax = jax.ops.segment_max(gate, batch, num_segments=n_graphs)
    gmax = jnp.where(jnp.isfinite(gmax), gmax, 0.0)
    ex = jnp.exp(gate - gmax[batch])
    denom = jax.ops.segment_sum(ex, batch, num_segments=n_graphs)
    w = (ex / (denom[batch] + 1e-16))[:, None]
    pooled = [jax.ops.segment_sum(w * t, batch, num_segments=n_graphs)
              for t in (xf, x1, x2)]

    enc = pallas_mlp(pooled, params['enc_mlp'], plan=[(0, 1), (1, 1), (2, 1)],
                     pad_out_lanes=True)                 # (B, latent_dim - 1)

    # --- Predictor (PyTorch mutates h[:, -1:] in place, so the latent sees the BN) ---
    s, t = params['bn_alpha_fit']
    a_bn = alpha_fit * s[None, :] + t[None, :]
    h = jnp.concatenate([enc, a_bn], axis=1)             # (B, latent_dim)
    # 1 + tanh(mlp(h) - 1 + a_bn) fused into the kernel epilogue
    alpha_pred = pallas_mlp([h], params['pred_mlp'], epilogue='alpha')   # (B, 1)

    loss = jnp.mean((alpha_pred - alpha) ** 2)           # nn.MSELoss then mean
    return loss, {'latent': h, 'alpha': alpha_pred}


# ----------------------------------------------------------------------------
if __name__ == "__main__":
    key = jax.random.PRNGKey(0)
    kp, kx, ke, ka, kaf = jax.random.split(key, 5)
    n_c, latent_dim, x_dim, e_dim = 64, 128, 1, 1
    params = init_trajsnet(kp, n_c=n_c, latent_dim=latent_dim, x_dim=x_dim, e_dim=e_dim)

    # small synthetic graph batch: 2 graphs x 8 nodes, bidirectional chain edges
    nodes_per_graph, n_graphs = 8, 2
    N = nodes_per_graph * n_graphs
    src, dst, batch_list = [], [], []
    for g in range(n_graphs):
        off = g * nodes_per_graph
        for i in range(nodes_per_graph - 1):
            src += [off + i, off + i + 1]
            dst += [off + i + 1, off + i]
        batch_list += [g] * nodes_per_graph
    edge_index = jnp.array([src, dst], dtype=jnp.int32)   # (2, E): row0=src(j), row1=dst(i)
    batch = jnp.array(batch_list, dtype=jnp.int32)
    E = edge_index.shape[1]

    x = jax.random.normal(kx, (N, x_dim), dtype=jnp.float32)
    edge_attr = jax.random.normal(ke, (E, e_dim), dtype=jnp.float32)
    alpha_fit = jax.random.normal(kaf, (n_graphs, 1), dtype=jnp.float32)
    alpha = 1.0 + 0.5 * jax.random.normal(ka, (n_graphs, 1), dtype=jnp.float32)

    fwd = jax.jit(trajsnet_forward, static_argnums=(7,))
    loss, out = fwd(params, x, edge_index, edge_attr, batch, alpha_fit, alpha, n_graphs)
    jax.block_until_ready((loss, out['latent'], out['alpha']))
    assert out['latent'].shape == (n_graphs, latent_dim)
    assert out['alpha'].shape == (n_graphs, 1)
    print("KERNEL_OK")
</pallas_src>

<mosaic_0001>
module attributes {stable_mosaic.version = 11 : i64} {
  func.func private @main(%arg0: i32) attributes {dimension_semantics = [#tpu.dimension_semantics<core_parallel>], iteration_bounds = array<i64: 2>, tpu.core_type = #tpu.core_type<sc_scalar_subcore>, window_params = []} {
    return
  }
}

module attributes {stable_mosaic.version = 11 : i64} {
  func.func private @main(%arg0: i32) attributes {dimension_semantics = [#tpu.dimension_semantics<core_parallel>], iteration_bounds = array<i64: 2>, tpu.core_type = #tpu.core_type<sc_scalar_subcore>, window_params = []} {
    return
  }
}

module attributes {stable_mosaic.version = 11 : i64} {
  func.func @_mlp_kernel(%arg0: i32, %arg1: memref<8x1xbf16, #tpu.memory_space<vmem>>, %arg2: memref<1x2xbf16, #tpu.memory_space<vmem>>, %arg3: memref<1x2xbf16, #tpu.memory_space<vmem>>, %arg4: memref<1x2xf32, #tpu.memory_space<vmem>>, %arg5: memref<2x1xbf16, #tpu.memory_space<vmem>>, %arg6: memref<1x1xf32, #tpu.memory_space<vmem>>, %arg7: memref<8x1xf32, #tpu.memory_space<vmem>>) attributes {dimension_semantics = [#tpu.dimension_semantics<parallel>], iteration_bounds = array<i64: 2>, scalar_prefetch = 0 : i64, scratch_operands = 0 : i64, tpu.core_type = #tpu.core_type<tc>, window_params = [{transform_indices = @transform_0, window_bounds = array<i64: 8, 1>}, {pipeline_mode = #tpu.pipeline_mode<synchronous>, transform_indices = @transform_1, window_bounds = array<i64: 1, 2>}, {pipeline_mode = #tpu.pipeline_mode<synchronous>, transform_indices = @transform_2, window_bounds = array<i64: 1, 2>}, {pipeline_mode = #tpu.pipeline_mode<synchronous>, transform_indices = @transform_3, window_bounds = array<i64: 1, 2>}, {pipeline_mode = #tpu.pipeline_mode<synchronous>, transform_indices = @transform_4, window_bounds = array<i64: 2, 1>}, {pipeline_mode = #tpu.pipeline_mode<synchronous>, transform_indices = @transform_5, window_bounds = array<i64: 1, 1>}, {transform_indices = @transform_6, window_bounds = array<i64: 8, 1>}]} {
    %c0 = arith.constant 0 : index
    %c0_0 = arith.constant 0 : index
    %0 = vector.load %arg1[%c0, %c0_0] : memref<8x1xbf16, #tpu.memory_space<vmem>>, vector<8x1xbf16>
    %c0_1 = arith.constant 0 : index
    %c0_2 = arith.constant 0 : index
    %1 = vector.load %arg4[%c0_1, %c0_2] : memref<1x2xf32, #tpu.memory_space<vmem>>, vector<1x2xf32>
    %2 = arith.extf %0 : vector<8x1xbf16> to vector<8x1xf32>
    %c0_3 = arith.constant 0 : index
    %c0_4 = arith.constant 0 : index
    %3 = vector.load %arg2[%c0_3, %c0_4] : memref<1x2xbf16, #tpu.memory_space<vmem>>, vector<1x2xbf16>
    %4 = arith.extf %3 : vector<1x2xbf16> to vector<1x2xf32>
    %5 = vector.broadcast %2 : vector<8x1xf32> to vector<8x2xf32>
    %6 = vector.broadcast %4 : vector<1x2xf32> to vector<8x2xf32>
    %7 = arith.mulf %5, %6 : vector<8x2xf32>
    %8 = vector.broadcast %1 : vector<1x2xf32> to vector<8x2xf32>
    %9 = arith.addf %8, %7 : vector<8x2xf32>
    %10 = arith.extf %0 : vector<8x1xbf16> to vector<8x1xf32>
    %11 = arith.mulf %10, %10 : vector<8x1xf32>
    %c0_5 = arith.constant 0 : index
    %c0_6 = arith.constant 0 : index
    %12 = vector.load %arg3[%c0_5, %c0_6] : memref<1x2xbf16, #tpu.memory_space<vmem>>, vector<1x2xbf16>
    %13 = arith.extf %12 : vector<1x2xbf16> to vector<1x2xf32>
    %14 = vector.broadcast %11 : vector<8x1xf32> to vector<8x2xf32>
    %15 = vector.broadcast %13 : vector<1x2xf32> to vector<8x2xf32>
    %16 = arith.mulf %14, %15 : vector<8x2xf32>
    %17 = arith.addf %9, %16 : vector<8x2xf32>
    %cst = arith.constant 0.000000e+00 : f32
    %18 = vector.broadcast %cst : f32 to vector<8x2xf32>
    %19 = arith.cmpf ogt, %17, %18 : vector<8x2xf32>
    %cst_7 = arith.constant 2.000000e-01 : f32
    %20 = vector.broadcast %cst_7 : f32 to vector<8x2xf32>
    %21 = arith.mulf %20, %17 : vector<8x2xf32>
    %22 = arith.select %19, %17, %21 : vector<8x2xi1>, vector<8x2xf32>
    %c0_8 = arith.constant 0 : index
    %c0_9 = arith.constant 0 : index
    %23 = vector.load %arg6[%c0_8, %c0_9] : memref<1x1xf32, #tpu.memory_space<vmem>>, vector<1x1xf32>
    %c0_10 = arith.constant 0 : index
    %c0_11 = arith.constant 0 : index
    %24 = vector.load %arg5[%c0_10, %c0_11] : memref<2x1xbf16, #tpu.memory_space<vmem>>, vector<2x1xbf16>
    %25 = arith.extf %24 : vector<2x1xbf16> to vector<2x1xf32>
    %26 = vector.extract_strided_slice %22 {offsets = [0, 0], sizes = [8, 1], strides = [1, 1]} : vector<8x2xf32> to vector<8x1xf32>
    %27 = vector.extract_strided_slice %25 {offsets = [0, 0], sizes = [1, 1], strides = [1, 1]} : vector<2x1xf32> to vector<1x1xf32>
    %28 = vector.broadcast %27 : vector<1x1xf32> to vector<8x1xf32>
    %29 = arith.mulf %26, %28 : vector<8x1xf32>
    %30 = vector.extract_strided_slice %22 {offsets = [0, 1], sizes = [8, 1], strides = [1, 1]} : vector<8x2xf32> to vector<8x1xf32>
    %31 = vector.extract_strided_slice %25 {offsets = [1, 0], sizes = [1, 1], strides = [1, 1]} : vector<2x1xf32> to vector<1x1xf32>
    %32 = vector.broadcast %31 : vector<1x1xf32> to vector<8x1xf32>
    %33 = arith.mulf %30, %32 : vector<8x1xf32>
    %34 = arith.addf %29, %33 : vector<8x1xf32>
    %35 = vector.broadcast %23 : vector<1x1xf32> to vector<8x1xf32>
    %36 = arith.addf %34, %35 : vector<8x1xf32>
    %c0_12 = arith.constant 0 : index
    %c0_13 = arith.constant 0 : index
    %37 = vector.load %arg7[%c0_12, %c0_13] : memref<8x1xf32, #tpu.memory_space<vmem>>, vector<8x1xf32>
    tpu.vector_store %arg7[%c0_12, %c0_13], %36 {strides = array<i32>} : memref<8x1xf32, #tpu.memory_space<vmem>>, vector<8x1xf32>,
    return
  }
  func.func @transform_0(%arg0: i32) -> (i32, i32) {
    %c0_i32 = arith.constant 0 : i32
    %c0_i32_0 = arith.constant 0 : i32
    return %arg0, %c0_i32 : i32, i32
  }
  func.func @transform_1(%arg0: i32) -> (i32, i32) {
    %c0_i32 = arith.constant 0 : i32
    %c0_i32_0 = arith.constant 0 : i32
    %c0_i32_1 = arith.constant 0 : i32
    return %c0_i32, %c0_i32_0 : i32, i32
  }
  func.func @transform_2(%arg0: i32) -> (i32, i32) {
    %c0_i32 = arith.constant 0 : i32
    %c0_i32_0 = arith.constant 0 : i32
    %c0_i32_1 = arith.constant 0 : i32
    return %c0_i32, %c0_i32_0 : i32, i32
  }
  func.func @transform_3(%arg0: i32) -> (i32, i32) {
    %c0_i32 = arith.constant 0 : i32
    %c0_i32_0 = arith.constant 0 : i32
    %c0_i32_1 = arith.constant 0 : i32
    return %c0_i32, %c0_i32_0 : i32, i32
  }
  func.func @transform_4(%arg0: i32) -> (i32, i32) {
    %c0_i32 = arith.constant 0 : i32
    %c0_i32_0 = arith.constant 0 : i32
    %c0_i32_1 = arith.constant 0 : i32
    return %c0_i32, %c0_i32_0 : i32, i32
  }
  func.func @transform_5(%arg0: i32) -> (i32, i32) {
    %c0_i32 = arith.constant 0 : i32
    %c0_i32_0 = arith.constant 0 : i32
    %c0_i32_1 = arith.constant 0 : i32
    return %c0_i32, %c0_i32_0 : i32, i32
  }
  func.func @transform_6(%arg0: i32) -> (i32, i32) {
    %c0_i32 = arith.constant 0 : i32
    %c0_i32_0 = arith.constant 0 : i32
    return %arg0, %c0_i32 : i32, i32
  }
}

module attributes {stable_mosaic.version = 11 : i64} {
  func.func @_mlp_kernel(%arg0: i32, %arg1: memref<16x1xbf16, #tpu.memory_space<vmem>>, %arg2: memref<1x2xbf16, #tpu.memory_space<vmem>>, %arg3: memref<1x2xbf16, #tpu.memory_space<vmem>>, %arg4: memref<1x2xf32, #tpu.memory_space<vmem>>, %arg5: memref<2x1xbf16, #tpu.memory_space<vmem>>, %arg6: memref<1x1xf32, #tpu.memory_space<vmem>>, %arg7: memref<16x1xf32, #tpu.memory_space<vmem>>) attributes {dimension_semantics = [#tpu.dimension_semantics<parallel>], iteration_bounds = array<i64: 2>, scalar_prefetch = 0 : i64, scratch_operands = 0 : i64, tpu.core_type = #tpu.core_type<tc>, window_params = [{transform_indices = @transform_0, window_bounds = array<i64: 16, 1>}, {pipeline_mode = #tpu.pipeline_mode<synchronous>, transform_indices = @transform_1, window_bounds = array<i64: 1, 2>}, {pipeline_mode = #tpu.pipeline_mode<synchronous>, transform_indices = @transform_2, window_bounds = array<i64: 1, 2>}, {pipeline_mode = #tpu.pipeline_mode<synchronous>, transform_indices = @transform_3, window_bounds = array<i64: 1, 2>}, {pipeline_mode = #tpu.pipeline_mode<synchronous>, transform_indices = @transform_4, window_bounds = array<i64: 2, 1>}, {pipeline_mode = #tpu.pipeline_mode<synchronous>, transform_indices = @transform_5, window_bounds = array<i64: 1, 1>}, {transform_indices = @transform_6, window_bounds = array<i64: 16, 1>}]} {
    %c0 = arith.constant 0 : index
    %c0_0 = arith.constant 0 : index
    %0 = vector.load %arg1[%c0, %c0_0] : memref<16x1xbf16, #tpu.memory_space<vmem>>, vector<16x1xbf16>
    %c0_1 = arith.constant 0 : index
    %c0_2 = arith.constant 0 : index
    %1 = vector.load %arg4[%c0_1, %c0_2] : memref<1x2xf32, #tpu.memory_space<vmem>>, vector<1x2xf32>
    %2 = arith.extf %0 : vector<16x1xbf16> to vector<16x1xf32>
    %c0_3 = arith.constant 0 : index
    %c0_4 = arith.constant 0 : index
    %3 = vector.load %arg2[%c0_3, %c0_4] : memref<1x2xbf16, #tpu.memory_space<vmem>>, vector<1x2xbf16>
    %4 = arith.extf %3 : vector<1x2xbf16> to vector<1x2xf32>
    %5 = vector.broadcast %2 : vector<16x1xf32> to vector<16x2xf32>
    %6 = vector.broadcast %4 : vector<1x2xf32> to vector<16x2xf32>
    %7 = arith.mulf %5, %6 : vector<16x2xf32>
    %8 = vector.broadcast %1 : vector<1x2xf32> to vector<16x2xf32>
    %9 = arith.addf %8, %7 : vector<16x2xf32>
    %10 = arith.extf %0 : vector<16x1xbf16> to vector<16x1xf32>
    %11 = arith.mulf %10, %10 : vector<16x1xf32>
    %c0_5 = arith.constant 0 : index
    %c0_6 = arith.constant 0 : index
    %12 = vector.load %arg3[%c0_5, %c0_6] : memref<1x2xbf16, #tpu.memory_space<vmem>>, vector<1x2xbf16>
    %13 = arith.extf %12 : vector<1x2xbf16> to vector<1x2xf32>
    %14 = vector.broadcast %11 : vector<16x1xf32> to vector<16x2xf32>
    %15 = vector.broadcast %13 : vector<1x2xf32> to vector<16x2xf32>
    %16 = arith.mulf %14, %15 : vector<16x2xf32>
    %17 = arith.addf %9, %16 : vector<16x2xf32>
    %cst = arith.constant 0.000000e+00 : f32
    %18 = vector.broadcast %cst : f32 to vector<16x2xf32>
    %19 = arith.cmpf ogt, %17, %18 : vector<16x2xf32>
    %cst_7 = arith.constant 2.000000e-01 : f32
    %20 = vector.broadcast %cst_7 : f32 to vector<16x2xf32>
    %21 = arith.mulf %20, %17 : vector<16x2xf32>
    %22 = arith.select %19, %17, %21 : vector<16x2xi1>, vector<16x2xf32>
    %c0_8 = arith.constant 0 : index
    %c0_9 = arith.constant 0 : index
    %23 = vector.load %arg6[%c0_8, %c0_9] : memref<1x1xf32, #tpu.memory_space<vmem>>, vector<1x1xf32>
    %c0_10 = arith.constant 0 : index
    %c0_11 = arith.constant 0 : index
    %24 = vector.load %arg5[%c0_10, %c0_11] : memref<2x1xbf16, #tpu.memory_space<vmem>>, vector<2x1xbf16>
    %25 = arith.extf %24 : vector<2x1xbf16> to vector<2x1xf32>
    %26 = vector.extract_strided_slice %22 {offsets = [0, 0], sizes = [16, 1], strides = [1, 1]} : vector<16x2xf32> to vector<16x1xf32>
    %27 = vector.extract_strided_slice %25 {offsets = [0, 0], sizes = [1, 1], strides = [1, 1]} : vector<2x1xf32> to vector<1x1xf32>
    %28 = vector.broadcast %27 : vector<1x1xf32> to vector<16x1xf32>
    %29 = arith.mulf %26, %28 : vector<16x1xf32>
    %30 = vector.extract_strided_slice %22 {offsets = [0, 1], sizes = [16, 1], strides = [1, 1]} : vector<16x2xf32> to vector<16x1xf32>
    %31 = vector.extract_strided_slice %25 {offsets = [1, 0], sizes = [1, 1], strides = [1, 1]} : vector<2x1xf32> to vector<1x1xf32>
    %32 = vector.broadcast %31 : vector<1x1xf32> to vector<16x1xf32>
    %33 = arith.mulf %30, %32 : vector<16x1xf32>
    %34 = arith.addf %29, %33 : vector<16x1xf32>
    %35 = vector.broadcast %23 : vector<1x1xf32> to vector<16x1xf32>
    %36 = arith.addf %34, %35 : vector<16x1xf32>
    %c0_12 = arith.constant 0 : index
    %c0_13 = arith.constant 0 : index
    %37 = vector.load %arg7[%c0_12, %c0_13] : memref<16x1xf32, #tpu.memory_space<vmem>>, vector<16x1xf32>
    tpu.vector_store %arg7[%c0_12, %c0_13], %36 {strides = array<i32>} : memref<16x1xf32, #tpu.memory_space<vmem>>, vector<16x1xf32>,
    return
  }
  func.func @transform_0(%arg0: i32) -> (i32, i32) {
    %c0_i32 = arith.constant 0 : i32
    %c0_i32_0 = arith.constant 0 : i32
    return %arg0, %c0_i32 : i32, i32
  }
  func.func @transform_1(%arg0: i32) -> (i32, i32) {
    %c0_i32 = arith.constant 0 : i32
    %c0_i32_0 = arith.constant 0 : i32
    %c0_i32_1 = arith.constant 0 : i32
    return %c0_i32, %c0_i32_0 : i32, i32
  }
  func.func @transform_2(%arg0: i32) -> (i32, i32) {
    %c0_i32 = arith.constant 0 : i32
    %c0_i32_0 = arith.constant 0 : i32
    %c0_i32_1 = arith.constant 0 : i32
    return %c0_i32, %c0_i32_0 : i32, i32
  }
  func.func @transform_3(%arg0: i32) -> (i32, i32) {
    %c0_i32 = arith.constant 0 : i32
    %c0_i32_0 = arith.constant 0 : i32
    %c0_i32_1 = arith.constant 0 : i32
    return %c0_i32, %c0_i32_0 : i32, i32
  }
  func.func @transform_4(%arg0: i32) -> (i32, i32) {
    %c0_i32 = arith.constant 0 : i32
    %c0_i32_0 = arith.constant 0 : i32
    %c0_i32_1 = arith.constant 0 : i32
    return %c0_i32, %c0_i32_0 : i32, i32
  }
  func.func @transform_5(%arg0: i32) -> (i32, i32) {
    %c0_i32 = arith.constant 0 : i32
    %c0_i32_0 = arith.constant 0 : i32
    %c0_i32_1 = arith.constant 0 : i32
    return %c0_i32, %c0_i32_0 : i32, i32
  }
  func.func @transform_6(%arg0: i32) -> (i32, i32) {
    %c0_i32 = arith.constant 0 : i32
    %c0_i32_0 = arith.constant 0 : i32
    return %arg0, %c0_i32 : i32, i32
  }
}

module attributes {stable_mosaic.version = 11 : i64} {
  func.func @_mlp_kernel(%arg0: i32, %arg1: memref<16x1xbf16, #tpu.memory_space<vmem>>, %arg2: memref<16x1xbf16, #tpu.memory_space<vmem>>, %arg3: memref<16x1xbf16, #tpu.memory_space<vmem>>, %arg4: memref<1x128xbf16, #tpu.memory_space<vmem>>, %arg5: memref<1x128xbf16, #tpu.memory_space<vmem>>, %arg6: memref<1x128xbf16, #tpu.memory_space<vmem>>, %arg7: memref<1x128xf32, #tpu.memory_space<vmem>>, %arg8: memref<128x64xbf16, #tpu.memory_space<vmem>>, %arg9: memref<1x64xf32, #tpu.memory_space<vmem>>, %arg10: memref<64x32xbf16, #tpu.memory_space<vmem>>, %arg11: memref<1x32xf32, #tpu.memory_space<vmem>>, %arg12: memref<32x64xbf16, #tpu.memory_space<vmem>>, %arg13: memref<1x64xf32, #tpu.memory_space<vmem>>, %arg14: memref<16x64xf32, #tpu.memory_space<vmem>>) attributes {dimension_semantics = [#tpu.dimension_semantics<parallel>], iteration_bounds = array<i64: 2>, scalar_prefetch = 0 : i64, scratch_operands = 0 : i64, tpu.core_type = #tpu.core_type<tc>, window_params = [{transform_indices = @transform_0, window_bounds = array<i64: 16, 1>}, {transform_indices = @transform_1, window_bounds = array<i64: 16, 1>}, {transform_indices = @transform_2, window_bounds = array<i64: 16, 1>}, {pipeline_mode = #tpu.pipeline_mode<synchronous>, transform_indices = @transform_3, window_bounds = array<i64: 1, 128>}, {pipeline_mode = #tpu.pipeline_mode<synchronous>, transform_indices = @transform_4, window_bounds = array<i64: 1, 128>}, {pipeline_mode = #tpu.pipeline_mode<synchronous>, transform_indices = @transform_5, window_bounds = array<i64: 1, 128>}, {pipeline_mode = #tpu.pipeline_mode<synchronous>, transform_indices = @transform_6, window_bounds = array<i64: 1, 128>}, {pipeline_mode = #tpu.pipeline_mode<synchronous>, transform_indices = @transform_7, window_bounds = array<i64: 128, 64>}, {pipeline_mode = #tpu.pipeline_mode<synchronous>, transform_indices = @transform_8, window_bounds = array<i64: 1, 64>}, {pipeline_mode = #tpu.pipeline_mode<synchronous>, transform_indices = @transform_9, window_bounds = array<i64: 64, 32>}, {pipeline_mode = #tpu.pipeline_mode<synchronous>, transform_indices = @transform_10, window_bounds = array<i64: 1, 32>}, {pipeline_mode = #tpu.pipeline_mode<synchronous>, transform_indices = @transform_11, window_bounds = array<i64: 32, 64>}, {pipeline_mode = #tpu.pipeline_mode<synchronous>, transform_indices = @transform_12, window_bounds = array<i64: 1, 64>}, {transform_indices = @transform_13, window_bounds = array<i64: 16, 64>}]} {
    %c0 = arith.constant 0 : index
    %c0_0 = arith.constant 0 : index
    %0 = vector.load %arg1[%c0, %c0_0] : memref<16x1xbf16, #tpu.memory_space<vmem>>, vector<16x1xbf16>
    %c0_1 = arith.constant 0 : index
    %c0_2 = arith.constant 0 : index
    %1 = vector.load %arg2[%c0_1, %c0_2] : memref<16x1xbf16, #tpu.memory_space<vmem>>, vector<16x1xbf16>
    %c0_3 = arith.constant 0 : index
    %c0_4 = arith.constant 0 : index
    %2 = vector.load %arg3[%c0_3, %c0_4] : memref<16x1xbf16, #tpu.memory_space<vmem>>, vector<16x1xbf16>
    %c0_5 = arith.constant 0 : index
    %c0_6 = arith.constant 0 : index
    %3 = vector.load %arg7[%c0_5, %c0_6] : memref<1x128xf32, #tpu.memory_space<vmem>>, vector<1x128xf32>
    %4 = arith.extf %0 : vector<16x1xbf16> to vector<16x1xf32>
    %c0_7 = arith.constant 0 : index
    %c0_8 = arith.constant 0 : index
    %5 = vector.load %arg4[%c0_7, %c0_8] : memref<1x128xbf16, #tpu.memory_space<vmem>>, vector<1x128xbf16>
    %6 = arith.extf %5 : vector<1x128xbf16> to vector<1x128xf32>
    %7 = vector.broadcast %4 : vector<16x1xf32> to vector<16x128xf32>
    %8 = vector.broadcast %6 : vector<1x128xf32> to vector<16x128xf32>
    %9 = arith.mulf %7, %8 : vector<16x128xf32>
    %10 = vector.broadcast %3 : vector<1x128xf32> to vector<16x128xf32>
    %11 = arith.addf %10, %9 : vector<16x128xf32>
    %12 = arith.extf %1 : vector<16x1xbf16> to vector<16x1xf32>
    %c0_9 = arith.constant 0 : index
    %c0_10 = arith.constant 0 : index
    %13 = vector.load %arg5[%c0_9, %c0_10] : memref<1x128xbf16, #tpu.memory_space<vmem>>, vector<1x128xbf16>
    %14 = arith.extf %13 : vector<1x128xbf16> to vector<1x128xf32>
    %15 = vector.broadcast %12 : vector<16x1xf32> to vector<16x128xf32>
    %16 = vector.broadcast %14 : vector<1x128xf32> to vector<16x128xf32>
    %17 = arith.mulf %15, %16 : vector<16x128xf32>
    %18 = arith.addf %11, %17 : vector<16x128xf32>
    %19 = arith.extf %2 : vector<16x1xbf16> to vector<16x1xf32>
    %c0_11 = arith.constant 0 : index
    %c0_12 = arith.constant 0 : index
    %20 = vector.load %arg6[%c0_11, %c0_12] : memref<1x128xbf16, #tpu.memory_space<vmem>>, vector<1x128xbf16>
    %21 = arith.extf %20 : vector<1x128xbf16> to vector<1x128xf32>
    %22 = vector.broadcast %19 : vector<16x1xf32> to vector<16x128xf32>
    %23 = vector.broadcast %21 : vector<1x128xf32> to vector<16x128xf32>
    %24 = arith.mulf %22, %23 : vector<16x128xf32>
    %25 = arith.addf %18, %24 : vector<16x128xf32>
    %cst = arith.constant 0.000000e+00 : f32
    %26 = vector.broadcast %cst : f32 to vector<16x128xf32>
    %27 = arith.cmpf ogt, %25, %26 : vector<16x128xf32>
    %cst_13 = arith.constant 2.000000e-01 : f32
    %28 = vector.broadcast %cst_13 : f32 to vector<16x128xf32>
    %29 = arith.mulf %28, %25 : vector<16x128xf32>
    %30 = arith.select %27, %25, %29 : vector<16x128xi1>, vector<16x128xf32>
    %c0_14 = arith.constant 0 : index
    %c0_15 = arith.constant 0 : index
    %31 = vector.load %arg9[%c0_14, %c0_15] : memref<1x64xf32, #tpu.memory_space<vmem>>, vector<1x64xf32>
    %32 = arith.truncf %30 : vector<16x128xf32> to vector<16x128xbf16>
    %c0_16 = arith.constant 0 : index
    %c0_17 = arith.constant 0 : index
    %33 = vector.load %arg8[%c0_16, %c0_17] : memref<128x64xbf16, #tpu.memory_space<vmem>>, vector<128x64xbf16>
    %cst_18 = arith.constant dense<0.000000e+00> : vector<16x64xf32>
    %34 = tpu.matmul %32, %33, %cst_18 {dimension_numbers = #tpu.dot_dimension_numbers<[1], [0], [0], [1], [0, 0, 1, 1], [], []>} : vector<16x128xbf16>, vector<128x64xbf16>, vector<16x64xf32> -> vector<16x64xf32>
    %35 = vector.broadcast %31 : vector<1x64xf32> to vector<16x64xf32>
    %36 = arith.addf %34, %35 : vector<16x64xf32>
    %cst_19 = arith.constant 0.000000e+00 : f32
    %37 = vector.broadcast %cst_19 : f32 to vector<16x64xf32>
    %38 = arith.cmpf ogt, %36, %37 : vector<16x64xf32>
    %cst_20 = arith.constant 2.000000e-01 : f32
    %39 = vector.broadcast %cst_20 : f32 to vector<16x64xf32>
    %40 = arith.mulf %39, %36 : vector<16x64xf32>
    %41 = arith.select %38, %36, %40 : vector<16x64xi1>, vector<16x64xf32>
    %c0_21 = arith.constant 0 : index
    %c0_22 = arith.constant 0 : index
    %42 = vector.load %arg11[%c0_21, %c0_22] : memref<1x32xf32, #tpu.memory_space<vmem>>, vector<1x32xf32>
    %43 = arith.truncf %41 : vector<16x64xf32> to vector<16x64xbf16>
    %c0_23 = arith.constant 0 : index
    %c0_24 = arith.constant 0 : index
    %44 = vector.load %arg10[%c0_23, %c0_24] : memref<64x32xbf16, #tpu.memory_space<vmem>>, vector<64x32xbf16>
    %cst_25 = arith.constant dense<0.000000e+00> : vector<16x32xf32>
    %45 = tpu.matmul %43, %44, %cst_25 {dimension_numbers = #tpu.dot_dimension_numbers<[1], [0], [0], [1], [0, 0, 1, 1], [], []>} : vector<16x64xbf16>, vector<64x32xbf16>, vector<16x32xf32> -> vector<16x32xf32>
    %46 = vector.broadcast %42 : vector<1x32xf32> to vector<16x32xf32>
    %47 = arith.addf %45, %46 : vector<16x32xf32>
    %cst_26 = arith.constant 0.000000e+00 : f32
    %48 = vector.broadcast %cst_26 : f32 to vector<16x32xf32>
    %49 = arith.cmpf ogt, %47, %48 : vector<16x32xf32>
    %cst_27 = arith.constant 2.000000e-01 : f32
    %50 = vector.broadcast %cst_27 : f32 to vector<16x32xf32>
    %51 = arith.mulf %50, %47 : vector<16x32xf32>
    %52 = arith.select %49, %47, %51 : vector<16x32xi1>, vector<16x32xf32>
    %c0_28 = arith.constant 0 : index
    %c0_29 = arith.constant 0 : index
    %53 = vector.load %arg13[%c0_28, %c0_29] : memref<1x64xf32, #tpu.memory_space<vmem>>, vector<1x64xf32>
    %54 = arith.truncf %52 : vector<16x32xf32> to vector<16x32xbf16>
    %c0_30 = arith.constant 0 : index
    %c0_31 = arith.constant 0 : index
    %55 = vector.load %arg12[%c0_30, %c0_31] : memref<32x64xbf16, #tpu.memory_space<vmem>>, vector<32x64xbf16>
    %cst_32 = arith.constant dense<0.000000e+00> : vector<16x64xf32>
    %56 = tpu.matmul %54, %55, %cst_32 {dimension_numbers = #tpu.dot_dimension_numbers<[1], [0], [0], [1], [0, 0, 1, 1], [], []>} : vector<16x32xbf16>, vector<32x64xbf16>, vector<16x64xf32> -> vector<16x64xf32>
    %57 = vector.broadcast %53 : vector<1x64xf32> to vector<16x64xf32>
    %58 = arith.addf %56, %57 : vector<16x64xf32>
    %c0_33 = arith.constant 0 : index
    %c0_34 = arith.constant 0 : index
    %59 = vector.load %arg14[%c0_33, %c0_34] : memref<16x64xf32, #tpu.memory_space<vmem>>, vector<16x64xf32>
    tpu.vector_store %arg14[%c0_33, %c0_34], %58 {strides = array<i32>} : memref<16x64xf32, #tpu.memory_space<vmem>>, vector<16x64xf32>,
    return
  }
  func.func @transform_0(%arg0: i32) -> (i32, i32) {
    %c0_i32 = arith.constant 0 : i32
    %c0_i32_0 = arith.constant 0 : i32
    return %arg0, %c0_i32 : i32, i32
  }
  func.func @transform_1(%arg0: i32) -> (i32, i32) {
    %c0_i32 = arith.constant 0 : i32
    %c0_i32_0 = arith.constant 0 : i32
    return %arg0, %c0_i32 : i32, i32
  }
  func.func @transform_2(%arg0: i32) -> (i32, i32) {
    %c0_i32 = arith.constant 0 : i32
    %c0_i32_0 = arith.constant 0 : i32
    return %arg0, %c0_i32 : i32, i32
  }
  func.func @transform_3(%arg0: i32) -> (i32, i32) {
    %c0_i32 = arith.constant 0 : i32
    %c0_i32_0 = arith.constant 0 : i32
    %c0_i32_1 = arith.constant 0 : i32
    return %c0_i32, %c0_i32_0 : i32, i32
  }
  func.func @transform_4(%arg0: i32) -> (i32, i32) {
    %c0_i32 = arith.constant 0 : i32
    %c0_i32_0 = arith.constant 0 : i32
    %c0_i32_1 = arith.constant 0 : i32
    return %c0_i32, %c0_i32_0 : i32, i32
  }
  func.func @transform_5(%arg0: i32) -> (i32, i32) {
    %c0_i32 = arith.constant 0 : i32
    %c0_i32_0 = arith.constant 0 : i32
    %c0_i32_1 = arith.constant 0 : i32
    return %c0_i32, %c0_i32_0 : i32, i32
  }
  func.func @transform_6(%arg0: i32) -> (i32, i32) {
    %c0_i32 = arith.constant 0 : i32
    %c0_i32_0 = arith.constant 0 : i32
    %c0_i32_1 = arith.constant 0 : i32
    return %c0_i32, %c0_i32_0 : i32, i32
  }
  func.func @transform_7(%arg0: i32) -> (i32, i32) {
    %c0_i32 = arith.constant 0 : i32
    %c0_i32_0 = arith.constant 0 : i32
    %c0_i32_1 = arith.constant 0 : i32
    return %c0_i32, %c0_i32_0 : i32, i32
  }
  func.func @transform_8(%arg0: i32) -> (i32, i32) {
    %c0_i32 = arith.constant 0 : i32
    %c0_i32_0 = arith.constant 0 : i32
    %c0_i32_1 = arith.constant 0 : i32
    return %c0_i32, %c0_i32_0 : i32, i32
  }
  func.func @transform_9(%arg0: i32) -> (i32, i32) {
    %c0_i32 = arith.constant 0 : i32
    %c0_i32_0 = arith.constant 0 : i32
    %c0_i32_1 = arith.constant 0 : i32
    return %c0_i32, %c0_i32_0 : i32, i32
  }
  func.func @transform_10(%arg0: i32) -> (i32, i32) {
    %c0_i32 = arith.constant 0 : i32
    %c0_i32_0 = arith.constant 0 : i32
    %c0_i32_1 = arith.constant 0 : i32
    return %c0_i32, %c0_i32_0 : i32, i32
  }
  func.func @transform_11(%arg0: i32) -> (i32, i32) {
    %c0_i32 = arith.constant 0 : i32
    %c0_i32_0 = arith.constant 0 : i32
    %c0_i32_1 = arith.constant 0 : i32
    return %c0_i32, %c0_i32_0 : i32, i32
  }
  func.func @transform_12(%arg0: i32) -> (i32, i32) {
    %c0_i32 = arith.constant 0 : i32
    %c0_i32_0 = arith.constant 0 : i32
    %c0_i32_1 = arith.constant 0 : i32
    return %c0_i32, %c0_i32_0 : i32, i32
  }
  func.func @transform_13(%arg0: i32) -> (i32, i32) {
    %c0_i32 = arith.constant 0 : i32
    %c0_i32_0 = arith.constant 0 : i32
    return %arg0, %c0_i32 : i32, i32
  }
}

module attributes {stable_mosaic.version = 11 : i64} {
  func.func @_mlp_kernel(%arg0: i32, %arg1: memref<8x64xbf16, #tpu.memory_space<vmem>>, %arg2: memref<64x128xbf16, #tpu.memory_space<vmem>>, %arg3: memref<64x128xbf16, #tpu.memory_space<vmem>>, %arg4: memref<64x128xbf16, #tpu.memory_space<vmem>>, %arg5: memref<1x128xf32, #tpu.memory_space<vmem>>, %arg6: memref<128x64xbf16, #tpu.memory_space<vmem>>, %arg7: memref<1x64xf32, #tpu.memory_space<vmem>>, %arg8: memref<64x64xbf16, #tpu.memory_space<vmem>>, %arg9: memref<1x64xf32, #tpu.memory_space<vmem>>, %arg10: memref<8x64xf32, #tpu.memory_space<vmem>>) attributes {dimension_semantics = [#tpu.dimension_semantics<parallel>], iteration_bounds = array<i64: 2>, scalar_prefetch = 0 : i64, scratch_operands = 0 : i64, tpu.core_type = #tpu.core_type<tc>, window_params = [{transform_indices = @transform_0, window_bounds = array<i64: 8, 64>}, {pipeline_mode = #tpu.pipeline_mode<synchronous>, transform_indices = @transform_1, window_bounds = array<i64: 64, 128>}, {pipeline_mode = #tpu.pipeline_mode<synchronous>, transform_indices = @transform_2, window_bounds = array<i64: 64, 128>}, {pipeline_mode = #tpu.pipeline_mode<synchronous>, transform_indices = @transform_3, window_bounds = array<i64: 64, 128>}, {pipeline_mode = #tpu.pipeline_mode<synchronous>, transform_indices = @transform_4, window_bounds = array<i64: 1, 128>}, {pipeline_mode = #tpu.pipeline_mode<synchronous>, transform_indices = @transform_5, window_bounds = array<i64: 128, 64>}, {pipeline_mode = #tpu.pipeline_mode<synchronous>, transform_indices = @transform_6, window_bounds = array<i64: 1, 64>}, {pipeline_mode = #tpu.pipeline_mode<synchronous>, transform_indices = @transform_7, window_bounds = array<i64: 64, 64>}, {pipeline_mode = #tpu.pipeline_mode<synchronous>, transform_indices = @transform_8, window_bounds = array<i64: 1, 64>}, {transform_indices = @transform_9, window_bounds = array<i64: 8, 64>}]} {
    %c0 = arith.constant 0 : index
    %c0_0 = arith.constant 0 : index
    %0 = vector.load %arg1[%c0, %c0_0] : memref<8x64xbf16, #tpu.memory_space<vmem>>, vector<8x64xbf16>
    %c0_1 = arith.constant 0 : index
    %c0_2 = arith.constant 0 : index
    %1 = vector.load %arg5[%c0_1, %c0_2] : memref<1x128xf32, #tpu.memory_space<vmem>>, vector<1x128xf32>
    %2 = arith.extf %0 : vector<8x64xbf16> to vector<8x64xf32>
    %3 = arith.truncf %2 : vector<8x64xf32> to vector<8x64xbf16>
    %c0_3 = arith.constant 0 : index
    %c0_4 = arith.constant 0 : index
    %4 = vector.load %arg2[%c0_3, %c0_4] : memref<64x128xbf16, #tpu.memory_space<vmem>>, vector<64x128xbf16>
    %cst = arith.constant dense<0.000000e+00> : vector<8x128xf32>
    %5 = tpu.matmul %3, %4, %cst {dimension_numbers = #tpu.dot_dimension_numbers<[1], [0], [0], [1], [0, 0, 1, 1], [], []>} : vector<8x64xbf16>, vector<64x128xbf16>, vector<8x128xf32> -> vector<8x128xf32>
    %6 = vector.broadcast %1 : vector<1x128xf32> to vector<8x128xf32>
    %7 = arith.addf %6, %5 : vector<8x128xf32>
    %8 = arith.extf %0 : vector<8x64xbf16> to vector<8x64xf32>
    %9 = arith.mulf %8, %8 : vector<8x64xf32>
    %10 = arith.truncf %9 : vector<8x64xf32> to vector<8x64xbf16>
    %c0_5 = arith.constant 0 : index
    %c0_6 = arith.constant 0 : index
    %11 = vector.load %arg3[%c0_5, %c0_6] : memref<64x128xbf16, #tpu.memory_space<vmem>>, vector<64x128xbf16>
    %cst_7 = arith.constant dense<0.000000e+00> : vector<8x128xf32>
    %12 = tpu.matmul %10, %11, %cst_7 {dimension_numbers = #tpu.dot_dimension_numbers<[1], [0], [0], [1], [0, 0, 1, 1], [], []>} : vector<8x64xbf16>, vector<64x128xbf16>, vector<8x128xf32> -> vector<8x128xf32>
    %13 = arith.addf %7, %12 : vector<8x128xf32>
    %14 = arith.extf %0 : vector<8x64xbf16> to vector<8x64xf32>
    %15 = arith.mulf %14, %14 : vector<8x64xf32>
    %16 = arith.mulf %15, %14 : vector<8x64xf32>
    %17 = arith.mulf %16, %14 : vector<8x64xf32>
    %18 = arith.truncf %17 : vector<8x64xf32> to vector<8x64xbf16>
    %c0_8 = arith.constant 0 : index
    %c0_9 = arith.constant 0 : index
    %19 = vector.load %arg4[%c0_8, %c0_9] : memref<64x128xbf16, #tpu.memory_space<vmem>>, vector<64x128xbf16>
    %cst_10 = arith.constant dense<0.000000e+00> : vector<8x128xf32>
    %20 = tpu.matmul %18, %19, %cst_10 {dimension_numbers = #tpu.dot_dimension_numbers<[1], [0], [0], [1], [0, 0, 1, 1], [], []>} : vector<8x64xbf16>, vector<64x128xbf16>, vector<8x128xf32> -> vector<8x128xf32>
    %21 = arith.addf %13, %20 : vector<8x128xf32>
    %cst_11 = arith.constant 0.000000e+00 : f32
    %22 = vector.broadcast %cst_11 : f32 to vector<8x128xf32>
    %23 = arith.cmpf ogt, %21, %22 : vector<8x128xf32>
    %cst_12 = arith.constant 2.000000e-01 : f32
    %24 = vector.broadcast %cst_12 : f32 to vector<8x128xf32>
    %25 = arith.mulf %24, %21 : vector<8x128xf32>
    %26 = arith.select %23, %21, %25 : vector<8x128xi1>, vector<8x128xf32>
    %c0_13 = arith.constant 0 : index
    %c0_14 = arith.constant 0 : index
    %27 = vector.load %arg7[%c0_13, %c0_14] : memref<1x64xf32, #tpu.memory_space<vmem>>, vector<1x64xf32>
    %28 = arith.truncf %26 : vector<8x128xf32> to vector<8x128xbf16>
    %c0_15 = arith.constant 0 : index
    %c0_16 = arith.constant 0 : index
    %29 = vector.load %arg6[%c0_15, %c0_16] : memref<128x64xbf16, #tpu.memory_space<vmem>>, vector<128x64xbf16>
    %cst_17 = arith.constant dense<0.000000e+00> : vector<8x64xf32>
    %30 = tpu.matmul %28, %29, %cst_17 {dimension_numbers = #tpu.dot_dimension_numbers<[1], [0], [0], [1], [0, 0, 1, 1], [], []>} : vector<8x128xbf16>, vector<128x64xbf16>, vector<8x64xf32> -> vector<8x64xf32>
    %31 = vector.broadcast %27 : vector<1x64xf32> to vector<8x64xf32>
    %32 = arith.addf %30, %31 : vector<8x64xf32>
    %cst_18 = arith.constant 0.000000e+00 : f32
    %33 = vector.broadcast %cst_18 : f32 to vector<8x64xf32>
    %34 = arith.cmpf ogt, %32, %33 : vector<8x64xf32>
    %cst_19 = arith.constant 2.000000e-01 : f32
    %35 = vector.broadcast %cst_19 : f32 to vector<8x64xf32>
    %36 = arith.mulf %35, %32 : vector<8x64xf32>
    %37 = arith.select %34, %32, %36 : vector<8x64xi1>, vector<8x64xf32>
    %c0_20 = arith.constant 0 : index
    %c0_21 = arith.constant 0 : index
    %38 = vector.load %arg9[%c0_20, %c0_21] : memref<1x64xf32, #tpu.memory_space<vmem>>, vector<1x64xf32>
    %39 = arith.truncf %37 : vector<8x64xf32> to vector<8x64xbf16>
    %c0_22 = arith.constant 0 : index
    %c0_23 = arith.constant 0 : index
    %40 = vector.load %arg8[%c0_22, %c0_23] : memref<64x64xbf16, #tpu.memory_space<vmem>>, vector<64x64xbf16>
    %cst_24 = arith.constant dense<0.000000e+00> : vector<8x64xf32>
    %41 = tpu.matmul %39, %40, %cst_24 {dimension_numbers = #tpu.dot_dimension_numbers<[1], [0], [0], [1], [0, 0, 1, 1], [], []>} : vector<8x64xbf16>, vector<64x64xbf16>, vector<8x64xf32> -> vector<8x64xf32>
    %42 = vector.broadcast %38 : vector<1x64xf32> to vector<8x64xf32>
    %43 = arith.addf %41, %42 : vector<8x64xf32>
    %c0_25 = arith.constant 0 : index
    %c0_26 = arith.constant 0 : index
    %44 = vector.load %arg10[%c0_25, %c0_26] : memref<8x64xf32, #tpu.memory_space<vmem>>, vector<8x64xf32>
    tpu.vector_store %arg10[%c0_25, %c0_26], %43 {strides = array<i32>} : memref<8x64xf32, #tpu.memory_space<vmem>>, vector<8x64xf32>,
    return
  }
  func.func @transform_0(%arg0: i32) -> (i32, i32) {
    %c0_i32 = arith.constant 0 : i32
    %c0_i32_0 = arith.constant 0 : i32
    return %arg0, %c0_i32 : i32, i32
  }
  func.func @transform_1(%arg0: i32) -> (i32, i32) {
    %c0_i32 = arith.constant 0 : i32
    %c0_i32_0 = arith.constant 0 : i32
    %c0_i32_1 = arith.constant 0 : i32
    return %c0_i32, %c0_i32_0 : i32, i32
  }
  func.func @transform_2(%arg0: i32) -> (i32, i32) {
    %c0_i32 = arith.constant 0 : i32
    %c0_i32_0 = arith.constant 0 : i32
    %c0_i32_1 = arith.constant 0 : i32
    return %c0_i32, %c0_i32_0 : i32, i32
  }
  func.func @transform_3(%arg0: i32) -> (i32, i32) {
    %c0_i32 = arith.constant 0 : i32
    %c0_i32_0 = arith.constant 0 : i32
    %c0_i32_1 = arith.constant 0 : i32
    return %c0_i32, %c0_i32_0 : i32, i32
  }
  func.func @transform_4(%arg0: i32) -> (i32, i32) {
    %c0_i32 = arith.constant 0 : i32
    %c0_i32_0 = arith.constant 0 : i32
    %c0_i32_1 = arith.constant 0 : i32
    return %c0_i32, %c0_i32_0 : i32, i32
  }
  func.func @transform_5(%arg0: i32) -> (i32, i32) {
    %c0_i32 = arith.constant 0 : i32
    %c0_i32_0 = arith.constant 0 : i32
    %c0_i32_1 = arith.constant 0 : i32
    return %c0_i32, %c0_i32_0 : i32, i32
  }
  func.func @transform_6(%arg0: i32) -> (i32, i32) {
    %c0_i32 = arith.constant 0 : i32
    %c0_i32_0 = arith.constant 0 : i32
    %c0_i32_1 = arith.constant 0 : i32
    return %c0_i32, %c0_i32_0 : i32, i32
  }
  func.func @transform_7(%arg0: i32) -> (i32, i32) {
    %c0_i32 = arith.constant 0 : i32
    %c0_i32_0 = arith.constant 0 : i32
    %c0_i32_1 = arith.constant 0 : i32
    return %c0_i32, %c0_i32_0 : i32, i32
  }
  func.func @transform_8(%arg0: i32) -> (i32, i32) {
    %c0_i32 = arith.constant 0 : i32
    %c0_i32_0 = arith.constant 0 : i32
    %c0_i32_1 = arith.constant 0 : i32
    return %c0_i32, %c0_i32_0 : i32, i32
  }
  func.func @transform_9(%arg0: i32) -> (i32, i32) {
    %c0_i32 = arith.constant 0 : i32
    %c0_i32_0 = arith.constant 0 : i32
    return %arg0, %c0_i32 : i32, i32
  }
}

module attributes {stable_mosaic.version = 11 : i64} {
  func.func @_mlp_kernel(%arg0: i32, %arg1: memref<8x64xbf16, #tpu.memory_space<vmem>>, %arg2: memref<64x128xbf16, #tpu.memory_space<vmem>>, %arg3: memref<64x128xbf16, #tpu.memory_space<vmem>>, %arg4: memref<1x128xf32, #tpu.memory_space<vmem>>, %arg5: memref<128x64xbf16, #tpu.memory_space<vmem>>, %arg6: memref<1x64xf32, #tpu.memory_space<vmem>>, %arg7: memref<8x64xf32, #tpu.memory_space<vmem>>) attributes {dimension_semantics = [#tpu.dimension_semantics<parallel>], iteration_bounds = array<i64: 2>, scalar_prefetch = 0 : i64, scratch_operands = 0 : i64, tpu.core_type = #tpu.core_type<tc>, window_params = [{transform_indices = @transform_0, window_bounds = array<i64: 8, 64>}, {pipeline_mode = #tpu.pipeline_mode<synchronous>, transform_indices = @transform_1, window_bounds = array<i64: 64, 128>}, {pipeline_mode = #tpu.pipeline_mode<synchronous>, transform_indices = @transform_2, window_bounds = array<i64: 64, 128>}, {pipeline_mode = #tpu.pipeline_mode<synchronous>, transform_indices = @transform_3, window_bounds = array<i64: 1, 128>}, {pipeline_mode = #tpu.pipeline_mode<synchronous>, transform_indices = @transform_4, window_bounds = array<i64: 128, 64>}, {pipeline_mode = #tpu.pipeline_mode<synchronous>, transform_indices = @transform_5, window_bounds = array<i64: 1, 64>}, {transform_indices = @transform_6, window_bounds = array<i64: 8, 64>}]} {
    %c0 = arith.constant 0 : index
    %c0_0 = arith.constant 0 : index
    %0 = vector.load %arg1[%c0, %c0_0] : memref<8x64xbf16, #tpu.memory_space<vmem>>, vector<8x64xbf16>
    %c0_1 = arith.constant 0 : index
    %c0_2 = arith.constant 0 : index
    %1 = vector.load %arg4[%c0_1, %c0_2] : memref<1x128xf32, #tpu.memory_space<vmem>>, vector<1x128xf32>
    %2 = arith.extf %0 : vector<8x64xbf16> to vector<8x64xf32>
    %3 = arith.truncf %2 : vector<8x64xf32> to vector<8x64xbf16>
    %c0_3 = arith.constant 0 : index
    %c0_4 = arith.constant 0 : index
    %4 = vector.load %arg2[%c0_3, %c0_4] : memref<64x128xbf16, #tpu.memory_space<vmem>>, vector<64x128xbf16>
    %cst = arith.constant dense<0.000000e+00> : vector<8x128xf32>
    %5 = tpu.matmul %3, %4, %cst {dimension_numbers = #tpu.dot_dimension_numbers<[1], [0], [0], [1], [0, 0, 1, 1], [], []>} : vector<8x64xbf16>, vector<64x128xbf16>, vector<8x128xf32> -> vector<8x128xf32>
    %6 = vector.broadcast %1 : vector<1x128xf32> to vector<8x128xf32>
    %7 = arith.addf %6, %5 : vector<8x128xf32>
    %8 = arith.extf %0 : vector<8x64xbf16> to vector<8x64xf32>
    %9 = arith.mulf %8, %8 : vector<8x64xf32>
    %10 = arith.truncf %9 : vector<8x64xf32> to vector<8x64xbf16>
    %c0_5 = arith.constant 0 : index
    %c0_6 = arith.constant 0 : index
    %11 = vector.load %arg3[%c0_5, %c0_6] : memref<64x128xbf16, #tpu.memory_space<vmem>>, vector<64x128xbf16>
    %cst_7 = arith.constant dense<0.000000e+00> : vector<8x128xf32>
    %12 = tpu.matmul %10, %11, %cst_7 {dimension_numbers = #tpu.dot_dimension_numbers<[1], [0], [0], [1], [0, 0, 1, 1], [], []>} : vector<8x64xbf16>, vector<64x128xbf16>, vector<8x128xf32> -> vector<8x128xf32>
    %13 = arith.addf %7, %12 : vector<8x128xf32>
    %cst_8 = arith.constant 0.000000e+00 : f32
    %14 = vector.broadcast %cst_8 : f32 to vector<8x128xf32>
    %15 = arith.cmpf ogt, %13, %14 : vector<8x128xf32>
    %cst_9 = arith.constant 2.000000e-01 : f32
    %16 = vector.broadcast %cst_9 : f32 to vector<8x128xf32>
    %17 = arith.mulf %16, %13 : vector<8x128xf32>
    %18 = arith.select %15, %13, %17 : vector<8x128xi1>, vector<8x128xf32>
    %c0_10 = arith.constant 0 : index
    %c0_11 = arith.constant 0 : index
    %19 = vector.load %arg6[%c0_10, %c0_11] : memref<1x64xf32, #tpu.memory_space<vmem>>, vector<1x64xf32>
    %20 = arith.truncf %18 : vector<8x128xf32> to vector<8x128xbf16>
    %c0_12 = arith.constant 0 : index
    %c0_13 = arith.constant 0 : index
    %21 = vector.load %arg5[%c0_12, %c0_13] : memref<128x64xbf16, #tpu.memory_space<vmem>>, vector<128x64xbf16>
    %cst_14 = arith.constant dense<0.000000e+00> : vector<8x64xf32>
    %22 = tpu.matmul %20, %21, %cst_14 {dimension_numbers = #tpu.dot_dimension_numbers<[1], [0], [0], [1], [0, 0, 1, 1], [], []>} : vector<8x128xbf16>, vector<128x64xbf16>, vector<8x64xf32> -> vector<8x64xf32>
    %23 = vector.broadcast %19 : vector<1x64xf32> to vector<8x64xf32>
    %24 = arith.addf %22, %23 : vector<8x64xf32>
    %c0_15 = arith.constant 0 : index
    %c0_16 = arith.constant 0 : index
    %25 = vector.load %arg7[%c0_15, %c0_16] : memref<8x64xf32, #tpu.memory_space<vmem>>, vector<8x64xf32>
    tpu.vector_store %arg7[%c0_15, %c0_16], %24 {strides = array<i32>} : memref<8x64xf32, #tpu.memory_space<vmem>>, vector<8x64xf32>,
    return
  }
  func.func @transform_0(%arg0: i32) -> (i32, i32) {
    %c0_i32 = arith.constant 0 : i32
    %c0_i32_0 = arith.constant 0 : i32
    return %arg0, %c0_i32 : i32, i32
  }
  func.func @transform_1(%arg0: i32) -> (i32, i32) {
    %c0_i32 = arith.constant 0 : i32
    %c0_i32_0 = arith.constant 0 : i32
    %c0_i32_1 = arith.constant 0 : i32
    return %c0_i32, %c0_i32_0 : i32, i32
  }
  func.func @transform_2(%arg0: i32) -> (i32, i32) {
    %c0_i32 = arith.constant 0 : i32
    %c0_i32_0 = arith.constant 0 : i32
    %c0_i32_1 = arith.constant 0 : i32
    return %c0_i32, %c0_i32_0 : i32, i32
  }
  func.func @transform_3(%arg0: i32) -> (i32, i32) {
    %c0_i32 = arith.constant 0 : i32
    %c0_i32_0 = arith.constant 0 : i32
    %c0_i32_1 = arith.constant 0 : i32
    return %c0_i32, %c0_i32_0 : i32, i32
  }
  func.func @transform_4(%arg0: i32) -> (i32, i32) {
    %c0_i32 = arith.constant 0 : i32
    %c0_i32_0 = arith.constant 0 : i32
    %c0_i32_1 = arith.constant 0 : i32
    return %c0_i32, %c0_i32_0 : i32, i32
  }
  func.func @transform_5(%arg0: i32) -> (i32, i32) {
    %c0_i32 = arith.constant 0 : i32
    %c0_i32_0 = arith.constant 0 : i32
    %c0_i32_1 = arith.constant 0 : i32
    return %c0_i32, %c0_i32_0 : i32, i32
  }
  func.func @transform_6(%arg0: i32) -> (i32, i32) {
    %c0_i32 = arith.constant 0 : i32
    %c0_i32_0 = arith.constant 0 : i32
    return %arg0, %c0_i32 : i32, i32
  }
}

module attributes {stable_mosaic.version = 11 : i64} {
  func.func @_mlp_kernel(%arg0: i32, %arg1: memref<16x1xbf16, #tpu.memory_space<vmem>>, %arg2: memref<16x64xbf16, #tpu.memory_space<vmem>>, %arg3: memref<16x64xbf16, #tpu.memory_space<vmem>>, %arg4: memref<1x128xbf16, #tpu.memory_space<vmem>>, %arg5: memref<64x128xbf16, #tpu.memory_space<vmem>>, %arg6: memref<64x128xbf16, #tpu.memory_space<vmem>>, %arg7: memref<1x128xf32, #tpu.memory_space<vmem>>, %arg8: memref<128x64xbf16, #tpu.memory_space<vmem>>, %arg9: memref<1x64xf32, #tpu.memory_space<vmem>>, %arg10: memref<64x32xbf16, #tpu.memory_space<vmem>>, %arg11: memref<1x32xf32, #tpu.memory_space<vmem>>, %arg12: memref<32x64xbf16, #tpu.memory_space<vmem>>, %arg13: memref<1x64xf32, #tpu.memory_space<vmem>>, %arg14: memref<16x64xf32, #tpu.memory_space<vmem>>) attributes {dimension_semantics = [#tpu.dimension_semantics<parallel>], iteration_bounds = array<i64: 2>, scalar_prefetch = 0 : i64, scratch_operands = 0 : i64, tpu.core_type = #tpu.core_type<tc>, window_params = [{transform_indices = @transform_0, window_bounds = array<i64: 16, 1>}, {transform_indices = @transform_1, window_bounds = array<i64: 16, 64>}, {transform_indices = @transform_2, window_bounds = array<i64: 16, 64>}, {pipeline_mode = #tpu.pipeline_mode<synchronous>, transform_indices = @transform_3, window_bounds = array<i64: 1, 128>}, {pipeline_mode = #tpu.pipeline_mode<synchronous>, transform_indices = @transform_4, window_bounds = array<i64: 64, 128>}, {pipeline_mode = #tpu.pipeline_mode<synchronous>, transform_indices = @transform_5, window_bounds = array<i64: 64, 128>}, {pipeline_mode = #tpu.pipeline_mode<synchronous>, transform_indices = @transform_6, window_bounds = array<i64: 1, 128>}, {pipeline_mode = #tpu.pipeline_mode<synchronous>, transform_indices = @transform_7, window_bounds = array<i64: 128, 64>}, {pipeline_mode = #tpu.pipeline_mode<synchronous>, transform_indices = @transform_8, window_bounds = array<i64: 1, 64>}, {pipeline_mode = #tpu.pipeline_mode<synchronous>, transform_indices = @transform_9, window_bounds = array<i64: 64, 32>}, {pipeline_mode = #tpu.pipeline_mode<synchronous>, transform_indices = @transform_10, window_bounds = array<i64: 1, 32>}, {pipeline_mode = #tpu.pipeline_mode<synchronous>, transform_indices = @transform_11, window_bounds = array<i64: 32, 64>}, {pipeline_mode = #tpu.pipeline_mode<synchronous>, transform_indices = @transform_12, window_bounds = array<i64: 1, 64>}, {transform_indices = @transform_13, window_bounds = array<i64: 16, 64>}]} {
    %c0 = arith.constant 0 : index
    %c0_0 = arith.constant 0 : index
    %0 = vector.load %arg1[%c0, %c0_0] : memref<16x1xbf16, #tpu.memory_space<vmem>>, vector<16x1xbf16>
    %c0_1 = arith.constant 0 : index
    %c0_2 = arith.constant 0 : index
    %1 = vector.load %arg2[%c0_1, %c0_2] : memref<16x64xbf16, #tpu.memory_space<vmem>>, vector<16x64xbf16>
    %c0_3 = arith.constant 0 : index
    %c0_4 = arith.constant 0 : index
    %2 = vector.load %arg3[%c0_3, %c0_4] : memref<16x64xbf16, #tpu.memory_space<vmem>>, vector<16x64xbf16>
    %c0_5 = arith.constant 0 : index
    %c0_6 = arith.constant 0 : index
    %3 = vector.load %arg7[%c0_5, %c0_6] : memref<1x128xf32, #tpu.memory_space<vmem>>, vector<1x128xf32>
    %4 = arith.extf %0 : vector<16x1xbf16> to vector<16x1xf32>
    %c0_7 = arith.constant 0 : index
    %c0_8 = arith.constant 0 : index
    %5 = vector.load %arg4[%c0_7, %c0_8] : memref<1x128xbf16, #tpu.memory_space<vmem>>, vector<1x128xbf16>
    %6 = arith.extf %5 : vector<1x128xbf16> to vector<1x128xf32>
    %7 = vector.broadcast %4 : vector<16x1xf32> to vector<16x128xf32>
    %8 = vector.broadcast %6 : vector<1x128xf32> to vector<16x128xf32>
    %9 = arith.mulf %7, %8 : vector<16x128xf32>
    %10 = vector.broadcast %3 : vector<1x128xf32> to vector<16x128xf32>
    %11 = arith.addf %10, %9 : vector<16x128xf32>
    %12 = arith.extf %1 : vector<16x64xbf16> to vector<16x64xf32>
    %13 = arith.truncf %12 : vector<16x64xf32> to vector<16x64xbf16>
    %c0_9 = arith.constant 0 : index
    %c0_10 = arith.constant 0 : index
    %14 = vector.load %arg5[%c0_9, %c0_10] : memref<64x128xbf16, #tpu.memory_space<vmem>>, vector<64x128xbf16>
    %cst = arith.constant dense<0.000000e+00> : vector<16x128xf32>
    %15 = tpu.matmul %13, %14, %cst {dimension_numbers = #tpu.dot_dimension_numbers<[1], [0], [0], [1], [0, 0, 1, 1], [], []>} : vector<16x64xbf16>, vector<64x128xbf16>, vector<16x128xf32> -> vector<16x128xf32>
    %16 = arith.addf %11, %15 : vector<16x128xf32>
    %17 = arith.extf %2 : vector<16x64xbf16> to vector<16x64xf32>
    %18 = arith.truncf %17 : vector<16x64xf32> to vector<16x64xbf16>
    %c0_11 = arith.constant 0 : index
    %c0_12 = arith.constant 0 : index
    %19 = vector.load %arg6[%c0_11, %c0_12] : memref<64x128xbf16, #tpu.memory_space<vmem>>, vector<64x128xbf16>
    %cst_13 = arith.constant dense<0.000000e+00> : vector<16x128xf32>
    %20 = tpu.matmul %18, %19, %cst_13 {dimension_numbers = #tpu.dot_dimension_numbers<[1], [0], [0], [1], [0, 0, 1, 1], [], []>} : vector<16x64xbf16>, vector<64x128xbf16>, vector<16x128xf32> -> vector<16x128xf32>
    %21 = arith.addf %16, %20 : vector<16x128xf32>
    %cst_14 = arith.constant 0.000000e+00 : f32
    %22 = vector.broadcast %cst_14 : f32 to vector<16x128xf32>
    %23 = arith.cmpf ogt, %21, %22 : vector<16x128xf32>
    %cst_15 = arith.constant 2.000000e-01 : f32
    %24 = vector.broadcast %cst_15 : f32 to vector<16x128xf32>
    %25 = arith.mulf %24, %21 : vector<16x128xf32>
    %26 = arith.select %23, %21, %25 : vector<16x128xi1>, vector<16x128xf32>
    %c0_16 = arith.constant 0 : index
    %c0_17 = arith.constant 0 : index
    %27 = vector.load %arg9[%c0_16, %c0_17] : memref<1x64xf32, #tpu.memory_space<vmem>>, vector<1x64xf32>
    %28 = arith.truncf %26 : vector<16x128xf32> to vector<16x128xbf16>
    %c0_18 = arith.constant 0 : index
    %c0_19 = arith.constant 0 : index
    %29 = vector.load %arg8[%c0_18, %c0_19] : memref<128x64xbf16, #tpu.memory_space<vmem>>, vector<128x64xbf16>
    %cst_20 = arith.constant dense<0.000000e+00> : vector<16x64xf32>
    %30 = tpu.matmul %28, %29, %cst_20 {dimension_numbers = #tpu.dot_dimension_numbers<[1], [0], [0], [1], [0, 0, 1, 1], [], []>} : vector<16x128xbf16>, vector<128x64xbf16>, vector<16x64xf32> -> vector<16x64xf32>
    %31 = vector.broadcast %27 : vector<1x64xf32> to vector<16x64xf32>
    %32 = arith.addf %30, %31 : vector<16x64xf32>
    %cst_21 = arith.constant 0.000000e+00 : f32
    %33 = vector.broadcast %cst_21 : f32 to vector<16x64xf32>
    %34 = arith.cmpf ogt, %32, %33 : vector<16x64xf32>
    %cst_22 = arith.constant 2.000000e-01 : f32
    %35 = vector.broadcast %cst_22 : f32 to vector<16x64xf32>
    %36 = arith.mulf %35, %32 : vector<16x64xf32>
    %37 = arith.select %34, %32, %36 : vector<16x64xi1>, vector<16x64xf32>
    %c0_23 = arith.constant 0 : index
    %c0_24 = arith.constant 0 : index
    %38 = vector.load %arg11[%c0_23, %c0_24] : memref<1x32xf32, #tpu.memory_space<vmem>>, vector<1x32xf32>
    %39 = arith.truncf %37 : vector<16x64xf32> to vector<16x64xbf16>
    %c0_25 = arith.constant 0 : index
    %c0_26 = arith.constant 0 : index
    %40 = vector.load %arg10[%c0_25, %c0_26] : memref<64x32xbf16, #tpu.memory_space<vmem>>, vector<64x32xbf16>
    %cst_27 = arith.constant dense<0.000000e+00> : vector<16x32xf32>
    %41 = tpu.matmul %39, %40, %cst_27 {dimension_numbers = #tpu.dot_dimension_numbers<[1], [0], [0], [1], [0, 0, 1, 1], [], []>} : vector<16x64xbf16>, vector<64x32xbf16>, vector<16x32xf32> -> vector<16x32xf32>
    %42 = vector.broadcast %38 : vector<1x32xf32> to vector<16x32xf32>
    %43 = arith.addf %41, %42 : vector<16x32xf32>
    %cst_28 = arith.constant 0.000000e+00 : f32
    %44 = vector.broadcast %cst_28 : f32 to vector<16x32xf32>
    %45 = arith.cmpf ogt, %43, %44 : vector<16x32xf32>
    %cst_29 = arith.constant 2.000000e-01 : f32
    %46 = vector.broadcast %cst_29 : f32 to vector<16x32xf32>
    %47 = arith.mulf %46, %43 : vector<16x32xf32>
    %48 = arith.select %45, %43, %47 : vector<16x32xi1>, vector<16x32xf32>
    %c0_30 = arith.constant 0 : index
    %c0_31 = arith.constant 0 : index
    %49 = vector.load %arg13[%c0_30, %c0_31] : memref<1x64xf32, #tpu.memory_space<vmem>>, vector<1x64xf32>
    %50 = arith.truncf %48 : vector<16x32xf32> to vector<16x32xbf16>
    %c0_32 = arith.constant 0 : index
    %c0_33 = arith.constant 0 : index
    %51 = vector.load %arg12[%c0_32, %c0_33] : memref<32x64xbf16, #tpu.memory_space<vmem>>, vector<32x64xbf16>
    %cst_34 = arith.constant dense<0.000000e+00> : vector<16x64xf32>
    %52 = tpu.matmul %50, %51, %cst_34 {dimension_numbers = #tpu.dot_dimension_numbers<[1], [0], [0], [1], [0, 0, 1, 1], [], []>} : vector<16x32xbf16>, vector<32x64xbf16>, vector<16x64xf32> -> vector<16x64xf32>
    %53 = vector.broadcast %49 : vector<1x64xf32> to vector<16x64xf32>
    %54 = arith.addf %52, %53 : vector<16x64xf32>
    %c0_35 = arith.constant 0 : index
    %c0_36 = arith.constant 0 : index
    %55 = vector.load %arg14[%c0_35, %c0_36] : memref<16x64xf32, #tpu.memory_space<vmem>>, vector<16x64xf32>
    tpu.vector_store %arg14[%c0_35, %c0_36], %54 {strides = array<i32>} : memref<16x64xf32, #tpu.memory_space<vmem>>, vector<16x64xf32>,
    return
  }
  func.func @transform_0(%arg0: i32) -> (i32, i32) {
    %c0_i32 = arith.constant 0 : i32
    %c0_i32_0 = arith.constant 0 : i32
    return %arg0, %c0_i32 : i32, i32
  }
  func.func @transform_1(%arg0: i32) -> (i32, i32) {
    %c0_i32 = arith.constant 0 : i32
    %c0_i32_0 = arith.constant 0 : i32
    return %arg0, %c0_i32 : i32, i32
  }
  func.func @transform_2(%arg0: i32) -> (i32, i32) {
    %c0_i32 = arith.constant 0 : i32
    %c0_i32_0 = arith.constant 0 : i32
    return %arg0, %c0_i32 : i32, i32
  }
  func.func @transform_3(%arg0: i32) -> (i32, i32) {
    %c0_i32 = arith.constant 0 : i32
    %c0_i32_0 = arith.constant 0 : i32
    %c0_i32_1 = arith.constant 0 : i32
    return %c0_i32, %c0_i32_0 : i32, i32
  }
  func.func @transform_4(%arg0: i32) -> (i32, i32) {
    %c0_i32 = arith.constant 0 : i32
    %c0_i32_0 = arith.constant 0 : i32
    %c0_i32_1 = arith.constant 0 : i32
    return %c0_i32, %c0_i32_0 : i32, i32
  }
  func.func @transform_5(%arg0: i32) -> (i32, i32) {
    %c0_i32 = arith.constant 0 : i32
    %c0_i32_0 = arith.constant 0 : i32
    %c0_i32_1 = arith.constant 0 : i32
    return %c0_i32, %c0_i32_0 : i32, i32
  }
  func.func @transform_6(%arg0: i32) -> (i32, i32) {
    %c0_i32 = arith.constant 0 : i32
    %c0_i32_0 = arith.constant 0 : i32
    %c0_i32_1 = arith.constant 0 : i32
    return %c0_i32, %c0_i32_0 : i32, i32
  }
  func.func @transform_7(%arg0: i32) -> (i32, i32) {
    %c0_i32 = arith.constant 0 : i32
    %c0_i32_0 = arith.constant 0 : i32
    %c0_i32_1 = arith.constant 0 : i32
    return %c0_i32, %c0_i32_0 : i32, i32
  }
  func.func @transform_8(%arg0: i32) -> (i32, i32) {
    %c0_i32 = arith.constant 0 : i32
    %c0_i32_0 = arith.constant 0 : i32
    %c0_i32_1 = arith.constant 0 : i32
    return %c0_i32, %c0_i32_0 : i32, i32
  }
  func.func @transform_9(%arg0: i32) -> (i32, i32) {
    %c0_i32 = arith.constant 0 : i32
    %c0_i32_0 = arith.constant 0 : i32
    %c0_i32_1 = arith.constant 0 : i32
    return %c0_i32, %c0_i32_0 : i32, i32
  }
  func.func @transform_10(%arg0: i32) -> (i32, i32) {
    %c0_i32 = arith.constant 0 : i32
    %c0_i32_0 = arith.constant 0 : i32
    %c0_i32_1 = arith.constant 0 : i32
    return %c0_i32, %c0_i32_0 : i32, i32
  }
  func.func @transform_11(%arg0: i32) -> (i32, i32) {
    %c0_i32 = arith.constant 0 : i32
    %c0_i32_0 = arith.constant 0 : i32
    %c0_i32_1 = arith.constant 0 : i32
    return %c0_i32, %c0_i32_0 : i32, i32
  }
  func.func @transform_12(%arg0: i32) -> (i32, i32) {
    %c0_i32 = arith.constant 0 : i32
    %c0_i32_0 = arith.constant 0 : i32
    %c0_i32_1 = arith.constant 0 : i32
    return %c0_i32, %c0_i32_0 : i32, i32
  }
  func.func @transform_13(%arg0: i32) -> (i32, i32) {
    %c0_i32 = arith.constant 0 : i32
    %c0_i32_0 = arith.constant 0 : i32
    return %arg0, %c0_i32 : i32, i32
  }
}

module attributes {stable_mosaic.version = 11 : i64} {
  func.func @_mlp_kernel(%arg0: i32, %arg1: memref<8x64xbf16, #tpu.memory_space<vmem>>, %arg2: memref<64x128xbf16, #tpu.memory_space<vmem>>, %arg3: memref<1x128xf32, #tpu.memory_space<vmem>>, %arg4: memref<128x64xbf16, #tpu.memory_space<vmem>>, %arg5: memref<1x64xf32, #tpu.memory_space<vmem>>, %arg6: memref<64x64xbf16, #tpu.memory_space<vmem>>, %arg7: memref<1x64xf32, #tpu.memory_space<vmem>>, %arg8: memref<8x64xf32, #tpu.memory_space<vmem>>) attributes {dimension_semantics = [#tpu.dimension_semantics<parallel>], iteration_bounds = array<i64: 2>, scalar_prefetch = 0 : i64, scratch_operands = 0 : i64, tpu.core_type = #tpu.core_type<tc>, window_params = [{transform_indices = @transform_0, window_bounds = array<i64: 8, 64>}, {pipeline_mode = #tpu.pipeline_mode<synchronous>, transform_indices = @transform_1, window_bounds = array<i64: 64, 128>}, {pipeline_mode = #tpu.pipeline_mode<synchronous>, transform_indices = @transform_2, window_bounds = array<i64: 1, 128>}, {pipeline_mode = #tpu.pipeline_mode<synchronous>, transform_indices = @transform_3, window_bounds = array<i64: 128, 64>}, {pipeline_mode = #tpu.pipeline_mode<synchronous>, transform_indices = @transform_4, window_bounds = array<i64: 1, 64>}, {pipeline_mode = #tpu.pipeline_mode<synchronous>, transform_indices = @transform_5, window_bounds = array<i64: 64, 64>}, {pipeline_mode = #tpu.pipeline_mode<synchronous>, transform_indices = @transform_6, window_bounds = array<i64: 1, 64>}, {transform_indices = @transform_7, window_bounds = array<i64: 8, 64>}]} {
    %c0 = arith.constant 0 : index
    %c0_0 = arith.constant 0 : index
    %0 = vector.load %arg1[%c0, %c0_0] : memref<8x64xbf16, #tpu.memory_space<vmem>>, vector<8x64xbf16>
    %c0_1 = arith.constant 0 : index
    %c0_2 = arith.constant 0 : index
    %1 = vector.load %arg3[%c0_1, %c0_2] : memref<1x128xf32, #tpu.memory_space<vmem>>, vector<1x128xf32>
    %2 = arith.extf %0 : vector<8x64xbf16> to vector<8x64xf32>
    %3 = arith.truncf %2 : vector<8x64xf32> to vector<8x64xbf16>
    %c0_3 = arith.constant 0 : index
    %c0_4 = arith.constant 0 : index
    %4 = vector.load %arg2[%c0_3, %c0_4] : memref<64x128xbf16, #tpu.memory_space<vmem>>, vector<64x128xbf16>
    %cst = arith.constant dense<0.000000e+00> : vector<8x128xf32>
    %5 = tpu.matmul %3, %4, %cst {dimension_numbers = #tpu.dot_dimension_numbers<[1], [0], [0], [1], [0, 0, 1, 1], [], []>} : vector<8x64xbf16>, vector<64x128xbf16>, vector<8x128xf32> -> vector<8x128xf32>
    %6 = vector.broadcast %1 : vector<1x128xf32> to vector<8x128xf32>
    %7 = arith.addf %6, %5 : vector<8x128xf32>
    %cst_5 = arith.constant 0.000000e+00 : f32
    %8 = vector.broadcast %cst_5 : f32 to vector<8x128xf32>
    %9 = arith.cmpf ogt, %7, %8 : vector<8x128xf32>
    %cst_6 = arith.constant 2.000000e-01 : f32
    %10 = vector.broadcast %cst_6 : f32 to vector<8x128xf32>
    %11 = arith.mulf %10, %7 : vector<8x128xf32>
    %12 = arith.select %9, %7, %11 : vector<8x128xi1>, vector<8x128xf32>
    %c0_7 = arith.constant 0 : index
    %c0_8 = arith.constant 0 : index
    %13 = vector.load %arg5[%c0_7, %c0_8] : memref<1x64xf32, #tpu.memory_space<vmem>>, vector<1x64xf32>
    %14 = arith.truncf %12 : vector<8x128xf32> to vector<8x128xbf16>
    %c0_9 = arith.constant 0 : index
    %c0_10 = arith.constant 0 : index
    %15 = vector.load %arg4[%c0_9, %c0_10] : memref<128x64xbf16, #tpu.memory_space<vmem>>, vector<128x64xbf16>
    %cst_11 = arith.constant dense<0.000000e+00> : vector<8x64xf32>
    %16 = tpu.matmul %14, %15, %cst_11 {dimension_numbers = #tpu.dot_dimension_numbers<[1], [0], [0], [1], [0, 0, 1, 1], [], []>} : vector<8x128xbf16>, vector<128x64xbf16>, vector<8x64xf32> -> vector<8x64xf32>
    %17 = vector.broadcast %13 : vector<1x64xf32> to vector<8x64xf32>
    %18 = arith.addf %16, %17 : vector<8x64xf32>
    %cst_12 = arith.constant 0.000000e+00 : f32
    %19 = vector.broadcast %cst_12 : f32 to vector<8x64xf32>
    %20 = arith.cmpf ogt, %18, %19 : vector<8x64xf32>
    %cst_13 = arith.constant 2.000000e-01 : f32
    %21 = vector.broadcast %cst_13 : f32 to vector<8x64xf32>
    %22 = arith.mulf %21, %18 : vector<8x64xf32>
    %23 = arith.select %20, %18, %22 : vector<8x64xi1>, vector<8x64xf32>
    %c0_14 = arith.constant 0 : index
    %c0_15 = arith.constant 0 : index
    %24 = vector.load %arg7[%c0_14, %c0_15] : memref<1x64xf32, #tpu.memory_space<vmem>>, vector<1x64xf32>
    %25 = arith.truncf %23 : vector<8x64xf32> to vector<8x64xbf16>
    %c0_16 = arith.constant 0 : index
    %c0_17 = arith.constant 0 : index
    %26 = vector.load %arg6[%c0_16, %c0_17] : memref<64x64xbf16, #tpu.memory_space<vmem>>, vector<64x64xbf16>
    %cst_18 = arith.constant dense<0.000000e+00> : vector<8x64xf32>
    %27 = tpu.matmul %25, %26, %cst_18 {dimension_numbers = #tpu.dot_dimension_numbers<[1], [0], [0], [1], [0, 0, 1, 1], [], []>} : vector<8x64xbf16>, vector<64x64xbf16>, vector<8x64xf32> -> vector<8x64xf32>
    %28 = vector.broadcast %24 : vector<1x64xf32> to vector<8x64xf32>
    %29 = arith.addf %27, %28 : vector<8x64xf32>
    %c0_19 = arith.constant 0 : index
    %c0_20 = arith.constant 0 : index
    %30 = vector.load %arg8[%c0_19, %c0_20] : memref<8x64xf32, #tpu.memory_space<vmem>>, vector<8x64xf32>
    tpu.vector_store %arg8[%c0_19, %c0_20], %29 {strides = array<i32>} : memref<8x64xf32, #tpu.memory_space<vmem>>, vector<8x64xf32>,
    return
  }
  func.func @transform_0(%arg0: i32) -> (i32, i32) {
    %c0_i32 = arith.constant 0 : i32
    %c0_i32_0 = arith.constant 0 : i32
    return %arg0, %c0_i32 : i32, i32
  }
  func.func @transform_1(%arg0: i32) -> (i32, i32) {
    %c0_i32 = arith.constant 0 : i32
    %c0_i32_0 = arith.constant 0 : i32
    %c0_i32_1 = arith.constant 0 : i32
    return %c0_i32, %c0_i32_0 : i32, i32
  }
  func.func @transform_2(%arg0: i32) -> (i32, i32) {
    %c0_i32 = arith.constant 0 : i32
    %c0_i32_0 = arith.constant 0 : i32
    %c0_i32_1 = arith.constant 0 : i32
    return %c0_i32, %c0_i32_0 : i32, i32
  }
  func.func @transform_3(%arg0: i32) -> (i32, i32) {
    %c0_i32 = arith.constant 0 : i32
    %c0_i32_0 = arith.constant 0 : i32
    %c0_i32_1 = arith.constant 0 : i32
    return %c0_i32, %c0_i32_0 : i32, i32
  }
  func.func @transform_4(%arg0: i32) -> (i32, i32) {
    %c0_i32 = arith.constant 0 : i32
    %c0_i32_0 = arith.constant 0 : i32
    %c0_i32_1 = arith.constant 0 : i32
    return %c0_i32, %c0_i32_0 : i32, i32
  }
  func.func @transform_5(%arg0: i32) -> (i32, i32) {
    %c0_i32 = arith.constant 0 : i32
    %c0_i32_0 = arith.constant 0 : i32
    %c0_i32_1 = arith.constant 0 : i32
    return %c0_i32, %c0_i32_0 : i32, i32
  }
  func.func @transform_6(%arg0: i32) -> (i32, i32) {
    %c0_i32 = arith.constant 0 : i32
    %c0_i32_0 = arith.constant 0 : i32
    %c0_i32_1 = arith.constant 0 : i32
    return %c0_i32, %c0_i32_0 : i32, i32
  }
  func.func @transform_7(%arg0: i32) -> (i32, i32) {
    %c0_i32 = arith.constant 0 : i32
    %c0_i32_0 = arith.constant 0 : i32
    return %arg0, %c0_i32 : i32, i32
  }
}

module attributes {stable_mosaic.version = 11 : i64} {
  func.func @_mlp_kernel(%arg0: i32, %arg1: memref<8x64xbf16, #tpu.memory_space<vmem>>, %arg2: memref<8x64xbf16, #tpu.memory_space<vmem>>, %arg3: memref<64x256xbf16, #tpu.memory_space<vmem>>, %arg4: memref<64x256xbf16, #tpu.memory_space<vmem>>, %arg5: memref<64x256xbf16, #tpu.memory_space<vmem>>, %arg6: memref<64x256xbf16, #tpu.memory_space<vmem>>, %arg7: memref<1x256xf32, #tpu.memory_space<vmem>>, %arg8: memref<256x128xbf16, #tpu.memory_space<vmem>>, %arg9: memref<1x128xf32, #tpu.memory_space<vmem>>, %arg10: memref<8x128xf32, #tpu.memory_space<vmem>>) attributes {dimension_semantics = [#tpu.dimension_semantics<parallel>], iteration_bounds = array<i64: 2>, scalar_prefetch = 0 : i64, scratch_operands = 0 : i64, tpu.core_type = #tpu.core_type<tc>, window_params = [{transform_indices = @transform_0, window_bounds = array<i64: 8, 64>}, {transform_indices = @transform_1, window_bounds = array<i64: 8, 64>}, {pipeline_mode = #tpu.pipeline_mode<synchronous>, transform_indices = @transform_2, window_bounds = array<i64: 64, 256>}, {pipeline_mode = #tpu.pipeline_mode<synchronous>, transform_indices = @transform_3, window_bounds = array<i64: 64, 256>}, {pipeline_mode = #tpu.pipeline_mode<synchronous>, transform_indices = @transform_4, window_bounds = array<i64: 64, 256>}, {pipeline_mode = #tpu.pipeline_mode<synchronous>, transform_indices = @transform_5, window_bounds = array<i64: 64, 256>}, {pipeline_mode = #tpu.pipeline_mode<synchronous>, transform_indices = @transform_6, window_bounds = array<i64: 1, 256>}, {pipeline_mode = #tpu.pipeline_mode<synchronous>, transform_indices = @transform_7, window_bounds = array<i64: 256, 128>}, {pipeline_mode = #tpu.pipeline_mode<synchronous>, transform_indices = @transform_8, window_bounds = array<i64: 1, 128>}, {transform_indices = @transform_9, window_bounds = array<i64: 8, 128>}]} {
    %c0 = arith.constant 0 : index
    %c0_0 = arith.constant 0 : index
    %0 = vector.load %arg1[%c0, %c0_0] : memref<8x64xbf16, #tpu.memory_space<vmem>>, vector<8x64xbf16>
    %c0_1 = arith.constant 0 : index
    %c0_2 = arith.constant 0 : index
    %1 = vector.load %arg2[%c0_1, %c0_2] : memref<8x64xbf16, #tpu.memory_space<vmem>>, vector<8x64xbf16>
    %c0_3 = arith.constant 0 : index
    %c0_4 = arith.constant 0 : index
    %2 = vector.load %arg7[%c0_3, %c0_4] : memref<1x256xf32, #tpu.memory_space<vmem>>, vector<1x256xf32>
    %3 = arith.extf %0 : vector<8x64xbf16> to vector<8x64xf32>
    %4 = arith.truncf %3 : vector<8x64xf32> to vector<8x64xbf16>
    %c0_5 = arith.constant 0 : index
    %c0_6 = arith.constant 0 : index
    %5 = vector.load %arg3[%c0_5, %c0_6] : memref<64x256xbf16, #tpu.memory_space<vmem>>, vector<64x256xbf16>
    %cst = arith.constant dense<0.000000e+00> : vector<8x256xf32>
    %6 = tpu.matmul %4, %5, %cst {dimension_numbers = #tpu.dot_dimension_numbers<[1], [0], [0], [1], [0, 0, 1, 1], [], []>} : vector<8x64xbf16>, vector<64x256xbf16>, vector<8x256xf32> -> vector<8x256xf32>
    %7 = vector.broadcast %2 : vector<1x256xf32> to vector<8x256xf32>
    %8 = arith.addf %7, %6 : vector<8x256xf32>
    %9 = arith.extf %1 : vector<8x64xbf16> to vector<8x64xf32>
    %10 = arith.truncf %9 : vector<8x64xf32> to vector<8x64xbf16>
    %c0_7 = arith.constant 0 : index
    %c0_8 = arith.constant 0 : index
    %11 = vector.load %arg4[%c0_7, %c0_8] : memref<64x256xbf16, #tpu.memory_space<vmem>>, vector<64x256xbf16>
    %cst_9 = arith.constant dense<0.000000e+00> : vector<8x256xf32>
    %12 = tpu.matmul %10, %11, %cst_9 {dimension_numbers = #tpu.dot_dimension_numbers<[1], [0], [0], [1], [0, 0, 1, 1], [], []>} : vector<8x64xbf16>, vector<64x256xbf16>, vector<8x256xf32> -> vector<8x256xf32>
    %13 = arith.addf %8, %12 : vector<8x256xf32>
    %14 = arith.extf %0 : vector<8x64xbf16> to vector<8x64xf32>
    %15 = arith.mulf %14, %14 : vector<8x64xf32>
    %16 = arith.truncf %15 : vector<8x64xf32> to vector<8x64xbf16>
    %c0_10 = arith.constant 0 : index
    %c0_11 = arith.constant 0 : index
    %17 = vector.load %arg5[%c0_10, %c0_11] : memref<64x256xbf16, #tpu.memory_space<vmem>>, vector<64x256xbf16>
    %cst_12 = arith.constant dense<0.000000e+00> : vector<8x256xf32>
    %18 = tpu.matmul %16, %17, %cst_12 {dimension_numbers = #tpu.dot_dimension_numbers<[1], [0], [0], [1], [0, 0, 1, 1], [], []>} : vector<8x64xbf16>, vector<64x256xbf16>, vector<8x256xf32> -> vector<8x256xf32>
    %19 = arith.addf %13, %18 : vector<8x256xf32>
    %20 = arith.extf %1 : vector<8x64xbf16> to vector<8x64xf32>
    %21 = arith.mulf %20, %20 : vector<8x64xf32>
    %22 = arith.truncf %21 : vector<8x64xf32> to vector<8x64xbf16>
    %c0_13 = arith.constant 0 : index
    %c0_14 = arith.constant 0 : index
    %23 = vector.load %arg6[%c0_13, %c0_14] : memref<64x256xbf16, #tpu.memory_space<vmem>>, vector<64x256xbf16>
    %cst_15 = arith.constant dense<0.000000e+00> : vector<8x256xf32>
    %24 = tpu.matmul %22, %23, %cst_15 {dimension_numbers = #tpu.dot_dimension_numbers<[1], [0], [0], [1], [0, 0, 1, 1], [], []>} : vector<8x64xbf16>, vector<64x256xbf16>, vector<8x256xf32> -> vector<8x256xf32>
    %25 = arith.addf %19, %24 : vector<8x256xf32>
    %cst_16 = arith.constant 0.000000e+00 : f32
    %26 = vector.broadcast %cst_16 : f32 to vector<8x256xf32>
    %27 = arith.cmpf ogt, %25, %26 : vector<8x256xf32>
    %cst_17 = arith.constant 2.000000e-01 : f32
    %28 = vector.broadcast %cst_17 : f32 to vector<8x256xf32>
    %29 = arith.mulf %28, %25 : vector<8x256xf32>
    %30 = arith.select %27, %25, %29 : vector<8x256xi1>, vector<8x256xf32>
    %c0_18 = arith.constant 0 : index
    %c0_19 = arith.constant 0 : index
    %31 = vector.load %arg9[%c0_18, %c0_19] : memref<1x128xf32, #tpu.memory_space<vmem>>, vector<1x128xf32>
    %32 = arith.truncf %30 : vector<8x256xf32> to vector<8x256xbf16>
    %c0_20 = arith.constant 0 : index
    %c0_21 = arith.constant 0 : index
    %33 = vector.load %arg8[%c0_20, %c0_21] : memref<256x128xbf16, #tpu.memory_space<vmem>>, vector<256x128xbf16>
    %cst_22 = arith.constant dense<0.000000e+00> : vector<8x128xf32>
    %34 = tpu.matmul %32, %33, %cst_22 {dimension_numbers = #tpu.dot_dimension_numbers<[1], [0], [0], [1], [0, 0, 1, 1], [], []>} : vector<8x256xbf16>, vector<256x128xbf16>, vector<8x128xf32> -> vector<8x128xf32>
    %35 = vector.broadcast %31 : vector<1x128xf32> to vector<8x128xf32>
    %36 = arith.addf %34, %35 : vector<8x128xf32>
    %c0_23 = arith.constant 0 : index
    %c0_24 = arith.constant 0 : index
    %37 = vector.load %arg10[%c0_23, %c0_24] : memref<8x128xf32, #tpu.memory_space<vmem>>, vector<8x128xf32>
    tpu.vector_store %arg10[%c0_23, %c0_24], %36 {strides = array<i32>} : memref<8x128xf32, #tpu.memory_space<vmem>>, vector<8x128xf32>,
    return
  }
  func.func @transform_0(%arg0: i32) -> (i32, i32) {
    %c0_i32 = arith.constant 0 : i32
    %c0_i32_0 = arith.constant 0 : i32
    return %arg0, %c0_i32 : i32, i32
  }
  func.func @transform_1(%arg0: i32) -> (i32, i32) {
    %c0_i32 = arith.constant 0 : i32
    %c0_i32_0 = arith.constant 0 : i32
    return %arg0, %c0_i32 : i32, i32
  }
  func.func @transform_2(%arg0: i32) -> (i32, i32) {
    %c0_i32 = arith.constant 0 : i32
    %c0_i32_0 = arith.constant 0 : i32
    %c0_i32_1 = arith.constant 0 : i32
    return %c0_i32, %c0_i32_0 : i32, i32
  }
  func.func @transform_3(%arg0: i32) -> (i32, i32) {
    %c0_i32 = arith.constant 0 : i32
    %c0_i32_0 = arith.constant 0 : i32
    %c0_i32_1 = arith.constant 0 : i32
    return %c0_i32, %c0_i32_0 : i32, i32
  }
  func.func @transform_4(%arg0: i32) -> (i32, i32) {
    %c0_i32 = arith.constant 0 : i32
    %c0_i32_0 = arith.constant 0 : i32
    %c0_i32_1 = arith.constant 0 : i32
    return %c0_i32, %c0_i32_0 : i32, i32
  }
  func.func @transform_5(%arg0: i32) -> (i32, i32) {
    %c0_i32 = arith.constant 0 : i32
    %c0_i32_0 = arith.constant 0 : i32
    %c0_i32_1 = arith.constant 0 : i32
    return %c0_i32, %c0_i32_0 : i32, i32
  }
  func.func @transform_6(%arg0: i32) -> (i32, i32) {
    %c0_i32 = arith.constant 0 : i32
    %c0_i32_0 = arith.constant 0 : i32
    %c0_i32_1 = arith.constant 0 : i32
    return %c0_i32, %c0_i32_0 : i32, i32
  }
  func.func @transform_7(%arg0: i32) -> (i32, i32) {
    %c0_i32 = arith.constant 0 : i32
    %c0_i32_0 = arith.constant 0 : i32
    %c0_i32_1 = arith.constant 0 : i32
    return %c0_i32, %c0_i32_0 : i32, i32
  }
  func.func @transform_8(%arg0: i32) -> (i32, i32) {
    %c0_i32 = arith.constant 0 : i32
    %c0_i32_0 = arith.constant 0 : i32
    %c0_i32_1 = arith.constant 0 : i32
    return %c0_i32, %c0_i32_0 : i32, i32
  }
  func.func @transform_9(%arg0: i32) -> (i32, i32) {
    %c0_i32 = arith.constant 0 : i32
    %c0_i32_0 = arith.constant 0 : i32
    return %arg0, %c0_i32 : i32, i32
  }
}

module attributes {stable_mosaic.version = 11 : i64} {
  func.func @_mlp_kernel(%arg0: i32, %arg1: memref<16x1xbf16, #tpu.memory_space<vmem>>, %arg2: memref<16x128xbf16, #tpu.memory_space<vmem>>, %arg3: memref<16x128xbf16, #tpu.memory_space<vmem>>, %arg4: memref<1x128xbf16, #tpu.memory_space<vmem>>, %arg5: memref<128x128xbf16, #tpu.memory_space<vmem>>, %arg6: memref<128x128xbf16, #tpu.memory_space<vmem>>, %arg7: memref<1x128xf32, #tpu.memory_space<vmem>>, %arg8: memref<128x64xbf16, #tpu.memory_space<vmem>>, %arg9: memref<1x64xf32, #tpu.memory_space<vmem>>, %arg10: memref<64x32xbf16, #tpu.memory_space<vmem>>, %arg11: memref<1x32xf32, #tpu.memory_space<vmem>>, %arg12: memref<32x64xbf16, #tpu.memory_space<vmem>>, %arg13: memref<1x64xf32, #tpu.memory_space<vmem>>, %arg14: memref<16x64xf32, #tpu.memory_space<vmem>>) attributes {dimension_semantics = [#tpu.dimension_semantics<parallel>], iteration_bounds = array<i64: 2>, scalar_prefetch = 0 : i64, scratch_operands = 0 : i64, tpu.core_type = #tpu.core_type<tc>, window_params = [{transform_indices = @transform_0, window_bounds = array<i64: 16, 1>}, {transform_indices = @transform_1, window_bounds = array<i64: 16, 128>}, {transform_indices = @transform_2, window_bounds = array<i64: 16, 128>}, {pipeline_mode = #tpu.pipeline_mode<synchronous>, transform_indices = @transform_3, window_bounds = array<i64: 1, 128>}, {pipeline_mode = #tpu.pipeline_mode<synchronous>, transform_indices = @transform_4, window_bounds = array<i64: 128, 128>}, {pipeline_mode = #tpu.pipeline_mode<synchronous>, transform_indices = @transform_5, window_bounds = array<i64: 128, 128>}, {pipeline_mode = #tpu.pipeline_mode<synchronous>, transform_indices = @transform_6, window_bounds = array<i64: 1, 128>}, {pipeline_mode = #tpu.pipeline_mode<synchronous>, transform_indices = @transform_7, window_bounds = array<i64: 128, 64>}, {pipeline_mode = #tpu.pipeline_mode<synchronous>, transform_indices = @transform_8, window_bounds = array<i64: 1, 64>}, {pipeline_mode = #tpu.pipeline_mode<synchronous>, transform_indices = @transform_9, window_bounds = array<i64: 64, 32>}, {pipeline_mode = #tpu.pipeline_mode<synchronous>, transform_indices = @transform_10, window_bounds = array<i64: 1, 32>}, {pipeline_mode = #tpu.pipeline_mode<synchronous>, transform_indices = @transform_11, window_bounds = array<i64: 32, 64>}, {pipeline_mode = #tpu.pipeline_mode<synchronous>, transform_indices = @transform_12, window_bounds = array<i64: 1, 64>}, {transform_indices = @transform_13, window_bounds = array<i64: 16, 64>}]} {
    %c0 = arith.constant 0 : index
    %c0_0 = arith.constant 0 : index
    %0 = vector.load %arg1[%c0, %c0_0] : memref<16x1xbf16, #tpu.memory_space<vmem>>, vector<16x1xbf16>
    %c0_1 = arith.constant 0 : index
    %c0_2 = arith.constant 0 : index
    %1 = vector.load %arg2[%c0_1, %c0_2] : memref<16x128xbf16, #tpu.memory_space<vmem>>, vector<16x128xbf16>
    %c0_3 = arith.constant 0 : index
    %c0_4 = arith.constant 0 : index
    %2 = vector.load %arg3[%c0_3, %c0_4] : memref<16x128xbf16, #tpu.memory_space<vmem>>, vector<16x128xbf16>
    %c0_5 = arith.constant 0 : index
    %c0_6 = arith.constant 0 : index
    %3 = vector.load %arg7[%c0_5, %c0_6] : memref<1x128xf32, #tpu.memory_space<vmem>>, vector<1x128xf32>
    %4 = arith.extf %0 : vector<16x1xbf16> to vector<16x1xf32>
    %c0_7 = arith.constant 0 : index
    %c0_8 = arith.constant 0 : index
    %5 = vector.load %arg4[%c0_7, %c0_8] : memref<1x128xbf16, #tpu.memory_space<vmem>>, vector<1x128xbf16>
    %6 = arith.extf %5 : vector<1x128xbf16> to vector<1x128xf32>
    %7 = vector.broadcast %4 : vector<16x1xf32> to vector<16x128xf32>
    %8 = vector.broadcast %6 : vector<1x128xf32> to vector<16x128xf32>
    %9 = arith.mulf %7, %8 : vector<16x128xf32>
    %10 = vector.broadcast %3 : vector<1x128xf32> to vector<16x128xf32>
    %11 = arith.addf %10, %9 : vector<16x128xf32>
    %12 = arith.extf %1 : vector<16x128xbf16> to vector<16x128xf32>
    %13 = arith.truncf %12 : vector<16x128xf32> to vector<16x128xbf16>
    %c0_9 = arith.constant 0 : index
    %c0_10 = arith.constant 0 : index
    %14 = vector.load %arg5[%c0_9, %c0_10] : memref<128x128xbf16, #tpu.memory_space<vmem>>, vector<128x128xbf16>
    %cst = arith.constant dense<0.000000e+00> : vector<16x128xf32>
    %15 = tpu.matmul %13, %14, %cst {dimension_numbers = #tpu.dot_dimension_numbers<[1], [0], [0], [1], [0, 0, 1, 1], [], []>} : vector<16x128xbf16>, vector<128x128xbf16>, vector<16x128xf32> -> vector<16x128xf32>
    %16 = arith.addf %11, %15 : vector<16x128xf32>
    %17 = arith.extf %2 : vector<16x128xbf16> to vector<16x128xf32>
    %18 = arith.truncf %17 : vector<16x128xf32> to vector<16x128xbf16>
    %c0_11 = arith.constant 0 : index
    %c0_12 = arith.constant 0 : index
    %19 = vector.load %arg6[%c0_11, %c0_12] : memref<128x128xbf16, #tpu.memory_space<vmem>>, vector<128x128xbf16>
    %cst_13 = arith.constant dense<0.000000e+00> : vector<16x128xf32>
    %20 = tpu.matmul %18, %19, %cst_13 {dimension_numbers = #tpu.dot_dimension_numbers<[1], [0], [0], [1], [0, 0, 1, 1], [], []>} : vector<16x128xbf16>, vector<128x128xbf16>, vector<16x128xf32> -> vector<16x128xf32>
    %21 = arith.addf %16, %20 : vector<16x128xf32>
    %cst_14 = arith.constant 0.000000e+00 : f32
    %22 = vector.broadcast %cst_14 : f32 to vector<16x128xf32>
    %23 = arith.cmpf ogt, %21, %22 : vector<16x128xf32>
    %cst_15 = arith.constant 2.000000e-01 : f32
    %24 = vector.broadcast %cst_15 : f32 to vector<16x128xf32>
    %25 = arith.mulf %24, %21 : vector<16x128xf32>
    %26 = arith.select %23, %21, %25 : vector<16x128xi1>, vector<16x128xf32>
    %c0_16 = arith.constant 0 : index
    %c0_17 = arith.constant 0 : index
    %27 = vector.load %arg9[%c0_16, %c0_17] : memref<1x64xf32, #tpu.memory_space<vmem>>, vector<1x64xf32>
    %28 = arith.truncf %26 : vector<16x128xf32> to vector<16x128xbf16>
    %c0_18 = arith.constant 0 : index
    %c0_19 = arith.constant 0 : index
    %29 = vector.load %arg8[%c0_18, %c0_19] : memref<128x64xbf16, #tpu.memory_space<vmem>>, vector<128x64xbf16>
    %cst_20 = arith.constant dense<0.000000e+00> : vector<16x64xf32>
    %30 = tpu.matmul %28, %29, %cst_20 {dimension_numbers = #tpu.dot_dimension_numbers<[1], [0], [0], [1], [0, 0, 1, 1], [], []>} : vector<16x128xbf16>, vector<128x64xbf16>, vector<16x64xf32> -> vector<16x64xf32>
    %31 = vector.broadcast %27 : vector<1x64xf32> to vector<16x64xf32>
    %32 = arith.addf %30, %31 : vector<16x64xf32>
    %cst_21 = arith.constant 0.000000e+00 : f32
    %33 = vector.broadcast %cst_21 : f32 to vector<16x64xf32>
    %34 = arith.cmpf ogt, %32, %33 : vector<16x64xf32>
    %cst_22 = arith.constant 2.000000e-01 : f32
    %35 = vector.broadcast %cst_22 : f32 to vector<16x64xf32>
    %36 = arith.mulf %35, %32 : vector<16x64xf32>
    %37 = arith.select %34, %32, %36 : vector<16x64xi1>, vector<16x64xf32>
    %c0_23 = arith.constant 0 : index
    %c0_24 = arith.constant 0 : index
    %38 = vector.load %arg11[%c0_23, %c0_24] : memref<1x32xf32, #tpu.memory_space<vmem>>, vector<1x32xf32>
    %39 = arith.truncf %37 : vector<16x64xf32> to vector<16x64xbf16>
    %c0_25 = arith.constant 0 : index
    %c0_26 = arith.constant 0 : index
    %40 = vector.load %arg10[%c0_25, %c0_26] : memref<64x32xbf16, #tpu.memory_space<vmem>>, vector<64x32xbf16>
    %cst_27 = arith.constant dense<0.000000e+00> : vector<16x32xf32>
    %41 = tpu.matmul %39, %40, %cst_27 {dimension_numbers = #tpu.dot_dimension_numbers<[1], [0], [0], [1], [0, 0, 1, 1], [], []>} : vector<16x64xbf16>, vector<64x32xbf16>, vector<16x32xf32> -> vector<16x32xf32>
    %42 = vector.broadcast %38 : vector<1x32xf32> to vector<16x32xf32>
    %43 = arith.addf %41, %42 : vector<16x32xf32>
    %cst_28 = arith.constant 0.000000e+00 : f32
    %44 = vector.broadcast %cst_28 : f32 to vector<16x32xf32>
    %45 = arith.cmpf ogt, %43, %44 : vector<16x32xf32>
    %cst_29 = arith.constant 2.000000e-01 : f32
    %46 = vector.broadcast %cst_29 : f32 to vector<16x32xf32>
    %47 = arith.mulf %46, %43 : vector<16x32xf32>
    %48 = arith.select %45, %43, %47 : vector<16x32xi1>, vector<16x32xf32>
    %c0_30 = arith.constant 0 : index
    %c0_31 = arith.constant 0 : index
    %49 = vector.load %arg13[%c0_30, %c0_31] : memref<1x64xf32, #tpu.memory_space<vmem>>, vector<1x64xf32>
    %50 = arith.truncf %48 : vector<16x32xf32> to vector<16x32xbf16>
    %c0_32 = arith.constant 0 : index
    %c0_33 = arith.constant 0 : index
    %51 = vector.load %arg12[%c0_32, %c0_33] : memref<32x64xbf16, #tpu.memory_space<vmem>>, vector<32x64xbf16>
    %cst_34 = arith.constant dense<0.000000e+00> : vector<16x64xf32>
    %52 = tpu.matmul %50, %51, %cst_34 {dimension_numbers = #tpu.dot_dimension_numbers<[1], [0], [0], [1], [0, 0, 1, 1], [], []>} : vector<16x32xbf16>, vector<32x64xbf16>, vector<16x64xf32> -> vector<16x64xf32>
    %53 = vector.broadcast %49 : vector<1x64xf32> to vector<16x64xf32>
    %54 = arith.addf %52, %53 : vector<16x64xf32>
    %c0_35 = arith.constant 0 : index
    %c0_36 = arith.constant 0 : index
    %55 = vector.load %arg14[%c0_35, %c0_36] : memref<16x64xf32, #tpu.memory_space<vmem>>, vector<16x64xf32>
    tpu.vector_store %arg14[%c0_35, %c0_36], %54 {strides = array<i32>} : memref<16x64xf32, #tpu.memory_space<vmem>>, vector<16x64xf32>,
    return
  }
  func.func @transform_0(%arg0: i32) -> (i32, i32) {
    %c0_i32 = arith.constant 0 : i32
    %c0_i32_0 = arith.constant 0 : i32
    return %arg0, %c0_i32 : i32, i32
  }
  func.func @transform_1(%arg0: i32) -> (i32, i32) {
    %c0_i32 = arith.constant 0 : i32
    %c0_i32_0 = arith.constant 0 : i32
    return %arg0, %c0_i32 : i32, i32
  }
  func.func @transform_2(%arg0: i32) -> (i32, i32) {
    %c0_i32 = arith.constant 0 : i32
    %c0_i32_0 = arith.constant 0 : i32
    return %arg0, %c0_i32 : i32, i32
  }
  func.func @transform_3(%arg0: i32) -> (i32, i32) {
    %c0_i32 = arith.constant 0 : i32
    %c0_i32_0 = arith.constant 0 : i32
    %c0_i32_1 = arith.constant 0 : i32
    return %c0_i32, %c0_i32_0 : i32, i32
  }
  func.func @transform_4(%arg0: i32) -> (i32, i32) {
    %c0_i32 = arith.constant 0 : i32
    %c0_i32_0 = arith.constant 0 : i32
    %c0_i32_1 = arith.constant 0 : i32
    return %c0_i32, %c0_i32_0 : i32, i32
  }
  func.func @transform_5(%arg0: i32) -> (i32, i32) {
    %c0_i32 = arith.constant 0 : i32
    %c0_i32_0 = arith.constant 0 : i32
    %c0_i32_1 = arith.constant 0 : i32
    return %c0_i32, %c0_i32_0 : i32, i32
  }
  func.func @transform_6(%arg0: i32) -> (i32, i32) {
    %c0_i32 = arith.constant 0 : i32
    %c0_i32_0 = arith.constant 0 : i32
    %c0_i32_1 = arith.constant 0 : i32
    return %c0_i32, %c0_i32_0 : i32, i32
  }
  func.func @transform_7(%arg0: i32) -> (i32, i32) {
    %c0_i32 = arith.constant 0 : i32
    %c0_i32_0 = arith.constant 0 : i32
    %c0_i32_1 = arith.constant 0 : i32
    return %c0_i32, %c0_i32_0 : i32, i32
  }
  func.func @transform_8(%arg0: i32) -> (i32, i32) {
    %c0_i32 = arith.constant 0 : i32
    %c0_i32_0 = arith.constant 0 : i32
    %c0_i32_1 = arith.constant 0 : i32
    return %c0_i32, %c0_i32_0 : i32, i32
  }
  func.func @transform_9(%arg0: i32) -> (i32, i32) {
    %c0_i32 = arith.constant 0 : i32
    %c0_i32_0 = arith.constant 0 : i32
    %c0_i32_1 = arith.constant 0 : i32
    return %c0_i32, %c0_i32_0 : i32, i32
  }
  func.func @transform_10(%arg0: i32) -> (i32, i32) {
    %c0_i32 = arith.constant 0 : i32
    %c0_i32_0 = arith.constant 0 : i32
    %c0_i32_1 = arith.constant 0 : i32
    return %c0_i32, %c0_i32_0 : i32, i32
  }
  func.func @transform_11(%arg0: i32) -> (i32, i32) {
    %c0_i32 = arith.constant 0 : i32
    %c0_i32_0 = arith.constant 0 : i32
    %c0_i32_1 = arith.constant 0 : i32
    return %c0_i32, %c0_i32_0 : i32, i32
  }
  func.func @transform_12(%arg0: i32) -> (i32, i32) {
    %c0_i32 = arith.constant 0 : i32
    %c0_i32_0 = arith.constant 0 : i32
    %c0_i32_1 = arith.constant 0 : i32
    return %c0_i32, %c0_i32_0 : i32, i32
  }
  func.func @transform_13(%arg0: i32) -> (i32, i32) {
    %c0_i32 = arith.constant 0 : i32
    %c0_i32_0 = arith.constant 0 : i32
    return %arg0, %c0_i32 : i32, i32
  }
}

module attributes {stable_mosaic.version = 11 : i64} {
  func.func @_mlp_kernel(%arg0: i32, %arg1: memref<8x64xbf16, #tpu.memory_space<vmem>>, %arg2: memref<8x64xbf16, #tpu.memory_space<vmem>>, %arg3: memref<8x64xbf16, #tpu.memory_space<vmem>>, %arg4: memref<64x64xbf16, #tpu.memory_space<vmem>>, %arg5: memref<64x64xbf16, #tpu.memory_space<vmem>>, %arg6: memref<64x64xbf16, #tpu.memory_space<vmem>>, %arg7: memref<1x64xf32, #tpu.memory_space<vmem>>, %arg8: memref<64x32xbf16, #tpu.memory_space<vmem>>, %arg9: memref<1x32xf32, #tpu.memory_space<vmem>>, %arg10: memref<32x1xbf16, #tpu.memory_space<vmem>>, %arg11: memref<1x1xf32, #tpu.memory_space<vmem>>, %arg12: memref<8x1xf32, #tpu.memory_space<vmem>>) attributes {dimension_semantics = [#tpu.dimension_semantics<parallel>], iteration_bounds = array<i64: 2>, scalar_prefetch = 0 : i64, scratch_operands = 0 : i64, tpu.core_type = #tpu.core_type<tc>, window_params = [{transform_indices = @transform_0, window_bounds = array<i64: 8, 64>}, {transform_indices = @transform_1, window_bounds = array<i64: 8, 64>}, {transform_indices = @transform_2, window_bounds = array<i64: 8, 64>}, {pipeline_mode = #tpu.pipeline_mode<synchronous>, transform_indices = @transform_3, window_bounds = array<i64: 64, 64>}, {pipeline_mode = #tpu.pipeline_mode<synchronous>, transform_indices = @transform_4, window_bounds = array<i64: 64, 64>}, {pipeline_mode = #tpu.pipeline_mode<synchronous>, transform_indices = @transform_5, window_bounds = array<i64: 64, 64>}, {pipeline_mode = #tpu.pipeline_mode<synchronous>, transform_indices = @transform_6, window_bounds = array<i64: 1, 64>}, {pipeline_mode = #tpu.pipeline_mode<synchronous>, transform_indices = @transform_7, window_bounds = array<i64: 64, 32>}, {pipeline_mode = #tpu.pipeline_mode<synchronous>, transform_indices = @transform_8, window_bounds = array<i64: 1, 32>}, {pipeline_mode = #tpu.pipeline_mode<synchronous>, transform_indices = @transform_9, window_bounds = array<i64: 32, 1>}, {pipeline_mode = #tpu.pipeline_mode<synchronous>, transform_indices = @transform_10, window_bounds = array<i64: 1, 1>}, {transform_indices = @transform_11, window_bounds = array<i64: 8, 1>}]} {
    %c0 = arith.constant 0 : index
    %c0_0 = arith.constant 0 : index
    %0 = vector.load %arg1[%c0, %c0_0] : memref<8x64xbf16, #tpu.memory_space<vmem>>, vector<8x64xbf16>
    %c0_1 = arith.constant 0 : index
    %c0_2 = arith.constant 0 : index
    %1 = vector.load %arg2[%c0_1, %c0_2] : memref<8x64xbf16, #tpu.memory_space<vmem>>, vector<8x64xbf16>
    %c0_3 = arith.constant 0 : index
    %c0_4 = arith.constant 0 : index
    %2 = vector.load %arg3[%c0_3, %c0_4] : memref<8x64xbf16, #tpu.memory_space<vmem>>, vector<8x64xbf16>
    %c0_5 = arith.constant 0 : index
    %c0_6 = arith.constant 0 : index
    %3 = vector.load %arg7[%c0_5, %c0_6] : memref<1x64xf32, #tpu.memory_space<vmem>>, vector<1x64xf32>
    %4 = arith.extf %0 : vector<8x64xbf16> to vector<8x64xf32>
    %5 = arith.truncf %4 : vector<8x64xf32> to vector<8x64xbf16>
    %c0_7 = arith.constant 0 : index
    %c0_8 = arith.constant 0 : index
    %6 = vector.load %arg4[%c0_7, %c0_8] : memref<64x64xbf16, #tpu.memory_space<vmem>>, vector<64x64xbf16>
    %cst = arith.constant dense<0.000000e+00> : vector<8x64xf32>
    %7 = tpu.matmul %5, %6, %cst {dimension_numbers = #tpu.dot_dimension_numbers<[1], [0], [0], [1], [0, 0, 1, 1], [], []>} : vector<8x64xbf16>, vector<64x64xbf16>, vector<8x64xf32> -> vector<8x64xf32>
    %8 = vector.broadcast %3 : vector<1x64xf32> to vector<8x64xf32>
    %9 = arith.addf %8, %7 : vector<8x64xf32>
    %10 = arith.extf %1 : vector<8x64xbf16> to vector<8x64xf32>
    %11 = arith.truncf %10 : vector<8x64xf32> to vector<8x64xbf16>
    %c0_9 = arith.constant 0 : index
    %c0_10 = arith.constant 0 : index
    %12 = vector.load %arg5[%c0_9, %c0_10] : memref<64x64xbf16, #tpu.memory_space<vmem>>, vector<64x64xbf16>
    %cst_11 = arith.constant dense<0.000000e+00> : vector<8x64xf32>
    %13 = tpu.matmul %11, %12, %cst_11 {dimension_numbers = #tpu.dot_dimension_numbers<[1], [0], [0], [1], [0, 0, 1, 1], [], []>} : vector<8x64xbf16>, vector<64x64xbf16>, vector<8x64xf32> -> vector<8x64xf32>
    %14 = arith.addf %9, %13 : vector<8x64xf32>
    %15 = arith.extf %2 : vector<8x64xbf16> to vector<8x64xf32>
    %16 = arith.truncf %15 : vector<8x64xf32> to vector<8x64xbf16>
    %c0_12 = arith.constant 0 : index
    %c0_13 = arith.constant 0 : index
    %17 = vector.load %arg6[%c0_12, %c0_13] : memref<64x64xbf16, #tpu.memory_space<vmem>>, vector<64x64xbf16>
    %cst_14 = arith.constant dense<0.000000e+00> : vector<8x64xf32>
    %18 = tpu.matmul %16, %17, %cst_14 {dimension_numbers = #tpu.dot_dimension_numbers<[1], [0], [0], [1], [0, 0, 1, 1], [], []>} : vector<8x64xbf16>, vector<64x64xbf16>, vector<8x64xf32> -> vector<8x64xf32>
    %19 = arith.addf %14, %18 : vector<8x64xf32>
    %cst_15 = arith.constant 0.000000e+00 : f32
    %20 = vector.broadcast %cst_15 : f32 to vector<8x64xf32>
    %21 = arith.cmpf ogt, %19, %20 : vector<8x64xf32>
    %cst_16 = arith.constant 2.000000e-01 : f32
    %22 = vector.broadcast %cst_16 : f32 to vector<8x64xf32>
    %23 = arith.mulf %22, %19 : vector<8x64xf32>
    %24 = arith.select %21, %19, %23 : vector<8x64xi1>, vector<8x64xf32>
    %c0_17 = arith.constant 0 : index
    %c0_18 = arith.constant 0 : index
    %25 = vector.load %arg9[%c0_17, %c0_18] : memref<1x32xf32, #tpu.memory_space<vmem>>, vector<1x32xf32>
    %26 = arith.truncf %24 : vector<8x64xf32> to vector<8x64xbf16>
    %c0_19 = arith.constant 0 : index
    %c0_20 = arith.constant 0 : index
    %27 = vector.load %arg8[%c0_19, %c0_20] : memref<64x32xbf16, #tpu.memory_space<vmem>>, vector<64x32xbf16>
    %cst_21 = arith.constant dense<0.000000e+00> : vector<8x32xf32>
    %28 = tpu.matmul %26, %27, %cst_21 {dimension_numbers = #tpu.dot_dimension_numbers<[1], [0], [0], [1], [0, 0, 1, 1], [], []>} : vector<8x64xbf16>, vector<64x32xbf16>, vector<8x32xf32> -> vector<8x32xf32>
    %29 = vector.broadcast %25 : vector<1x32xf32> to vector<8x32xf32>
    %30 = arith.addf %28, %29 : vector<8x32xf32>
    %cst_22 = arith.constant 0.000000e+00 : f32
    %31 = vector.broadcast %cst_22 : f32 to vector<8x32xf32>
    %32 = arith.cmpf ogt, %30, %31 : vector<8x32xf32>
    %cst_23 = arith.constant 2.000000e-01 : f32
    %33 = vector.broadcast %cst_23 : f32 to vector<8x32xf32>
    %34 = arith.mulf %33, %30 : vector<8x32xf32>
    %35 = arith.select %32, %30, %34 : vector<8x32xi1>, vector<8x32xf32>
    %c0_24 = arith.constant 0 : index
    %c0_25 = arith.constant 0 : index
    %36 = vector.load %arg11[%c0_24, %c0_25] : memref<1x1xf32, #tpu.memory_space<vmem>>, vector<1x1xf32>
    %37 = arith.truncf %35 : vector<8x32xf32> to vector<8x32xbf16>
    %c0_26 = arith.constant 0 : index
    %c0_27 = arith.constant 0 : index
    %38 = vector.load %arg10[%c0_26, %c0_27] : memref<32x1xbf16, #tpu.memory_space<vmem>>, vector<32x1xbf16>
    %cst_28 = arith.constant dense<0.000000e+00> : vector<8x1xf32>
    %39 = tpu.matmul %37, %38, %cst_28 {dimension_numbers = #tpu.dot_dimension_numbers<[1], [0], [0], [1], [0, 0, 1, 1], [], []>} : vector<8x32xbf16>, vector<32x1xbf16>, vector<8x1xf32> -> vector<8x1xf32>
    %40 = vector.broadcast %36 : vector<1x1xf32> to vector<8x1xf32>
    %41 = arith.addf %39, %40 : vector<8x1xf32>
    %c0_29 = arith.constant 0 : index
    %c0_30 = arith.constant 0 : index
    %42 = vector.load %arg12[%c0_29, %c0_30] : memref<8x1xf32, #tpu.memory_space<vmem>>, vector<8x1xf32>
    tpu.vector_store %arg12[%c0_29, %c0_30], %41 {strides = array<i32>} : memref<8x1xf32, #tpu.memory_space<vmem>>, vector<8x1xf32>,
    return
  }
  func.func @transform_0(%arg0: i32) -> (i32, i32) {
    %c0_i32 = arith.constant 0 : i32
    %c0_i32_0 = arith.constant 0 : i32
    return %arg0, %c0_i32 : i32, i32
  }
  func.func @transform_1(%arg0: i32) -> (i32, i32) {
    %c0_i32 = arith.constant 0 : i32
    %c0_i32_0 = arith.constant 0 : i32
    return %arg0, %c0_i32 : i32, i32
  }
  func.func @transform_2(%arg0: i32) -> (i32, i32) {
    %c0_i32 = arith.constant 0 : i32
    %c0_i32_0 = arith.constant 0 : i32
    return %arg0, %c0_i32 : i32, i32
  }
  func.func @transform_3(%arg0: i32) -> (i32, i32) {
    %c0_i32 = arith.constant 0 : i32
    %c0_i32_0 = arith.constant 0 : i32
    %c0_i32_1 = arith.constant 0 : i32
    return %c0_i32, %c0_i32_0 : i32, i32
  }
  func.func @transform_4(%arg0: i32) -> (i32, i32) {
    %c0_i32 = arith.constant 0 : i32
    %c0_i32_0 = arith.constant 0 : i32
    %c0_i32_1 = arith.constant 0 : i32
    return %c0_i32, %c0_i32_0 : i32, i32
  }
  func.func @transform_5(%arg0: i32) -> (i32, i32) {
    %c0_i32 = arith.constant 0 : i32
    %c0_i32_0 = arith.constant 0 : i32
    %c0_i32_1 = arith.constant 0 : i32
    return %c0_i32, %c0_i32_0 : i32, i32
  }
  func.func @transform_6(%arg0: i32) -> (i32, i32) {
    %c0_i32 = arith.constant 0 : i32
    %c0_i32_0 = arith.constant 0 : i32
    %c0_i32_1 = arith.constant 0 : i32
    return %c0_i32, %c0_i32_0 : i32, i32
  }
  func.func @transform_7(%arg0: i32) -> (i32, i32) {
    %c0_i32 = arith.constant 0 : i32
    %c0_i32_0 = arith.constant 0 : i32
    %c0_i32_1 = arith.constant 0 : i32
    return %c0_i32, %c0_i32_0 : i32, i32
  }
  func.func @transform_8(%arg0: i32) -> (i32, i32) {
    %c0_i32 = arith.constant 0 : i32
    %c0_i32_0 = arith.constant 0 : i32
    %c0_i32_1 = arith.constant 0 : i32
    return %c0_i32, %c0_i32_0 : i32, i32
  }
  func.func @transform_9(%arg0: i32) -> (i32, i32) {
    %c0_i32 = arith.constant 0 : i32
    %c0_i32_0 = arith.constant 0 : i32
    %c0_i32_1 = arith.constant 0 : i32
    return %c0_i32, %c0_i32_0 : i32, i32
  }
  func.func @transform_10(%arg0: i32) -> (i32, i32) {
    %c0_i32 = arith.constant 0 : i32
    %c0_i32_0 = arith.constant 0 : i32
    %c0_i32_1 = arith.constant 0 : i32
    return %c0_i32, %c0_i32_0 : i32, i32
  }
  func.func @transform_11(%arg0: i32) -> (i32, i32) {
    %c0_i32 = arith.constant 0 : i32
    %c0_i32_0 = arith.constant 0 : i32
    return %arg0, %c0_i32 : i32, i32
  }
}

module attributes {stable_mosaic.version = 11 : i64} {
  func.func @_mlp_kernel(%arg0: i32, %arg1: memref<8x128xbf16, #tpu.memory_space<vmem>>, %arg2: memref<128x128xbf16, #tpu.memory_space<vmem>>, %arg3: memref<1x128xf32, #tpu.memory_space<vmem>>, %arg4: memref<128x128xbf16, #tpu.memory_space<vmem>>, %arg5: memref<1x128xf32, #tpu.memory_space<vmem>>, %arg6: memref<128x64xbf16, #tpu.memory_space<vmem>>, %arg7: memref<1x64xf32, #tpu.memory_space<vmem>>, %arg8: memref<64x16xbf16, #tpu.memory_space<vmem>>, %arg9: memref<1x16xf32, #tpu.memory_space<vmem>>, %arg10: memref<16x1xbf16, #tpu.memory_space<vmem>>, %arg11: memref<1x1xf32, #tpu.memory_space<vmem>>, %arg12: memref<8x1xf32, #tpu.memory_space<vmem>>) attributes {dimension_semantics = [#tpu.dimension_semantics<parallel>], iteration_bounds = array<i64: 1>, scalar_prefetch = 0 : i64, scratch_operands = 0 : i64, tpu.core_type = #tpu.core_type<tc>, window_params = [{transform_indices = @transform_0, window_bounds = array<i64: 8, 128>}, {pipeline_mode = #tpu.pipeline_mode<synchronous>, transform_indices = @transform_1, window_bounds = array<i64: 128, 128>}, {pipeline_mode = #tpu.pipeline_mode<synchronous>, transform_indices = @transform_2, window_bounds = array<i64: 1, 128>}, {pipeline_mode = #tpu.pipeline_mode<synchronous>, transform_indices = @transform_3, window_bounds = array<i64: 128, 128>}, {pipeline_mode = #tpu.pipeline_mode<synchronous>, transform_indices = @transform_4, window_bounds = array<i64: 1, 128>}, {pipeline_mode = #tpu.pipeline_mode<synchronous>, transform_indices = @transform_5, window_bounds = array<i64: 128, 64>}, {pipeline_mode = #tpu.pipeline_mode<synchronous>, transform_indices = @transform_6, window_bounds = array<i64: 1, 64>}, {pipeline_mode = #tpu.pipeline_mode<synchronous>, transform_indices = @transform_7, window_bounds = array<i64: 64, 16>}, {pipeline_mode = #tpu.pipeline_mode<synchronous>, transform_indices = @transform_8, window_bounds = array<i64: 1, 16>}, {pipeline_mode = #tpu.pipeline_mode<synchronous>, transform_indices = @transform_9, window_bounds = array<i64: 16, 1>}, {pipeline_mode = #tpu.pipeline_mode<synchronous>, transform_indices = @transform_10, window_bounds = array<i64: 1, 1>}, {transform_indices = @transform_11, window_bounds = array<i64: 8, 1>}]} {
    %c0 = arith.constant 0 : index
    %c0_0 = arith.constant 0 : index
    %0 = vector.load %arg1[%c0, %c0_0] : memref<8x128xbf16, #tpu.memory_space<vmem>>, vector<8x128xbf16>
    %c0_1 = arith.constant 0 : index
    %c0_2 = arith.constant 0 : index
    %1 = vector.load %arg3[%c0_1, %c0_2] : memref<1x128xf32, #tpu.memory_space<vmem>>, vector<1x128xf32>
    %2 = arith.extf %0 : vector<8x128xbf16> to vector<8x128xf32>
    %3 = arith.truncf %2 : vector<8x128xf32> to vector<8x128xbf16>
    %c0_3 = arith.constant 0 : index
    %c0_4 = arith.constant 0 : index
    %4 = vector.load %arg2[%c0_3, %c0_4] : memref<128x128xbf16, #tpu.memory_space<vmem>>, vector<128x128xbf16>
    %cst = arith.constant dense<0.000000e+00> : vector<8x128xf32>
    %5 = tpu.matmul %3, %4, %cst {dimension_numbers = #tpu.dot_dimension_numbers<[1], [0], [0], [1], [0, 0, 1, 1], [], []>} : vector<8x128xbf16>, vector<128x128xbf16>, vector<8x128xf32> -> vector<8x128xf32>
    %6 = vector.broadcast %1 : vector<1x128xf32> to vector<8x128xf32>
    %7 = arith.addf %6, %5 : vector<8x128xf32>
    %cst_5 = arith.constant 0.000000e+00 : f32
    %8 = vector.broadcast %cst_5 : f32 to vector<8x128xf32>
    %9 = arith.cmpf ogt, %7, %8 : vector<8x128xf32>
    %cst_6 = arith.constant 2.000000e-01 : f32
    %10 = vector.broadcast %cst_6 : f32 to vector<8x128xf32>
    %11 = arith.mulf %10, %7 : vector<8x128xf32>
    %12 = arith.select %9, %7, %11 : vector<8x128xi1>, vector<8x128xf32>
    %c0_7 = arith.constant 0 : index
    %c0_8 = arith.constant 0 : index
    %13 = vector.load %arg5[%c0_7, %c0_8] : memref<1x128xf32, #tpu.memory_space<vmem>>, vector<1x128xf32>
    %14 = arith.truncf %12 : vector<8x128xf32> to vector<8x128xbf16>
    %c0_9 = arith.constant 0 : index
    %c0_10 = arith.constant 0 : index
    %15 = vector.load %arg4[%c0_9, %c0_10] : memref<128x128xbf16, #tpu.memory_space<vmem>>, vector<128x128xbf16>
    %cst_11 = arith.constant dense<0.000000e+00> : vector<8x128xf32>
    %16 = tpu.matmul %14, %15, %cst_11 {dimension_numbers = #tpu.dot_dimension_numbers<[1], [0], [0], [1], [0, 0, 1, 1], [], []>} : vector<8x128xbf16>, vector<128x128xbf16>, vector<8x128xf32> -> vector<8x128xf32>
    %17 = vector.broadcast %13 : vector<1x128xf32> to vector<8x128xf32>
    %18 = arith.addf %16, %17 : vector<8x128xf32>
    %cst_12 = arith.constant 0.000000e+00 : f32
    %19 = vector.broadcast %cst_12 : f32 to vector<8x128xf32>
    %20 = arith.cmpf ogt, %18, %19 : vector<8x128xf32>
    %cst_13 = arith.constant 2.000000e-01 : f32
    %21 = vector.broadcast %cst_13 : f32 to vector<8x128xf32>
    %22 = arith.mulf %21, %18 : vector<8x128xf32>
    %23 = arith.select %20, %18, %22 : vector<8x128xi1>, vector<8x128xf32>
    %c0_14 = arith.constant 0 : index
    %c0_15 = arith.constant 0 : index
    %24 = vector.load %arg7[%c0_14, %c0_15] : memref<1x64xf32, #tpu.memory_space<vmem>>, vector<1x64xf32>
    %25 = arith.truncf %23 : vector<8x128xf32> to vector<8x128xbf16>
    %c0_16 = arith.constant 0 : index
    %c0_17 = arith.constant 0 : index
    %26 = vector.load %arg6[%c0_16, %c0_17] : memref<128x64xbf16, #tpu.memory_space<vmem>>, vector<128x64xbf16>
    %cst_18 = arith.constant dense<0.000000e+00> : vector<8x64xf32>
    %27 = tpu.matmul %25, %26, %cst_18 {dimension_numbers = #tpu.dot_dimension_numbers<[1], [0], [0], [1], [0, 0, 1, 1], [], []>} : vector<8x128xbf16>, vector<128x64xbf16>, vector<8x64xf32> -> vector<8x64xf32>
    %28 = vector.broadcast %24 : vector<1x64xf32> to vector<8x64xf32>
    %29 = arith.addf %27, %28 : vector<8x64xf32>
    %cst_19 = arith.constant 0.000000e+00 : f32
    %30 = vector.broadcast %cst_19 : f32 to vector<8x64xf32>
    %31 = arith.cmpf ogt, %29, %30 : vector<8x64xf32>
    %cst_20 = arith.constant 2.000000e-01 : f32
    %32 = vector.broadcast %cst_20 : f32 to vector<8x64xf32>
    %33 = arith.mulf %32, %29 : vector<8x64xf32>
    %34 = arith.select %31, %29, %33 : vector<8x64xi1>, vector<8x64xf32>
    %c0_21 = arith.constant 0 : index
    %c0_22 = arith.constant 0 : index
    %35 = vector.load %arg9[%c0_21, %c0_22] : memref<1x16xf32, #tpu.memory_space<vmem>>, vector<1x16xf32>
    %36 = arith.truncf %34 : vector<8x64xf32> to vector<8x64xbf16>
    %c0_23 = arith.constant 0 : index
    %c0_24 = arith.constant 0 : index
    %37 = vector.load %arg8[%c0_23, %c0_24] : memref<64x16xbf16, #tpu.memory_space<vmem>>, vector<64x16xbf16>
    %cst_25 = arith.constant dense<0.000000e+00> : vector<8x16xf32>
    %38 = tpu.matmul %36, %37, %cst_25 {dimension_numbers = #tpu.dot_dimension_numbers<[1], [0], [0], [1], [0, 0, 1, 1], [], []>} : vector<8x64xbf16>, vector<64x16xbf16>, vector<8x16xf32> -> vector<8x16xf32>
    %39 = vector.broadcast %35 : vector<1x16xf32> to vector<8x16xf32>
    %40 = arith.addf %38, %39 : vector<8x16xf32>
    %cst_26 = arith.constant 0.000000e+00 : f32
    %41 = vector.broadcast %cst_26 : f32 to vector<8x16xf32>
    %42 = arith.cmpf ogt, %40, %41 : vector<8x16xf32>
    %cst_27 = arith.constant 2.000000e-01 : f32
    %43 = vector.broadcast %cst_27 : f32 to vector<8x16xf32>
    %44 = arith.mulf %43, %40 : vector<8x16xf32>
    %45 = arith.select %42, %40, %44 : vector<8x16xi1>, vector<8x16xf32>
    %c0_28 = arith.constant 0 : index
    %c0_29 = arith.constant 0 : index
    %46 = vector.load %arg11[%c0_28, %c0_29] : memref<1x1xf32, #tpu.memory_space<vmem>>, vector<1x1xf32>
    %47 = arith.truncf %45 : vector<8x16xf32> to vector<8x16xbf16>
    %c0_30 = arith.constant 0 : index
    %c0_31 = arith.constant 0 : index
    %48 = vector.load %arg10[%c0_30, %c0_31] : memref<16x1xbf16, #tpu.memory_space<vmem>>, vector<16x1xbf16>
    %cst_32 = arith.constant dense<0.000000e+00> : vector<8x1xf32>
    %49 = tpu.matmul %47, %48, %cst_32 {dimension_numbers = #tpu.dot_dimension_numbers<[1], [0], [0], [1], [0, 0, 1, 1], [], []>} : vector<8x16xbf16>, vector<16x1xbf16>, vector<8x1xf32> -> vector<8x1xf32>
    %50 = vector.broadcast %46 : vector<1x1xf32> to vector<8x1xf32>
    %51 = arith.addf %49, %50 : vector<8x1xf32>
    %52 = vector.extract_strided_slice %0 {offsets = [0, 127], sizes = [8, 1], strides = [1, 1]} : vector<8x128xbf16> to vector<8x1xbf16>
    %53 = arith.extf %52 : vector<8x1xbf16> to vector<8x1xf32>
    %cst_33 = arith.constant 1.000000e+00 : f32
    %54 = vector.broadcast %cst_33 : f32 to vector<8x1xf32>
    %55 = arith.subf %51, %54 : vector<8x1xf32>
    %56 = arith.addf %55, %53 : vector<8x1xf32>
    %57 = math.tanh %56 : vector<8x1xf32>
    %cst_34 = arith.constant 1.000000e+00 : f32
    %58 = vector.broadcast %cst_34 : f32 to vector<8x1xf32>
    %59 = arith.addf %58, %57 : vector<8x1xf32>
    %c0_35 = arith.constant 0 : index
    %c0_36 = arith.constant 0 : index
    %60 = vector.load %arg12[%c0_35, %c0_36] : memref<8x1xf32, #tpu.memory_space<vmem>>, vector<8x1xf32>
    tpu.vector_store %arg12[%c0_35, %c0_36], %59 {strides = array<i32>} : memref<8x1xf32, #tpu.memory_space<vmem>>, vector<8x1xf32>,
    return
  }
  func.func @transform_0(%arg0: i32) -> (i32, i32) {
    %c0_i32 = arith.constant 0 : i32
    %c0_i32_0 = arith.constant 0 : i32
    return %arg0, %c0_i32 : i32, i32
  }
  func.func @transform_1(%arg0: i32) -> (i32, i32) {
    %c0_i32 = arith.constant 0 : i32
    %c0_i32_0 = arith.constant 0 : i32
    %c0_i32_1 = arith.constant 0 : i32
    return %c0_i32, %c0_i32_0 : i32, i32
  }
  func.func @transform_2(%arg0: i32) -> (i32, i32) {
    %c0_i32 = arith.constant 0 : i32
    %c0_i32_0 = arith.constant 0 : i32
    %c0_i32_1 = arith.constant 0 : i32
    return %c0_i32, %c0_i32_0 : i32, i32
  }
  func.func @transform_3(%arg0: i32) -> (i32, i32) {
    %c0_i32 = arith.constant 0 : i32
    %c0_i32_0 = arith.constant 0 : i32
    %c0_i32_1 = arith.constant 0 : i32
    return %c0_i32, %c0_i32_0 : i32, i32
  }
  func.func @transform_4(%arg0: i32) -> (i32, i32) {
    %c0_i32 = arith.constant 0 : i32
    %c0_i32_0 = arith.constant 0 : i32
    %c0_i32_1 = arith.constant 0 : i32
    return %c0_i32, %c0_i32_0 : i32, i32
  }
  func.func @transform_5(%arg0: i32) -> (i32, i32) {
    %c0_i32 = arith.constant 0 : i32
    %c0_i32_0 = arith.constant 0 : i32
    %c0_i32_1 = arith.constant 0 : i32
    return %c0_i32, %c0_i32_0 : i32, i32
  }
  func.func @transform_6(%arg0: i32) -> (i32, i32) {
    %c0_i32 = arith.constant 0 : i32
    %c0_i32_0 = arith.constant 0 : i32
    %c0_i32_1 = arith.constant 0 : i32
    return %c0_i32, %c0_i32_0 : i32, i32
  }
  func.func @transform_7(%arg0: i32) -> (i32, i32) {
    %c0_i32 = arith.constant 0 : i32
    %c0_i32_0 = arith.constant 0 : i32
    %c0_i32_1 = arith.constant 0 : i32
    return %c0_i32, %c0_i32_0 : i32, i32
  }
  func.func @transform_8(%arg0: i32) -> (i32, i32) {
    %c0_i32 = arith.constant 0 : i32
    %c0_i32_0 = arith.constant 0 : i32
    %c0_i32_1 = arith.constant 0 : i32
    return %c0_i32, %c0_i32_0 : i32, i32
  }
  func.func @transform_9(%arg0: i32) -> (i32, i32) {
    %c0_i32 = arith.constant 0 : i32
    %c0_i32_0 = arith.constant 0 : i32
    %c0_i32_1 = arith.constant 0 : i32
    return %c0_i32, %c0_i32_0 : i32, i32
  }
  func.func @transform_10(%arg0: i32) -> (i32, i32) {
    %c0_i32 = arith.constant 0 : i32
    %c0_i32_0 = arith.constant 0 : i32
    %c0_i32_1 = arith.constant 0 : i32
    return %c0_i32, %c0_i32_0 : i32, i32
  }
  func.func @transform_11(%arg0: i32) -> (i32, i32) {
    %c0_i32 = arith.constant 0 : i32
    %c0_i32_0 = arith.constant 0 : i32
    return %arg0, %c0_i32 : i32, i32
  }
}

module attributes {stable_mosaic.version = 11 : i64} {
  func.func @_mlp_kernel(%arg0: i32, %arg1: memref<8x64xbf16, #tpu.memory_space<vmem>>, %arg2: memref<8x64xbf16, #tpu.memory_space<vmem>>, %arg3: memref<8x64xbf16, #tpu.memory_space<vmem>>, %arg4: memref<64x128xbf16, #tpu.memory_space<vmem>>, %arg5: memref<64x128xbf16, #tpu.memory_space<vmem>>, %arg6: memref<64x128xbf16, #tpu.memory_space<vmem>>, %arg7: memref<1x128xf32, #tpu.memory_space<vmem>>, %arg8: memref<128x256xbf16, #tpu.memory_space<vmem>>, %arg9: memref<1x256xf32, #tpu.memory_space<vmem>>, %arg10: memref<256x128xbf16, #tpu.memory_space<vmem>>, %arg11: memref<1x128xf32, #tpu.memory_space<vmem>>, %arg12: memref<8x128xf32, #tpu.memory_space<vmem>>) attributes {dimension_semantics = [#tpu.dimension_semantics<parallel>], iteration_bounds = array<i64: 1>, scalar_prefetch = 0 : i64, scratch_operands = 0 : i64, tpu.core_type = #tpu.core_type<tc>, window_params = [{transform_indices = @transform_0, window_bounds = array<i64: 8, 64>}, {transform_indices = @transform_1, window_bounds = array<i64: 8, 64>}, {transform_indices = @transform_2, window_bounds = array<i64: 8, 64>}, {pipeline_mode = #tpu.pipeline_mode<synchronous>, transform_indices = @transform_3, window_bounds = array<i64: 64, 128>}, {pipeline_mode = #tpu.pipeline_mode<synchronous>, transform_indices = @transform_4, window_bounds = array<i64: 64, 128>}, {pipeline_mode = #tpu.pipeline_mode<synchronous>, transform_indices = @transform_5, window_bounds = array<i64: 64, 128>}, {pipeline_mode = #tpu.pipeline_mode<synchronous>, transform_indices = @transform_6, window_bounds = array<i64: 1, 128>}, {pipeline_mode = #tpu.pipeline_mode<synchronous>, transform_indices = @transform_7, window_bounds = array<i64: 128, 256>}, {pipeline_mode = #tpu.pipeline_mode<synchronous>, transform_indices = @transform_8, window_bounds = array<i64: 1, 256>}, {pipeline_mode = #tpu.pipeline_mode<synchronous>, transform_indices = @transform_9, window_bounds = array<i64: 256, 128>}, {pipeline_mode = #tpu.pipeline_mode<synchronous>, transform_indices = @transform_10, window_bounds = array<i64: 1, 128>}, {transform_indices = @transform_11, window_bounds = array<i64: 8, 128>}]} {
    %c0 = arith.constant 0 : index
    %c0_0 = arith.constant 0 : index
    %0 = vector.load %arg1[%c0, %c0_0] : memref<8x64xbf16, #tpu.memory_space<vmem>>, vector<8x64xbf16>
    %c0_1 = arith.constant 0 : index
    %c0_2 = arith.constant 0 : index
    %1 = vector.load %arg2[%c0_1, %c0_2] : memref<8x64xbf16, #tpu.memory_space<vmem>>, vector<8x64xbf16>
    %c0_3 = arith.constant 0 : index
    %c0_4 = arith.constant 0 : index
    %2 = vector.load %arg3[%c0_3, %c0_4] : memref<8x64xbf16, #tpu.memory_space<vmem>>, vector<8x64xbf16>
    %c0_5 = arith.constant 0 : index
    %c0_6 = arith.constant 0 : index
    %3 = vector.load %arg7[%c0_5, %c0_6] : memref<1x128xf32, #tpu.memory_space<vmem>>, vector<1x128xf32>
    %4 = arith.extf %0 : vector<8x64xbf16> to vector<8x64xf32>
    %5 = arith.truncf %4 : vector<8x64xf32> to vector<8x64xbf16>
    %c0_7 = arith.constant 0 : index
    %c0_8 = arith.constant 0 : index
    %6 = vector.load %arg4[%c0_7, %c0_8] : memref<64x128xbf16, #tpu.memory_space<vmem>>, vector<64x128xbf16>
    %cst = arith.constant dense<0.000000e+00> : vector<8x128xf32>
    %7 = tpu.matmul %5, %6, %cst {dimension_numbers = #tpu.dot_dimension_numbers<[1], [0], [0], [1], [0, 0, 1, 1], [], []>} : vector<8x64xbf16>, vector<64x128xbf16>, vector<8x128xf32> -> vector<8x128xf32>
    %8 = vector.broadcast %3 : vector<1x128xf32> to vector<8x128xf32>
    %9 = arith.addf %8, %7 : vector<8x128xf32>
    %10 = arith.extf %1 : vector<8x64xbf16> to vector<8x64xf32>
    %11 = arith.truncf %10 : vector<8x64xf32> to vector<8x64xbf16>
    %c0_9 = arith.constant 0 : index
    %c0_10 = arith.constant 0 : index
    %12 = vector.load %arg5[%c0_9, %c0_10] : memref<64x128xbf16, #tpu.memory_space<vmem>>, vector<64x128xbf16>
    %cst_11 = arith.constant dense<0.000000e+00> : vector<8x128xf32>
    %13 = tpu.matmul %11, %12, %cst_11 {dimension_numbers = #tpu.dot_dimension_numbers<[1], [0], [0], [1], [0, 0, 1, 1], [], []>} : vector<8x64xbf16>, vector<64x128xbf16>, vector<8x128xf32> -> vector<8x128xf32>
    %14 = arith.addf %9, %13 : vector<8x128xf32>
    %15 = arith.extf %2 : vector<8x64xbf16> to vector<8x64xf32>
    %16 = arith.truncf %15 : vector<8x64xf32> to vector<8x64xbf16>
    %c0_12 = arith.constant 0 : index
    %c0_13 = arith.constant 0 : index
    %17 = vector.load %arg6[%c0_12, %c0_13] : memref<64x128xbf16, #tpu.memory_space<vmem>>, vector<64x128xbf16>
    %cst_14 = arith.constant dense<0.000000e+00> : vector<8x128xf32>
    %18 = tpu.matmul %16, %17, %cst_14 {dimension_numbers = #tpu.dot_dimension_numbers<[1], [0], [0], [1], [0, 0, 1, 1], [], []>} : vector<8x64xbf16>, vector<64x128xbf16>, vector<8x128xf32> -> vector<8x128xf32>
    %19 = arith.addf %14, %18 : vector<8x128xf32>
    %cst_15 = arith.constant 0.000000e+00 : f32
    %20 = vector.broadcast %cst_15 : f32 to vector<8x128xf32>
    %21 = arith.cmpf ogt, %19, %20 : vector<8x128xf32>
    %cst_16 = arith.constant 2.000000e-01 : f32
    %22 = vector.broadcast %cst_16 : f32 to vector<8x128xf32>
    %23 = arith.mulf %22, %19 : vector<8x128xf32>
    %24 = arith.select %21, %19, %23 : vector<8x128xi1>, vector<8x128xf32>
    %c0_17 = arith.constant 0 : index
    %c0_18 = arith.constant 0 : index
    %25 = vector.load %arg9[%c0_17, %c0_18] : memref<1x256xf32, #tpu.memory_space<vmem>>, vector<1x256xf32>
    %26 = arith.truncf %24 : vector<8x128xf32> to vector<8x128xbf16>
    %c0_19 = arith.constant 0 : index
    %c0_20 = arith.constant 0 : index
    %27 = vector.load %arg8[%c0_19, %c0_20] : memref<128x256xbf16, #tpu.memory_space<vmem>>, vector<128x256xbf16>
    %cst_21 = arith.constant dense<0.000000e+00> : vector<8x256xf32>
    %28 = tpu.matmul %26, %27, %cst_21 {dimension_numbers = #tpu.dot_dimension_numbers<[1], [0], [0], [1], [0, 0, 1, 1], [], []>} : vector<8x128xbf16>, vector<128x256xbf16>, vector<8x256xf32> -> vector<8x256xf32>
    %29 = vector.broadcast %25 : vector<1x256xf32> to vector<8x256xf32>
    %30 = arith.addf %28, %29 : vector<8x256xf32>
    %cst_22 = arith.constant 0.000000e+00 : f32
    %31 = vector.broadcast %cst_22 : f32 to vector<8x256xf32>
    %32 = arith.cmpf ogt, %30, %31 : vector<8x256xf32>
    %cst_23 = arith.constant 2.000000e-01 : f32
    %33 = vector.broadcast %cst_23 : f32 to vector<8x256xf32>
    %34 = arith.mulf %33, %30 : vector<8x256xf32>
    %35 = arith.select %32, %30, %34 : vector<8x256xi1>, vector<8x256xf32>
    %c0_24 = arith.constant 0 : index
    %c0_25 = arith.constant 0 : index
    %36 = vector.load %arg11[%c0_24, %c0_25] : memref<1x128xf32, #tpu.memory_space<vmem>>, vector<1x128xf32>
    %37 = arith.truncf %35 : vector<8x256xf32> to vector<8x256xbf16>
    %c0_26 = arith.constant 0 : index
    %c0_27 = arith.constant 0 : index
    %38 = vector.load %arg10[%c0_26, %c0_27] : memref<256x128xbf16, #tpu.memory_space<vmem>>, vector<256x128xbf16>
    %cst_28 = arith.constant dense<0.000000e+00> : vector<8x128xf32>
    %39 = tpu.matmul %37, %38, %cst_28 {dimension_numbers = #tpu.dot_dimension_numbers<[1], [0], [0], [1], [0, 0, 1, 1], [], []>} : vector<8x256xbf16>, vector<256x128xbf16>, vector<8x128xf32> -> vector<8x128xf32>
    %40 = vector.broadcast %36 : vector<1x128xf32> to vector<8x128xf32>
    %41 = arith.addf %39, %40 : vector<8x128xf32>
    %c0_29 = arith.constant 0 : index
    %c0_30 = arith.constant 0 : index
    %42 = vector.load %arg12[%c0_29, %c0_30] : memref<8x128xf32, #tpu.memory_space<vmem>>, vector<8x128xf32>
    tpu.vector_store %arg12[%c0_29, %c0_30], %41 {strides = array<i32>} : memref<8x128xf32, #tpu.memory_space<vmem>>, vector<8x128xf32>,
    return
  }
  func.func @transform_0(%arg0: i32) -> (i32, i32) {
    %c0_i32 = arith.constant 0 : i32
    %c0_i32_0 = arith.constant 0 : i32
    return %arg0, %c0_i32 : i32, i32
  }
  func.func @transform_1(%arg0: i32) -> (i32, i32) {
    %c0_i32 = arith.constant 0 : i32
    %c0_i32_0 = arith.constant 0 : i32
    return %arg0, %c0_i32 : i32, i32
  }
  func.func @transform_2(%arg0: i32) -> (i32, i32) {
    %c0_i32 = arith.constant 0 : i32
    %c0_i32_0 = arith.constant 0 : i32
    return %arg0, %c0_i32 : i32, i32
  }
  func.func @transform_3(%arg0: i32) -> (i32, i32) {
    %c0_i32 = arith.constant 0 : i32
    %c0_i32_0 = arith.constant 0 : i32
    %c0_i32_1 = arith.constant 0 : i32
    return %c0_i32, %c0_i32_0 : i32, i32
  }
  func.func @transform_4(%arg0: i32) -> (i32, i32) {
    %c0_i32 = arith.constant 0 : i32
    %c0_i32_0 = arith.constant 0 : i32
    %c0_i32_1 = arith.constant 0 : i32
    return %c0_i32, %c0_i32_0 : i32, i32
  }
  func.func @transform_5(%arg0: i32) -> (i32, i32) {
    %c0_i32 = arith.constant 0 : i32
    %c0_i32_0 = arith.constant 0 : i32
    %c0_i32_1 = arith.constant 0 : i32
    return %c0_i32, %c0_i32_0 : i32, i32
  }
  func.func @transform_6(%arg0: i32) -> (i32, i32) {
    %c0_i32 = arith.constant 0 : i32
    %c0_i32_0 = arith.constant 0 : i32
    %c0_i32_1 = arith.constant 0 : i32
    return %c0_i32, %c0_i32_0 : i32, i32
  }
  func.func @transform_7(%arg0: i32) -> (i32, i32) {
    %c0_i32 = arith.constant 0 : i32
    %c0_i32_0 = arith.constant 0 : i32
    %c0_i32_1 = arith.constant 0 : i32
    return %c0_i32, %c0_i32_0 : i32, i32
  }
  func.func @transform_8(%arg0: i32) -> (i32, i32) {
    %c0_i32 = arith.constant 0 : i32
    %c0_i32_0 = arith.constant 0 : i32
    %c0_i32_1 = arith.constant 0 : i32
    return %c0_i32, %c0_i32_0 : i32, i32
  }
  func.func @transform_9(%arg0: i32) -> (i32, i32) {
    %c0_i32 = arith.constant 0 : i32
    %c0_i32_0 = arith.constant 0 : i32
    %c0_i32_1 = arith.constant 0 : i32
    return %c0_i32, %c0_i32_0 : i32, i32
  }
  func.func @transform_10(%arg0: i32) -> (i32, i32) {
    %c0_i32 = arith.constant 0 : i32
    %c0_i32_0 = arith.constant 0 : i32
    %c0_i32_1 = arith.constant 0 : i32
    return %c0_i32, %c0_i32_0 : i32, i32
  }
  func.func @transform_11(%arg0: i32) -> (i32, i32) {
    %c0_i32 = arith.constant 0 : i32
    %c0_i32_0 = arith.constant 0 : i32
    return %arg0, %c0_i32 : i32, i32
  }
}

</mosaic_0001>

<llo_original>
// kernel: trajsnet_forward.15
$region0: #{trajsnet_forward.15}
  #allocation0 [shape = 'u32[]', space=smem, size = 0x4, offset = 0x4, fixed_abs, tag = 'smem constant byte address 0x4 - core index']
  #allocation1 [shape = 'u32[144,128]{1,0:T(1,128)}', space=vmem, size = 0x12000, scoped, tag = 'internal scratch']
  #allocation2 [shape = 'f32[1,1]{1,0:T(1,128)S(1)}', space=vmem, size = 0x200, scoped, tag = 'scoped memory for trajsnet_forward.15']
  %s0 = inlined_call_operand.vmem [shape: bf16[16,1], index: 0, kind: input, shape index: {}]
  %s1 = inlined_call_operand.vmem [shape: bf16[1,2], index: 1, kind: input, shape index: {}]
  %s2 = inlined_call_operand.vmem [shape: bf16[1,2], index: 2, kind: input, shape index: {}]
  %s3 = inlined_call_operand.vmem [shape: f32[1,2], index: 3, kind: input, shape index: {}]
  %s4 = inlined_call_operand.vmem [shape: bf16[2,1], index: 4, kind: input, shape index: {}]
  %s5 = inlined_call_operand.<no memory space> [shape: f32[1,1], index: 5, kind: input, shape index: {}]
  %s6 = inlined_call_operand.vmem [shape: f32[16,1], index: 6, kind: output, shape index: {}]
  %s7 = sld [smem:[#allocation0]]
  $region57: #{trajsnet_forward.15} parent=0
    _
  %s9 = ssub.s32 1, %s7
  %s10 = scalar_select 0, %s9, %s7
  %v11 = vstv %s5
  %12 = vst [vmem:[#allocation2] sm:$0x1] %v11
  loop: start=0, step=1, limit=4
  $region2: #{trajsnet_forward.15} parent=0 // loop_pre_header
    _
  $region3: #{trajsnet_forward.15} parent=0 // loop_header
    %s14 = sphi 0, %s18
    %p15 = scmp.ge.s32.totalorder %s14, 4
    %s24 = sphi 0, %s26
    %s27 = sphi 0, %s24
    %s28 = sphi 0, %s27
    %s44 = sphi 0, %s28
    %s48 = sphi 0, %s48
    %s50 = sphi 0, %s48
    %s51 = sphi 0, %s50
    %s65 = sphi 0, %s51
    %s69 = sphi 0, %s69
    %s71 = sphi 0, %s69
    %s72 = sphi 0, %s71
    %s86 = sphi 0, %s72
    %s90 = sphi 0, %s90
    %s92 = sphi 0, %s90
    %s93 = sphi 0, %s92
    %s107 = sphi 0, %s93
    %s111 = sphi 0, %s111
    %s113 = sphi 0, %s111
    %s114 = sphi 0, %s113
    %s128 = sphi 0, %s114
    %s132 = sphi 0, %s132
    %s134 = sphi 0, %s132
    %s135 = sphi 0, %s134
    %s149 = sphi 0, %s135
    %s155 = sphi 0, %s157
    %s158 = sphi 0, %s155
    %s159 = sphi 0, %s158
    %s175 = sphi 0, %s159
  $region4: #{trajsnet_forward.15} parent=0 // loop_header_branch
    %17 = sbr.rel (%p15) target = $region8
  $region5: #{trajsnet_forward.15} parent=0 // loop_body
    %s19 = ssub.s32 %s14, 1
    %s20 = ssub.s32 %s14, 2
    %s21 = sadd.s32 %s14, 1
    %s22 = ssub.s32 %s14, %s21
    %p23 = scmp.eq.s32.totalorder %s22, 0
    %s25 = sadd.s32 %s24, 1
    %s26 = scalar_select %p23, %s24, %s25
    %p29 = pneg %p23
    %p30 = scmp.eq.s32.totalorder %s14, 1
    %p31 = por %p29, %p30
    %p32 = scmp.ne.s32.totalorder %s24, %s27
    %p33 = scmp.eq.s32.totalorder %s14, 0
    %p34 = por %p32, %p33
    %p35 = scmp.ne.s32.totalorder %s24, %s27
    %p36 = scmp.eq.s32.totalorder %s19, 1
    %p37 = por %p35, %p36
    %p38 = scmp.ne.s32.totalorder %s27, %s28
    %p39 = scmp.eq.s32.totalorder %s19, 0
    %p40 = por %p38, %p39
    %p41 = scmp.ne.s32.totalorder %s27, %s28
    %p42 = scmp.eq.s32.totalorder %s20, 1
    %p43 = por %p41, %p42
    %p45 = scmp.ne.s32.totalorder %s28, %s44
    %p46 = scmp.eq.s32.totalorder %s20, 0
    %p47 = por %p45, %p46
    %s49 = sadd.s32 %s48, 1
    %p52 = scmp.eq.s32.totalorder %s14, 1
    %p53 = scmp.ne.s32.totalorder %s48, %s50
    %p54 = scmp.eq.s32.totalorder %s14, 0
    %p55 = por %p53, %p54
    %p56 = scmp.ne.s32.totalorder %s48, %s50
    %p57 = scmp.eq.s32.totalorder %s19, 1
    %p58 = por %p56, %p57
    %p59 = scmp.ne.s32.totalorder %s50, %s51
    %p60 = scmp.eq.s32.totalorder %s19, 0
    %p61 = por %p59, %p60
    %p62 = scmp.ne.s32.totalorder %s50, %s51
    %p63 = scmp.eq.s32.totalorder %s20, 1
    %p64 = por %p62, %p63
    %p66 = scmp.ne.s32.totalorder %s51, %s65
    %p67 = scmp.eq.s32.totalorder %s20, 0
    %p68 = por %p66, %p67
    %s70 = sadd.s32 %s69, 1
    %p73 = scmp.eq.s32.totalorder %s14, 1
    %p74 = scmp.ne.s32.totalorder %s69, %s71
    %p75 = scmp.eq.s32.totalorder %s14, 0
    %p76 = por %p74, %p75
    %p77 = scmp.ne.s32.totalorder %s69, %s71
    %p78 = scmp.eq.s32.totalorder %s19, 1
    %p79 = por %p77, %p78
    %p80 = scmp.ne.s32.totalorder %s71, %s72
    %p81 = scmp.eq.s32.totalorder %s19, 0
    %p82 = por %p80, %p81
    %p83 = scmp.ne.s32.totalorder %s71, %s72
    %p84 = scmp.eq.s32.totalorder %s20, 1
    %p85 = por %p83, %p84
    %p87 = scmp.ne.s32.totalorder %s72, %s86
    %p88 = scmp.eq.s32.totalorder %s20, 0
    %p89 = por %p87, %p88
    %s91 = sadd.s32 %s90, 1
    %p94 = scmp.eq.s32.totalorder %s14, 1
    %p95 = scmp.ne.s32.totalorder %s90, %s92
    %p96 = scmp.eq.s32.totalorder %s14, 0
    %p97 = por %p95, %p96
    %p98 = scmp.ne.s32.totalorder %s90, %s92
    %p99 = scmp.eq.s32.totalorder %s19, 1
    %p100 = por %p98, %p99
    %p101 = scmp.ne.s32.totalorder %s92, %s93
    %p102 = scmp.eq.s32.totalorder %s19, 0
    %p103 = por %p101, %p102
    %p104 = scmp.ne.s32.totalorder %s92, %s93
    %p105 = scmp.eq.s32.totalorder %s20, 1
    %p106 = por %p104, %p105
    %p108 = scmp.ne.s32.totalorder %s93, %s107
    %p109 = scmp.eq.s32.totalorder %s20, 0
    %p110 = por %p108, %p109
    %s112 = sadd.s32 %s111, 1
    %p115 = scmp.eq.s32.totalorder %s14, 1
    %p116 = scmp.ne.s32.totalorder %s111, %s113
    %p117 = scmp.eq.s32.totalorder %s14, 0
    %p118 = por %p116, %p117
    %p119 = scmp.ne.s32.totalorder %s111, %s113
    %p120 = scmp.eq.s32.totalorder %s19, 1
    %p121 = por %p119, %p120
    %p122 = scmp.ne.s32.totalorder %s113, %s114
    %p123 = scmp.eq.s32.totalorder %s19, 0
    %p124 = por %p122, %p123
    %p125 = scmp.ne.s32.totalorder %s113, %s114
    %p126 = scmp.eq.s32.totalorder %s20, 1
    %p127 = por %p125, %p126
    %p129 = scmp.ne.s32.totalorder %s114, %s128
    %p130 = scmp.eq.s32.totalorder %s20, 0
    %p131 = por %p129, %p130
    %s133 = sadd.s32 %s132, 1
    %p136 = scmp.eq.s32.totalorder %s14, 1
    %p137 = scmp.ne.s32.totalorder %s132, %s134
    %p138 = scmp.eq.s32.totalorder %s14, 0
    %p139 = por %p137, %p138
    %p140 = scmp.ne.s32.totalorder %s132, %s134
    %p141 = scmp.eq.s32.totalorder %s19, 1
    %p142 = por %p140, %p141
    %p143 = scmp.ne.s32.totalorder %s134, %s135
    %p144 = scmp.eq.s32.totalorder %s19, 0
    %p145 = por %p143, %p144
    %p146 = scmp.ne.s32.totalorder %s134, %s135
    %p147 = scmp.eq.s32.totalorder %s20, 1
    %p148 = por %p146, %p147
    %p150 = scmp.ne.s32.totalorder %s135, %s149
    %p151 = scmp.eq.s32.totalorder %s20, 0
    %p152 = por %p150, %p151
    %s153 = ssub.s32 %s14, %s21
    %p154 = scmp.eq.s32.totalorder %s153, 0
    %s156 = sadd.s32 %s155, 1
    %s157 = scalar_select %p154, %s155, %s156
    %p160 = pneg %p154
    %p161 = scmp.eq.s32.totalorder %s14, 1
    %p162 = por %p160, %p161
    %p163 = scmp.ne.s32.totalorder %s155, %s158
    %p164 = scmp.eq.s32.totalorder %s14, 0
    %p165 = por %p163, %p164
    %p166 = scmp.ne.s32.totalorder %s155, %s158
    %p167 = scmp.eq.s32.totalorder %s19, 1
    %p168 = por %p166, %p167
    %p169 = scmp.ne.s32.totalorder %s158, %s159
    %p170 = scmp.eq.s32.totalorder %s19, 0
    %p171 = por %p169, %p170
    %p172 = scmp.ne.s32.totalorder %s158, %s159
    %p173 = scmp.eq.s32.totalorder %s20, 1
    %p174 = por %p172, %p173
    %p176 = scmp.ne.s32.totalorder %s159, %s175
    %p177 = scmp.eq.s32.totalorder %s20, 0
    %p178 = por %p176, %p177
    %p179 = scmp.le.s32.totalorder 1, %s14
    %p180 = scmp.lt.s32.totalorder %s14, 3
    %p181 = pnand %p179, %p180
    %p182 = pneg %p181
    // Predicated region
    $region9: #{trajsnet_forward.15} parent=5 // pred_check
      _
    $region10: #{trajsnet_forward.15} parent=5 // pred_check_branch
      %184 = sbr.rel (%p181) target = $region12
    $region11: #{trajsnet_forward.15} parent=5 // pred_region
      %s185 = ssub.s32 %s14, 1
      // Predicated region
      $region13: #{trajsnet_forward.15} parent=11 // pred_check
        %p186 = pneg %p61
      $region14: #{trajsnet_forward.15} parent=11 // pred_check_branch
        %188 = sbr.rel (%p186) target = $region16
      $region15: #{trajsnet_forward.15} parent=11 // pred_region
        _
      $region16: #{trajsnet_forward.15} parent=11 // pred_fallthru
        _
      // Predicated region
      $region17: #{trajsnet_forward.15} parent=11 // pred_check
        %p189 = pneg %p82
      $region18: #{trajsnet_forward.15} parent=11 // pred_check_branch
        %191 = sbr.rel (%p189) target = $region20
      $region19: #{trajsnet_forward.15} parent=11 // pred_region
        _
      $region20: #{trajsnet_forward.15} parent=11 // pred_fallthru
        _
      // Predicated region
      $region21: #{trajsnet_forward.15} parent=11 // pred_check
        %p192 = pneg %p103
      $region22: #{trajsnet_forward.15} parent=11 // pred_check_branch
        %194 = sbr.rel (%p192) target = $region24
      $region23: #{trajsnet_forward.15} parent=11 // pred_region
        _
      $region24: #{trajsnet_forward.15} parent=11 // pred_fallthru
        _
      // Predicated region
      $region25: #{trajsnet_forward.15} parent=11 // pred_check
        %p195 = pneg %p124
      $region26: #{trajsnet_forward.15} parent=11 // pred_check_branch
        %197 = sbr.rel (%p195) target = $region28
      $region27: #{trajsnet_forward.15} parent=11 // pred_region
        _
      $region28: #{trajsnet_forward.15} parent=11 // pred_fallthru
        _
      // Predicated region
      $region29: #{trajsnet_forward.15} parent=11 // pred_check
        %p198 = pneg %p145
      $region30: #{trajsnet_forward.15} parent=11 // pred_check_branch
        %200 = sbr.rel (%p198) target = $region32
      $region31: #{trajsnet_forward.15} parent=11 // pred_region
        _
      $region32: #{trajsnet_forward.15} parent=11 // pred_fallthru
        _
    $region12: #{trajsnet_forward.15} parent=5 // pred_fallthru
      _
    %p201 = scmp.lt.s32.totalorder %s14, 2
    // Predicated region
    $region33: #{trajsnet_forward.15} parent=5 // pred_check
      %p202 = pneg %p201
    $region34: #{trajsnet_forward.15} parent=5 // pred_check_branch
      %204 = sbr.rel (%p202) target = $region36
    $region35: #{trajsnet_forward.15} parent=5 // pred_region
      // Predicated region
      $region37: #{trajsnet_forward.15} parent=35 // pred_check
        %p205 = pneg %p34
      $region38: #{trajsnet_forward.15} parent=35 // pred_check_branch
        %207 = sbr.rel (%p205) target = $region40
      $region39: #{trajsnet_forward.15} parent=35 // pred_region
        %p208 = scmp.lt.s32.totalorder %s14, 1
        %s209 = scalar_select %p208, %s14, 1
        %s210 = smul.addr %s209, 4
        %s211 = scalar_lea.vmem %s0, %s210
      $region40: #{trajsnet_forward.15} parent=35 // pred_fallthru
        _
    $region36: #{trajsnet_forward.15} parent=5 // pred_fallthru
      _
    %p212 = scmp.le.s32.totalorder 1, %s14
    %p213 = scmp.lt.s32.totalorder %s14, 3
    %p214 = pnand %p212, %p213
    %p215 = pneg %p214
    // Predicated region
    $region41: #{trajsnet_forward.15} parent=5 // pred_check
      _
    $region42: #{trajsnet_forward.15} parent=5 // pred_check_branch
      %217 = sbr.rel (%p214) target = $region44
    $region43: #{trajsnet_forward.15} parent=5 // pred_region
      %s218 = ssub.s32 %s14, 1
      %p219 = scmp.lt.s32.totalorder %s19, 1
      %s220 = scalar_select %p219, %s19, 1
      %s221 = smul.addr %s220, 4
      %s222 = scalar_lea.vmem %s0, %s221
      %p223 = pneg %p40
      %p224 = pneg %p37
      %p225 = pneg %p61
      %p226 = pneg %p58
      %p227 = pneg %p82
      %p228 = pneg %p79
      %p229 = pneg %p103
      %p230 = pneg %p100
      %p231 = pneg %p124
      %p232 = pneg %p121
      %p233 = pneg %p145
      %p234 = pneg %p142
      %p235 = pneg %p171
      %p236 = pneg %p168
      %p237 = scmp.lt.s32.totalorder %s19, 1
      %s238 = scalar_select %p237, %s19, 1
      %s239 = smul.addr %s238, 8
      %s240 = scalar_lea.vmem %s6, %s239
      %p241 = scmp.lt.s32.totalorder %s19, 1
      %s242 = scalar_select %p241, %s19, 1
      %s243 = smul.addr %s242, 4
      %s244 = scalar_lea.vmem %s0, %s243
      %p245 = scmp.lt.s32.totalorder %s19, 1
      %s246 = scalar_select %p245, %s19, 1
      %s247 = smul.addr %s246, 8
      %s248 = scalar_lea.vmem %s6, %s247
      %v249 = vld [vmem:[%s244] sm:$0xf]
      %v250 = vld [vmem:[%s3] sm:$0x1]
      %v251 = vunpack.c.l.bf16 %v249
      %v252 = vld [vmem:[%s1] sm:$0x1]
      %v253 = vunpack.c.l.bf16 %v252
      %255 = vset.pattern.permute.xlu0 0
      %256 = vperm.xlu0 %255, %v251
      %v257 = vpop.permute.xlu0 %256
      %v259 = vlaneseq
      %v260 = vshrl.u32 %v259, 7
      %v261 = vsub.s32 0, %v260
      %v262 = vrot.slane %v253, %v261
      %v263 = vmul.f32 %v257, %v262
      %v265 = vlaneseq
      %v266 = vshrl.u32 %v265, 7
      %v267 = vsub.s32 0, %v266
      %v268 = vrot.slane %v250, %v267
      %v270 = vadd.f32 %v268, %v263
      %v271 = vmul.f32 %v251, %v251
      %v272 = vld [vmem:[%s2] sm:$0x1]
      %v273 = vunpack.c.l.bf16 %v272
      %275 = vset.pattern.permute.xlu0 0
      %276 = vperm.xlu0 %275, %v271
      %v277 = vpop.permute.xlu0 %276
      %v279 = vlaneseq
      %v280 = vshrl.u32 %v279, 7
      %v281 = vsub.s32 0, %v280
      %v282 = vrot.slane %v273, %v281
      %v283 = vmul.f32 %v277, %v282
      %v284 = vadd.f32 %v270, %v283
      %vm285 = vcmp.gt.f32.partialorder %v284, 0.0
      %v286 = vmul.f32 %v284, 0.2
      %v287 = vsel %vm285, %v284, %v286
      %v288 = vld [vmem:[#allocation2] sm:$0x1]
      %v289 = vld [vmem:[%s4] sm:$0x1]
      %v290 = vunpack.c.l.bf16 %v289
      %v291 = vlaneseq
      %v292 = vshrl.u32 %v291, 7
      %v293 = vsub.s32 0, %v292
      %v294 = vrot.slane %v290, %v293
      %v295 = vmul.f32 %v287, %v294
      %v296 = vlaneseq
      %v297 = vshrl.u32 %v296, 7
      %v298 = vsub.s32 1, %v297
      %v299 = vrot.slane %v290, %v298
      %301 = vrot.lane.b32.xlu0 %v299, 1
      %v302 = vpop.permute.xlu0 %301
      %v304 = vmul.f32 %v287, %v302
      %306 = vrot.lane.b32.xlu0 %v304, 127
      %v307 = vpop.permute.xlu0 %306
      %v309 = vadd.f32 %v295, %v307
      %v311 = vlaneseq
      %v312 = vshrl.u32 %v311, 7
      %v313 = vsub.s32 0, %v312
      %v314 = vrot.slane %v288, %v313
      %v316 = vadd.f32 %v309, %v314
      %vm317 = vcmask 7168
      %318 = vst.msk [vmem:[%s248] sm:$0xff] %vm317, %v316
      %p319 = scmp.lt.s32.totalorder %s19, 1
      %s320 = scalar_select %p319, %s19, 1
      %s321 = smul.addr %s320, 8
      %s322 = scalar_lea.vmem %s6, %s321
      // Predicated region
      $region45: #{trajsnet_forward.15} parent=43 // pred_check
        %p323 = pneg %p168
      $region46: #{trajsnet_forward.15} parent=43 // pred_check_branch
        %325 = sbr.rel (%p323) target = $region48
      $region47: #{trajsnet_forward.15} parent=43 // pred_region
        _
      $region48: #{trajsnet_forward.15} parent=43 // pred_fallthru
        _
    $region44: #{trajsnet_forward.15} parent=5 // pred_fallthru
      _
    %p326 = scmp.le.s32.totalorder 2, %s14
    // Predicated region
    $region49: #{trajsnet_forward.15} parent=5 // pred_check
      %p327 = pneg %p326
    $region50: #{trajsnet_forward.15} parent=5 // pred_check_branch
      %329 = sbr.rel (%p327) target = $region52
    $region51: #{trajsnet_forward.15} parent=5 // pred_region
      %s330 = ssub.s32 %s14, 2
      // Predicated region
      $region53: #{trajsnet_forward.15} parent=51 // pred_check
        %p331 = pneg %p174
      $region54: #{trajsnet_forward.15} parent=51 // pred_check_branch
        %333 = sbr.rel (%p331) target = $region56
      $region55: #{trajsnet_forward.15} parent=51 // pred_region
        %p334 = scmp.lt.s32.totalorder %s20, 1
        %s335 = scalar_select %p334, %s20, 1
        %s336 = smul.addr %s335, 8
        %s337 = scalar_lea.vmem %s6, %s336
      $region56: #{trajsnet_forward.15} parent=51 // pred_fallthru
        _
    $region52: #{trajsnet_forward.15} parent=5 // pred_fallthru
      _
  $region6: #{trajsnet_forward.15} parent=0 // loop_footer
    %s18 = sadd.s32 1, %s14
  $region7: #{trajsnet_forward.15} parent=0 // loop_footer_branch
    %13 = sbr.rel target = $region3
  $region8: #{trajsnet_forward.15} parent=0 // loop_exit
    _

// kernel: trajsnet_forward.16
$region0: #{trajsnet_forward.16}
  #allocation0 [shape = 'u32[]', space=smem, size = 0x4, offset = 0x4, fixed_abs, tag = 'smem constant byte address 0x4 - core index']
  #allocation1 [shape = 'u32[144,128]{1,0:T(1,128)}', space=vmem, size = 0x12000, scoped, tag = 'internal scratch']
  #allocation2 [shape = 'f32[1,1]{1,0:T(1,128)S(1)}', space=vmem, size = 0x200, scoped, tag = 'scoped memory for trajsnet_forward.16']
  %s0 = inlined_call_operand.vmem [shape: bf16[32,1], index: 0, kind: input, shape index: {}]
  %s1 = inlined_call_operand.vmem [shape: bf16[1,2], index: 1, kind: input, shape index: {}]
  %s2 = inlined_call_operand.vmem [shape: bf16[1,2], index: 2, kind: input, shape index: {}]
  %s3 = inlined_call_operand.vmem [shape: f32[1,2], index: 3, kind: input, shape index: {}]
  %s4 = inlined_call_operand.vmem [shape: bf16[2,1], index: 4, kind: input, shape index: {}]
  %s5 = inlined_call_operand.<no memory space> [shape: f32[1,1], index: 5, kind: input, shape index: {}]
  %s6 = inlined_call_operand.vmem [shape: f32[32,1], index: 6, kind: output, shape index: {}]
  %s7 = sld [smem:[#allocation0]]
  $region57: #{trajsnet_forward.16} parent=0
    _
  %s9 = ssub.s32 1, %s7
  %s10 = scalar_select 0, %s9, %s7
  %v11 = vstv %s5
  %12 = vst [vmem:[#allocation2] sm:$0x1] %v11
  loop: start=0, step=1, limit=4
  $region2: #{trajsnet_forward.16} parent=0 // loop_pre_header
    _
  $region3: #{trajsnet_forward.16} parent=0 // loop_header
    %s14 = sphi 0, %s18
    %p15 = scmp.ge.s32.totalorder %s14, 4
    %s24 = sphi 0, %s26
    %s27 = sphi 0, %s24
    %s28 = sphi 0, %s27
    %s44 = sphi 0, %s28
    %s48 = sphi 0, %s48
    %s50 = sphi 0, %s48
    %s51 = sphi 0, %s50
    %s65 = sphi 0, %s51
    %s69 = sphi 0, %s69
    %s71 = sphi 0, %s69
    %s72 = sphi 0, %s71
    %s86 = sphi 0, %s72
    %s90 = sphi 0, %s90
    %s92 = sphi 0, %s90
    %s93 = sphi 0, %s92
    %s107 = sphi 0, %s93
    %s111 = sphi 0, %s111
    %s113 = sphi 0, %s111
    %s114 = sphi 0, %s113
    %s128 = sphi 0, %s114
    %s132 = sphi 0, %s132
    %s134 = sphi 0, %s132
    %s135 = sphi 0, %s134
    %s149 = sphi 0, %s135
    %s155 = sphi 0, %s157
    %s158 = sphi 0, %s155
    %s159 = sphi 0, %s158
    %s175 = sphi 0, %s159
  $region4: #{trajsnet_forward.16} parent=0 // loop_header_branch
    %17 = sbr.rel (%p15) target = $region8
  $region5: #{trajsnet_forward.16} parent=0 // loop_body
    %s19 = ssub.s32 %s14, 1
    %s20 = ssub.s32 %s14, 2
    %s21 = sadd.s32 %s14, 1
    %s22 = ssub.s32 %s14, %s21
    %p23 = scmp.eq.s32.totalorder %s22, 0
    %s25 = sadd.s32 %s24, 1
    %s26 = scalar_select %p23, %s24, %s25
    %p29 = pneg %p23
    %p30 = scmp.eq.s32.totalorder %s14, 1
    %p31 = por %p29, %p30
    %p32 = scmp.ne.s32.totalorder %s24, %s27
    %p33 = scmp.eq.s32.totalorder %s14, 0
    %p34 = por %p32, %p33
    %p35 = scmp.ne.s32.totalorder %s24, %s27
    %p36 = scmp.eq.s32.totalorder %s19, 1
    %p37 = por %p35, %p36
    %p38 = scmp.ne.s32.totalorder %s27, %s28
    %p39 = scmp.eq.s32.totalorder %s19, 0
    %p40 = por %p38, %p39
    %p41 = scmp.ne.s32.totalorder %s27, %s28
    %p42 = scmp.eq.s32.totalorder %s20, 1
    %p43 = por %p41, %p42
    %p45 = scmp.ne.s32.totalorder %s28, %s44
    %p46 = scmp.eq.s32.totalorder %s20, 0
    %p47 = por %p45, %p46
    %s49 = sadd.s32 %s48, 1
    %p52 = scmp.eq.s32.totalorder %s14, 1
    %p53 = scmp.ne.s32.totalorder %s48, %s50
    %p54 = scmp.eq.s32.totalorder %s14, 0
    %p55 = por %p53, %p54
    %p56 = scmp.ne.s32.totalorder %s48, %s50
    %p57 = scmp.eq.s32.totalorder %s19, 1
    %p58 = por %p56, %p57
    %p59 = scmp.ne.s32.totalorder %s50, %s51
    %p60 = scmp.eq.s32.totalorder %s19, 0
    %p61 = por %p59, %p60
    %p62 = scmp.ne.s32.totalorder %s50, %s51
    %p63 = scmp.eq.s32.totalorder %s20, 1
    %p64 = por %p62, %p63
    %p66 = scmp.ne.s32.totalorder %s51, %s65
    %p67 = scmp.eq.s32.totalorder %s20, 0
    %p68 = por %p66, %p67
    %s70 = sadd.s32 %s69, 1
    %p73 = scmp.eq.s32.totalorder %s14, 1
    %p74 = scmp.ne.s32.totalorder %s69, %s71
    %p75 = scmp.eq.s32.totalorder %s14, 0
    %p76 = por %p74, %p75
    %p77 = scmp.ne.s32.totalorder %s69, %s71
    %p78 = scmp.eq.s32.totalorder %s19, 1
    %p79 = por %p77, %p78
    %p80 = scmp.ne.s32.totalorder %s71, %s72
    %p81 = scmp.eq.s32.totalorder %s19, 0
    %p82 = por %p80, %p81
    %p83 = scmp.ne.s32.totalorder %s71, %s72
    %p84 = scmp.eq.s32.totalorder %s20, 1
    %p85 = por %p83, %p84
    %p87 = scmp.ne.s32.totalorder %s72, %s86
    %p88 = scmp.eq.s32.totalorder %s20, 0
    %p89 = por %p87, %p88
    %s91 = sadd.s32 %s90, 1
    %p94 = scmp.eq.s32.totalorder %s14, 1
    %p95 = scmp.ne.s32.totalorder %s90, %s92
    %p96 = scmp.eq.s32.totalorder %s14, 0
    %p97 = por %p95, %p96
    %p98 = scmp.ne.s32.totalorder %s90, %s92
    %p99 = scmp.eq.s32.totalorder %s19, 1
    %p100 = por %p98, %p99
    %p101 = scmp.ne.s32.totalorder %s92, %s93
    %p102 = scmp.eq.s32.totalorder %s19, 0
    %p103 = por %p101, %p102
    %p104 = scmp.ne.s32.totalorder %s92, %s93
    %p105 = scmp.eq.s32.totalorder %s20, 1
    %p106 = por %p104, %p105
    %p108 = scmp.ne.s32.totalorder %s93, %s107
    %p109 = scmp.eq.s32.totalorder %s20, 0
    %p110 = por %p108, %p109
    %s112 = sadd.s32 %s111, 1
    %p115 = scmp.eq.s32.totalorder %s14, 1
    %p116 = scmp.ne.s32.totalorder %s111, %s113
    %p117 = scmp.eq.s32.totalorder %s14, 0
    %p118 = por %p116, %p117
    %p119 = scmp.ne.s32.totalorder %s111, %s113
    %p120 = scmp.eq.s32.totalorder %s19, 1
    %p121 = por %p119, %p120
    %p122 = scmp.ne.s32.totalorder %s113, %s114
    %p123 = scmp.eq.s32.totalorder %s19, 0
    %p124 = por %p122, %p123
    %p125 = scmp.ne.s32.totalorder %s113, %s114
    %p126 = scmp.eq.s32.totalorder %s20, 1
    %p127 = por %p125, %p126
    %p129 = scmp.ne.s32.totalorder %s114, %s128
    %p130 = scmp.eq.s32.totalorder %s20, 0
    %p131 = por %p129, %p130
    %s133 = sadd.s32 %s132, 1
    %p136 = scmp.eq.s32.totalorder %s14, 1
    %p137 = scmp.ne.s32.totalorder %s132, %s134
    %p138 = scmp.eq.s32.totalorder %s14, 0
    %p139 = por %p137, %p138
    %p140 = scmp.ne.s32.totalorder %s132, %s134
    %p141 = scmp.eq.s32.totalorder %s19, 1
    %p142 = por %p140, %p141
    %p143 = scmp.ne.s32.totalorder %s134, %s135
    %p144 = scmp.eq.s32.totalorder %s19, 0
    %p145 = por %p143, %p144
    %p146 = scmp.ne.s32.totalorder %s134, %s135
    %p147 = scmp.eq.s32.totalorder %s20, 1
    %p148 = por %p146, %p147
    %p150 = scmp.ne.s32.totalorder %s135, %s149
    %p151 = scmp.eq.s32.totalorder %s20, 0
    %p152 = por %p150, %p151
    %s153 = ssub.s32 %s14, %s21
    %p154 = scmp.eq.s32.totalorder %s153, 0
    %s156 = sadd.s32 %s155, 1
    %s157 = scalar_select %p154, %s155, %s156
    %p160 = pneg %p154
    %p161 = scmp.eq.s32.totalorder %s14, 1
    %p162 = por %p160, %p161
    %p163 = scmp.ne.s32.totalorder %s155, %s158
    %p164 = scmp.eq.s32.totalorder %s14, 0
    %p165 = por %p163, %p164
    %p166 = scmp.ne.s32.totalorder %s155, %s158
    %p167 = scmp.eq.s32.totalorder %s19, 1
    %p168 = por %p166, %p167
    %p169 = scmp.ne.s32.totalorder %s158, %s159
    %p170 = scmp.eq.s32.totalorder %s19, 0
    %p171 = por %p169, %p170
    %p172 = scmp.ne.s32.totalorder %s158, %s159
    %p173 = scmp.eq.s32.totalorder %s20, 1
    %p174 = por %p172, %p173
    %p176 = scmp.ne.s32.totalorder %s159, %s175
    %p177 = scmp.eq.s32.totalorder %s20, 0
    %p178 = por %p176, %p177
    %p179 = scmp.le.s32.totalorder 1, %s14
    %p180 = scmp.lt.s32.totalorder %s14, 3
    %p181 = pnand %p179, %p180
    %p182 = pneg %p181
    // Predicated region
    $region9: #{trajsnet_forward.16} parent=5 // pred_check
      _
    $region10: #{trajsnet_forward.16} parent=5 // pred_check_branch
      %184 = sbr.rel (%p181) target = $region12
    $region11: #{trajsnet_forward.16} parent=5 // pred_region
      %s185 = ssub.s32 %s14, 1
      // Predicated region
      $region13: #{trajsnet_forward.16} parent=11 // pred_check
        %p186 = pneg %p61
      $region14: #{trajsnet_forward.16} parent=11 // pred_check_branch
        %188 = sbr.rel (%p186) target = $region16
      $region15: #{trajsnet_forward.16} parent=11 // pred_region
        _
      $region16: #{trajsnet_forward.16} parent=11 // pred_fallthru
        _
      // Predicated region
      $region17: #{trajsnet_forward.16} parent=11 // pred_check
        %p189 = pneg %p82
      $region18: #{trajsnet_forward.16} parent=11 // pred_check_branch
        %191 = sbr.rel (%p189) target = $region20
      $region19: #{trajsnet_forward.16} parent=11 // pred_region
        _
      $region20: #{trajsnet_forward.16} parent=11 // pred_fallthru
        _
      // Predicated region
      $region21: #{trajsnet_forward.16} parent=11 // pred_check
        %p192 = pneg %p103
      $region22: #{trajsnet_forward.16} parent=11 // pred_check_branch
        %194 = sbr.rel (%p192) target = $region24
      $region23: #{trajsnet_forward.16} parent=11 // pred_region
        _
      $region24: #{trajsnet_forward.16} parent=11 // pred_fallthru
        _
      // Predicated region
      $region25: #{trajsnet_forward.16} parent=11 // pred_check
        %p195 = pneg %p124
      $region26: #{trajsnet_forward.16} parent=11 // pred_check_branch
        %197 = sbr.rel (%p195) target = $region28
      $region27: #{trajsnet_forward.16} parent=11 // pred_region
        _
      $region28: #{trajsnet_forward.16} parent=11 // pred_fallthru
        _
      // Predicated region
      $region29: #{trajsnet_forward.16} parent=11 // pred_check
        %p198 = pneg %p145
      $region30: #{trajsnet_forward.16} parent=11 // pred_check_branch
        %200 = sbr.rel (%p198) target = $region32
      $region31: #{trajsnet_forward.16} parent=11 // pred_region
        _
      $region32: #{trajsnet_forward.16} parent=11 // pred_fallthru
        _
    $region12: #{trajsnet_forward.16} parent=5 // pred_fallthru
      _
    %p201 = scmp.lt.s32.totalorder %s14, 2
    // Predicated region
    $region33: #{trajsnet_forward.16} parent=5 // pred_check
      %p202 = pneg %p201
    $region34: #{trajsnet_forward.16} parent=5 // pred_check_branch
      %204 = sbr.rel (%p202) target = $region36
    $region35: #{trajsnet_forward.16} parent=5 // pred_region
      // Predicated region
      $region37: #{trajsnet_forward.16} parent=35 // pred_check
        %p205 = pneg %p34
      $region38: #{trajsnet_forward.16} parent=35 // pred_check_branch
        %207 = sbr.rel (%p205) target = $region40
      $region39: #{trajsnet_forward.16} parent=35 // pred_region
        %s208 = smul.u32 2, %s14
        %p209 = scmp.lt.s32.totalorder %s208, 3
        %s210 = scalar_select %p209, %s208, 3
        %s211 = smul.addr %s210, 4
        %s212 = scalar_lea.vmem %s0, %s211
        %s213 = smul.u32 2, %s14
      $region40: #{trajsnet_forward.16} parent=35 // pred_fallthru
        _
    $region36: #{trajsnet_forward.16} parent=5 // pred_fallthru
      _
    %p214 = scmp.le.s32.totalorder 1, %s14
    %p215 = scmp.lt.s32.totalorder %s14, 3
    %p216 = pnand %p214, %p215
    %p217 = pneg %p216
    // Predicated region
    $region41: #{trajsnet_forward.16} parent=5 // pred_check
      _
    $region42: #{trajsnet_forward.16} parent=5 // pred_check_branch
      %219 = sbr.rel (%p216) target = $region44
    $region43: #{trajsnet_forward.16} parent=5 // pred_region
      %s220 = ssub.s32 %s14, 1
      %s221 = smul.u32 2, %s19
      %p222 = scmp.lt.s32.totalorder %s221, 3
      %s223 = scalar_select %p222, %s221, 3
      %s224 = smul.addr %s223, 4
      %s225 = scalar_lea.vmem %s0, %s224
      %p226 = pneg %p40
      %p227 = pneg %p37
      %p228 = pneg %p61
      %p229 = pneg %p58
      %p230 = pneg %p82
      %p231 = pneg %p79
      %p232 = pneg %p103
      %p233 = pneg %p100
      %p234 = pneg %p124
      %p235 = pneg %p121
      %p236 = pneg %p145
      %p237 = pneg %p142
      %p238 = pneg %p171
      %p239 = pneg %p168
      %s240 = smul.u32 2, %s19
      %p241 = scmp.lt.s32.totalorder %s240, 3
      %s242 = scalar_select %p241, %s240, 3
      %s243 = smul.addr %s242, 8
      %s244 = scalar_lea.vmem %s6, %s243
      %s245 = smul.u32 2, %s19
      %p246 = scmp.lt.s32.totalorder %s245, 3
      %s247 = scalar_select %p246, %s245, 3
      %s248 = smul.addr %s247, 4
      %s249 = scalar_lea.vmem %s0, %s248
      %s250 = smul.u32 2, %s19
      %s251 = smul.u32 2, %s19
      %p252 = scmp.lt.s32.totalorder %s251, 3
      %s253 = scalar_select %p252, %s251, 3
      %s254 = smul.addr %s253, 8
      %s255 = scalar_lea.vmem %s6, %s254
      %s256 = smul.u32 2, %s19
      %v257 = vld [vmem:[%s249] sm:$0xf]
      %v258 = vld [vmem:[%s249 + $0x4] sm:$0xf]
      %v259 = vld [vmem:[%s3] sm:$0x1]
      %v260 = vunpack.c.l.bf16 %v257
      %v261 = vunpack.c.l.bf16 %v258
      %v262 = vld [vmem:[%s1] sm:$0x1]
      %v263 = vunpack.c.l.bf16 %v262
      %265 = vset.pattern.permute.xlu0 0
      %266 = vperm.xlu0 %265, %v260
      %v267 = vpop.permute.xlu0 %266
      %270 = vset.pattern.permute.xlu0 0
      %271 = vperm.xlu0 %270, %v261
      %v272 = vpop.permute.xlu0 %271
      %v274 = vlaneseq
      %v275 = vshrl.u32 %v274, 7
      %v276 = vsub.s32 0, %v275
      %v277 = vrot.slane %v263, %v276
      %v278 = vmul.f32 %v267, %v277
      %v279 = vmul.f32 %v272, %v277
      %v281 = vlaneseq
      %v282 = vshrl.u32 %v281, 7
      %v283 = vsub.s32 0, %v282
      %v284 = vrot.slane %v259, %v283
      %v286 = vadd.f32 %v284, %v278
      %v287 = vadd.f32 %v284, %v279
      %v288 = vmul.f32 %v260, %v260
      %v289 = vmul.f32 %v261, %v261
      %v290 = vld [vmem:[%s2] sm:$0x1]
      %v291 = vunpack.c.l.bf16 %v290
      %293 = vset.pattern.permute.xlu0 0
      %294 = vperm.xlu0 %293, %v288
      %v295 = vpop.permute.xlu0 %294
      %298 = vset.pattern.permute.xlu0 0
      %299 = vperm.xlu0 %298, %v289
      %v300 = vpop.permute.xlu0 %299
      %v302 = vlaneseq
      %v303 = vshrl.u32 %v302, 7
      %v304 = vsub.s32 0, %v303
      %v305 = vrot.slane %v291, %v304
      %v306 = vmul.f32 %v295, %v305
      %v307 = vmul.f32 %v300, %v305
      %v308 = vadd.f32 %v286, %v306
      %v309 = vadd.f32 %v287, %v307
      %vm310 = vcmp.gt.f32.partialorder %v308, 0.0
      %vm311 = vcmp.gt.f32.partialorder %v309, 0.0
      %v312 = vmul.f32 %v308, 0.2
      %v313 = vmul.f32 %v309, 0.2
      %v314 = vsel %vm310, %v308, %v312
      %v315 = vsel %vm311, %v309, %v313
      %v316 = vld [vmem:[#allocation2] sm:$0x1]
      %v317 = vld [vmem:[%s4] sm:$0x1]
      %v318 = vunpack.c.l.bf16 %v317
      %v319 = vlaneseq
      %v320 = vshrl.u32 %v319, 7
      %v321 = vsub.s32 0, %v320
      %v322 = vrot.slane %v318, %v321
      %v323 = vmul.f32 %v314, %v322
      %v324 = vmul.f32 %v315, %v322
      %v325 = vlaneseq
      %v326 = vshrl.u32 %v325, 7
      %v327 = vsub.s32 1, %v326
      %v328 = vrot.slane %v318, %v327
      %330 = vrot.lane.b32.xlu0 %v328, 1
      %v331 = vpop.permute.xlu0 %330
      %v333 = vmul.f32 %v314, %v331
      %v334 = vmul.f32 %v315, %v331
      %337 = vrot.lane.b32.xlu0 %v333, 127
      %v338 = vpop.permute.xlu0 %337
      %339 = vrot.lane.b32.xlu0 %v334, 127
      %v340 = vpop.permute.xlu0 %339
      %v343 = vadd.f32 %v323, %v338
      %v344 = vadd.f32 %v324, %v340
      %v346 = vlaneseq
      %v347 = vshrl.u32 %v346, 7
      %v348 = vsub.s32 0, %v347
      %v349 = vrot.slane %v316, %v348
      %v351 = vadd.f32 %v343, %v349
      %v352 = vadd.f32 %v344, %v349
      %vm353 = vcmask 7168
      %354 = vst.msk [vmem:[%s255] sm:$0xff] %vm353, %v351
      %355 = vst.msk [vmem:[%s255 + $0x8] sm:$0xff] %vm353, %v352
      %s356 = smul.u32 2, %s19
      %p357 = scmp.lt.s32.totalorder %s356, 3
      %s358 = scalar_select %p357, %s356, 3
      %s359 = smul.addr %s358, 8
      %s360 = scalar_lea.vmem %s6, %s359
      // Predicated region
      $region45: #{trajsnet_forward.16} parent=43 // pred_check
        %p361 = pneg %p168
      $region46: #{trajsnet_forward.16} parent=43 // pred_check_branch
        %363 = sbr.rel (%p361) target = $region48
      $region47: #{trajsnet_forward.16} parent=43 // pred_region
        %s364 = smul.u32 2, %s19
      $region48: #{trajsnet_forward.16} parent=43 // pred_fallthru
        _
    $region44: #{trajsnet_forward.16} parent=5 // pred_fallthru
      _
    %p365 = scmp.le.s32.totalorder 2, %s14
    // Predicated region
    $region49: #{trajsnet_forward.16} parent=5 // pred_check
      %p366 = pneg %p365
    $region50: #{trajsnet_forward.16} parent=5 // pred_check_branch
      %368 = sbr.rel (%p366) target = $region52
    $region51: #{trajsnet_forward.16} parent=5 // pred_region
      %s369 = ssub.s32 %s14, 2
      // Predicated region
      $region53: #{trajsnet_forward.16} parent=51 // pred_check
        %p370 = pneg %p174
      $region54: #{trajsnet_forward.16} parent=51 // pred_check_branch
        %372 = sbr.rel (%p370) target = $region56
      $region55: #{trajsnet_forward.16} parent=51 // pred_region
        %s373 = smul.u32 2, %s20
        %p374 = scmp.lt.s32.totalorder %s373, 3
        %s375 = scalar_select %p374, %s373, 3
        %s376 = smul.addr %s375, 8
        %s377 = scalar_lea.vmem %s6, %s376
      $region56: #{trajsnet_forward.16} parent=51 // pred_fallthru
        _
    $region52: #{trajsnet_forward.16} parent=5 // pred_fallthru
      _
  $region6: #{trajsnet_forward.16} parent=0 // loop_footer
    %s18 = sadd.s32 1, %s14
  $region7: #{trajsnet_forward.16} parent=0 // loop_footer_branch
    %13 = sbr.rel target = $region3
  $region8: #{trajsnet_forward.16} parent=0 // loop_exit
    _

// kernel: trajsnet_forward.17
$region0: #{trajsnet_forward.17}
  #allocation0 [shape = 'u32[]', space=smem, size = 0x4, offset = 0x4, fixed_abs, tag = 'smem constant byte address 0x4 - core index']
  #allocation1 [shape = 'u32[144,128]{1,0:T(1,128)}', space=vmem, size = 0x12000, scoped, tag = 'internal scratch']
  %s0 = inlined_call_operand.vmem [shape: bf16[32,1], index: 0, kind: input, shape index: {}]
  %s1 = inlined_call_operand.vmem [shape: bf16[32,1], index: 1, kind: input, shape index: {}]
  %s2 = inlined_call_operand.vmem [shape: bf16[32,1], index: 2, kind: input, shape index: {}]
  %s3 = inlined_call_operand.vmem [shape: bf16[1,128], index: 3, kind: input, shape index: {}]
  %s4 = inlined_call_operand.vmem [shape: bf16[1,128], index: 4, kind: input, shape index: {}]
  %s5 = inlined_call_operand.vmem [shape: bf16[1,128], index: 5, kind: input, shape index: {}]
  %s6 = inlined_call_operand.vmem [shape: f32[1,128], index: 6, kind: input, shape index: {}]
  %s7 = inlined_call_operand.vmem [shape: bf16[128,64], index: 7, kind: input, shape index: {}]
  %s8 = inlined_call_operand.vmem [shape: f32[1,64], index: 8, kind: input, shape index: {}]
  %s9 = inlined_call_operand.vmem [shape: bf16[64,32], index: 9, kind: input, shape index: {}]
  %s10 = inlined_call_operand.vmem [shape: f32[1,32], index: 10, kind: input, shape index: {}]
  %s11 = inlined_call_operand.vmem [shape: bf16[32,64], index: 11, kind: input, shape index: {}]
  %s12 = inlined_call_operand.vmem [shape: f32[1,64], index: 12, kind: input, shape index: {}]
  %s13 = inlined_call_operand.vmem [shape: f32[32,64], index: 13, kind: output, shape index: {}]
  %s14 = sld [smem:[#allocation0]]
  $region85: #{trajsnet_forward.17} parent=0
    _
  %s16 = ssub.s32 1, %s14
  %s17 = scalar_select 0, %s16, %s14
  loop: start=0, step=1, limit=4
  $region2: #{trajsnet_forward.17} parent=0 // loop_pre_header
    _
  $region3: #{trajsnet_forward.17} parent=0 // loop_header
    %s19 = sphi 0, %s23
    %p20 = scmp.ge.s32.totalorder %s19, 4
    %s29 = sphi 0, %s31
    %s32 = sphi 0, %s29
    %s33 = sphi 0, %s32
    %s49 = sphi 0, %s33
    %s55 = sphi 0, %s57
    %s58 = sphi 0, %s55
    %s59 = sphi 0, %s58
    %s75 = sphi 0, %s59
    %s81 = sphi 0, %s83
    %s84 = sphi 0, %s81
    %s85 = sphi 0, %s84
    %s101 = sphi 0, %s85
    %s105 = sphi 0, %s105
    %s107 = sphi 0, %s105
    %s108 = sphi 0, %s107
    %s122 = sphi 0, %s108
    %s126 = sphi 0, %s126
    %s128 = sphi 0, %s126
    %s129 = sphi 0, %s128
    %s143 = sphi 0, %s129
    %s147 = sphi 0, %s147
    %s149 = sphi 0, %s147
    %s150 = sphi 0, %s149
    %s164 = sphi 0, %s150
    %s168 = sphi 0, %s168
    %s170 = sphi 0, %s168
    %s171 = sphi 0, %s170
    %s185 = sphi 0, %s171
    %s189 = sphi 0, %s189
    %s191 = sphi 0, %s189
    %s192 = sphi 0, %s191
    %s206 = sphi 0, %s192
    %s210 = sphi 0, %s210
    %s212 = sphi 0, %s210
    %s213 = sphi 0, %s212
    %s227 = sphi 0, %s213
    %s231 = sphi 0, %s231
    %s233 = sphi 0, %s231
    %s234 = sphi 0, %s233
    %s248 = sphi 0, %s234
    %s252 = sphi 0, %s252
    %s254 = sphi 0, %s252
    %s255 = sphi 0, %s254
    %s269 = sphi 0, %s255
    %s273 = sphi 0, %s273
    %s275 = sphi 0, %s273
    %s276 = sphi 0, %s275
    %s290 = sphi 0, %s276
    %s294 = sphi 0, %s294
    %s296 = sphi 0, %s294
    %s297 = sphi 0, %s296
    %s311 = sphi 0, %s297
    %s317 = sphi 0, %s319
    %s320 = sphi 0, %s317
    %s321 = sphi 0, %s320
    %s337 = sphi 0, %s321
  $region4: #{trajsnet_forward.17} parent=0 // loop_header_branch
    %22 = sbr.rel (%p20) target = $region8
  $region5: #{trajsnet_forward.17} parent=0 // loop_body
    %s24 = ssub.s32 %s19, 1
    %s25 = ssub.s32 %s19, 2
    %s26 = sadd.s32 %s19, 1
    %s27 = ssub.s32 %s19, %s26
    %p28 = scmp.eq.s32.totalorder %s27, 0
    %s30 = sadd.s32 %s29, 1
    %s31 = scalar_select %p28, %s29, %s30
    %p34 = pneg %p28
    %p35 = scmp.eq.s32.totalorder %s19, 1
    %p36 = por %p34, %p35
    %p37 = scmp.ne.s32.totalorder %s29, %s32
    %p38 = scmp.eq.s32.totalorder %s19, 0
    %p39 = por %p37, %p38
    %p40 = scmp.ne.s32.totalorder %s29, %s32
    %p41 = scmp.eq.s32.totalorder %s24, 1
    %p42 = por %p40, %p41
    %p43 = scmp.ne.s32.totalorder %s32, %s33
    %p44 = scmp.eq.s32.totalorder %s24, 0
    %p45 = por %p43, %p44
    %p46 = scmp.ne.s32.totalorder %s32, %s33
    %p47 = scmp.eq.s32.totalorder %s25, 1
    %p48 = por %p46, %p47
    %p50 = scmp.ne.s32.totalorder %s33, %s49
    %p51 = scmp.eq.s32.totalorder %s25, 0
    %p52 = por %p50, %p51
    %s53 = ssub.s32 %s19, %s26
    %p54 = scmp.eq.s32.totalorder %s53, 0
    %s56 = sadd.s32 %s55, 1
    %s57 = scalar_select %p54, %s55, %s56
    %p60 = pneg %p54
    %p61 = scmp.eq.s32.totalorder %s19, 1
    %p62 = por %p60, %p61
    %p63 = scmp.ne.s32.totalorder %s55, %s58
    %p64 = scmp.eq.s32.totalorder %s19, 0
    %p65 = por %p63, %p64
    %p66 = scmp.ne.s32.totalorder %s55, %s58
    %p67 = scmp.eq.s32.totalorder %s24, 1
    %p68 = por %p66, %p67
    %p69 = scmp.ne.s32.totalorder %s58, %s59
    %p70 = scmp.eq.s32.totalorder %s24, 0
    %p71 = por %p69, %p70
    %p72 = scmp.ne.s32.totalorder %s58, %s59
    %p73 = scmp.eq.s32.totalorder %s25, 1
    %p74 = por %p72, %p73
    %p76 = scmp.ne.s32.totalorder %s59, %s75
    %p77 = scmp.eq.s32.totalorder %s25, 0
    %p78 = por %p76, %p77
    %s79 = ssub.s32 %s19, %s26
    %p80 = scmp.eq.s32.totalorder %s79, 0
    %s82 = sadd.s32 %s81, 1
    %s83 = scalar_select %p80, %s81, %s82
    %p86 = pneg %p80
    %p87 = scmp.eq.s32.totalorder %s19, 1
    %p88 = por %p86, %p87
    %p89 = scmp.ne.s32.totalorder %s81, %s84
    %p90 = scmp.eq.s32.totalorder %s19, 0
    %p91 = por %p89, %p90
    %p92 = scmp.ne.s32.totalorder %s81, %s84
    %p93 = scmp.eq.s32.totalorder %s24, 1
    %p94 = por %p92, %p93
    %p95 = scmp.ne.s32.totalorder %s84, %s85
    %p96 = scmp.eq.s32.totalorder %s24, 0
    %p97 = por %p95, %p96
    %p98 = scmp.ne.s32.totalorder %s84, %s85
    %p99 = scmp.eq.s32.totalorder %s25, 1
    %p100 = por %p98, %p99
    %p102 = scmp.ne.s32.totalorder %s85, %s101
    %p103 = scmp.eq.s32.totalorder %s25, 0
    %p104 = por %p102, %p103
    %s106 = sadd.s32 %s105, 1
    %p109 = scmp.eq.s32.totalorder %s19, 1
    %p110 = scmp.ne.s32.totalorder %s105, %s107
    %p111 = scmp.eq.s32.totalorder %s19, 0
    %p112 = por %p110, %p111
    %p113 = scmp.ne.s32.totalorder %s105, %s107
    %p114 = scmp.eq.s32.totalorder %s24, 1
    %p115 = por %p113, %p114
    %p116 = scmp.ne.s32.totalorder %s107, %s108
    %p117 = scmp.eq.s32.totalorder %s24, 0
    %p118 = por %p116, %p117
    %p119 = scmp.ne.s32.totalorder %s107, %s108
    %p120 = scmp.eq.s32.totalorder %s25, 1
    %p121 = por %p119, %p120
    %p123 = scmp.ne.s32.totalorder %s108, %s122
    %p124 = scmp.eq.s32.totalorder %s25, 0
    %p125 = por %p123, %p124
    %s127 = sadd.s32 %s126, 1
    %p130 = scmp.eq.s32.totalorder %s19, 1
    %p131 = scmp.ne.s32.totalorder %s126, %s128
    %p132 = scmp.eq.s32.totalorder %s19, 0
    %p133 = por %p131, %p132
    %p134 = scmp.ne.s32.totalorder %s126, %s128
    %p135 = scmp.eq.s32.totalorder %s24, 1
    %p136 = por %p134, %p135
    %p137 = scmp.ne.s32.totalorder %s128, %s129
    %p138 = scmp.eq.s32.totalorder %s24, 0
    %p139 = por %p137, %p138
    %p140 = scmp.ne.s32.totalorder %s128, %s129
    %p141 = scmp.eq.s32.totalorder %s25, 1
    %p142 = por %p140, %p141
    %p144 = scmp.ne.s32.totalorder %s129, %s143
    %p145 = scmp.eq.s32.totalorder %s25, 0
    %p146 = por %p144, %p145
    %s148 = sadd.s32 %s147, 1
    %p151 = scmp.eq.s32.totalorder %s19, 1
    %p152 = scmp.ne.s32.totalorder %s147, %s149
    %p153 = scmp.eq.s32.totalorder %s19, 0
    %p154 = por %p152, %p153
    %p155 = scmp.ne.s32.totalorder %s147, %s149
    %p156 = scmp.eq.s32.totalorder %s24, 1
    %p157 = por %p155, %p156
    %p158 = scmp.ne.s32.totalorder %s149, %s150
    %p159 = scmp.eq.s32.totalorder %s24, 0
    %p160 = por %p158, %p159
    %p161 = scmp.ne.s32.totalorder %s149, %s150
    %p162 = scmp.eq.s32.totalorder %s25, 1
    %p163 = por %p161, %p162
    %p165 = scmp.ne.s32.totalorder %s150, %s164
    %p166 = scmp.eq.s32.totalorder %s25, 0
    %p167 = por %p165, %p166
    %s169 = sadd.s32 %s168, 1
    %p172 = scmp.eq.s32.totalorder %s19, 1
    %p173 = scmp.ne.s32.totalorder %s168, %s170
    %p174 = scmp.eq.s32.totalorder %s19, 0
    %p175 = por %p173, %p174
    %p176 = scmp.ne.s32.totalorder %s168, %s170
    %p177 = scmp.eq.s32.totalorder %s24, 1
    %p178 = por %p176, %p177
    %p179 = scmp.ne.s32.totalorder %s170, %s171
    %p180 = scmp.eq.s32.totalorder %s24, 0
    %p181 = por %p179, %p180
    %p182 = scmp.ne.s32.totalorder %s170, %s171
    %p183 = scmp.eq.s32.totalorder %s25, 1
    %p184 = por %p182, %p183
    %p186 = scmp.ne.s32.totalorder %s171, %s185
    %p187 = scmp.eq.s32.totalorder %s25, 0
    %p188 = por %p186, %p187
    %s190 = sadd.s32 %s189, 1
    %p193 = scmp.eq.s32.totalorder %s19, 1
    %p194 = scmp.ne.s32.totalorder %s189, %s191
    %p195 = scmp.eq.s32.totalorder %s19, 0
    %p196 = por %p194, %p195
    %p197 = scmp.ne.s32.totalorder %s189, %s191
    %p198 = scmp.eq.s32.totalorder %s24, 1
    %p199 = por %p197, %p198
    %p200 = scmp.ne.s32.totalorder %s191, %s192
    %p201 = scmp.eq.s32.totalorder %s24, 0
    %p202 = por %p200, %p201
    %p203 = scmp.ne.s32.totalorder %s191, %s192
    %p204 = scmp.eq.s32.totalorder %s25, 1
    %p205 = por %p203, %p204
    %p207 = scmp.ne.s32.totalorder %s192, %s206
    %p208 = scmp.eq.s32.totalorder %s25, 0
    %p209 = por %p207, %p208
    %s211 = sadd.s32 %s210, 1
    %p214 = scmp.eq.s32.totalorder %s19, 1
    %p215 = scmp.ne.s32.totalorder %s210, %s212
    %p216 = scmp.eq.s32.totalorder %s19, 0
    %p217 = por %p215, %p216
    %p218 = scmp.ne.s32.totalorder %s210, %s212
    %p219 = scmp.eq.s32.totalorder %s24, 1
    %p220 = por %p218, %p219
    %p221 = scmp.ne.s32.totalorder %s212, %s213
    %p222 = scmp.eq.s32.totalorder %s24, 0
    %p223 = por %p221, %p222
    %p224 = scmp.ne.s32.totalorder %s212, %s213
    %p225 = scmp.eq.s32.totalorder %s25, 1
    %p226 = por %p224, %p225
    %p228 = scmp.ne.s32.totalorder %s213, %s227
    %p229 = scmp.eq.s32.totalorder %s25, 0
    %p230 = por %p228, %p229
    %s232 = sadd.s32 %s231, 1
    %p235 = scmp.eq.s32.totalorder %s19, 1
    %p236 = scmp.ne.s32.totalorder %s231, %s233
    %p237 = scmp.eq.s32.totalorder %s19, 0
    %p238 = por %p236, %p237
    %p239 = scmp.ne.s32.totalorder %s231, %s233
    %p240 = scmp.eq.s32.totalorder %s24, 1
    %p241 = por %p239, %p240
    %p242 = scmp.ne.s32.totalorder %s233, %s234
    %p243 = scmp.eq.s32.totalorder %s24, 0
    %p244 = por %p242, %p243
    %p245 = scmp.ne.s32.totalorder %s233, %s234
    %p246 = scmp.eq.s32.totalorder %s25, 1
    %p247 = por %p245, %p246
    %p249 = scmp.ne.s32.totalorder %s234, %s248
    %p250 = scmp.eq.s32.totalorder %s25, 0
    %p251 = por %p249, %p250
    %s253 = sadd.s32 %s252, 1
    %p256 = scmp.eq.s32.totalorder %s19, 1
    %p257 = scmp.ne.s32.totalorder %s252, %s254
    %p258 = scmp.eq.s32.totalorder %s19, 0
    %p259 = por %p257, %p258
    %p260 = scmp.ne.s32.totalorder %s252, %s254
    %p261 = scmp.eq.s32.totalorder %s24, 1
    %p262 = por %p260, %p261
    %p263 = scmp.ne.s32.totalorder %s254, %s255
    %p264 = scmp.eq.s32.totalorder %s24, 0
    %p265 = por %p263, %p264
    %p266 = scmp.ne.s32.totalorder %s254, %s255
    %p267 = scmp.eq.s32.totalorder %s25, 1
    %p268 = por %p266, %p267
    %p270 = scmp.ne.s32.totalorder %s255, %s269
    %p271 = scmp.eq.s32.totalorder %s25, 0
    %p272 = por %p270, %p271
    %s274 = sadd.s32 %s273, 1
    %p277 = scmp.eq.s32.totalorder %s19, 1
    %p278 = scmp.ne.s32.totalorder %s273, %s275
    %p279 = scmp.eq.s32.totalorder %s19, 0
    %p280 = por %p278, %p279
    %p281 = scmp.ne.s32.totalorder %s273, %s275
    %p282 = scmp.eq.s32.totalorder %s24, 1
    %p283 = por %p281, %p282
    %p284 = scmp.ne.s32.totalorder %s275, %s276
    %p285 = scmp.eq.s32.totalorder %s24, 0
    %p286 = por %p284, %p285
    %p287 = scmp.ne.s32.totalorder %s275, %s276
    %p288 = scmp.eq.s32.totalorder %s25, 1
    %p289 = por %p287, %p288
    %p291 = scmp.ne.s32.totalorder %s276, %s290
    %p292 = scmp.eq.s32.totalorder %s25, 0
    %p293 = por %p291, %p292
    %s295 = sadd.s32 %s294, 1
    %p298 = scmp.eq.s32.totalorder %s19, 1
    %p299 = scmp.ne.s32.totalorder %s294, %s296
    %p300 = scmp.eq.s32.totalorder %s19, 0
    %p301 = por %p299, %p300
    %p302 = scmp.ne.s32.totalorder %s294, %s296
    %p303 = scmp.eq.s32.totalorder %s24, 1
    %p304 = por %p302, %p303
    %p305 = scmp.ne.s32.totalorder %s296, %s297
    %p306 = scmp.eq.s32.totalorder %s24, 0
    %p307 = por %p305, %p306
    %p308 = scmp.ne.s32.totalorder %s296, %s297
    %p309 = scmp.eq.s32.totalorder %s25, 1
    %p310 = por %p308, %p309
    %p312 = scmp.ne.s32.totalorder %s297, %s311
    %p313 = scmp.eq.s32.totalorder %s25, 0
    %p314 = por %p312, %p313
    %s315 = ssub.s32 %s19, %s26
    %p316 = scmp.eq.s32.totalorder %s315, 0
    %s318 = sadd.s32 %s317, 1
    %s319 = scalar_select %p316, %s317, %s318
    %p322 = pneg %p316
    %p323 = scmp.eq.s32.totalorder %s19, 1
    %p324 = por %p322, %p323
    %p325 = scmp.ne.s32.totalorder %s317, %s320
    %p326 = scmp.eq.s32.totalorder %s19, 0
    %p327 = por %p325, %p326
    %p328 = scmp.ne.s32.totalorder %s317, %s320
    %p329 = scmp.eq.s32.totalorder %s24, 1
    %p330 = por %p328, %p329
    %p331 = scmp.ne.s32.totalorder %s320, %s321
    %p332 = scmp.eq.s32.totalorder %s24, 0
    %p333 = por %p331, %p332
    %p334 = scmp.ne.s32.totalorder %s320, %s321
    %p335 = scmp.eq.s32.totalorder %s25, 1
    %p336 = por %p334, %p335
    %p338 = scmp.ne.s32.totalorder %s321, %s337
    %p339 = scmp.eq.s32.totalorder %s25, 0
    %p340 = por %p338, %p339
    %p341 = scmp.le.s32.totalorder 1, %s19
    %p342 = scmp.lt.s32.totalorder %s19, 3
    %p343 = pnand %p341, %p342
    %p344 = pneg %p343
    // Predicated region
    $region9: #{trajsnet_forward.17} parent=5 // pred_check
      _
    $region10: #{trajsnet_forward.17} parent=5 // pred_check_branch
      %346 = sbr.rel (%p343) target = $region12
    $region11: #{trajsnet_forward.17} parent=5 // pred_region
      %s347 = ssub.s32 %s19, 1
      // Predicated region
      $region13: #{trajsnet_forward.17} parent=11 // pred_check
        %p348 = pneg %p118
      $region14: #{trajsnet_forward.17} parent=11 // pred_check_branch
        %350 = sbr.rel (%p348) target = $region16
      $region15: #{trajsnet_forward.17} parent=11 // pred_region
        _
      $region16: #{trajsnet_forward.17} parent=11 // pred_fallthru
        _
      // Predicated region
      $region17: #{trajsnet_forward.17} parent=11 // pred_check
        %p351 = pneg %p139
      $region18: #{trajsnet_forward.17} parent=11 // pred_check_branch
        %353 = sbr.rel (%p351) target = $region20
      $region19: #{trajsnet_forward.17} parent=11 // pred_region
        _
      $region20: #{trajsnet_forward.17} parent=11 // pred_fallthru
        _
      // Predicated region
      $region21: #{trajsnet_forward.17} parent=11 // pred_check
        %p354 = pneg %p160
      $region22: #{trajsnet_forward.17} parent=11 // pred_check_branch
        %356 = sbr.rel (%p354) target = $region24
      $region23: #{trajsnet_forward.17} parent=11 // pred_region
        _
      $region24: #{trajsnet_forward.17} parent=11 // pred_fallthru
        _
      // Predicated region
      $region25: #{trajsnet_forward.17} parent=11 // pred_check
        %p357 = pneg %p181
      $region26: #{trajsnet_forward.17} parent=11 // pred_check_branch
        %359 = sbr.rel (%p357) target = $region28
      $region27: #{trajsnet_forward.17} parent=11 // pred_region
        _
      $region28: #{trajsnet_forward.17} parent=11 // pred_fallthru
        _
      // Predicated region
      $region29: #{trajsnet_forward.17} parent=11 // pred_check
        %p360 = pneg %p202
      $region30: #{trajsnet_forward.17} parent=11 // pred_check_branch
        %362 = sbr.rel (%p360) target = $region32
      $region31: #{trajsnet_forward.17} parent=11 // pred_region
        _
      $region32: #{trajsnet_forward.17} parent=11 // pred_fallthru
        _
      // Predicated region
      $region33: #{trajsnet_forward.17} parent=11 // pred_check
        %p363 = pneg %p223
      $region34: #{trajsnet_forward.17} parent=11 // pred_check_branch
        %365 = sbr.rel (%p363) target = $region36
      $region35: #{trajsnet_forward.17} parent=11 // pred_region
        _
      $region36: #{trajsnet_forward.17} parent=11 // pred_fallthru
        _
      // Predicated region
      $region37: #{trajsnet_forward.17} parent=11 // pred_check
        %p366 = pneg %p244
      $region38: #{trajsnet_forward.17} parent=11 // pred_check_branch
        %368 = sbr.rel (%p366) target = $region40
      $region39: #{trajsnet_forward.17} parent=11 // pred_region
        _
      $region40: #{trajsnet_forward.17} parent=11 // pred_fallthru
        _
      // Predicated region
      $region41: #{trajsnet_forward.17} parent=11 // pred_check
        %p369 = pneg %p265
      $region42: #{trajsnet_forward.17} parent=11 // pred_check_branch
        %371 = sbr.rel (%p369) target = $region44
      $region43: #{trajsnet_forward.17} parent=11 // pred_region
        _
      $region44: #{trajsnet_forward.17} parent=11 // pred_fallthru
        _
      // Predicated region
      $region45: #{trajsnet_forward.17} parent=11 // pred_check
        %p372 = pneg %p286
      $region46: #{trajsnet_forward.17} parent=11 // pred_check_branch
        %374 = sbr.rel (%p372) target = $region48
      $region47: #{trajsnet_forward.17} parent=11 // pred_region
        _
      $region48: #{trajsnet_forward.17} parent=11 // pred_fallthru
        _
      // Predicated region
      $region49: #{trajsnet_forward.17} parent=11 // pred_check
        %p375 = pneg %p307
      $region50: #{trajsnet_forward.17} parent=11 // pred_check_branch
        %377 = sbr.rel (%p375) target = $region52
      $region51: #{trajsnet_forward.17} parent=11 // pred_region
        _
      $region52: #{trajsnet_forward.17} parent=11 // pred_fallthru
        _
    $region12: #{trajsnet_forward.17} parent=5 // pred_fallthru
      _
    %p378 = scmp.lt.s32.totalorder %s19, 2
    // Predicated region
    $region53: #{trajsnet_forward.17} parent=5 // pred_check
      %p379 = pneg %p378
    $region54: #{trajsnet_forward.17} parent=5 // pred_check_branch
      %381 = sbr.rel (%p379) target = $region56
    $region55: #{trajsnet_forward.17} parent=5 // pred_region
      // Predicated region
      $region57: #{trajsnet_forward.17} parent=55 // pred_check
        %p382 = pneg %p39
      $region58: #{trajsnet_forward.17} parent=55 // pred_check_branch
        %384 = sbr.rel (%p382) target = $region60
      $region59: #{trajsnet_forward.17} parent=55 // pred_region
        %s385 = smul.u32 2, %s19
        %p386 = scmp.lt.s32.totalorder %s385, 3
        %s387 = scalar_select %p386, %s385, 3
        %s388 = smul.addr %s387, 4
        %s389 = scalar_lea.vmem %s0, %s388
        %s390 = smul.u32 2, %s19
      $region60: #{trajsnet_forward.17} parent=55 // pred_fallthru
        _
      // Predicated region
      $region61: #{trajsnet_forward.17} parent=55 // pred_check
        %p391 = pneg %p65
      $region62: #{trajsnet_forward.17} parent=55 // pred_check_branch
        %393 = sbr.rel (%p391) target = $region64
      $region63: #{trajsnet_forward.17} parent=55 // pred_region
        %s394 = smul.u32 2, %s19
        %p395 = scmp.lt.s32.totalorder %s394, 3
        %s396 = scalar_select %p395, %s394, 3
        %s397 = smul.addr %s396, 4
        %s398 = scalar_lea.vmem %s1, %s397
        %s399 = smul.u32 2, %s19
      $region64: #{trajsnet_forward.17} parent=55 // pred_fallthru
        _
      // Predicated region
      $region65: #{trajsnet_forward.17} parent=55 // pred_check
        %p400 = pneg %p91
      $region66: #{trajsnet_forward.17} parent=55 // pred_check_branch
        %402 = sbr.rel (%p400) target = $region68
      $region67: #{trajsnet_forward.17} parent=55 // pred_region
        %s403 = smul.u32 2, %s19
        %p404 = scmp.lt.s32.totalorder %s403, 3
        %s405 = scalar_select %p404, %s403, 3
        %s406 = smul.addr %s405, 4
        %s407 = scalar_lea.vmem %s2, %s406
        %s408 = smul.u32 2, %s19
      $region68: #{trajsnet_forward.17} parent=55 // pred_fallthru
        _
    $region56: #{trajsnet_forward.17} parent=5 // pred_fallthru
      _
    %p409 = scmp.le.s32.totalorder 1, %s19
    %p410 = scmp.lt.s32.totalorder %s19, 3
    %p411 = pnand %p409, %p410
    %p412 = pneg %p411
    // Predicated region
    $region69: #{trajsnet_forward.17} parent=5 // pred_check
      _
    $region70: #{trajsnet_forward.17} parent=5 // pred_check_branch
      %414 = sbr.rel (%p411) target = $region72
    $region71: #{trajsnet_forward.17} parent=5 // pred_region
      %s415 = ssub.s32 %s19, 1
      %s416 = smul.u32 2, %s24
      %p417 = scmp.lt.s32.totalorder %s416, 3
      %s418 = scalar_select %p417, %s416, 3
      %s419 = smul.addr %s418, 4
      %s420 = scalar_lea.vmem %s0, %s419
      %p421 = pneg %p45
      %p422 = pneg %p42
      %s423 = smul.u32 2, %s24
      %p424 = scmp.lt.s32.totalorder %s423, 3
      %s425 = scalar_select %p424, %s423, 3
      %s426 = smul.addr %s425, 4
      %s427 = scalar_lea.vmem %s1, %s426
      %p428 = pneg %p71
      %p429 = pneg %p68
      %s430 = smul.u32 2, %s24
      %p431 = scmp.lt.s32.totalorder %s430, 3
      %s432 = scalar_select %p431, %s430, 3
      %s433 = smul.addr %s432, 4
      %s434 = scalar_lea.vmem %s2, %s433
      %p435 = pneg %p97
      %p436 = pneg %p94
      %p437 = pneg %p118
      %p438 = pneg %p115
      %p439 = pneg %p139
      %p440 = pneg %p136
      %p441 = pneg %p160
      %p442 = pneg %p157
      %p443 = pneg %p181
      %p444 = pneg %p178
      %p445 = pneg %p202
      %p446 = pneg %p199
      %p447 = pneg %p223
      %p448 = pneg %p220
      %p449 = pneg %p244
      %p450 = pneg %p241
      %p451 = pneg %p265
      %p452 = pneg %p262
      %p453 = pneg %p286
      %p454 = pneg %p283
      %p455 = pneg %p307
      %p456 = pneg %p304
      %p457 = pneg %p333
      %p458 = pneg %p330
      %s459 = smul.u32 2, %s24
      %p460 = scmp.lt.s32.totalorder %s459, 3
      %s461 = scalar_select %p460, %s459, 3
      %s462 = smul.addr %s461, 8
      %s463 = scalar_lea.vmem %s13, %s462
      %s464 = smul.u32 2, %s24
      %p465 = scmp.lt.s32.totalorder %s464, 3
      %s466 = scalar_select %p465, %s464, 3
      %s467 = smul.addr %s466, 4
      %s468 = scalar_lea.vmem %s0, %s467
      %s469 = smul.u32 2, %s24
      %s470 = smul.u32 2, %s24
      %p471 = scmp.lt.s32.totalorder %s470, 3
      %s472 = scalar_select %p471, %s470, 3
      %s473 = smul.addr %s472, 4
      %s474 = scalar_lea.vmem %s1, %s473
      %s475 = smul.u32 2, %s24
      %s476 = smul.u32 2, %s24
      %p477 = scmp.lt.s32.totalorder %s476, 3
      %s478 = scalar_select %p477, %s476, 3
      %s479 = smul.addr %s478, 4
      %s480 = scalar_lea.vmem %s2, %s479
      %s481 = smul.u32 2, %s24
      %s482 = smul.u32 2, %s24
      %p483 = scmp.lt.s32.totalorder %s482, 3
      %s484 = scalar_select %p483, %s482, 3
      %s485 = smul.addr %s484, 8
      %s486 = scalar_lea.vmem %s13, %s485
      %s487 = smul.u32 2, %s24
      %v489 = vld [vmem:[%s468] sm:$0xf]
      %v490 = vld [vmem:[%s468 + $0x4] sm:$0xf]
      %v491 = vld [vmem:[%s474] sm:$0xf]
      %v492 = vld [vmem:[%s474 + $0x4] sm:$0xf]
      %v493 = vld [vmem:[%s480] sm:$0xf]
      %v494 = vld [vmem:[%s480 + $0x4] sm:$0xf]
      %v495 = vld [vmem:[%s6] sm:$0x1]
      %v496 = vunpack.c.l.bf16 %v489
      %v497 = vunpack.c.l.bf16 %v490
      %v498 = vld [vmem:[%s3] sm:$0x1]
      %v499 = vunpack.c.l.bf16 %v498
      %501 = vset.pattern.permute.xlu0 0
      %502 = vperm.xlu0 %501, %v496
      %v503 = vpop.permute.xlu0 %502
      %506 = vset.pattern.permute.xlu0 0
      %507 = vperm.xlu0 %506, %v497
      %v508 = vpop.permute.xlu0 %507
      %v510 = vlaneseq
      %v511 = vshrl.u32 %v510, 7
      %v512 = vsub.s32 0, %v511
      %v513 = vrot.slane %v499, %v512
      %v514 = vmul.f32 %v503, %v513
      %v515 = vmul.f32 %v508, %v513
      %v517 = vlaneseq
      %v518 = vshrl.u32 %v517, 7
      %v519 = vsub.s32 0, %v518
      %v520 = vrot.slane %v495, %v519
      %v522 = vadd.f32 %v520, %v514
      %v523 = vadd.f32 %v520, %v515
      %v524 = vunpack.c.l.bf16 %v491
      %v525 = vunpack.c.l.bf16 %v492
      %v526 = vld [vmem:[%s4] sm:$0x1]
      %v527 = vunpack.c.l.bf16 %v526
      %529 = vset.pattern.permute.xlu0 0
      %530 = vperm.xlu0 %529, %v524
      %v531 = vpop.permute.xlu0 %530
      %534 = vset.pattern.permute.xlu0 0
      %535 = vperm.xlu0 %534, %v525
      %v536 = vpop.permute.xlu0 %535
      %v538 = vlaneseq
      %v539 = vshrl.u32 %v538, 7
      %v540 = vsub.s32 0, %v539
      %v541 = vrot.slane %v527, %v540
      %v542 = vmul.f32 %v531, %v541
      %v543 = vmul.f32 %v536, %v541
      %v544 = vadd.f32 %v522, %v542
      %v545 = vadd.f32 %v523, %v543
      %v546 = vunpack.c.l.bf16 %v493
      %v547 = vunpack.c.l.bf16 %v494
      %v548 = vld [vmem:[%s5] sm:$0x1]
      %v549 = vunpack.c.l.bf16 %v548
      %551 = vset.pattern.permute.xlu0 0
      %552 = vperm.xlu0 %551, %v546
      %v553 = vpop.permute.xlu0 %552
      %556 = vset.pattern.permute.xlu0 0
      %557 = vperm.xlu0 %556, %v547
      %v558 = vpop.permute.xlu0 %557
      %v560 = vlaneseq
      %v561 = vshrl.u32 %v560, 7
      %v562 = vsub.s32 0, %v561
      %v563 = vrot.slane %v549, %v562
      %v564 = vmul.f32 %v553, %v563
      %v565 = vmul.f32 %v558, %v563
      %v566 = vadd.f32 %v544, %v564
      %v567 = vadd.f32 %v545, %v565
      %vm568 = vcmp.gt.f32.partialorder %v566, 0.0
      %vm569 = vcmp.gt.f32.partialorder %v567, 0.0
      %v570 = vmul.f32 %v566, 0.2
      %v571 = vmul.f32 %v567, 0.2
      %v572 = vsel %vm568, %v566, %v570
      %v573 = vsel %vm569, %v567, %v571
      %v574 = vld [vmem:[%s8] sm:$0x1]
      %v575 = vpack.c.bf16 %v573, %v572
      %v576 = vld [vmem:[%s7] sm:$0xf]
      %v577 = vld [vmem:[%s7 + $0x4] sm:$0xf]
      %v578 = vld [vmem:[%s7 + $0x8] sm:$0xf]
      %v579 = vld [vmem:[%s7 + $0xc] sm:$0xf]
      %v580 = vld [vmem:[%s7 + $0x10] sm:$0xf]
      %v581 = vld [vmem:[%s7 + $0x14] sm:$0xf]
      %v582 = vld [vmem:[%s7 + $0x18] sm:$0xf]
      %v583 = vld [vmem:[%s7 + $0x1c] sm:$0xf]
      %v584 = vld [vmem:[%s7 + $0x20] sm:$0xf]
      %v585 = vld [vmem:[%s7 + $0x24] sm:$0xf]
      %v586 = vld [vmem:[%s7 + $0x28] sm:$0xf]
      %v587 = vld [vmem:[%s7 + $0x2c] sm:$0xf]
      %v588 = vld [vmem:[%s7 + $0x30] sm:$0xf]
      %v589 = vld [vmem:[%s7 + $0x34] sm:$0xf]
      %v590 = vld [vmem:[%s7 + $0x38] sm:$0xf]
      %v591 = vld [vmem:[%s7 + $0x3c] sm:$0xf]
      %v593 = vlaneseq
      %v594 = vshrl.u32 %v593, 7
      %v595 = vsub.s32 0, %v594
      %v596 = vrot.slane %v574, %v595
      %v614 = vunpack.c.l.b16 %v576
      %v615 = vunpack.c.l.b16 %v577
      %v616 = vunpack.c.l.b16 %v578
      %v617 = vunpack.c.l.b16 %v579
      %v618 = vunpack.c.l.b16 %v580
      %v619 = vunpack.c.l.b16 %v581
      %v620 = vunpack.c.l.b16 %v582
      %v621 = vunpack.c.l.b16 %v583
      %v622 = vunpack.c.l.b16 %v584
      %v623 = vunpack.c.l.b16 %v585
      %v624 = vunpack.c.l.b16 %v586
      %v625 = vunpack.c.l.b16 %v587
      %v626 = vunpack.c.l.b16 %v588
      %v627 = vunpack.c.l.b16 %v589
      %v628 = vunpack.c.l.b16 %v590
      %v629 = vunpack.c.l.b16 %v591
      %v630 = vpack.c.b16 %v615, %v614
      %v631 = vpack.c.b16 %v617, %v616
      %v632 = vpack.c.b16 %v619, %v618
      %v633 = vpack.c.b16 %v621, %v620
      %v634 = vpack.c.b16 %v623, %v622
      %v635 = vpack.c.b16 %v625, %v624
      %v636 = vpack.c.b16 %v627, %v626
      %v637 = vpack.c.b16 %v629, %v628
      %646 = vmatprep.subr.bf16.mxu0 0
      %647 = vmatpush1.bf16.msra.mxu0 %v630
      %648 = vmatprep.subr.bf16.mxu0 0
      %649 = vmatpush1.bf16.msra.mxu0 %v631
      %650 = vmatprep.subr.bf16.mxu0 0
      %651 = vmatpush1.bf16.msra.mxu0 %v632
      %652 = vmatprep.subr.bf16.mxu0 0
      %653 = vmatpush1.bf16.msra.mxu0 %v633
      %654 = vmatprep.subr.bf16.mxu0 0
      %655 = vmatpush1.bf16.msra.mxu0 %v634
      %656 = vmatprep.subr.bf16.mxu0 0
      %657 = vmatpush1.bf16.msra.mxu0 %v635
      %658 = vmatprep.subr.bf16.mxu0 0
      %659 = vmatpush1.bf16.msra.mxu0 %v636
      %660 = vmatprep.subr.bf16.mxu0 0
      %661 = vmatpush1.bf16.msra.mxu0 %v637
      %662 = vmatprep.subr.bf16.mxu0 0
      %663 = vmatpush1.bf16.msra.mxu0 0
      %664 = vmatprep.subr.bf16.mxu0 0
      %665 = vmatpush1.bf16.msra.mxu0 0
      %666 = vmatprep.subr.bf16.mxu0 0
      %667 = vmatpush1.bf16.msra.mxu0 0
      %668 = vmatprep.subr.bf16.mxu0 0
      %669 = vmatpush1.bf16.msra.mxu0 0
      %670 = vmatprep.subr.bf16.mxu0 0
      %671 = vmatpush1.bf16.msra.mxu0 0
      %672 = vmatprep.subr.bf16.mxu0 0
      %673 = vmatpush1.bf16.msra.mxu0 0
      %674 = vmatprep.subr.bf16.mxu0 0
      %675 = vmatpush1.bf16.msra.mxu0 0
      %676 = vmatprep.subr.bf16.mxu0 0
      %677 = vmatpush1.bf16.msra.mxu0 0
      %678 = vmatprep.mubr.bf16.mxu0 0
      %679 = vmatmul.mubr.bf16.gmra.mrb[0].mxu0 %v575
      %v680 = vpop.f32.mrb[0].mxu0
      %v681 = vadd.f32 %v596, %v680
      %v682 = vpop.f32.mrb[0].mxu0
      %v683 = vpop.f32.mrb[0].mxu0
      %v684 = vadd.f32 %v596, %v683
      %v685 = vpop.f32.mrb[0].mxu0
      %686 = vdwg.mxu0
      %vm687 = vcmp.gt.f32.partialorder %v681, 0.0
      %vm688 = vcmp.gt.f32.partialorder %v684, 0.0
      %v689 = vmul.f32 %v681, 0.2
      %v690 = vmul.f32 %v684, 0.2
      %v691 = vsel %vm687, %v681, %v689
      %v692 = vsel %vm688, %v684, %v690
      %v693 = vld [vmem:[%s10] sm:$0x1]
      %v694 = vpack.c.bf16 %v692, %v691
      %v695 = vld [vmem:[%s9] sm:$0xf]
      %v696 = vld [vmem:[%s9 + $0x4] sm:$0xf]
      %v697 = vld [vmem:[%s9 + $0x8] sm:$0xf]
      %v698 = vld [vmem:[%s9 + $0xc] sm:$0xf]
      %v699 = vld [vmem:[%s9 + $0x10] sm:$0xf]
      %v700 = vld [vmem:[%s9 + $0x14] sm:$0xf]
      %v701 = vld [vmem:[%s9 + $0x18] sm:$0xf]
      %v702 = vld [vmem:[%s9 + $0x1c] sm:$0xf]
      %v704 = vlaneseq
      %v705 = vshrl.u32 %v704, 7
      %v706 = vsub.s32 0, %v705
      %v707 = vrot.slane %v693, %v706
      %v717 = vunpack.c.l.b16 %v695
      %v718 = vunpack.c.l.b16 %v696
      %v719 = vunpack.c.l.b16 %v697
      %v720 = vunpack.c.l.b16 %v698
      %v721 = vunpack.c.l.b16 %v699
      %v722 = vunpack.c.l.b16 %v700
      %v723 = vunpack.c.l.b16 %v701
      %v724 = vunpack.c.l.b16 %v702
      %v725 = vpack.c.b16 %v718, %v717
      %v726 = vpack.c.b16 %v720, %v719
      %v727 = vpack.c.b16 %v722, %v721
      %v728 = vpack.c.b16 %v724, %v723
      %vm733 = vcmask 523264
      %v735 = vsel %vm733, %v694, 0
      %737 = vmatprep.subr.bf16.mxu0 0
      %738 = vmatpush1.bf16.msra.mxu0 %v725
      %739 = vmatprep.subr.bf16.mxu0 0
      %740 = vmatpush1.bf16.msra.mxu0 %v726
      %741 = vmatprep.subr.bf16.mxu0 0
      %742 = vmatpush1.bf16.msra.mxu0 %v727
      %743 = vmatprep.subr.bf16.mxu0 0
      %744 = vmatpush1.bf16.msra.mxu0 %v728
      %745 = vmatprep.subr.bf16.mxu0 0
      %746 = vmatpush1.bf16.msra.mxu0 0
      %747 = vmatprep.subr.bf16.mxu0 0
      %748 = vmatpush1.bf16.msra.mxu0 0
      %749 = vmatprep.subr.bf16.mxu0 0
      %750 = vmatpush1.bf16.msra.mxu0 0
      %751 = vmatprep.subr.bf16.mxu0 0
      %752 = vmatpush1.bf16.msra.mxu0 0
      %753 = vmatprep.subr.bf16.mxu0 0
      %754 = vmatpush1.bf16.msra.mxu0 0
      %755 = vmatprep.subr.bf16.mxu0 0
      %756 = vmatpush1.bf16.msra.mxu0 0
      %757 = vmatprep.subr.bf16.mxu0 0
      %758 = vmatpush1.bf16.msra.mxu0 0
      %759 = vmatprep.subr.bf16.mxu0 0
      %760 = vmatpush1.bf16.msra.mxu0 0
      %761 = vmatprep.subr.bf16.mxu0 0
      %762 = vmatpush1.bf16.msra.mxu0 0
      %763 = vmatprep.subr.bf16.mxu0 0
      %764 = vmatpush1.bf16.msra.mxu0 0
      %765 = vmatprep.subr.bf16.mxu0 0
      %766 = vmatpush1.bf16.msra.mxu0 0
      %767 = vmatprep.subr.bf16.mxu0 0
      %768 = vmatpush1.bf16.msra.mxu0 0
      %769 = vmatprep.mubr.bf16.mxu0 0
      %770 = vmatmul.mubr.bf16.gmra.mrb[0].mxu0 %v735
      %v771 = vpop.f32.mrb[0].mxu0
      %v772 = vadd.f32 %v707, %v771
      %v773 = vpop.f32.mrb[0].mxu0
      %v774 = vpop.f32.mrb[0].mxu0
      %v775 = vadd.f32 %v707, %v774
      %v776 = vpop.f32.mrb[0].mxu0
      %777 = vdwg.mxu0
      %vm778 = vcmp.gt.f32.partialorder %v772, 0.0
      %vm779 = vcmp.gt.f32.partialorder %v775, 0.0
      %v780 = vmul.f32 %v772, 0.2
      %v781 = vmul.f32 %v775, 0.2
      %v782 = vsel %vm778, %v772, %v780
      %v783 = vsel %vm779, %v775, %v781
      %v784 = vld [vmem:[%s12] sm:$0x1]
      %v785 = vpack.c.bf16 %v783, %v782
      %v786 = vld [vmem:[%s11] sm:$0xf]
      %v787 = vld [vmem:[%s11 + $0x4] sm:$0xf]
      %v788 = vld [vmem:[%s11 + $0x8] sm:$0xf]
      %v789 = vld [vmem:[%s11 + $0xc] sm:$0xf]
      %v791 = vlaneseq
      %v792 = vshrl.u32 %v791, 7
      %v793 = vsub.s32 0, %v792
      %v794 = vrot.slane %v784, %v793
      %v800 = vunpack.c.l.b16 %v786
      %v801 = vunpack.c.l.b16 %v787
      %v802 = vunpack.c.l.b16 %v788
      %v803 = vunpack.c.l.b16 %v789
      %v804 = vpack.c.b16 %v801, %v800
      %v805 = vpack.c.b16 %v803, %v802
      %vm808 = vcmask 261120
      %v810 = vsel %vm808, %v785, 0
      %812 = vmatprep.subr.bf16.mxu0 0
      %813 = vmatpush1.bf16.msra.mxu0 %v804
      %814 = vmatprep.subr.bf16.mxu0 0
      %815 = vmatpush1.bf16.msra.mxu0 %v805
      %816 = vmatprep.subr.bf16.mxu0 0
      %817 = vmatpush1.bf16.msra.mxu0 0
      %818 = vmatprep.subr.bf16.mxu0 0
      %819 = vmatpush1.bf16.msra.mxu0 0
      %820 = vmatprep.subr.bf16.mxu0 0
      %821 = vmatpush1.bf16.msra.mxu0 0
      %822 = vmatprep.subr.bf16.mxu0 0
      %823 = vmatpush1.bf16.msra.mxu0 0
      %824 = vmatprep.subr.bf16.mxu0 0
      %825 = vmatpush1.bf16.msra.mxu0 0
      %826 = vmatprep.subr.bf16.mxu0 0
      %827 = vmatpush1.bf16.msra.mxu0 0
      %828 = vmatprep.subr.bf16.mxu0 0
      %829 = vmatpush1.bf16.msra.mxu0 0
      %830 = vmatprep.subr.bf16.mxu0 0
      %831 = vmatpush1.bf16.msra.mxu0 0
      %832 = vmatprep.subr.bf16.mxu0 0
      %833 = vmatpush1.bf16.msra.mxu0 0
      %834 = vmatprep.subr.bf16.mxu0 0
      %835 = vmatpush1.bf16.msra.mxu0 0
      %836 = vmatprep.subr.bf16.mxu0 0
      %837 = vmatpush1.bf16.msra.mxu0 0
      %838 = vmatprep.subr.bf16.mxu0 0
      %839 = vmatpush1.bf16.msra.mxu0 0
      %840 = vmatprep.subr.bf16.mxu0 0
      %841 = vmatpush1.bf16.msra.mxu0 0
      %842 = vmatprep.subr.bf16.mxu0 0
      %843 = vmatpush1.bf16.msra.mxu0 0
      %844 = vmatprep.mubr.bf16.mxu0 0
      %845 = vmatmul.mubr.bf16.gmra.mrb[0].mxu0 %v810
      %v846 = vpop.f32.mrb[0].mxu0
      %v847 = vadd.f32 %v794, %v846
      %v848 = vpop.f32.mrb[0].mxu0
      %v849 = vpop.f32.mrb[0].mxu0
      %v850 = vadd.f32 %v794, %v849
      %v851 = vpop.f32.mrb[0].mxu0
      %852 = vdwg.mxu0
      %853 = vst.msk [vmem:[%s486] sm:$0xff] %vm733, %v847
      %854 = vst.msk [vmem:[%s486 + $0x8] sm:$0xff] %vm733, %v850
      %s855 = smul.u32 2, %s24
      %p856 = scmp.lt.s32.totalorder %s855, 3
      %s857 = scalar_select %p856, %s855, 3
      %s858 = smul.addr %s857, 8
      %s859 = scalar_lea.vmem %s13, %s858
      // Predicated region
      $region73: #{trajsnet_forward.17} parent=71 // pred_check
        %p860 = pneg %p330
      $region74: #{trajsnet_forward.17} parent=71 // pred_check_branch
        %862 = sbr.rel (%p860) target = $region76
      $region75: #{trajsnet_forward.17} parent=71 // pred_region
        %s863 = smul.u32 2, %s24
      $region76: #{trajsnet_forward.17} parent=71 // pred_fallthru
        _
    $region72: #{trajsnet_forward.17} parent=5 // pred_fallthru
      _
    %p864 = scmp.le.s32.totalorder 2, %s19
    // Predicated region
    $region77: #{trajsnet_forward.17} parent=5 // pred_check
      %p865 = pneg %p864
    $region78: #{trajsnet_forward.17} parent=5 // pred_check_branch
      %867 = sbr.rel (%p865) target = $region80
    $region79: #{trajsnet_forward.17} parent=5 // pred_region
      %s868 = ssub.s32 %s19, 2
      // Predicated region
      $region81: #{trajsnet_forward.17} parent=79 // pred_check
        %p869 = pneg %p336
      $region82: #{trajsnet_forward.17} parent=79 // pred_check_branch
        %871 = sbr.rel (%p869) target = $region84
      $region83: #{trajsnet_forward.17} parent=79 // pred_region
        %s872 = smul.u32 2, %s25
        %p873 = scmp.lt.s32.totalorder %s872, 3
        %s874 = scalar_select %p873, %s872, 3
        %s875 = smul.addr %s874, 8
        %s876 = scalar_lea.vmem %s13, %s875
      $region84: #{trajsnet_forward.17} parent=79 // pred_fallthru
        _
    $region80: #{trajsnet_forward.17} parent=5 // pred_fallthru
      _
  $region6: #{trajsnet_forward.17} parent=0 // loop_footer
    %s23 = sadd.s32 1, %s19
  $region7: #{trajsnet_forward.17} parent=0 // loop_footer_branch
    %18 = sbr.rel target = $region3
  $region8: #{trajsnet_forward.17} parent=0 // loop_exit
    _

// kernel: trajsnet_forward.18
$region0: #{trajsnet_forward.18}
  #allocation0 [shape = 'u32[]', space=smem, size = 0x4, offset = 0x4, fixed_abs, tag = 'smem constant byte address 0x4 - core index']
  #allocation1 [shape = 'u32[144,128]{1,0:T(1,128)}', space=vmem, size = 0x12000, scoped, tag = 'internal scratch']
  %s0 = inlined_call_operand.vmem [shape: bf16[16,64], index: 0, kind: input, shape index: {}]
  %s1 = inlined_call_operand.vmem [shape: bf16[64,128], index: 1, kind: input, shape index: {}]
  %s2 = inlined_call_operand.vmem [shape: bf16[64,128], index: 2, kind: input, shape index: {}]
  %s3 = inlined_call_operand.vmem [shape: bf16[64,128], index: 3, kind: input, shape index: {}]
  %s4 = inlined_call_operand.vmem [shape: f32[1,128], index: 4, kind: input, shape index: {}]
  %s5 = inlined_call_operand.vmem [shape: bf16[128,64], index: 5, kind: input, shape index: {}]
  %s6 = inlined_call_operand.vmem [shape: f32[1,64], index: 6, kind: input, shape index: {}]
  %s7 = inlined_call_operand.vmem [shape: bf16[64,64], index: 7, kind: input, shape index: {}]
  %s8 = inlined_call_operand.vmem [shape: f32[1,64], index: 8, kind: input, shape index: {}]
  %s9 = inlined_call_operand.vmem [shape: f32[16,64], index: 9, kind: output, shape index: {}]
  %s10 = sld [smem:[#allocation0]]
  $region69: #{trajsnet_forward.18} parent=0
    _
  %s12 = ssub.s32 1, %s10
  %s13 = scalar_select 0, %s12, %s10
  loop: start=0, step=1, limit=4
  $region2: #{trajsnet_forward.18} parent=0 // loop_pre_header
    _
  $region3: #{trajsnet_forward.18} parent=0 // loop_header
    %s15 = sphi 0, %s19
    %p16 = scmp.ge.s32.totalorder %s15, 4
    %s25 = sphi 0, %s27
    %s28 = sphi 0, %s25
    %s29 = sphi 0, %s28
    %s45 = sphi 0, %s29
    %s49 = sphi 0, %s49
    %s51 = sphi 0, %s49
    %s52 = sphi 0, %s51
    %s66 = sphi 0, %s52
    %s70 = sphi 0, %s70
    %s72 = sphi 0, %s70
    %s73 = sphi 0, %s72
    %s87 = sphi 0, %s73
    %s91 = sphi 0, %s91
    %s93 = sphi 0, %s91
    %s94 = sphi 0, %s93
    %s108 = sphi 0, %s94
    %s112 = sphi 0, %s112
    %s114 = sphi 0, %s112
    %s115 = sphi 0, %s114
    %s129 = sphi 0, %s115
    %s133 = sphi 0, %s133
    %s135 = sphi 0, %s133
    %s136 = sphi 0, %s135
    %s150 = sphi 0, %s136
    %s154 = sphi 0, %s154
    %s156 = sphi 0, %s154
    %s157 = sphi 0, %s156
    %s171 = sphi 0, %s157
    %s175 = sphi 0, %s175
    %s177 = sphi 0, %s175
    %s178 = sphi 0, %s177
    %s192 = sphi 0, %s178
    %s196 = sphi 0, %s196
    %s198 = sphi 0, %s196
    %s199 = sphi 0, %s198
    %s213 = sphi 0, %s199
    %s219 = sphi 0, %s221
    %s222 = sphi 0, %s219
    %s223 = sphi 0, %s222
    %s239 = sphi 0, %s223
  $region4: #{trajsnet_forward.18} parent=0 // loop_header_branch
    %18 = sbr.rel (%p16) target = $region8
  $region5: #{trajsnet_forward.18} parent=0 // loop_body
    %s20 = ssub.s32 %s15, 1
    %s21 = ssub.s32 %s15, 2
    %s22 = sadd.s32 %s15, 1
    %s23 = ssub.s32 %s15, %s22
    %p24 = scmp.eq.s32.totalorder %s23, 0
    %s26 = sadd.s32 %s25, 1
    %s27 = scalar_select %p24, %s25, %s26
    %p30 = pneg %p24
    %p31 = scmp.eq.s32.totalorder %s15, 1
    %p32 = por %p30, %p31
    %p33 = scmp.ne.s32.totalorder %s25, %s28
    %p34 = scmp.eq.s32.totalorder %s15, 0
    %p35 = por %p33, %p34
    %p36 = scmp.ne.s32.totalorder %s25, %s28
    %p37 = scmp.eq.s32.totalorder %s20, 1
    %p38 = por %p36, %p37
    %p39 = scmp.ne.s32.totalorder %s28, %s29
    %p40 = scmp.eq.s32.totalorder %s20, 0
    %p41 = por %p39, %p40
    %p42 = scmp.ne.s32.totalorder %s28, %s29
    %p43 = scmp.eq.s32.totalorder %s21, 1
    %p44 = por %p42, %p43
    %p46 = scmp.ne.s32.totalorder %s29, %s45
    %p47 = scmp.eq.s32.totalorder %s21, 0
    %p48 = por %p46, %p47
    %s50 = sadd.s32 %s49, 1
    %p53 = scmp.eq.s32.totalorder %s15, 1
    %p54 = scmp.ne.s32.totalorder %s49, %s51
    %p55 = scmp.eq.s32.totalorder %s15, 0
    %p56 = por %p54, %p55
    %p57 = scmp.ne.s32.totalorder %s49, %s51
    %p58 = scmp.eq.s32.totalorder %s20, 1
    %p59 = por %p57, %p58
    %p60 = scmp.ne.s32.totalorder %s51, %s52
    %p61 = scmp.eq.s32.totalorder %s20, 0
    %p62 = por %p60, %p61
    %p63 = scmp.ne.s32.totalorder %s51, %s52
    %p64 = scmp.eq.s32.totalorder %s21, 1
    %p65 = por %p63, %p64
    %p67 = scmp.ne.s32.totalorder %s52, %s66
    %p68 = scmp.eq.s32.totalorder %s21, 0
    %p69 = por %p67, %p68
    %s71 = sadd.s32 %s70, 1
    %p74 = scmp.eq.s32.totalorder %s15, 1
    %p75 = scmp.ne.s32.totalorder %s70, %s72
    %p76 = scmp.eq.s32.totalorder %s15, 0
    %p77 = por %p75, %p76
    %p78 = scmp.ne.s32.totalorder %s70, %s72
    %p79 = scmp.eq.s32.totalorder %s20, 1
    %p80 = por %p78, %p79
    %p81 = scmp.ne.s32.totalorder %s72, %s73
    %p82 = scmp.eq.s32.totalorder %s20, 0
    %p83 = por %p81, %p82
    %p84 = scmp.ne.s32.totalorder %s72, %s73
    %p85 = scmp.eq.s32.totalorder %s21, 1
    %p86 = por %p84, %p85
    %p88 = scmp.ne.s32.totalorder %s73, %s87
    %p89 = scmp.eq.s32.totalorder %s21, 0
    %p90 = por %p88, %p89
    %s92 = sadd.s32 %s91, 1
    %p95 = scmp.eq.s32.totalorder %s15, 1
    %p96 = scmp.ne.s32.totalorder %s91, %s93
    %p97 = scmp.eq.s32.totalorder %s15, 0
    %p98 = por %p96, %p97
    %p99 = scmp.ne.s32.totalorder %s91, %s93
    %p100 = scmp.eq.s32.totalorder %s20, 1
    %p101 = por %p99, %p100
    %p102 = scmp.ne.s32.totalorder %s93, %s94
    %p103 = scmp.eq.s32.totalorder %s20, 0
    %p104 = por %p102, %p103
    %p105 = scmp.ne.s32.totalorder %s93, %s94
    %p106 = scmp.eq.s32.totalorder %s21, 1
    %p107 = por %p105, %p106
    %p109 = scmp.ne.s32.totalorder %s94, %s108
    %p110 = scmp.eq.s32.totalorder %s21, 0
    %p111 = por %p109, %p110
    %s113 = sadd.s32 %s112, 1
    %p116 = scmp.eq.s32.totalorder %s15, 1
    %p117 = scmp.ne.s32.totalorder %s112, %s114
    %p118 = scmp.eq.s32.totalorder %s15, 0
    %p119 = por %p117, %p118
    %p120 = scmp.ne.s32.totalorder %s112, %s114
    %p121 = scmp.eq.s32.totalorder %s20, 1
    %p122 = por %p120, %p121
    %p123 = scmp.ne.s32.totalorder %s114, %s115
    %p124 = scmp.eq.s32.totalorder %s20, 0
    %p125 = por %p123, %p124
    %p126 = scmp.ne.s32.totalorder %s114, %s115
    %p127 = scmp.eq.s32.totalorder %s21, 1
    %p128 = por %p126, %p127
    %p130 = scmp.ne.s32.totalorder %s115, %s129
    %p131 = scmp.eq.s32.totalorder %s21, 0
    %p132 = por %p130, %p131
    %s134 = sadd.s32 %s133, 1
    %p137 = scmp.eq.s32.totalorder %s15, 1
    %p138 = scmp.ne.s32.totalorder %s133, %s135
    %p139 = scmp.eq.s32.totalorder %s15, 0
    %p140 = por %p138, %p139
    %p141 = scmp.ne.s32.totalorder %s133, %s135
    %p142 = scmp.eq.s32.totalorder %s20, 1
    %p143 = por %p141, %p142
    %p144 = scmp.ne.s32.totalorder %s135, %s136
    %p145 = scmp.eq.s32.totalorder %s20, 0
    %p146 = por %p144, %p145
    %p147 = scmp.ne.s32.totalorder %s135, %s136
    %p148 = scmp.eq.s32.totalorder %s21, 1
    %p149 = por %p147, %p148
    %p151 = scmp.ne.s32.totalorder %s136, %s150
    %p152 = scmp.eq.s32.totalorder %s21, 0
    %p153 = por %p151, %p152
    %s155 = sadd.s32 %s154, 1
    %p158 = scmp.eq.s32.totalorder %s15, 1
    %p159 = scmp.ne.s32.totalorder %s154, %s156
    %p160 = scmp.eq.s32.totalorder %s15, 0
    %p161 = por %p159, %p160
    %p162 = scmp.ne.s32.totalorder %s154, %s156
    %p163 = scmp.eq.s32.totalorder %s20, 1
    %p164 = por %p162, %p163
    %p165 = scmp.ne.s32.totalorder %s156, %s157
    %p166 = scmp.eq.s32.totalorder %s20, 0
    %p167 = por %p165, %p166
    %p168 = scmp.ne.s32.totalorder %s156, %s157
    %p169 = scmp.eq.s32.totalorder %s21, 1
    %p170 = por %p168, %p169
    %p172 = scmp.ne.s32.totalorder %s157, %s171
    %p173 = scmp.eq.s32.totalorder %s21, 0
    %p174 = por %p172, %p173
    %s176 = sadd.s32 %s175, 1
    %p179 = scmp.eq.s32.totalorder %s15, 1
    %p180 = scmp.ne.s32.totalorder %s175, %s177
    %p181 = scmp.eq.s32.totalorder %s15, 0
    %p182 = por %p180, %p181
    %p183 = scmp.ne.s32.totalorder %s175, %s177
    %p184 = scmp.eq.s32.totalorder %s20, 1
    %p185 = por %p183, %p184
    %p186 = scmp.ne.s32.totalorder %s177, %s178
    %p187 = scmp.eq.s32.totalorder %s20, 0
    %p188 = por %p186, %p187
    %p189 = scmp.ne.s32.totalorder %s177, %s178
    %p190 = scmp.eq.s32.totalorder %s21, 1
    %p191 = por %p189, %p190
    %p193 = scmp.ne.s32.totalorder %s178, %s192
    %p194 = scmp.eq.s32.totalorder %s21, 0
    %p195 = por %p193, %p194
    %s197 = sadd.s32 %s196, 1
    %p200 = scmp.eq.s32.totalorder %s15, 1
    %p201 = scmp.ne.s32.totalorder %s196, %s198
    %p202 = scmp.eq.s32.totalorder %s15, 0
    %p203 = por %p201, %p202
    %p204 = scmp.ne.s32.totalorder %s196, %s198
    %p205 = scmp.eq.s32.totalorder %s20, 1
    %p206 = por %p204, %p205
    %p207 = scmp.ne.s32.totalorder %s198, %s199
    %p208 = scmp.eq.s32.totalorder %s20, 0
    %p209 = por %p207, %p208
    %p210 = scmp.ne.s32.totalorder %s198, %s199
    %p211 = scmp.eq.s32.totalorder %s21, 1
    %p212 = por %p210, %p211
    %p214 = scmp.ne.s32.totalorder %s199, %s213
    %p215 = scmp.eq.s32.totalorder %s21, 0
    %p216 = por %p214, %p215
    %s217 = ssub.s32 %s15, %s22
    %p218 = scmp.eq.s32.totalorder %s217, 0
    %s220 = sadd.s32 %s219, 1
    %s221 = scalar_select %p218, %s219, %s220
    %p224 = pneg %p218
    %p225 = scmp.eq.s32.totalorder %s15, 1
    %p226 = por %p224, %p225
    %p227 = scmp.ne.s32.totalorder %s219, %s222
    %p228 = scmp.eq.s32.totalorder %s15, 0
    %p229 = por %p227, %p228
    %p230 = scmp.ne.s32.totalorder %s219, %s222
    %p231 = scmp.eq.s32.totalorder %s20, 1
    %p232 = por %p230, %p231
    %p233 = scmp.ne.s32.totalorder %s222, %s223
    %p234 = scmp.eq.s32.totalorder %s20, 0
    %p235 = por %p233, %p234
    %p236 = scmp.ne.s32.totalorder %s222, %s223
    %p237 = scmp.eq.s32.totalorder %s21, 1
    %p238 = por %p236, %p237
    %p240 = scmp.ne.s32.totalorder %s223, %s239
    %p241 = scmp.eq.s32.totalorder %s21, 0
    %p242 = por %p240, %p241
    %p243 = scmp.le.s32.totalorder 1, %s15
    %p244 = scmp.lt.s32.totalorder %s15, 3
    %p245 = pnand %p243, %p244
    %p246 = pneg %p245
    // Predicated region
    $region9: #{trajsnet_forward.18} parent=5 // pred_check
      _
    $region10: #{trajsnet_forward.18} parent=5 // pred_check_branch
      %248 = sbr.rel (%p245) target = $region12
    $region11: #{trajsnet_forward.18} parent=5 // pred_region
      %s249 = ssub.s32 %s15, 1
      // Predicated region
      $region13: #{trajsnet_forward.18} parent=11 // pred_check
        %p250 = pneg %p62
      $region14: #{trajsnet_forward.18} parent=11 // pred_check_branch
        %252 = sbr.rel (%p250) target = $region16
      $region15: #{trajsnet_forward.18} parent=11 // pred_region
        _
      $region16: #{trajsnet_forward.18} parent=11 // pred_fallthru
        _
      // Predicated region
      $region17: #{trajsnet_forward.18} parent=11 // pred_check
        %p253 = pneg %p83
      $region18: #{trajsnet_forward.18} parent=11 // pred_check_branch
        %255 = sbr.rel (%p253) target = $region20
      $region19: #{trajsnet_forward.18} parent=11 // pred_region
        _
      $region20: #{trajsnet_forward.18} parent=11 // pred_fallthru
        _
      // Predicated region
      $region21: #{trajsnet_forward.18} parent=11 // pred_check
        %p256 = pneg %p104
      $region22: #{trajsnet_forward.18} parent=11 // pred_check_branch
        %258 = sbr.rel (%p256) target = $region24
      $region23: #{trajsnet_forward.18} parent=11 // pred_region
        _
      $region24: #{trajsnet_forward.18} parent=11 // pred_fallthru
        _
      // Predicated region
      $region25: #{trajsnet_forward.18} parent=11 // pred_check
        %p259 = pneg %p125
      $region26: #{trajsnet_forward.18} parent=11 // pred_check_branch
        %261 = sbr.rel (%p259) target = $region28
      $region27: #{trajsnet_forward.18} parent=11 // pred_region
        _
      $region28: #{trajsnet_forward.18} parent=11 // pred_fallthru
        _
      // Predicated region
      $region29: #{trajsnet_forward.18} parent=11 // pred_check
        %p262 = pneg %p146
      $region30: #{trajsnet_forward.18} parent=11 // pred_check_branch
        %264 = sbr.rel (%p262) target = $region32
      $region31: #{trajsnet_forward.18} parent=11 // pred_region
        _
      $region32: #{trajsnet_forward.18} parent=11 // pred_fallthru
        _
      // Predicated region
      $region33: #{trajsnet_forward.18} parent=11 // pred_check
        %p265 = pneg %p167
      $region34: #{trajsnet_forward.18} parent=11 // pred_check_branch
        %267 = sbr.rel (%p265) target = $region36
      $region35: #{trajsnet_forward.18} parent=11 // pred_region
        _
      $region36: #{trajsnet_forward.18} parent=11 // pred_fallthru
        _
      // Predicated region
      $region37: #{trajsnet_forward.18} parent=11 // pred_check
        %p268 = pneg %p188
      $region38: #{trajsnet_forward.18} parent=11 // pred_check_branch
        %270 = sbr.rel (%p268) target = $region40
      $region39: #{trajsnet_forward.18} parent=11 // pred_region
        _
      $region40: #{trajsnet_forward.18} parent=11 // pred_fallthru
        _
      // Predicated region
      $region41: #{trajsnet_forward.18} parent=11 // pred_check
        %p271 = pneg %p209
      $region42: #{trajsnet_forward.18} parent=11 // pred_check_branch
        %273 = sbr.rel (%p271) target = $region44
      $region43: #{trajsnet_forward.18} parent=11 // pred_region
        _
      $region44: #{trajsnet_forward.18} parent=11 // pred_fallthru
        _
    $region12: #{trajsnet_forward.18} parent=5 // pred_fallthru
      _
    %p274 = scmp.lt.s32.totalorder %s15, 2
    // Predicated region
    $region45: #{trajsnet_forward.18} parent=5 // pred_check
      %p275 = pneg %p274
    $region46: #{trajsnet_forward.18} parent=5 // pred_check_branch
      %277 = sbr.rel (%p275) target = $region48
    $region47: #{trajsnet_forward.18} parent=5 // pred_region
      // Predicated region
      $region49: #{trajsnet_forward.18} parent=47 // pred_check
        %p278 = pneg %p35
      $region50: #{trajsnet_forward.18} parent=47 // pred_check_branch
        %280 = sbr.rel (%p278) target = $region52
      $region51: #{trajsnet_forward.18} parent=47 // pred_region
        %p281 = scmp.lt.s32.totalorder %s15, 1
        %s282 = scalar_select %p281, %s15, 1
        %s283 = smul.addr %s282, 4
        %s284 = scalar_lea.vmem %s0, %s283
      $region52: #{trajsnet_forward.18} parent=47 // pred_fallthru
        _
    $region48: #{trajsnet_forward.18} parent=5 // pred_fallthru
      _
    %p285 = scmp.le.s32.totalorder 1, %s15
    %p286 = scmp.lt.s32.totalorder %s15, 3
    %p287 = pnand %p285, %p286
    %p288 = pneg %p287
    // Predicated region
    $region53: #{trajsnet_forward.18} parent=5 // pred_check
      _
    $region54: #{trajsnet_forward.18} parent=5 // pred_check_branch
      %290 = sbr.rel (%p287) target = $region56
    $region55: #{trajsnet_forward.18} parent=5 // pred_region
      %s291 = ssub.s32 %s15, 1
      %p292 = scmp.lt.s32.totalorder %s20, 1
      %s293 = scalar_select %p292, %s20, 1
      %s294 = smul.addr %s293, 4
      %s295 = scalar_lea.vmem %s0, %s294
      %p296 = pneg %p41
      %p297 = pneg %p38
      %p298 = pneg %p62
      %p299 = pneg %p59
      %p300 = pneg %p83
      %p301 = pneg %p80
      %p302 = pneg %p104
      %p303 = pneg %p101
      %p304 = pneg %p125
      %p305 = pneg %p122
      %p306 = pneg %p146
      %p307 = pneg %p143
      %p308 = pneg %p167
      %p309 = pneg %p164
      %p310 = pneg %p188
      %p311 = pneg %p185
      %p312 = pneg %p209
      %p313 = pneg %p206
      %p314 = pneg %p235
      %p315 = pneg %p232
      %p316 = scmp.lt.s32.totalorder %s20, 1
      %s317 = scalar_select %p316, %s20, 1
      %s318 = smul.addr %s317, 8
      %s319 = scalar_lea.vmem %s9, %s318
      %p320 = scmp.lt.s32.totalorder %s20, 1
      %s321 = scalar_select %p320, %s20, 1
      %s322 = smul.addr %s321, 4
      %s323 = scalar_lea.vmem %s0, %s322
      %p324 = scmp.lt.s32.totalorder %s20, 1
      %s325 = scalar_select %p324, %s20, 1
      %s326 = smul.addr %s325, 8
      %s327 = scalar_lea.vmem %s9, %s326
      %v329 = vld [vmem:[%s323] sm:$0xf]
      %v330 = vld [vmem:[%s4] sm:$0x1]
      %v331 = vld [vmem:[%s1] sm:$0xf]
      %v332 = vld [vmem:[%s1 + $0x4] sm:$0xf]
      %v333 = vld [vmem:[%s1 + $0x8] sm:$0xf]
      %v334 = vld [vmem:[%s1 + $0xc] sm:$0xf]
      %v335 = vld [vmem:[%s1 + $0x10] sm:$0xf]
      %v336 = vld [vmem:[%s1 + $0x14] sm:$0xf]
      %v337 = vld [vmem:[%s1 + $0x18] sm:$0xf]
      %v338 = vld [vmem:[%s1 + $0x1c] sm:$0xf]
      %v347 = vunpack.c.l.b16 %v331
      %v348 = vunpack.c.l.b16 %v332
      %v349 = vunpack.c.l.b16 %v333
      %v350 = vunpack.c.l.b16 %v334
      %v351 = vunpack.c.l.b16 %v335
      %v352 = vunpack.c.l.b16 %v336
      %v353 = vunpack.c.l.b16 %v337
      %v354 = vunpack.c.l.b16 %v338
      %v355 = vpack.c.b16 %v348, %v347
      %v356 = vpack.c.b16 %v350, %v349
      %v357 = vpack.c.b16 %v352, %v351
      %v358 = vpack.c.b16 %v354, %v353
      %vm363 = vcmask 523264
      %v365 = vsel %vm363, %v329, 0
      %367 = vmatprep.subr.bf16.mxu0 0
      %368 = vmatpush1.bf16.msra.mxu0 %v355
      %369 = vmatprep.subr.bf16.mxu0 0
      %370 = vmatpush1.bf16.msra.mxu0 %v356
      %371 = vmatprep.subr.bf16.mxu0 0
      %372 = vmatpush1.bf16.msra.mxu0 %v357
      %373 = vmatprep.subr.bf16.mxu0 0
      %374 = vmatpush1.bf16.msra.mxu0 %v358
      %375 = vmatprep.subr.bf16.mxu0 0
      %376 = vmatpush1.bf16.msra.mxu0 0
      %377 = vmatprep.subr.bf16.mxu0 0
      %378 = vmatpush1.bf16.msra.mxu0 0
      %379 = vmatprep.subr.bf16.mxu0 0
      %380 = vmatpush1.bf16.msra.mxu0 0
      %381 = vmatprep.subr.bf16.mxu0 0
      %382 = vmatpush1.bf16.msra.mxu0 0
      %383 = vmatprep.subr.bf16.mxu0 0
      %384 = vmatpush1.bf16.msra.mxu0 0
      %385 = vmatprep.subr.bf16.mxu0 0
      %386 = vmatpush1.bf16.msra.mxu0 0
      %387 = vmatprep.subr.bf16.mxu0 0
      %388 = vmatpush1.bf16.msra.mxu0 0
      %389 = vmatprep.subr.bf16.mxu0 0
      %390 = vmatpush1.bf16.msra.mxu0 0
      %391 = vmatprep.subr.bf16.mxu0 0
      %392 = vmatpush1.bf16.msra.mxu0 0
      %393 = vmatprep.subr.bf16.mxu0 0
      %394 = vmatpush1.bf16.msra.mxu0 0
      %395 = vmatprep.subr.bf16.mxu0 0
      %396 = vmatpush1.bf16.msra.mxu0 0
      %397 = vmatprep.subr.bf16.mxu0 0
      %398 = vmatpush1.bf16.msra.mxu0 0
      %399 = vmatprep.mubr.bf16.mxu0 0
      %400 = vmatmul.mubr.bf16.gmra.mrb[0].mxu0 %v365
      %v401 = vpop.f32.mrb[0].mxu0
      %v402 = vadd.f32 0.0, %v401
      %v403 = vpop.f32.mrb[0].mxu0
      %v404 = vpop.f32.mrb[0].mxu0
      %v405 = vpop.f32.mrb[0].mxu0
      %406 = vdwg.mxu0
      %v408 = vlaneseq
      %v409 = vshrl.u32 %v408, 7
      %v410 = vsub.s32 0, %v409
      %v411 = vrot.slane %v330, %v410
      %v413 = vadd.f32 %v411, %v402
      %v414 = vunpack.c.l.bf16 %v329
      %v415 = vmul.f32 %v414, %v414
      %v416 = vpack.c.bf16 %v415, %v415
      %v417 = vld [vmem:[%s2] sm:$0xf]
      %v418 = vld [vmem:[%s2 + $0x4] sm:$0xf]
      %v419 = vld [vmem:[%s2 + $0x8] sm:$0xf]
      %v420 = vld [vmem:[%s2 + $0xc] sm:$0xf]
      %v421 = vld [vmem:[%s2 + $0x10] sm:$0xf]
      %v422 = vld [vmem:[%s2 + $0x14] sm:$0xf]
      %v423 = vld [vmem:[%s2 + $0x18] sm:$0xf]
      %v424 = vld [vmem:[%s2 + $0x1c] sm:$0xf]
      %v433 = vunpack.c.l.b16 %v417
      %v434 = vunpack.c.l.b16 %v418
      %v435 = vunpack.c.l.b16 %v419
      %v436 = vunpack.c.l.b16 %v420
      %v437 = vunpack.c.l.b16 %v421
      %v438 = vunpack.c.l.b16 %v422
      %v439 = vunpack.c.l.b16 %v423
      %v440 = vunpack.c.l.b16 %v424
      %v441 = vpack.c.b16 %v434, %v433
      %v442 = vpack.c.b16 %v436, %v435
      %v443 = vpack.c.b16 %v438, %v437
      %v444 = vpack.c.b16 %v440, %v439
      %v450 = vsel %vm363, %v416, 0
      %452 = vmatprep.subr.bf16.mxu0 0
      %453 = vmatpush1.bf16.msra.mxu0 %v441
      %454 = vmatprep.subr.bf16.mxu0 0
      %455 = vmatpush1.bf16.msra.mxu0 %v442
      %456 = vmatprep.subr.bf16.mxu0 0
      %457 = vmatpush1.bf16.msra.mxu0 %v443
      %458 = vmatprep.subr.bf16.mxu0 0
      %459 = vmatpush1.bf16.msra.mxu0 %v444
      %460 = vmatprep.subr.bf16.mxu0 0
      %461 = vmatpush1.bf16.msra.mxu0 0
      %462 = vmatprep.subr.bf16.mxu0 0
      %463 = vmatpush1.bf16.msra.mxu0 0
      %464 = vmatprep.subr.bf16.mxu0 0
      %465 = vmatpush1.bf16.msra.mxu0 0
      %466 = vmatprep.subr.bf16.mxu0 0
      %467 = vmatpush1.bf16.msra.mxu0 0
      %468 = vmatprep.subr.bf16.mxu0 0
      %469 = vmatpush1.bf16.msra.mxu0 0
      %470 = vmatprep.subr.bf16.mxu0 0
      %471 = vmatpush1.bf16.msra.mxu0 0
      %472 = vmatprep.subr.bf16.mxu0 0
      %473 = vmatpush1.bf16.msra.mxu0 0
      %474 = vmatprep.subr.bf16.mxu0 0
      %475 = vmatpush1.bf16.msra.mxu0 0
      %476 = vmatprep.subr.bf16.mxu0 0
      %477 = vmatpush1.bf16.msra.mxu0 0
      %478 = vmatprep.subr.bf16.mxu0 0
      %479 = vmatpush1.bf16.msra.mxu0 0
      %480 = vmatprep.subr.bf16.mxu0 0
      %481 = vmatpush1.bf16.msra.mxu0 0
      %482 = vmatprep.subr.bf16.mxu0 0
      %483 = vmatpush1.bf16.msra.mxu0 0
      %484 = vmatprep.mubr.bf16.mxu0 0
      %485 = vmatmul.mubr.bf16.gmra.mrb[0].mxu0 %v450
      %v486 = vpop.f32.mrb[0].mxu0
      %v487 = vadd.f32 0.0, %v486
      %v488 = vpop.f32.mrb[0].mxu0
      %v489 = vpop.f32.mrb[0].mxu0
      %v490 = vpop.f32.mrb[0].mxu0
      %491 = vdwg.mxu0
      %v492 = vadd.f32 %v413, %v487
      %v493 = vmul.f32 %v415, %v414
      %v494 = vmul.f32 %v493, %v414
      %v495 = vpack.c.bf16 %v494, %v494
      %v496 = vld [vmem:[%s3] sm:$0xf]
      %v497 = vld [vmem:[%s3 + $0x4] sm:$0xf]
      %v498 = vld [vmem:[%s3 + $0x8] sm:$0xf]
      %v499 = vld [vmem:[%s3 + $0xc] sm:$0xf]
      %v500 = vld [vmem:[%s3 + $0x10] sm:$0xf]
      %v501 = vld [vmem:[%s3 + $0x14] sm:$0xf]
      %v502 = vld [vmem:[%s3 + $0x18] sm:$0xf]
      %v503 = vld [vmem:[%s3 + $0x1c] sm:$0xf]
      %v512 = vunpack.c.l.b16 %v496
      %v513 = vunpack.c.l.b16 %v497
      %v514 = vunpack.c.l.b16 %v498
      %v515 = vunpack.c.l.b16 %v499
      %v516 = vunpack.c.l.b16 %v500
      %v517 = vunpack.c.l.b16 %v501
      %v518 = vunpack.c.l.b16 %v502
      %v519 = vunpack.c.l.b16 %v503
      %v520 = vpack.c.b16 %v513, %v512
      %v521 = vpack.c.b16 %v515, %v514
      %v522 = vpack.c.b16 %v517, %v516
      %v523 = vpack.c.b16 %v519, %v518
      %v529 = vsel %vm363, %v495, 0
      %531 = vmatprep.subr.bf16.mxu0 0
      %532 = vmatpush1.bf16.msra.mxu0 %v520
      %533 = vmatprep.subr.bf16.mxu0 0
      %534 = vmatpush1.bf16.msra.mxu0 %v521
      %535 = vmatprep.subr.bf16.mxu0 0
      %536 = vmatpush1.bf16.msra.mxu0 %v522
      %537 = vmatprep.subr.bf16.mxu0 0
      %538 = vmatpush1.bf16.msra.mxu0 %v523
      %539 = vmatprep.subr.bf16.mxu0 0
      %540 = vmatpush1.bf16.msra.mxu0 0
      %541 = vmatprep.subr.bf16.mxu0 0
      %542 = vmatpush1.bf16.msra.mxu0 0
      %543 = vmatprep.subr.bf16.mxu0 0
      %544 = vmatpush1.bf16.msra.mxu0 0
      %545 = vmatprep.subr.bf16.mxu0 0
      %546 = vmatpush1.bf16.msra.mxu0 0
      %547 = vmatprep.subr.bf16.mxu0 0
      %548 = vmatpush1.bf16.msra.mxu0 0
      %549 = vmatprep.subr.bf16.mxu0 0
      %550 = vmatpush1.bf16.msra.mxu0 0
      %551 = vmatprep.subr.bf16.mxu0 0
      %552 = vmatpush1.bf16.msra.mxu0 0
      %553 = vmatprep.subr.bf16.mxu0 0
      %554 = vmatpush1.bf16.msra.mxu0 0
      %555 = vmatprep.subr.bf16.mxu0 0
      %556 = vmatpush1.bf16.msra.mxu0 0
      %557 = vmatprep.subr.bf16.mxu0 0
      %558 = vmatpush1.bf16.msra.mxu0 0
      %559 = vmatprep.subr.bf16.mxu0 0
      %560 = vmatpush1.bf16.msra.mxu0 0
      %561 = vmatprep.subr.bf16.mxu0 0
      %562 = vmatpush1.bf16.msra.mxu0 0
      %563 = vmatprep.mubr.bf16.mxu0 0
      %564 = vmatmul.mubr.bf16.gmra.mrb[0].mxu0 %v529
      %v565 = vpop.f32.mrb[0].mxu0
      %v566 = vadd.f32 0.0, %v565
      %v567 = vpop.f32.mrb[0].mxu0
      %v568 = vpop.f32.mrb[0].mxu0
      %v569 = vpop.f32.mrb[0].mxu0
      %570 = vdwg.mxu0
      %v571 = vadd.f32 %v492, %v566
      %vm572 = vcmp.gt.f32.partialorder %v571, 0.0
      %v573 = vmul.f32 %v571, 0.2
      %v574 = vsel %vm572, %v571, %v573
      %v575 = vld [vmem:[%s6] sm:$0x1]
      %v576 = vpack.c.bf16 %v574, %v574
      %v577 = vld [vmem:[%s5] sm:$0xf]
      %v578 = vld [vmem:[%s5 + $0x4] sm:$0xf]
      %v579 = vld [vmem:[%s5 + $0x8] sm:$0xf]
      %v580 = vld [vmem:[%s5 + $0xc] sm:$0xf]
      %v581 = vld [vmem:[%s5 + $0x10] sm:$0xf]
      %v582 = vld [vmem:[%s5 + $0x14] sm:$0xf]
      %v583 = vld [vmem:[%s5 + $0x18] sm:$0xf]
      %v584 = vld [vmem:[%s5 + $0x1c] sm:$0xf]
      %v585 = vld [vmem:[%s5 + $0x20] sm:$0xf]
      %v586 = vld [vmem:[%s5 + $0x24] sm:$0xf]
      %v587 = vld [vmem:[%s5 + $0x28] sm:$0xf]
      %v588 = vld [vmem:[%s5 + $0x2c] sm:$0xf]
      %v589 = vld [vmem:[%s5 + $0x30] sm:$0xf]
      %v590 = vld [vmem:[%s5 + $0x34] sm:$0xf]
      %v591 = vld [vmem:[%s5 + $0x38] sm:$0xf]
      %v592 = vld [vmem:[%s5 + $0x3c] sm:$0xf]
      %v594 = vlaneseq
      %v595 = vshrl.u32 %v594, 7
      %v596 = vsub.s32 0, %v595
      %v597 = vrot.slane %v575, %v596
      %v615 = vunpack.c.l.b16 %v577
      %v616 = vunpack.c.l.b16 %v578
      %v617 = vunpack.c.l.b16 %v579
      %v618 = vunpack.c.l.b16 %v580
      %v619 = vunpack.c.l.b16 %v581
      %v620 = vunpack.c.l.b16 %v582
      %v621 = vunpack.c.l.b16 %v583
      %v622 = vunpack.c.l.b16 %v584
      %v623 = vunpack.c.l.b16 %v585
      %v624 = vunpack.c.l.b16 %v586
      %v625 = vunpack.c.l.b16 %v587
      %v626 = vunpack.c.l.b16 %v588
      %v627 = vunpack.c.l.b16 %v589
      %v628 = vunpack.c.l.b16 %v590
      %v629 = vunpack.c.l.b16 %v591
      %v630 = vunpack.c.l.b16 %v592
      %v631 = vpack.c.b16 %v616, %v615
      %v632 = vpack.c.b16 %v618, %v617
      %v633 = vpack.c.b16 %v620, %v619
      %v634 = vpack.c.b16 %v622, %v621
      %v635 = vpack.c.b16 %v624, %v623
      %v636 = vpack.c.b16 %v626, %v625
      %v637 = vpack.c.b16 %v628, %v627
      %v638 = vpack.c.b16 %v630, %v629
      %647 = vmatprep.subr.bf16.mxu0 0
      %648 = vmatpush1.bf16.msra.mxu0 %v631
      %649 = vmatprep.subr.bf16.mxu0 0
      %650 = vmatpush1.bf16.msra.mxu0 %v632
      %651 = vmatprep.subr.bf16.mxu0 0
      %652 = vmatpush1.bf16.msra.mxu0 %v633
      %653 = vmatprep.subr.bf16.mxu0 0
      %654 = vmatpush1.bf16.msra.mxu0 %v634
      %655 = vmatprep.subr.bf16.mxu0 0
      %656 = vmatpush1.bf16.msra.mxu0 %v635
      %657 = vmatprep.subr.bf16.mxu0 0
      %658 = vmatpush1.bf16.msra.mxu0 %v636
      %659 = vmatprep.subr.bf16.mxu0 0
      %660 = vmatpush1.bf16.msra.mxu0 %v637
      %661 = vmatprep.subr.bf16.mxu0 0
      %662 = vmatpush1.bf16.msra.mxu0 %v638
      %663 = vmatprep.subr.bf16.mxu0 0
      %664 = vmatpush1.bf16.msra.mxu0 0
      %665 = vmatprep.subr.bf16.mxu0 0
      %666 = vmatpush1.bf16.msra.mxu0 0
      %667 = vmatprep.subr.bf16.mxu0 0
      %668 = vmatpush1.bf16.msra.mxu0 0
      %669 = vmatprep.subr.bf16.mxu0 0
      %670 = vmatpush1.bf16.msra.mxu0 0
      %671 = vmatprep.subr.bf16.mxu0 0
      %672 = vmatpush1.bf16.msra.mxu0 0
      %673 = vmatprep.subr.bf16.mxu0 0
      %674 = vmatpush1.bf16.msra.mxu0 0
      %675 = vmatprep.subr.bf16.mxu0 0
      %676 = vmatpush1.bf16.msra.mxu0 0
      %677 = vmatprep.subr.bf16.mxu0 0
      %678 = vmatpush1.bf16.msra.mxu0 0
      %679 = vmatprep.mubr.bf16.mxu0 0
      %680 = vmatmul.mubr.bf16.gmra.mrb[0].mxu0 %v576
      %v681 = vpop.f32.mrb[0].mxu0
      %v682 = vadd.f32 %v597, %v681
      %v683 = vpop.f32.mrb[0].mxu0
      %v684 = vpop.f32.mrb[0].mxu0
      %v685 = vpop.f32.mrb[0].mxu0
      %686 = vdwg.mxu0
      %vm687 = vcmp.gt.f32.partialorder %v682, 0.0
      %v688 = vmul.f32 %v682, 0.2
      %v689 = vsel %vm687, %v682, %v688
      %v690 = vld [vmem:[%s8] sm:$0x1]
      %v691 = vpack.c.bf16 %v689, %v689
      %v692 = vld [vmem:[%s7] sm:$0xf]
      %v693 = vld [vmem:[%s7 + $0x4] sm:$0xf]
      %v694 = vld [vmem:[%s7 + $0x8] sm:$0xf]
      %v695 = vld [vmem:[%s7 + $0xc] sm:$0xf]
      %v696 = vld [vmem:[%s7 + $0x10] sm:$0xf]
      %v697 = vld [vmem:[%s7 + $0x14] sm:$0xf]
      %v698 = vld [vmem:[%s7 + $0x18] sm:$0xf]
      %v699 = vld [vmem:[%s7 + $0x1c] sm:$0xf]
      %v701 = vlaneseq
      %v702 = vshrl.u32 %v701, 7
      %v703 = vsub.s32 0, %v702
      %v704 = vrot.slane %v690, %v703
      %v714 = vunpack.c.l.b16 %v692
      %v715 = vunpack.c.l.b16 %v693
      %v716 = vunpack.c.l.b16 %v694
      %v717 = vunpack.c.l.b16 %v695
      %v718 = vunpack.c.l.b16 %v696
      %v719 = vunpack.c.l.b16 %v697
      %v720 = vunpack.c.l.b16 %v698
      %v721 = vunpack.c.l.b16 %v699
      %v722 = vpack.c.b16 %v715, %v714
      %v723 = vpack.c.b16 %v717, %v716
      %v724 = vpack.c.b16 %v719, %v718
      %v725 = vpack.c.b16 %v721, %v720
      %v731 = vsel %vm363, %v691, 0
      %733 = vmatprep.subr.bf16.mxu0 0
      %734 = vmatpush1.bf16.msra.mxu0 %v722
      %735 = vmatprep.subr.bf16.mxu0 0
      %736 = vmatpush1.bf16.msra.mxu0 %v723
      %737 = vmatprep.subr.bf16.mxu0 0
      %738 = vmatpush1.bf16.msra.mxu0 %v724
      %739 = vmatprep.subr.bf16.mxu0 0
      %740 = vmatpush1.bf16.msra.mxu0 %v725
      %741 = vmatprep.subr.bf16.mxu0 0
      %742 = vmatpush1.bf16.msra.mxu0 0
      %743 = vmatprep.subr.bf16.mxu0 0
      %744 = vmatpush1.bf16.msra.mxu0 0
      %745 = vmatprep.subr.bf16.mxu0 0
      %746 = vmatpush1.bf16.msra.mxu0 0
      %747 = vmatprep.subr.bf16.mxu0 0
      %748 = vmatpush1.bf16.msra.mxu0 0
      %749 = vmatprep.subr.bf16.mxu0 0
      %750 = vmatpush1.bf16.msra.mxu0 0
      %751 = vmatprep.subr.bf16.mxu0 0
      %752 = vmatpush1.bf16.msra.mxu0 0
      %753 = vmatprep.subr.bf16.mxu0 0
      %754 = vmatpush1.bf16.msra.mxu0 0
      %755 = vmatprep.subr.bf16.mxu0 0
      %756 = vmatpush1.bf16.msra.mxu0 0
      %757 = vmatprep.subr.bf16.mxu0 0
      %758 = vmatpush1.bf16.msra.mxu0 0
      %759 = vmatprep.subr.bf16.mxu0 0
      %760 = vmatpush1.bf16.msra.mxu0 0
      %761 = vmatprep.subr.bf16.mxu0 0
      %762 = vmatpush1.bf16.msra.mxu0 0
      %763 = vmatprep.subr.bf16.mxu0 0
      %764 = vmatpush1.bf16.msra.mxu0 0
      %765 = vmatprep.mubr.bf16.mxu0 0
      %766 = vmatmul.mubr.bf16.gmra.mrb[0].mxu0 %v731
      %v767 = vpop.f32.mrb[0].mxu0
      %v768 = vadd.f32 %v704, %v767
      %v769 = vpop.f32.mrb[0].mxu0
      %v770 = vpop.f32.mrb[0].mxu0
      %v771 = vpop.f32.mrb[0].mxu0
      %772 = vdwg.mxu0
      %773 = vst.msk [vmem:[%s327] sm:$0xff] %vm363, %v768
      %p774 = scmp.lt.s32.totalorder %s20, 1
      %s775 = scalar_select %p774, %s20, 1
      %s776 = smul.addr %s775, 8
      %s777 = scalar_lea.vmem %s9, %s776
      // Predicated region
      $region57: #{trajsnet_forward.18} parent=55 // pred_check
        %p778 = pneg %p232
      $region58: #{trajsnet_forward.18} parent=55 // pred_check_branch
        %780 = sbr.rel (%p778) target = $region60
      $region59: #{trajsnet_forward.18} parent=55 // pred_region
        _
      $region60: #{trajsnet_forward.18} parent=55 // pred_fallthru
        _
    $region56: #{trajsnet_forward.18} parent=5 // pred_fallthru
      _
    %p781 = scmp.le.s32.totalorder 2, %s15
    // Predicated region
    $region61: #{trajsnet_forward.18} parent=5 // pred_check
      %p782 = pneg %p781
    $region62: #{trajsnet_forward.18} parent=5 // pred_check_branch
      %784 = sbr.rel (%p782) target = $region64
    $region63: #{trajsnet_forward.18} parent=5 // pred_region
      %s785 = ssub.s32 %s15, 2
      // Predicated region
      $region65: #{trajsnet_forward.18} parent=63 // pred_check
        %p786 = pneg %p238
      $region66: #{trajsnet_forward.18} parent=63 // pred_check_branch
        %788 = sbr.rel (%p786) target = $region68
      $region67: #{trajsnet_forward.18} parent=63 // pred_region
        %p789 = scmp.lt.s32.totalorder %s21, 1
        %s790 = scalar_select %p789, %s21, 1
        %s791 = smul.addr %s790, 8
        %s792 = scalar_lea.vmem %s9, %s791
      $region68: #{trajsnet_forward.18} parent=63 // pred_fallthru
        _
    $region64: #{trajsnet_forward.18} parent=5 // pred_fallthru
      _
  $region6: #{trajsnet_forward.18} parent=0 // loop_footer
    %s19 = sadd.s32 1, %s15
  $region7: #{trajsnet_forward.18} parent=0 // loop_footer_branch
    %14 = sbr.rel target = $region3
  $region8: #{trajsnet_forward.18} parent=0 // loop_exit
    _

// kernel: trajsnet_forward.19
$region0: #{trajsnet_forward.19}
  #allocation0 [shape = 'u32[]', space=smem, size = 0x4, offset = 0x4, fixed_abs, tag = 'smem constant byte address 0x4 - core index']
  #allocation1 [shape = 'u32[144,128]{1,0:T(1,128)}', space=vmem, size = 0x12000, scoped, tag = 'internal scratch']
  %s0 = inlined_call_operand.vmem [shape: bf16[16,64], index: 0, kind: input, shape index: {}]
  %s1 = inlined_call_operand.vmem [shape: bf16[64,128], index: 1, kind: input, shape index: {}]
  %s2 = inlined_call_operand.vmem [shape: bf16[64,128], index: 2, kind: input, shape index: {}]
  %s3 = inlined_call_operand.vmem [shape: f32[1,128], index: 3, kind: input, shape index: {}]
  %s4 = inlined_call_operand.vmem [shape: bf16[128,64], index: 4, kind: input, shape index: {}]
  %s5 = inlined_call_operand.vmem [shape: f32[1,64], index: 5, kind: input, shape index: {}]
  %s6 = inlined_call_operand.vmem [shape: f32[16,64], index: 6, kind: output, shape index: {}]
  %s7 = sld [smem:[#allocation0]]
  $region57: #{trajsnet_forward.19} parent=0
    _
  %s9 = ssub.s32 1, %s7
  %s10 = scalar_select 0, %s9, %s7
  loop: start=0, step=1, limit=4
  $region2: #{trajsnet_forward.19} parent=0 // loop_pre_header
    _
  $region3: #{trajsnet_forward.19} parent=0 // loop_header
    %s12 = sphi 0, %s16
    %p13 = scmp.ge.s32.totalorder %s12, 4
    %s22 = sphi 0, %s24
    %s25 = sphi 0, %s22
    %s26 = sphi 0, %s25
    %s42 = sphi 0, %s26
    %s46 = sphi 0, %s46
    %s48 = sphi 0, %s46
    %s49 = sphi 0, %s48
    %s63 = sphi 0, %s49
    %s67 = sphi 0, %s67
    %s69 = sphi 0, %s67
    %s70 = sphi 0, %s69
    %s84 = sphi 0, %s70
    %s88 = sphi 0, %s88
    %s90 = sphi 0, %s88
    %s91 = sphi 0, %s90
    %s105 = sphi 0, %s91
    %s109 = sphi 0, %s109
    %s111 = sphi 0, %s109
    %s112 = sphi 0, %s111
    %s126 = sphi 0, %s112
    %s130 = sphi 0, %s130
    %s132 = sphi 0, %s130
    %s133 = sphi 0, %s132
    %s147 = sphi 0, %s133
    %s153 = sphi 0, %s155
    %s156 = sphi 0, %s153
    %s157 = sphi 0, %s156
    %s173 = sphi 0, %s157
  $region4: #{trajsnet_forward.19} parent=0 // loop_header_branch
    %15 = sbr.rel (%p13) target = $region8
  $region5: #{trajsnet_forward.19} parent=0 // loop_body
    %s17 = ssub.s32 %s12, 1
    %s18 = ssub.s32 %s12, 2
    %s19 = sadd.s32 %s12, 1
    %s20 = ssub.s32 %s12, %s19
    %p21 = scmp.eq.s32.totalorder %s20, 0
    %s23 = sadd.s32 %s22, 1
    %s24 = scalar_select %p21, %s22, %s23
    %p27 = pneg %p21
    %p28 = scmp.eq.s32.totalorder %s12, 1
    %p29 = por %p27, %p28
    %p30 = scmp.ne.s32.totalorder %s22, %s25
    %p31 = scmp.eq.s32.totalorder %s12, 0
    %p32 = por %p30, %p31
    %p33 = scmp.ne.s32.totalorder %s22, %s25
    %p34 = scmp.eq.s32.totalorder %s17, 1
    %p35 = por %p33, %p34
    %p36 = scmp.ne.s32.totalorder %s25, %s26
    %p37 = scmp.eq.s32.totalorder %s17, 0
    %p38 = por %p36, %p37
    %p39 = scmp.ne.s32.totalorder %s25, %s26
    %p40 = scmp.eq.s32.totalorder %s18, 1
    %p41 = por %p39, %p40
    %p43 = scmp.ne.s32.totalorder %s26, %s42
    %p44 = scmp.eq.s32.totalorder %s18, 0
    %p45 = por %p43, %p44
    %s47 = sadd.s32 %s46, 1
    %p50 = scmp.eq.s32.totalorder %s12, 1
    %p51 = scmp.ne.s32.totalorder %s46, %s48
    %p52 = scmp.eq.s32.totalorder %s12, 0
    %p53 = por %p51, %p52
    %p54 = scmp.ne.s32.totalorder %s46, %s48
    %p55 = scmp.eq.s32.totalorder %s17, 1
    %p56 = por %p54, %p55
    %p57 = scmp.ne.s32.totalorder %s48, %s49
    %p58 = scmp.eq.s32.totalorder %s17, 0
    %p59 = por %p57, %p58
    %p60 = scmp.ne.s32.totalorder %s48, %s49
    %p61 = scmp.eq.s32.totalorder %s18, 1
    %p62 = por %p60, %p61
    %p64 = scmp.ne.s32.totalorder %s49, %s63
    %p65 = scmp.eq.s32.totalorder %s18, 0
    %p66 = por %p64, %p65
    %s68 = sadd.s32 %s67, 1
    %p71 = scmp.eq.s32.totalorder %s12, 1
    %p72 = scmp.ne.s32.totalorder %s67, %s69
    %p73 = scmp.eq.s32.totalorder %s12, 0
    %p74 = por %p72, %p73
    %p75 = scmp.ne.s32.totalorder %s67, %s69
    %p76 = scmp.eq.s32.totalorder %s17, 1
    %p77 = por %p75, %p76
    %p78 = scmp.ne.s32.totalorder %s69, %s70
    %p79 = scmp.eq.s32.totalorder %s17, 0
    %p80 = por %p78, %p79
    %p81 = scmp.ne.s32.totalorder %s69, %s70
    %p82 = scmp.eq.s32.totalorder %s18, 1
    %p83 = por %p81, %p82
    %p85 = scmp.ne.s32.totalorder %s70, %s84
    %p86 = scmp.eq.s32.totalorder %s18, 0
    %p87 = por %p85, %p86
    %s89 = sadd.s32 %s88, 1
    %p92 = scmp.eq.s32.totalorder %s12, 1
    %p93 = scmp.ne.s32.totalorder %s88, %s90
    %p94 = scmp.eq.s32.totalorder %s12, 0
    %p95 = por %p93, %p94
    %p96 = scmp.ne.s32.totalorder %s88, %s90
    %p97 = scmp.eq.s32.totalorder %s17, 1
    %p98 = por %p96, %p97
    %p99 = scmp.ne.s32.totalorder %s90, %s91
    %p100 = scmp.eq.s32.totalorder %s17, 0
    %p101 = por %p99, %p100
    %p102 = scmp.ne.s32.totalorder %s90, %s91
    %p103 = scmp.eq.s32.totalorder %s18, 1
    %p104 = por %p102, %p103
    %p106 = scmp.ne.s32.totalorder %s91, %s105
    %p107 = scmp.eq.s32.totalorder %s18, 0
    %p108 = por %p106, %p107
    %s110 = sadd.s32 %s109, 1
    %p113 = scmp.eq.s32.totalorder %s12, 1
    %p114 = scmp.ne.s32.totalorder %s109, %s111
    %p115 = scmp.eq.s32.totalorder %s12, 0
    %p116 = por %p114, %p115
    %p117 = scmp.ne.s32.totalorder %s109, %s111
    %p118 = scmp.eq.s32.totalorder %s17, 1
    %p119 = por %p117, %p118
    %p120 = scmp.ne.s32.totalorder %s111, %s112
    %p121 = scmp.eq.s32.totalorder %s17, 0
    %p122 = por %p120, %p121
    %p123 = scmp.ne.s32.totalorder %s111, %s112
    %p124 = scmp.eq.s32.totalorder %s18, 1
    %p125 = por %p123, %p124
    %p127 = scmp.ne.s32.totalorder %s112, %s126
    %p128 = scmp.eq.s32.totalorder %s18, 0
    %p129 = por %p127, %p128
    %s131 = sadd.s32 %s130, 1
    %p134 = scmp.eq.s32.totalorder %s12, 1
    %p135 = scmp.ne.s32.totalorder %s130, %s132
    %p136 = scmp.eq.s32.totalorder %s12, 0
    %p137 = por %p135, %p136
    %p138 = scmp.ne.s32.totalorder %s130, %s132
    %p139 = scmp.eq.s32.totalorder %s17, 1
    %p140 = por %p138, %p139
    %p141 = scmp.ne.s32.totalorder %s132, %s133
    %p142 = scmp.eq.s32.totalorder %s17, 0
    %p143 = por %p141, %p142
    %p144 = scmp.ne.s32.totalorder %s132, %s133
    %p145 = scmp.eq.s32.totalorder %s18, 1
    %p146 = por %p144, %p145
    %p148 = scmp.ne.s32.totalorder %s133, %s147
    %p149 = scmp.eq.s32.totalorder %s18, 0
    %p150 = por %p148, %p149
    %s151 = ssub.s32 %s12, %s19
    %p152 = scmp.eq.s32.totalorder %s151, 0
    %s154 = sadd.s32 %s153, 1
    %s155 = scalar_select %p152, %s153, %s154
    %p158 = pneg %p152
    %p159 = scmp.eq.s32.totalorder %s12, 1
    %p160 = por %p158, %p159
    %p161 = scmp.ne.s32.totalorder %s153, %s156
    %p162 = scmp.eq.s32.totalorder %s12, 0
    %p163 = por %p161, %p162
    %p164 = scmp.ne.s32.totalorder %s153, %s156
    %p165 = scmp.eq.s32.totalorder %s17, 1
    %p166 = por %p164, %p165
    %p167 = scmp.ne.s32.totalorder %s156, %s157
    %p168 = scmp.eq.s32.totalorder %s17, 0
    %p169 = por %p167, %p168
    %p170 = scmp.ne.s32.totalorder %s156, %s157
    %p171 = scmp.eq.s32.totalorder %s18, 1
    %p172 = por %p170, %p171
    %p174 = scmp.ne.s32.totalorder %s157, %s173
    %p175 = scmp.eq.s32.totalorder %s18, 0
    %p176 = por %p174, %p175
    %p177 = scmp.le.s32.totalorder 1, %s12
    %p178 = scmp.lt.s32.totalorder %s12, 3
    %p179 = pnand %p177, %p178
    %p180 = pneg %p179
    // Predicated region
    $region9: #{trajsnet_forward.19} parent=5 // pred_check
      _
    $region10: #{trajsnet_forward.19} parent=5 // pred_check_branch
      %182 = sbr.rel (%p179) target = $region12
    $region11: #{trajsnet_forward.19} parent=5 // pred_region
      %s183 = ssub.s32 %s12, 1
      // Predicated region
      $region13: #{trajsnet_forward.19} parent=11 // pred_check
        %p184 = pneg %p59
      $region14: #{trajsnet_forward.19} parent=11 // pred_check_branch
        %186 = sbr.rel (%p184) target = $region16
      $region15: #{trajsnet_forward.19} parent=11 // pred_region
        _
      $region16: #{trajsnet_forward.19} parent=11 // pred_fallthru
        _
      // Predicated region
      $region17: #{trajsnet_forward.19} parent=11 // pred_check
        %p187 = pneg %p80
      $region18: #{trajsnet_forward.19} parent=11 // pred_check_branch
        %189 = sbr.rel (%p187) target = $region20
      $region19: #{trajsnet_forward.19} parent=11 // pred_region
        _
      $region20: #{trajsnet_forward.19} parent=11 // pred_fallthru
        _
      // Predicated region
      $region21: #{trajsnet_forward.19} parent=11 // pred_check
        %p190 = pneg %p101
      $region22: #{trajsnet_forward.19} parent=11 // pred_check_branch
        %192 = sbr.rel (%p190) target = $region24
      $region23: #{trajsnet_forward.19} parent=11 // pred_region
        _
      $region24: #{trajsnet_forward.19} parent=11 // pred_fallthru
        _
      // Predicated region
      $region25: #{trajsnet_forward.19} parent=11 // pred_check
        %p193 = pneg %p122
      $region26: #{trajsnet_forward.19} parent=11 // pred_check_branch
        %195 = sbr.rel (%p193) target = $region28
      $region27: #{trajsnet_forward.19} parent=11 // pred_region
        _
      $region28: #{trajsnet_forward.19} parent=11 // pred_fallthru
        _
      // Predicated region
      $region29: #{trajsnet_forward.19} parent=11 // pred_check
        %p196 = pneg %p143
      $region30: #{trajsnet_forward.19} parent=11 // pred_check_branch
        %198 = sbr.rel (%p196) target = $region32
      $region31: #{trajsnet_forward.19} parent=11 // pred_region
        _
      $region32: #{trajsnet_forward.19} parent=11 // pred_fallthru
        _
    $region12: #{trajsnet_forward.19} parent=5 // pred_fallthru
      _
    %p199 = scmp.lt.s32.totalorder %s12, 2
    // Predicated region
    $region33: #{trajsnet_forward.19} parent=5 // pred_check
      %p200 = pneg %p199
    $region34: #{trajsnet_forward.19} parent=5 // pred_check_branch
      %202 = sbr.rel (%p200) target = $region36
    $region35: #{trajsnet_forward.19} parent=5 // pred_region
      // Predicated region
      $region37: #{trajsnet_forward.19} parent=35 // pred_check
        %p203 = pneg %p32
      $region38: #{trajsnet_forward.19} parent=35 // pred_check_branch
        %205 = sbr.rel (%p203) target = $region40
      $region39: #{trajsnet_forward.19} parent=35 // pred_region
        %p206 = scmp.lt.s32.totalorder %s12, 1
        %s207 = scalar_select %p206, %s12, 1
        %s208 = smul.addr %s207, 4
        %s209 = scalar_lea.vmem %s0, %s208
      $region40: #{trajsnet_forward.19} parent=35 // pred_fallthru
        _
    $region36: #{trajsnet_forward.19} parent=5 // pred_fallthru
      _
    %p210 = scmp.le.s32.totalorder 1, %s12
    %p211 = scmp.lt.s32.totalorder %s12, 3
    %p212 = pnand %p210, %p211
    %p213 = pneg %p212
    // Predicated region
    $region41: #{trajsnet_forward.19} parent=5 // pred_check
      _
    $region42: #{trajsnet_forward.19} parent=5 // pred_check_branch
      %215 = sbr.rel (%p212) target = $region44
    $region43: #{trajsnet_forward.19} parent=5 // pred_region
      %s216 = ssub.s32 %s12, 1
      %p217 = scmp.lt.s32.totalorder %s17, 1
      %s218 = scalar_select %p217, %s17, 1
      %s219 = smul.addr %s218, 4
      %s220 = scalar_lea.vmem %s0, %s219
      %p221 = pneg %p38
      %p222 = pneg %p35
      %p223 = pneg %p59
      %p224 = pneg %p56
      %p225 = pneg %p80
      %p226 = pneg %p77
      %p227 = pneg %p101
      %p228 = pneg %p98
      %p229 = pneg %p122
      %p230 = pneg %p119
      %p231 = pneg %p143
      %p232 = pneg %p140
      %p233 = pneg %p169
      %p234 = pneg %p166
      %p235 = scmp.lt.s32.totalorder %s17, 1
      %s236 = scalar_select %p235, %s17, 1
      %s237 = smul.addr %s236, 8
      %s238 = scalar_lea.vmem %s6, %s237
      %p239 = scmp.lt.s32.totalorder %s17, 1
      %s240 = scalar_select %p239, %s17, 1
      %s241 = smul.addr %s240, 4
      %s242 = scalar_lea.vmem %s0, %s241
      %p243 = scmp.lt.s32.totalorder %s17, 1
      %s244 = scalar_select %p243, %s17, 1
      %s245 = smul.addr %s244, 8
      %s246 = scalar_lea.vmem %s6, %s245
      %v248 = vld [vmem:[%s242] sm:$0xf]
      %v249 = vld [vmem:[%s3] sm:$0x1]
      %v250 = vld [vmem:[%s1] sm:$0xf]
      %v251 = vld [vmem:[%s1 + $0x4] sm:$0xf]
      %v252 = vld [vmem:[%s1 + $0x8] sm:$0xf]
      %v253 = vld [vmem:[%s1 + $0xc] sm:$0xf]
      %v254 = vld [vmem:[%s1 + $0x10] sm:$0xf]
      %v255 = vld [vmem:[%s1 + $0x14] sm:$0xf]
      %v256 = vld [vmem:[%s1 + $0x18] sm:$0xf]
      %v257 = vld [vmem:[%s1 + $0x1c] sm:$0xf]
      %v266 = vunpack.c.l.b16 %v250
      %v267 = vunpack.c.l.b16 %v251
      %v268 = vunpack.c.l.b16 %v252
      %v269 = vunpack.c.l.b16 %v253
      %v270 = vunpack.c.l.b16 %v254
      %v271 = vunpack.c.l.b16 %v255
      %v272 = vunpack.c.l.b16 %v256
      %v273 = vunpack.c.l.b16 %v257
      %v274 = vpack.c.b16 %v267, %v266
      %v275 = vpack.c.b16 %v269, %v268
      %v276 = vpack.c.b16 %v271, %v270
      %v277 = vpack.c.b16 %v273, %v272
      %vm282 = vcmask 523264
      %v284 = vsel %vm282, %v248, 0
      %286 = vmatprep.subr.bf16.mxu0 0
      %287 = vmatpush1.bf16.msra.mxu0 %v274
      %288 = vmatprep.subr.bf16.mxu0 0
      %289 = vmatpush1.bf16.msra.mxu0 %v275
      %290 = vmatprep.subr.bf16.mxu0 0
      %291 = vmatpush1.bf16.msra.mxu0 %v276
      %292 = vmatprep.subr.bf16.mxu0 0
      %293 = vmatpush1.bf16.msra.mxu0 %v277
      %294 = vmatprep.subr.bf16.mxu0 0
      %295 = vmatpush1.bf16.msra.mxu0 0
      %296 = vmatprep.subr.bf16.mxu0 0
      %297 = vmatpush1.bf16.msra.mxu0 0
      %298 = vmatprep.subr.bf16.mxu0 0
      %299 = vmatpush1.bf16.msra.mxu0 0
      %300 = vmatprep.subr.bf16.mxu0 0
      %301 = vmatpush1.bf16.msra.mxu0 0
      %302 = vmatprep.subr.bf16.mxu0 0
      %303 = vmatpush1.bf16.msra.mxu0 0
      %304 = vmatprep.subr.bf16.mxu0 0
      %305 = vmatpush1.bf16.msra.mxu0 0
      %306 = vmatprep.subr.bf16.mxu0 0
      %307 = vmatpush1.bf16.msra.mxu0 0
      %308 = vmatprep.subr.bf16.mxu0 0
      %309 = vmatpush1.bf16.msra.mxu0 0
      %310 = vmatprep.subr.bf16.mxu0 0
      %311 = vmatpush1.bf16.msra.mxu0 0
      %312 = vmatprep.subr.bf16.mxu0 0
      %313 = vmatpush1.bf16.msra.mxu0 0
      %314 = vmatprep.subr.bf16.mxu0 0
      %315 = vmatpush1.bf16.msra.mxu0 0
      %316 = vmatprep.subr.bf16.mxu0 0
      %317 = vmatpush1.bf16.msra.mxu0 0
      %318 = vmatprep.mubr.bf16.mxu0 0
      %319 = vmatmul.mubr.bf16.gmra.mrb[0].mxu0 %v284
      %v320 = vpop.f32.mrb[0].mxu0
      %v321 = vadd.f32 0.0, %v320
      %v322 = vpop.f32.mrb[0].mxu0
      %v323 = vpop.f32.mrb[0].mxu0
      %v324 = vpop.f32.mrb[0].mxu0
      %325 = vdwg.mxu0
      %v327 = vlaneseq
      %v328 = vshrl.u32 %v327, 7
      %v329 = vsub.s32 0, %v328
      %v330 = vrot.slane %v249, %v329
      %v332 = vadd.f32 %v330, %v321
      %v333 = vunpack.c.l.bf16 %v248
      %v334 = vmul.f32 %v333, %v333
      %v335 = vpack.c.bf16 %v334, %v334
      %v336 = vld [vmem:[%s2] sm:$0xf]
      %v337 = vld [vmem:[%s2 + $0x4] sm:$0xf]
      %v338 = vld [vmem:[%s2 + $0x8] sm:$0xf]
      %v339 = vld [vmem:[%s2 + $0xc] sm:$0xf]
      %v340 = vld [vmem:[%s2 + $0x10] sm:$0xf]
      %v341 = vld [vmem:[%s2 + $0x14] sm:$0xf]
      %v342 = vld [vmem:[%s2 + $0x18] sm:$0xf]
      %v343 = vld [vmem:[%s2 + $0x1c] sm:$0xf]
      %v352 = vunpack.c.l.b16 %v336
      %v353 = vunpack.c.l.b16 %v337
      %v354 = vunpack.c.l.b16 %v338
      %v355 = vunpack.c.l.b16 %v339
      %v356 = vunpack.c.l.b16 %v340
      %v357 = vunpack.c.l.b16 %v341
      %v358 = vunpack.c.l.b16 %v342
      %v359 = vunpack.c.l.b16 %v343
      %v360 = vpack.c.b16 %v353, %v352
      %v361 = vpack.c.b16 %v355, %v354
      %v362 = vpack.c.b16 %v357, %v356
      %v363 = vpack.c.b16 %v359, %v358
      %v369 = vsel %vm282, %v335, 0
      %371 = vmatprep.subr.bf16.mxu0 0
      %372 = vmatpush1.bf16.msra.mxu0 %v360
      %373 = vmatprep.subr.bf16.mxu0 0
      %374 = vmatpush1.bf16.msra.mxu0 %v361
      %375 = vmatprep.subr.bf16.mxu0 0
      %376 = vmatpush1.bf16.msra.mxu0 %v362
      %377 = vmatprep.subr.bf16.mxu0 0
      %378 = vmatpush1.bf16.msra.mxu0 %v363
      %379 = vmatprep.subr.bf16.mxu0 0
      %380 = vmatpush1.bf16.msra.mxu0 0
      %381 = vmatprep.subr.bf16.mxu0 0
      %382 = vmatpush1.bf16.msra.mxu0 0
      %383 = vmatprep.subr.bf16.mxu0 0
      %384 = vmatpush1.bf16.msra.mxu0 0
      %385 = vmatprep.subr.bf16.mxu0 0
      %386 = vmatpush1.bf16.msra.mxu0 0
      %387 = vmatprep.subr.bf16.mxu0 0
      %388 = vmatpush1.bf16.msra.mxu0 0
      %389 = vmatprep.subr.bf16.mxu0 0
      %390 = vmatpush1.bf16.msra.mxu0 0
      %391 = vmatprep.subr.bf16.mxu0 0
      %392 = vmatpush1.bf16.msra.mxu0 0
      %393 = vmatprep.subr.bf16.mxu0 0
      %394 = vmatpush1.bf16.msra.mxu0 0
      %395 = vmatprep.subr.bf16.mxu0 0
      %396 = vmatpush1.bf16.msra.mxu0 0
      %397 = vmatprep.subr.bf16.mxu0 0
      %398 = vmatpush1.bf16.msra.mxu0 0
      %399 = vmatprep.subr.bf16.mxu0 0
      %400 = vmatpush1.bf16.msra.mxu0 0
      %401 = vmatprep.subr.bf16.mxu0 0
      %402 = vmatpush1.bf16.msra.mxu0 0
      %403 = vmatprep.mubr.bf16.mxu0 0
      %404 = vmatmul.mubr.bf16.gmra.mrb[0].mxu0 %v369
      %v405 = vpop.f32.mrb[0].mxu0
      %v406 = vadd.f32 0.0, %v405
      %v407 = vpop.f32.mrb[0].mxu0
      %v408 = vpop.f32.mrb[0].mxu0
      %v409 = vpop.f32.mrb[0].mxu0
      %410 = vdwg.mxu0
      %v411 = vadd.f32 %v332, %v406
      %vm412 = vcmp.gt.f32.partialorder %v411, 0.0
      %v413 = vmul.f32 %v411, 0.2
      %v414 = vsel %vm412, %v411, %v413
      %v415 = vld [vmem:[%s5] sm:$0x1]
      %v416 = vpack.c.bf16 %v414, %v414
      %v417 = vld [vmem:[%s4] sm:$0xf]
      %v418 = vld [vmem:[%s4 + $0x4] sm:$0xf]
      %v419 = vld [vmem:[%s4 + $0x8] sm:$0xf]
      %v420 = vld [vmem:[%s4 + $0xc] sm:$0xf]
      %v421 = vld [vmem:[%s4 + $0x10] sm:$0xf]
      %v422 = vld [vmem:[%s4 + $0x14] sm:$0xf]
      %v423 = vld [vmem:[%s4 + $0x18] sm:$0xf]
      %v424 = vld [vmem:[%s4 + $0x1c] sm:$0xf]
      %v425 = vld [vmem:[%s4 + $0x20] sm:$0xf]
      %v426 = vld [vmem:[%s4 + $0x24] sm:$0xf]
      %v427 = vld [vmem:[%s4 + $0x28] sm:$0xf]
      %v428 = vld [vmem:[%s4 + $0x2c] sm:$0xf]
      %v429 = vld [vmem:[%s4 + $0x30] sm:$0xf]
      %v430 = vld [vmem:[%s4 + $0x34] sm:$0xf]
      %v431 = vld [vmem:[%s4 + $0x38] sm:$0xf]
      %v432 = vld [vmem:[%s4 + $0x3c] sm:$0xf]
      %v434 = vlaneseq
      %v435 = vshrl.u32 %v434, 7
      %v436 = vsub.s32 0, %v435
      %v437 = vrot.slane %v415, %v436
      %v455 = vunpack.c.l.b16 %v417
      %v456 = vunpack.c.l.b16 %v418
      %v457 = vunpack.c.l.b16 %v419
      %v458 = vunpack.c.l.b16 %v420
      %v459 = vunpack.c.l.b16 %v421
      %v460 = vunpack.c.l.b16 %v422
      %v461 = vunpack.c.l.b16 %v423
      %v462 = vunpack.c.l.b16 %v424
      %v463 = vunpack.c.l.b16 %v425
      %v464 = vunpack.c.l.b16 %v426
      %v465 = vunpack.c.l.b16 %v427
      %v466 = vunpack.c.l.b16 %v428
      %v467 = vunpack.c.l.b16 %v429
      %v468 = vunpack.c.l.b16 %v430
      %v469 = vunpack.c.l.b16 %v431
      %v470 = vunpack.c.l.b16 %v432
      %v471 = vpack.c.b16 %v456, %v455
      %v472 = vpack.c.b16 %v458, %v457
      %v473 = vpack.c.b16 %v460, %v459
      %v474 = vpack.c.b16 %v462, %v461
      %v475 = vpack.c.b16 %v464, %v463
      %v476 = vpack.c.b16 %v466, %v465
      %v477 = vpack.c.b16 %v468, %v467
      %v478 = vpack.c.b16 %v470, %v469
      %487 = vmatprep.subr.bf16.mxu0 0
      %488 = vmatpush1.bf16.msra.mxu0 %v471
      %489 = vmatprep.subr.bf16.mxu0 0
      %490 = vmatpush1.bf16.msra.mxu0 %v472
      %491 = vmatprep.subr.bf16.mxu0 0
      %492 = vmatpush1.bf16.msra.mxu0 %v473
      %493 = vmatprep.subr.bf16.mxu0 0
      %494 = vmatpush1.bf16.msra.mxu0 %v474
      %495 = vmatprep.subr.bf16.mxu0 0
      %496 = vmatpush1.bf16.msra.mxu0 %v475
      %497 = vmatprep.subr.bf16.mxu0 0
      %498 = vmatpush1.bf16.msra.mxu0 %v476
      %499 = vmatprep.subr.bf16.mxu0 0
      %500 = vmatpush1.bf16.msra.mxu0 %v477
      %501 = vmatprep.subr.bf16.mxu0 0
      %502 = vmatpush1.bf16.msra.mxu0 %v478
      %503 = vmatprep.subr.bf16.mxu0 0
      %504 = vmatpush1.bf16.msra.mxu0 0
      %505 = vmatprep.subr.bf16.mxu0 0
      %506 = vmatpush1.bf16.msra.mxu0 0
      %507 = vmatprep.subr.bf16.mxu0 0
      %508 = vmatpush1.bf16.msra.mxu0 0
      %509 = vmatprep.subr.bf16.mxu0 0
      %510 = vmatpush1.bf16.msra.mxu0 0
      %511 = vmatprep.subr.bf16.mxu0 0
      %512 = vmatpush1.bf16.msra.mxu0 0
      %513 = vmatprep.subr.bf16.mxu0 0
      %514 = vmatpush1.bf16.msra.mxu0 0
      %515 = vmatprep.subr.bf16.mxu0 0
      %516 = vmatpush1.bf16.msra.mxu0 0
      %517 = vmatprep.subr.bf16.mxu0 0
      %518 = vmatpush1.bf16.msra.mxu0 0
      %519 = vmatprep.mubr.bf16.mxu0 0
      %520 = vmatmul.mubr.bf16.gmra.mrb[0].mxu0 %v416
      %v521 = vpop.f32.mrb[0].mxu0
      %v522 = vadd.f32 %v437, %v521
      %v523 = vpop.f32.mrb[0].mxu0
      %v524 = vpop.f32.mrb[0].mxu0
      %v525 = vpop.f32.mrb[0].mxu0
      %526 = vdwg.mxu0
      %527 = vst.msk [vmem:[%s246] sm:$0xff] %vm282, %v522
      %p528 = scmp.lt.s32.totalorder %s17, 1
      %s529 = scalar_select %p528, %s17, 1
      %s530 = smul.addr %s529, 8
      %s531 = scalar_lea.vmem %s6, %s530
      // Predicated region
      $region45: #{trajsnet_forward.19} parent=43 // pred_check
        %p532 = pneg %p166
      $region46: #{trajsnet_forward.19} parent=43 // pred_check_branch
        %534 = sbr.rel (%p532) target = $region48
      $region47: #{trajsnet_forward.19} parent=43 // pred_region
        _
      $region48: #{trajsnet_forward.19} parent=43 // pred_fallthru
        _
    $region44: #{trajsnet_forward.19} parent=5 // pred_fallthru
      _
    %p535 = scmp.le.s32.totalorder 2, %s12
    // Predicated region
    $region49: #{trajsnet_forward.19} parent=5 // pred_check
      %p536 = pneg %p535
    $region50: #{trajsnet_forward.19} parent=5 // pred_check_branch
      %538 = sbr.rel (%p536) target = $region52
    $region51: #{trajsnet_forward.19} parent=5 // pred_region
      %s539 = ssub.s32 %s12, 2
      // Predicated region
      $region53: #{trajsnet_forward.19} parent=51 // pred_check
        %p540 = pneg %p172
      $region54: #{trajsnet_forward.19} parent=51 // pred_check_branch
        %542 = sbr.rel (%p540) target = $region56
      $region55: #{trajsnet_forward.19} parent=51 // pred_region
        %p543 = scmp.lt.s32.totalorder %s18, 1
        %s544 = scalar_select %p543, %s18, 1
        %s545 = smul.addr %s544, 8
        %s546 = scalar_lea.vmem %s6, %s545
      $region56: #{trajsnet_forward.19} parent=51 // pred_fallthru
        _
    $region52: #{trajsnet_forward.19} parent=5 // pred_fallthru
      _
  $region6: #{trajsnet_forward.19} parent=0 // loop_footer
    %s16 = sadd.s32 1, %s12
  $region7: #{trajsnet_forward.19} parent=0 // loop_footer_branch
    %11 = sbr.rel target = $region3
  $region8: #{trajsnet_forward.19} parent=0 // loop_exit
    _

// kernel: trajsnet_forward.21
$region0: #{trajsnet_forward.21}
  #allocation0 [shape = 'u32[]', space=smem, size = 0x4, offset = 0x4, fixed_abs, tag = 'smem constant byte address 0x4 - core index']
  #allocation1 [shape = 'u32[144,128]{1,0:T(1,128)}', space=vmem, size = 0x12000, scoped, tag = 'internal scratch']
  %s0 = inlined_call_operand.vmem [shape: bf16[32,1], index: 0, kind: input, shape index: {}]
  %s1 = inlined_call_operand.vmem [shape: bf16[32,64], index: 1, kind: input, shape index: {}]
  %s2 = inlined_call_operand.vmem [shape: bf16[32,64], index: 2, kind: input, shape index: {}]
  %s3 = inlined_call_operand.vmem [shape: bf16[1,128], index: 3, kind: input, shape index: {}]
  %s4 = inlined_call_operand.vmem [shape: bf16[64,128], index: 4, kind: input, shape index: {}]
  %s5 = inlined_call_operand.vmem [shape: bf16[64,128], index: 5, kind: input, shape index: {}]
  %s6 = inlined_call_operand.vmem [shape: f32[1,128], index: 6, kind: input, shape index: {}]
  %s7 = inlined_call_operand.vmem [shape: bf16[128,64], index: 7, kind: input, shape index: {}]
  %s8 = inlined_call_operand.vmem [shape: f32[1,64], index: 8, kind: input, shape index: {}]
  %s9 = inlined_call_operand.vmem [shape: bf16[64,32], index: 9, kind: input, shape index: {}]
  %s10 = inlined_call_operand.vmem [shape: f32[1,32], index: 10, kind: input, shape index: {}]
  %s11 = inlined_call_operand.vmem [shape: bf16[32,64], index: 11, kind: input, shape index: {}]
  %s12 = inlined_call_operand.vmem [shape: f32[1,64], index: 12, kind: input, shape index: {}]
  %s13 = inlined_call_operand.vmem [shape: f32[32,64], index: 13, kind: output, shape index: {}]
  %s14 = sld [smem:[#allocation0]]
  $region85: #{trajsnet_forward.21} parent=0
    _
  %s16 = ssub.s32 1, %s14
  %s17 = scalar_select 0, %s16, %s14
  loop: start=0, step=1, limit=4
  $region2: #{trajsnet_forward.21} parent=0 // loop_pre_header
    _
  $region3: #{trajsnet_forward.21} parent=0 // loop_header
    %s19 = sphi 0, %s23
    %p20 = scmp.ge.s32.totalorder %s19, 4
    %s29 = sphi 0, %s31
    %s32 = sphi 0, %s29
    %s33 = sphi 0, %s32
    %s49 = sphi 0, %s33
    %s55 = sphi 0, %s57
    %s58 = sphi 0, %s55
    %s59 = sphi 0, %s58
    %s75 = sphi 0, %s59
    %s81 = sphi 0, %s83
    %s84 = sphi 0, %s81
    %s85 = sphi 0, %s84
    %s101 = sphi 0, %s85
    %s105 = sphi 0, %s105
    %s107 = sphi 0, %s105
    %s108 = sphi 0, %s107
    %s122 = sphi 0, %s108
    %s126 = sphi 0, %s126
    %s128 = sphi 0, %s126
    %s129 = sphi 0, %s128
    %s143 = sphi 0, %s129
    %s147 = sphi 0, %s147
    %s149 = sphi 0, %s147
    %s150 = sphi 0, %s149
    %s164 = sphi 0, %s150
    %s168 = sphi 0, %s168
    %s170 = sphi 0, %s168
    %s171 = sphi 0, %s170
    %s185 = sphi 0, %s171
    %s189 = sphi 0, %s189
    %s191 = sphi 0, %s189
    %s192 = sphi 0, %s191
    %s206 = sphi 0, %s192
    %s210 = sphi 0, %s210
    %s212 = sphi 0, %s210
    %s213 = sphi 0, %s212
    %s227 = sphi 0, %s213
    %s231 = sphi 0, %s231
    %s233 = sphi 0, %s231
    %s234 = sphi 0, %s233
    %s248 = sphi 0, %s234
    %s252 = sphi 0, %s252
    %s254 = sphi 0, %s252
    %s255 = sphi 0, %s254
    %s269 = sphi 0, %s255
    %s273 = sphi 0, %s273
    %s275 = sphi 0, %s273
    %s276 = sphi 0, %s275
    %s290 = sphi 0, %s276
    %s294 = sphi 0, %s294
    %s296 = sphi 0, %s294
    %s297 = sphi 0, %s296
    %s311 = sphi 0, %s297
    %s317 = sphi 0, %s319
    %s320 = sphi 0, %s317
    %s321 = sphi 0, %s320
    %s337 = sphi 0, %s321
  $region4: #{trajsnet_forward.21} parent=0 // loop_header_branch
    %22 = sbr.rel (%p20) target = $region8
  $region5: #{trajsnet_forward.21} parent=0 // loop_body
    %s24 = ssub.s32 %s19, 1
    %s25 = ssub.s32 %s19, 2
    %s26 = sadd.s32 %s19, 1
    %s27 = ssub.s32 %s19, %s26
    %p28 = scmp.eq.s32.totalorder %s27, 0
    %s30 = sadd.s32 %s29, 1
    %s31 = scalar_select %p28, %s29, %s30
    %p34 = pneg %p28
    %p35 = scmp.eq.s32.totalorder %s19, 1
    %p36 = por %p34, %p35
    %p37 = scmp.ne.s32.totalorder %s29, %s32
    %p38 = scmp.eq.s32.totalorder %s19, 0
    %p39 = por %p37, %p38
    %p40 = scmp.ne.s32.totalorder %s29, %s32
    %p41 = scmp.eq.s32.totalorder %s24, 1
    %p42 = por %p40, %p41
    %p43 = scmp.ne.s32.totalorder %s32, %s33
    %p44 = scmp.eq.s32.totalorder %s24, 0
    %p45 = por %p43, %p44
    %p46 = scmp.ne.s32.totalorder %s32, %s33
    %p47 = scmp.eq.s32.totalorder %s25, 1
    %p48 = por %p46, %p47
    %p50 = scmp.ne.s32.totalorder %s33, %s49
    %p51 = scmp.eq.s32.totalorder %s25, 0
    %p52 = por %p50, %p51
    %s53 = ssub.s32 %s19, %s26
    %p54 = scmp.eq.s32.totalorder %s53, 0
    %s56 = sadd.s32 %s55, 1
    %s57 = scalar_select %p54, %s55, %s56
    %p60 = pneg %p54
    %p61 = scmp.eq.s32.totalorder %s19, 1
    %p62 = por %p60, %p61
    %p63 = scmp.ne.s32.totalorder %s55, %s58
    %p64 = scmp.eq.s32.totalorder %s19, 0
    %p65 = por %p63, %p64
    %p66 = scmp.ne.s32.totalorder %s55, %s58
    %p67 = scmp.eq.s32.totalorder %s24, 1
    %p68 = por %p66, %p67
    %p69 = scmp.ne.s32.totalorder %s58, %s59
    %p70 = scmp.eq.s32.totalorder %s24, 0
    %p71 = por %p69, %p70
    %p72 = scmp.ne.s32.totalorder %s58, %s59
    %p73 = scmp.eq.s32.totalorder %s25, 1
    %p74 = por %p72, %p73
    %p76 = scmp.ne.s32.totalorder %s59, %s75
    %p77 = scmp.eq.s32.totalorder %s25, 0
    %p78 = por %p76, %p77
    %s79 = ssub.s32 %s19, %s26
    %p80 = scmp.eq.s32.totalorder %s79, 0
    %s82 = sadd.s32 %s81, 1
    %s83 = scalar_select %p80, %s81, %s82
    %p86 = pneg %p80
    %p87 = scmp.eq.s32.totalorder %s19, 1
    %p88 = por %p86, %p87
    %p89 = scmp.ne.s32.totalorder %s81, %s84
    %p90 = scmp.eq.s32.totalorder %s19, 0
    %p91 = por %p89, %p90
    %p92 = scmp.ne.s32.totalorder %s81, %s84
    %p93 = scmp.eq.s32.totalorder %s24, 1
    %p94 = por %p92, %p93
    %p95 = scmp.ne.s32.totalorder %s84, %s85
    %p96 = scmp.eq.s32.totalorder %s24, 0
    %p97 = por %p95, %p96
    %p98 = scmp.ne.s32.totalorder %s84, %s85
    %p99 = scmp.eq.s32.totalorder %s25, 1
    %p100 = por %p98, %p99
    %p102 = scmp.ne.s32.totalorder %s85, %s101
    %p103 = scmp.eq.s32.totalorder %s25, 0
    %p104 = por %p102, %p103
    %s106 = sadd.s32 %s105, 1
    %p109 = scmp.eq.s32.totalorder %s19, 1
    %p110 = scmp.ne.s32.totalorder %s105, %s107
    %p111 = scmp.eq.s32.totalorder %s19, 0
    %p112 = por %p110, %p111
    %p113 = scmp.ne.s32.totalorder %s105, %s107
    %p114 = scmp.eq.s32.totalorder %s24, 1
    %p115 = por %p113, %p114
    %p116 = scmp.ne.s32.totalorder %s107, %s108
    %p117 = scmp.eq.s32.totalorder %s24, 0
    %p118 = por %p116, %p117
    %p119 = scmp.ne.s32.totalorder %s107, %s108
    %p120 = scmp.eq.s32.totalorder %s25, 1
    %p121 = por %p119, %p120
    %p123 = scmp.ne.s32.totalorder %s108, %s122
    %p124 = scmp.eq.s32.totalorder %s25, 0
    %p125 = por %p123, %p124
    %s127 = sadd.s32 %s126, 1
    %p130 = scmp.eq.s32.totalorder %s19, 1
    %p131 = scmp.ne.s32.totalorder %s126, %s128
    %p132 = scmp.eq.s32.totalorder %s19, 0
    %p133 = por %p131, %p132
    %p134 = scmp.ne.s32.totalorder %s126, %s128
    %p135 = scmp.eq.s32.totalorder %s24, 1
    %p136 = por %p134, %p135
    %p137 = scmp.ne.s32.totalorder %s128, %s129
    %p138 = scmp.eq.s32.totalorder %s24, 0
    %p139 = por %p137, %p138
    %p140 = scmp.ne.s32.totalorder %s128, %s129
    %p141 = scmp.eq.s32.totalorder %s25, 1
    %p142 = por %p140, %p141
    %p144 = scmp.ne.s32.totalorder %s129, %s143
    %p145 = scmp.eq.s32.totalorder %s25, 0
    %p146 = por %p144, %p145
    %s148 = sadd.s32 %s147, 1
    %p151 = scmp.eq.s32.totalorder %s19, 1
    %p152 = scmp.ne.s32.totalorder %s147, %s149
    %p153 = scmp.eq.s32.totalorder %s19, 0
    %p154 = por %p152, %p153
    %p155 = scmp.ne.s32.totalorder %s147, %s149
    %p156 = scmp.eq.s32.totalorder %s24, 1
    %p157 = por %p155, %p156
    %p158 = scmp.ne.s32.totalorder %s149, %s150
    %p159 = scmp.eq.s32.totalorder %s24, 0
    %p160 = por %p158, %p159
    %p161 = scmp.ne.s32.totalorder %s149, %s150
    %p162 = scmp.eq.s32.totalorder %s25, 1
    %p163 = por %p161, %p162
    %p165 = scmp.ne.s32.totalorder %s150, %s164
    %p166 = scmp.eq.s32.totalorder %s25, 0
    %p167 = por %p165, %p166
    %s169 = sadd.s32 %s168, 1
    %p172 = scmp.eq.s32.totalorder %s19, 1
    %p173 = scmp.ne.s32.totalorder %s168, %s170
    %p174 = scmp.eq.s32.totalorder %s19, 0
    %p175 = por %p173, %p174
    %p176 = scmp.ne.s32.totalorder %s168, %s170
    %p177 = scmp.eq.s32.totalorder %s24, 1
    %p178 = por %p176, %p177
    %p179 = scmp.ne.s32.totalorder %s170, %s171
    %p180 = scmp.eq.s32.totalorder %s24, 0
    %p181 = por %p179, %p180
    %p182 = scmp.ne.s32.totalorder %s170, %s171
    %p183 = scmp.eq.s32.totalorder %s25, 1
    %p184 = por %p182, %p183
    %p186 = scmp.ne.s32.totalorder %s171, %s185
    %p187 = scmp.eq.s32.totalorder %s25, 0
    %p188 = por %p186, %p187
    %s190 = sadd.s32 %s189, 1
    %p193 = scmp.eq.s32.totalorder %s19, 1
    %p194 = scmp.ne.s32.totalorder %s189, %s191
    %p195 = scmp.eq.s32.totalorder %s19, 0
    %p196 = por %p194, %p195
    %p197 = scmp.ne.s32.totalorder %s189, %s191
    %p198 = scmp.eq.s32.totalorder %s24, 1
    %p199 = por %p197, %p198
    %p200 = scmp.ne.s32.totalorder %s191, %s192
    %p201 = scmp.eq.s32.totalorder %s24, 0
    %p202 = por %p200, %p201
    %p203 = scmp.ne.s32.totalorder %s191, %s192
    %p204 = scmp.eq.s32.totalorder %s25, 1
    %p205 = por %p203, %p204
    %p207 = scmp.ne.s32.totalorder %s192, %s206
    %p208 = scmp.eq.s32.totalorder %s25, 0
    %p209 = por %p207, %p208
    %s211 = sadd.s32 %s210, 1
    %p214 = scmp.eq.s32.totalorder %s19, 1
    %p215 = scmp.ne.s32.totalorder %s210, %s212
    %p216 = scmp.eq.s32.totalorder %s19, 0
    %p217 = por %p215, %p216
    %p218 = scmp.ne.s32.totalorder %s210, %s212
    %p219 = scmp.eq.s32.totalorder %s24, 1
    %p220 = por %p218, %p219
    %p221 = scmp.ne.s32.totalorder %s212, %s213
    %p222 = scmp.eq.s32.totalorder %s24, 0
    %p223 = por %p221, %p222
    %p224 = scmp.ne.s32.totalorder %s212, %s213
    %p225 = scmp.eq.s32.totalorder %s25, 1
    %p226 = por %p224, %p225
    %p228 = scmp.ne.s32.totalorder %s213, %s227
    %p229 = scmp.eq.s32.totalorder %s25, 0
    %p230 = por %p228, %p229
    %s232 = sadd.s32 %s231, 1
    %p235 = scmp.eq.s32.totalorder %s19, 1
    %p236 = scmp.ne.s32.totalorder %s231, %s233
    %p237 = scmp.eq.s32.totalorder %s19, 0
    %p238 = por %p236, %p237
    %p239 = scmp.ne.s32.totalorder %s231, %s233
    %p240 = scmp.eq.s32.totalorder %s24, 1
    %p241 = por %p239, %p240
    %p242 = scmp.ne.s32.totalorder %s233, %s234
    %p243 = scmp.eq.s32.totalorder %s24, 0
    %p244 = por %p242, %p243
    %p245 = scmp.ne.s32.totalorder %s233, %s234
    %p246 = scmp.eq.s32.totalorder %s25, 1
    %p247 = por %p245, %p246
    %p249 = scmp.ne.s32.totalorder %s234, %s248
    %p250 = scmp.eq.s32.totalorder %s25, 0
    %p251 = por %p249, %p250
    %s253 = sadd.s32 %s252, 1
    %p256 = scmp.eq.s32.totalorder %s19, 1
    %p257 = scmp.ne.s32.totalorder %s252, %s254
    %p258 = scmp.eq.s32.totalorder %s19, 0
    %p259 = por %p257, %p258
    %p260 = scmp.ne.s32.totalorder %s252, %s254
    %p261 = scmp.eq.s32.totalorder %s24, 1
    %p262 = por %p260, %p261
    %p263 = scmp.ne.s32.totalorder %s254, %s255
    %p264 = scmp.eq.s32.totalorder %s24, 0
    %p265 = por %p263, %p264
    %p266 = scmp.ne.s32.totalorder %s254, %s255
    %p267 = scmp.eq.s32.totalorder %s25, 1
    %p268 = por %p266, %p267
    %p270 = scmp.ne.s32.totalorder %s255, %s269
    %p271 = scmp.eq.s32.totalorder %s25, 0
    %p272 = por %p270, %p271
    %s274 = sadd.s32 %s273, 1
    %p277 = scmp.eq.s32.totalorder %s19, 1
    %p278 = scmp.ne.s32.totalorder %s273, %s275
    %p279 = scmp.eq.s32.totalorder %s19, 0
    %p280 = por %p278, %p279
    %p281 = scmp.ne.s32.totalorder %s273, %s275
    %p282 = scmp.eq.s32.totalorder %s24, 1
    %p283 = por %p281, %p282
    %p284 = scmp.ne.s32.totalorder %s275, %s276
    %p285 = scmp.eq.s32.totalorder %s24, 0
    %p286 = por %p284, %p285
    %p287 = scmp.ne.s32.totalorder %s275, %s276
    %p288 = scmp.eq.s32.totalorder %s25, 1
    %p289 = por %p287, %p288
    %p291 = scmp.ne.s32.totalorder %s276, %s290
    %p292 = scmp.eq.s32.totalorder %s25, 0
    %p293 = por %p291, %p292
    %s295 = sadd.s32 %s294, 1
    %p298 = scmp.eq.s32.totalorder %s19, 1
    %p299 = scmp.ne.s32.totalorder %s294, %s296
    %p300 = scmp.eq.s32.totalorder %s19, 0
    %p301 = por %p299, %p300
    %p302 = scmp.ne.s32.totalorder %s294, %s296
    %p303 = scmp.eq.s32.totalorder %s24, 1
    %p304 = por %p302, %p303
    %p305 = scmp.ne.s32.totalorder %s296, %s297
    %p306 = scmp.eq.s32.totalorder %s24, 0
    %p307 = por %p305, %p306
    %p308 = scmp.ne.s32.totalorder %s296, %s297
    %p309 = scmp.eq.s32.totalorder %s25, 1
    %p310 = por %p308, %p309
    %p312 = scmp.ne.s32.totalorder %s297, %s311
    %p313 = scmp.eq.s32.totalorder %s25, 0
    %p314 = por %p312, %p313
    %s315 = ssub.s32 %s19, %s26
    %p316 = scmp.eq.s32.totalorder %s315, 0
    %s318 = sadd.s32 %s317, 1
    %s319 = scalar_select %p316, %s317, %s318
    %p322 = pneg %p316
    %p323 = scmp.eq.s32.totalorder %s19, 1
    %p324 = por %p322, %p323
    %p325 = scmp.ne.s32.totalorder %s317, %s320
    %p326 = scmp.eq.s32.totalorder %s19, 0
    %p327 = por %p325, %p326
    %p328 = scmp.ne.s32.totalorder %s317, %s320
    %p329 = scmp.eq.s32.totalorder %s24, 1
    %p330 = por %p328, %p329
    %p331 = scmp.ne.s32.totalorder %s320, %s321
    %p332 = scmp.eq.s32.totalorder %s24, 0
    %p333 = por %p331, %p332
    %p334 = scmp.ne.s32.totalorder %s320, %s321
    %p335 = scmp.eq.s32.totalorder %s25, 1
    %p336 = por %p334, %p335
    %p338 = scmp.ne.s32.totalorder %s321, %s337
    %p339 = scmp.eq.s32.totalorder %s25, 0
    %p340 = por %p338, %p339
    %p341 = scmp.le.s32.totalorder 1, %s19
    %p342 = scmp.lt.s32.totalorder %s19, 3
    %p343 = pnand %p341, %p342
    %p344 = pneg %p343
    // Predicated region
    $region9: #{trajsnet_forward.21} parent=5 // pred_check
      _
    $region10: #{trajsnet_forward.21} parent=5 // pred_check_branch
      %346 = sbr.rel (%p343) target = $region12
    $region11: #{trajsnet_forward.21} parent=5 // pred_region
      %s347 = ssub.s32 %s19, 1
      // Predicated region
      $region13: #{trajsnet_forward.21} parent=11 // pred_check
        %p348 = pneg %p118
      $region14: #{trajsnet_forward.21} parent=11 // pred_check_branch
        %350 = sbr.rel (%p348) target = $region16
      $region15: #{trajsnet_forward.21} parent=11 // pred_region
        _
      $region16: #{trajsnet_forward.21} parent=11 // pred_fallthru
        _
      // Predicated region
      $region17: #{trajsnet_forward.21} parent=11 // pred_check
        %p351 = pneg %p139
      $region18: #{trajsnet_forward.21} parent=11 // pred_check_branch
        %353 = sbr.rel (%p351) target = $region20
      $region19: #{trajsnet_forward.21} parent=11 // pred_region
        _
      $region20: #{trajsnet_forward.21} parent=11 // pred_fallthru
        _
      // Predicated region
      $region21: #{trajsnet_forward.21} parent=11 // pred_check
        %p354 = pneg %p160
      $region22: #{trajsnet_forward.21} parent=11 // pred_check_branch
        %356 = sbr.rel (%p354) target = $region24
      $region23: #{trajsnet_forward.21} parent=11 // pred_region
        _
      $region24: #{trajsnet_forward.21} parent=11 // pred_fallthru
        _
      // Predicated region
      $region25: #{trajsnet_forward.21} parent=11 // pred_check
        %p357 = pneg %p181
      $region26: #{trajsnet_forward.21} parent=11 // pred_check_branch
        %359 = sbr.rel (%p357) target = $region28
      $region27: #{trajsnet_forward.21} parent=11 // pred_region
        _
      $region28: #{trajsnet_forward.21} parent=11 // pred_fallthru
        _
      // Predicated region
      $region29: #{trajsnet_forward.21} parent=11 // pred_check
        %p360 = pneg %p202
      $region30: #{trajsnet_forward.21} parent=11 // pred_check_branch
        %362 = sbr.rel (%p360) target = $region32
      $region31: #{trajsnet_forward.21} parent=11 // pred_region
        _
      $region32: #{trajsnet_forward.21} parent=11 // pred_fallthru
        _
      // Predicated region
      $region33: #{trajsnet_forward.21} parent=11 // pred_check
        %p363 = pneg %p223
      $region34: #{trajsnet_forward.21} parent=11 // pred_check_branch
        %365 = sbr.rel (%p363) target = $region36
      $region35: #{trajsnet_forward.21} parent=11 // pred_region
        _
      $region36: #{trajsnet_forward.21} parent=11 // pred_fallthru
        _
      // Predicated region
      $region37: #{trajsnet_forward.21} parent=11 // pred_check
        %p366 = pneg %p244
      $region38: #{trajsnet_forward.21} parent=11 // pred_check_branch
        %368 = sbr.rel (%p366) target = $region40
      $region39: #{trajsnet_forward.21} parent=11 // pred_region
        _
      $region40: #{trajsnet_forward.21} parent=11 // pred_fallthru
        _
      // Predicated region
      $region41: #{trajsnet_forward.21} parent=11 // pred_check
        %p369 = pneg %p265
      $region42: #{trajsnet_forward.21} parent=11 // pred_check_branch
        %371 = sbr.rel (%p369) target = $region44
      $region43: #{trajsnet_forward.21} parent=11 // pred_region
        _
      $region44: #{trajsnet_forward.21} parent=11 // pred_fallthru
        _
      // Predicated region
      $region45: #{trajsnet_forward.21} parent=11 // pred_check
        %p372 = pneg %p286
      $region46: #{trajsnet_forward.21} parent=11 // pred_check_branch
        %374 = sbr.rel (%p372) target = $region48
      $region47: #{trajsnet_forward.21} parent=11 // pred_region
        _
      $region48: #{trajsnet_forward.21} parent=11 // pred_fallthru
        _
      // Predicated region
      $region49: #{trajsnet_forward.21} parent=11 // pred_check
        %p375 = pneg %p307
      $region50: #{trajsnet_forward.21} parent=11 // pred_check_branch
        %377 = sbr.rel (%p375) target = $region52
      $region51: #{trajsnet_forward.21} parent=11 // pred_region
        _
      $region52: #{trajsnet_forward.21} parent=11 // pred_fallthru
        _
    $region12: #{trajsnet_forward.21} parent=5 // pred_fallthru
      _
    %p378 = scmp.lt.s32.totalorder %s19, 2
    // Predicated region
    $region53: #{trajsnet_forward.21} parent=5 // pred_check
      %p379 = pneg %p378
    $region54: #{trajsnet_forward.21} parent=5 // pred_check_branch
      %381 = sbr.rel (%p379) target = $region56
    $region55: #{trajsnet_forward.21} parent=5 // pred_region
      // Predicated region
      $region57: #{trajsnet_forward.21} parent=55 // pred_check
        %p382 = pneg %p39
      $region58: #{trajsnet_forward.21} parent=55 // pred_check_branch
        %384 = sbr.rel (%p382) target = $region60
      $region59: #{trajsnet_forward.21} parent=55 // pred_region
        %s385 = smul.u32 2, %s19
        %p386 = scmp.lt.s32.totalorder %s385, 3
        %s387 = scalar_select %p386, %s385, 3
        %s388 = smul.addr %s387, 4
        %s389 = scalar_lea.vmem %s0, %s388
        %s390 = smul.u32 2, %s19
      $region60: #{trajsnet_forward.21} parent=55 // pred_fallthru
        _
      // Predicated region
      $region61: #{trajsnet_forward.21} parent=55 // pred_check
        %p391 = pneg %p65
      $region62: #{trajsnet_forward.21} parent=55 // pred_check_branch
        %393 = sbr.rel (%p391) target = $region64
      $region63: #{trajsnet_forward.21} parent=55 // pred_region
        %s394 = smul.u32 2, %s19
        %p395 = scmp.lt.s32.totalorder %s394, 3
        %s396 = scalar_select %p395, %s394, 3
        %s397 = smul.addr %s396, 4
        %s398 = scalar_lea.vmem %s1, %s397
        %s399 = smul.u32 2, %s19
      $region64: #{trajsnet_forward.21} parent=55 // pred_fallthru
        _
      // Predicated region
      $region65: #{trajsnet_forward.21} parent=55 // pred_check
        %p400 = pneg %p91
      $region66: #{trajsnet_forward.21} parent=55 // pred_check_branch
        %402 = sbr.rel (%p400) target = $region68
      $region67: #{trajsnet_forward.21} parent=55 // pred_region
        %s403 = smul.u32 2, %s19
        %p404 = scmp.lt.s32.totalorder %s403, 3
        %s405 = scalar_select %p404, %s403, 3
        %s406 = smul.addr %s405, 4
        %s407 = scalar_lea.vmem %s2, %s406
        %s408 = smul.u32 2, %s19
      $region68: #{trajsnet_forward.21} parent=55 // pred_fallthru
        _
    $region56: #{trajsnet_forward.21} parent=5 // pred_fallthru
      _
    %p409 = scmp.le.s32.totalorder 1, %s19
    %p410 = scmp.lt.s32.totalorder %s19, 3
    %p411 = pnand %p409, %p410
    %p412 = pneg %p411
    // Predicated region
    $region69: #{trajsnet_forward.21} parent=5 // pred_check
      _
    $region70: #{trajsnet_forward.21} parent=5 // pred_check_branch
      %414 = sbr.rel (%p411) target = $region72
    $region71: #{trajsnet_forward.21} parent=5 // pred_region
      %s415 = ssub.s32 %s19, 1
      %s416 = smul.u32 2, %s24
      %p417 = scmp.lt.s32.totalorder %s416, 3
      %s418 = scalar_select %p417, %s416, 3
      %s419 = smul.addr %s418, 4
      %s420 = scalar_lea.vmem %s0, %s419
      %p421 = pneg %p45
      %p422 = pneg %p42
      %s423 = smul.u32 2, %s24
      %p424 = scmp.lt.s32.totalorder %s423, 3
      %s425 = scalar_select %p424, %s423, 3
      %s426 = smul.addr %s425, 4
      %s427 = scalar_lea.vmem %s1, %s426
      %p428 = pneg %p71
      %p429 = pneg %p68
      %s430 = smul.u32 2, %s24
      %p431 = scmp.lt.s32.totalorder %s430, 3
      %s432 = scalar_select %p431, %s430, 3
      %s433 = smul.addr %s432, 4
      %s434 = scalar_lea.vmem %s2, %s433
      %p435 = pneg %p97
      %p436 = pneg %p94
      %p437 = pneg %p118
      %p438 = pneg %p115
      %p439 = pneg %p139
      %p440 = pneg %p136
      %p441 = pneg %p160
      %p442 = pneg %p157
      %p443 = pneg %p181
      %p444 = pneg %p178
      %p445 = pneg %p202
      %p446 = pneg %p199
      %p447 = pneg %p223
      %p448 = pneg %p220
      %p449 = pneg %p244
      %p450 = pneg %p241
      %p451 = pneg %p265
      %p452 = pneg %p262
      %p453 = pneg %p286
      %p454 = pneg %p283
      %p455 = pneg %p307
      %p456 = pneg %p304
      %p457 = pneg %p333
      %p458 = pneg %p330
      %s459 = smul.u32 2, %s24
      %p460 = scmp.lt.s32.totalorder %s459, 3
      %s461 = scalar_select %p460, %s459, 3
      %s462 = smul.addr %s461, 8
      %s463 = scalar_lea.vmem %s13, %s462
      %s464 = smul.u32 2, %s24
      %p465 = scmp.lt.s32.totalorder %s464, 3
      %s466 = scalar_select %p465, %s464, 3
      %s467 = smul.addr %s466, 4
      %s468 = scalar_lea.vmem %s0, %s467
      %s469 = smul.u32 2, %s24
      %s470 = smul.u32 2, %s24
      %p471 = scmp.lt.s32.totalorder %s470, 3
      %s472 = scalar_select %p471, %s470, 3
      %s473 = smul.addr %s472, 4
      %s474 = scalar_lea.vmem %s1, %s473
      %s475 = smul.u32 2, %s24
      %s476 = smul.u32 2, %s24
      %p477 = scmp.lt.s32.totalorder %s476, 3
      %s478 = scalar_select %p477, %s476, 3
      %s479 = smul.addr %s478, 4
      %s480 = scalar_lea.vmem %s2, %s479
      %s481 = smul.u32 2, %s24
      %s482 = smul.u32 2, %s24
      %p483 = scmp.lt.s32.totalorder %s482, 3
      %s484 = scalar_select %p483, %s482, 3
      %s485 = smul.addr %s484, 8
      %s486 = scalar_lea.vmem %s13, %s485
      %s487 = smul.u32 2, %s24
      %v489 = vld [vmem:[%s468] sm:$0xf]
      %v490 = vld [vmem:[%s468 + $0x4] sm:$0xf]
      %v491 = vld [vmem:[%s474] sm:$0xf]
      %v492 = vld [vmem:[%s474 + $0x4] sm:$0xf]
      %v493 = vld [vmem:[%s480] sm:$0xf]
      %v494 = vld [vmem:[%s480 + $0x4] sm:$0xf]
      %v495 = vld [vmem:[%s6] sm:$0x1]
      %v496 = vunpack.c.l.bf16 %v489
      %v497 = vunpack.c.l.bf16 %v490
      %v498 = vld [vmem:[%s3] sm:$0x1]
      %v499 = vunpack.c.l.bf16 %v498
      %501 = vset.pattern.permute.xlu0 0
      %502 = vperm.xlu0 %501, %v496
      %v503 = vpop.permute.xlu0 %502
      %506 = vset.pattern.permute.xlu0 0
      %507 = vperm.xlu0 %506, %v497
      %v508 = vpop.permute.xlu0 %507
      %v510 = vlaneseq
      %v511 = vshrl.u32 %v510, 7
      %v512 = vsub.s32 0, %v511
      %v513 = vrot.slane %v499, %v512
      %v514 = vmul.f32 %v503, %v513
      %v515 = vmul.f32 %v508, %v513
      %v517 = vlaneseq
      %v518 = vshrl.u32 %v517, 7
      %v519 = vsub.s32 0, %v518
      %v520 = vrot.slane %v495, %v519
      %v522 = vadd.f32 %v520, %v514
      %v523 = vadd.f32 %v520, %v515
      %v524 = vld [vmem:[%s4] sm:$0xf]
      %v525 = vld [vmem:[%s4 + $0x4] sm:$0xf]
      %v526 = vld [vmem:[%s4 + $0x8] sm:$0xf]
      %v527 = vld [vmem:[%s4 + $0xc] sm:$0xf]
      %v528 = vld [vmem:[%s4 + $0x10] sm:$0xf]
      %v529 = vld [vmem:[%s4 + $0x14] sm:$0xf]
      %v530 = vld [vmem:[%s4 + $0x18] sm:$0xf]
      %v531 = vld [vmem:[%s4 + $0x1c] sm:$0xf]
      %v534 = vunpack.c.l.b16 %v491
      %v535 = vunpack.c.l.b16 %v492
      %v536 = vpack.c.b16 %v535, %v534
      %v545 = vunpack.c.l.b16 %v524
      %v546 = vunpack.c.l.b16 %v525
      %v547 = vunpack.c.l.b16 %v526
      %v548 = vunpack.c.l.b16 %v527
      %v549 = vunpack.c.l.b16 %v528
      %v550 = vunpack.c.l.b16 %v529
      %v551 = vunpack.c.l.b16 %v530
      %v552 = vunpack.c.l.b16 %v531
      %v553 = vpack.c.b16 %v546, %v545
      %v554 = vpack.c.b16 %v548, %v547
      %v555 = vpack.c.b16 %v550, %v549
      %v556 = vpack.c.b16 %v552, %v551
      %vm561 = vcmask 523264
      %v563 = vsel %vm561, %v536, 0
      %565 = vmatprep.subr.bf16.mxu0 0
      %566 = vmatpush1.bf16.msra.mxu0 %v553
      %567 = vmatprep.subr.bf16.mxu0 0
      %568 = vmatpush1.bf16.msra.mxu0 %v554
      %569 = vmatprep.subr.bf16.mxu0 0
      %570 = vmatpush1.bf16.msra.mxu0 %v555
      %571 = vmatprep.subr.bf16.mxu0 0
      %572 = vmatpush1.bf16.msra.mxu0 %v556
      %573 = vmatprep.subr.bf16.mxu0 0
      %574 = vmatpush1.bf16.msra.mxu0 0
      %575 = vmatprep.subr.bf16.mxu0 0
      %576 = vmatpush1.bf16.msra.mxu0 0
      %577 = vmatprep.subr.bf16.mxu0 0
      %578 = vmatpush1.bf16.msra.mxu0 0
      %579 = vmatprep.subr.bf16.mxu0 0
      %580 = vmatpush1.bf16.msra.mxu0 0
      %581 = vmatprep.subr.bf16.mxu0 0
      %582 = vmatpush1.bf16.msra.mxu0 0
      %583 = vmatprep.subr.bf16.mxu0 0
      %584 = vmatpush1.bf16.msra.mxu0 0
      %585 = vmatprep.subr.bf16.mxu0 0
      %586 = vmatpush1.bf16.msra.mxu0 0
      %587 = vmatprep.subr.bf16.mxu0 0
      %588 = vmatpush1.bf16.msra.mxu0 0
      %589 = vmatprep.subr.bf16.mxu0 0
      %590 = vmatpush1.bf16.msra.mxu0 0
      %591 = vmatprep.subr.bf16.mxu0 0
      %592 = vmatpush1.bf16.msra.mxu0 0
      %593 = vmatprep.subr.bf16.mxu0 0
      %594 = vmatpush1.bf16.msra.mxu0 0
      %595 = vmatprep.subr.bf16.mxu0 0
      %596 = vmatpush1.bf16.msra.mxu0 0
      %597 = vmatprep.mubr.bf16.mxu0 0
      %598 = vmatmul.mubr.bf16.gmra.mrb[0].mxu0 %v563
      %v599 = vpop.f32.mrb[0].mxu0
      %v600 = vadd.f32 0.0, %v599
      %v601 = vpop.f32.mrb[0].mxu0
      %v602 = vpop.f32.mrb[0].mxu0
      %v603 = vadd.f32 0.0, %v602
      %v604 = vpop.f32.mrb[0].mxu0
      %605 = vdwg.mxu0
      %v606 = vadd.f32 %v522, %v600
      %v607 = vadd.f32 %v523, %v603
      %v608 = vld [vmem:[%s5] sm:$0xf]
      %v609 = vld [vmem:[%s5 + $0x4] sm:$0xf]
      %v610 = vld [vmem:[%s5 + $0x8] sm:$0xf]
      %v611 = vld [vmem:[%s5 + $0xc] sm:$0xf]
      %v612 = vld [vmem:[%s5 + $0x10] sm:$0xf]
      %v613 = vld [vmem:[%s5 + $0x14] sm:$0xf]
      %v614 = vld [vmem:[%s5 + $0x18] sm:$0xf]
      %v615 = vld [vmem:[%s5 + $0x1c] sm:$0xf]
      %v618 = vunpack.c.l.b16 %v493
      %v619 = vunpack.c.l.b16 %v494
      %v620 = vpack.c.b16 %v619, %v618
      %v629 = vunpack.c.l.b16 %v608
      %v630 = vunpack.c.l.b16 %v609
      %v631 = vunpack.c.l.b16 %v610
      %v632 = vunpack.c.l.b16 %v611
      %v633 = vunpack.c.l.b16 %v612
      %v634 = vunpack.c.l.b16 %v613
      %v635 = vunpack.c.l.b16 %v614
      %v636 = vunpack.c.l.b16 %v615
      %v637 = vpack.c.b16 %v630, %v629
      %v638 = vpack.c.b16 %v632, %v631
      %v639 = vpack.c.b16 %v634, %v633
      %v640 = vpack.c.b16 %v636, %v635
      %v646 = vsel %vm561, %v620, 0
      %648 = vmatprep.subr.bf16.mxu0 0
      %649 = vmatpush1.bf16.msra.mxu0 %v637
      %650 = vmatprep.subr.bf16.mxu0 0
      %651 = vmatpush1.bf16.msra.mxu0 %v638
      %652 = vmatprep.subr.bf16.mxu0 0
      %653 = vmatpush1.bf16.msra.mxu0 %v639
      %654 = vmatprep.subr.bf16.mxu0 0
      %655 = vmatpush1.bf16.msra.mxu0 %v640
      %656 = vmatprep.subr.bf16.mxu0 0
      %657 = vmatpush1.bf16.msra.mxu0 0
      %658 = vmatprep.subr.bf16.mxu0 0
      %659 = vmatpush1.bf16.msra.mxu0 0
      %660 = vmatprep.subr.bf16.mxu0 0
      %661 = vmatpush1.bf16.msra.mxu0 0
      %662 = vmatprep.subr.bf16.mxu0 0
      %663 = vmatpush1.bf16.msra.mxu0 0
      %664 = vmatprep.subr.bf16.mxu0 0
      %665 = vmatpush1.bf16.msra.mxu0 0
      %666 = vmatprep.subr.bf16.mxu0 0
      %667 = vmatpush1.bf16.msra.mxu0 0
      %668 = vmatprep.subr.bf16.mxu0 0
      %669 = vmatpush1.bf16.msra.mxu0 0
      %670 = vmatprep.subr.bf16.mxu0 0
      %671 = vmatpush1.bf16.msra.mxu0 0
      %672 = vmatprep.subr.bf16.mxu0 0
      %673 = vmatpush1.bf16.msra.mxu0 0
      %674 = vmatprep.subr.bf16.mxu0 0
      %675 = vmatpush1.bf16.msra.mxu0 0
      %676 = vmatprep.subr.bf16.mxu0 0
      %677 = vmatpush1.bf16.msra.mxu0 0
      %678 = vmatprep.subr.bf16.mxu0 0
      %679 = vmatpush1.bf16.msra.mxu0 0
      %680 = vmatprep.mubr.bf16.mxu0 0
      %681 = vmatmul.mubr.bf16.gmra.mrb[0].mxu0 %v646
      %v682 = vpop.f32.mrb[0].mxu0
      %v683 = vadd.f32 0.0, %v682
      %v684 = vpop.f32.mrb[0].mxu0
      %v685 = vpop.f32.mrb[0].mxu0
      %v686 = vadd.f32 0.0, %v685
      %v687 = vpop.f32.mrb[0].mxu0
      %688 = vdwg.mxu0
      %v689 = vadd.f32 %v606, %v683
      %v690 = vadd.f32 %v607, %v686
      %vm691 = vcmp.gt.f32.partialorder %v689, 0.0
      %vm692 = vcmp.gt.f32.partialorder %v690, 0.0
      %v693 = vmul.f32 %v689, 0.2
      %v694 = vmul.f32 %v690, 0.2
      %v695 = vsel %vm691, %v689, %v693
      %v696 = vsel %vm692, %v690, %v694
      %v697 = vld [vmem:[%s8] sm:$0x1]
      %v698 = vpack.c.bf16 %v696, %v695
      %v699 = vld [vmem:[%s7] sm:$0xf]
      %v700 = vld [vmem:[%s7 + $0x4] sm:$0xf]
      %v701 = vld [vmem:[%s7 + $0x8] sm:$0xf]
      %v702 = vld [vmem:[%s7 + $0xc] sm:$0xf]
      %v703 = vld [vmem:[%s7 + $0x10] sm:$0xf]
      %v704 = vld [vmem:[%s7 + $0x14] sm:$0xf]
      %v705 = vld [vmem:[%s7 + $0x18] sm:$0xf]
      %v706 = vld [vmem:[%s7 + $0x1c] sm:$0xf]
      %v707 = vld [vmem:[%s7 + $0x20] sm:$0xf]
      %v708 = vld [vmem:[%s7 + $0x24] sm:$0xf]
      %v709 = vld [vmem:[%s7 + $0x28] sm:$0xf]
      %v710 = vld [vmem:[%s7 + $0x2c] sm:$0xf]
      %v711 = vld [vmem:[%s7 + $0x30] sm:$0xf]
      %v712 = vld [vmem:[%s7 + $0x34] sm:$0xf]
      %v713 = vld [vmem:[%s7 + $0x38] sm:$0xf]
      %v714 = vld [vmem:[%s7 + $0x3c] sm:$0xf]
      %v716 = vlaneseq
      %v717 = vshrl.u32 %v716, 7
      %v718 = vsub.s32 0, %v717
      %v719 = vrot.slane %v697, %v718
      %v737 = vunpack.c.l.b16 %v699
      %v738 = vunpack.c.l.b16 %v700
      %v739 = vunpack.c.l.b16 %v701
      %v740 = vunpack.c.l.b16 %v702
      %v741 = vunpack.c.l.b16 %v703
      %v742 = vunpack.c.l.b16 %v704
      %v743 = vunpack.c.l.b16 %v705
      %v744 = vunpack.c.l.b16 %v706
      %v745 = vunpack.c.l.b16 %v707
      %v746 = vunpack.c.l.b16 %v708
      %v747 = vunpack.c.l.b16 %v709
      %v748 = vunpack.c.l.b16 %v710
      %v749 = vunpack.c.l.b16 %v711
      %v750 = vunpack.c.l.b16 %v712
      %v751 = vunpack.c.l.b16 %v713
      %v752 = vunpack.c.l.b16 %v714
      %v753 = vpack.c.b16 %v738, %v737
      %v754 = vpack.c.b16 %v740, %v739
      %v755 = vpack.c.b16 %v742, %v741
      %v756 = vpack.c.b16 %v744, %v743
      %v757 = vpack.c.b16 %v746, %v745
      %v758 = vpack.c.b16 %v748, %v747
      %v759 = vpack.c.b16 %v750, %v749
      %v760 = vpack.c.b16 %v752, %v751
      %769 = vmatprep.subr.bf16.mxu0 0
      %770 = vmatpush1.bf16.msra.mxu0 %v753
      %771 = vmatprep.subr.bf16.mxu0 0
      %772 = vmatpush1.bf16.msra.mxu0 %v754
      %773 = vmatprep.subr.bf16.mxu0 0
      %774 = vmatpush1.bf16.msra.mxu0 %v755
      %775 = vmatprep.subr.bf16.mxu0 0
      %776 = vmatpush1.bf16.msra.mxu0 %v756
      %777 = vmatprep.subr.bf16.mxu0 0
      %778 = vmatpush1.bf16.msra.mxu0 %v757
      %779 = vmatprep.subr.bf16.mxu0 0
      %780 = vmatpush1.bf16.msra.mxu0 %v758
      %781 = vmatprep.subr.bf16.mxu0 0
      %782 = vmatpush1.bf16.msra.mxu0 %v759
      %783 = vmatprep.subr.bf16.mxu0 0
      %784 = vmatpush1.bf16.msra.mxu0 %v760
      %785 = vmatprep.subr.bf16.mxu0 0
      %786 = vmatpush1.bf16.msra.mxu0 0
      %787 = vmatprep.subr.bf16.mxu0 0
      %788 = vmatpush1.bf16.msra.mxu0 0
      %789 = vmatprep.subr.bf16.mxu0 0
      %790 = vmatpush1.bf16.msra.mxu0 0
      %791 = vmatprep.subr.bf16.mxu0 0
      %792 = vmatpush1.bf16.msra.mxu0 0
      %793 = vmatprep.subr.bf16.mxu0 0
      %794 = vmatpush1.bf16.msra.mxu0 0
      %795 = vmatprep.subr.bf16.mxu0 0
      %796 = vmatpush1.bf16.msra.mxu0 0
      %797 = vmatprep.subr.bf16.mxu0 0
      %798 = vmatpush1.bf16.msra.mxu0 0
      %799 = vmatprep.subr.bf16.mxu0 0
      %800 = vmatpush1.bf16.msra.mxu0 0
      %801 = vmatprep.mubr.bf16.mxu0 0
      %802 = vmatmul.mubr.bf16.gmra.mrb[0].mxu0 %v698
      %v803 = vpop.f32.mrb[0].mxu0
      %v804 = vadd.f32 %v719, %v803
      %v805 = vpop.f32.mrb[0].mxu0
      %v806 = vpop.f32.mrb[0].mxu0
      %v807 = vadd.f32 %v719, %v806
      %v808 = vpop.f32.mrb[0].mxu0
      %809 = vdwg.mxu0
      %vm810 = vcmp.gt.f32.partialorder %v804, 0.0
      %vm811 = vcmp.gt.f32.partialorder %v807, 0.0
      %v812 = vmul.f32 %v804, 0.2
      %v813 = vmul.f32 %v807, 0.2
      %v814 = vsel %vm810, %v804, %v812
      %v815 = vsel %vm811, %v807, %v813
      %v816 = vld [vmem:[%s10] sm:$0x1]
      %v817 = vpack.c.bf16 %v815, %v814
      %v818 = vld [vmem:[%s9] sm:$0xf]
      %v819 = vld [vmem:[%s9 + $0x4] sm:$0xf]
      %v820 = vld [vmem:[%s9 + $0x8] sm:$0xf]
      %v821 = vld [vmem:[%s9 + $0xc] sm:$0xf]
      %v822 = vld [vmem:[%s9 + $0x10] sm:$0xf]
      %v823 = vld [vmem:[%s9 + $0x14] sm:$0xf]
      %v824 = vld [vmem:[%s9 + $0x18] sm:$0xf]
      %v825 = vld [vmem:[%s9 + $0x1c] sm:$0xf]
      %v827 = vlaneseq
      %v828 = vshrl.u32 %v827, 7
      %v829 = vsub.s32 0, %v828
      %v830 = vrot.slane %v816, %v829
      %v840 = vunpack.c.l.b16 %v818
      %v841 = vunpack.c.l.b16 %v819
      %v842 = vunpack.c.l.b16 %v820
      %v843 = vunpack.c.l.b16 %v821
      %v844 = vunpack.c.l.b16 %v822
      %v845 = vunpack.c.l.b16 %v823
      %v846 = vunpack.c.l.b16 %v824
      %v847 = vunpack.c.l.b16 %v825
      %v848 = vpack.c.b16 %v841, %v840
      %v849 = vpack.c.b16 %v843, %v842
      %v850 = vpack.c.b16 %v845, %v844
      %v851 = vpack.c.b16 %v847, %v846
      %v857 = vsel %vm561, %v817, 0
      %859 = vmatprep.subr.bf16.mxu0 0
      %860 = vmatpush1.bf16.msra.mxu0 %v848
      %861 = vmatprep.subr.bf16.mxu0 0
      %862 = vmatpush1.bf16.msra.mxu0 %v849
      %863 = vmatprep.subr.bf16.mxu0 0
      %864 = vmatpush1.bf16.msra.mxu0 %v850
      %865 = vmatprep.subr.bf16.mxu0 0
      %866 = vmatpush1.bf16.msra.mxu0 %v851
      %867 = vmatprep.subr.bf16.mxu0 0
      %868 = vmatpush1.bf16.msra.mxu0 0
      %869 = vmatprep.subr.bf16.mxu0 0
      %870 = vmatpush1.bf16.msra.mxu0 0
      %871 = vmatprep.subr.bf16.mxu0 0
      %872 = vmatpush1.bf16.msra.mxu0 0
      %873 = vmatprep.subr.bf16.mxu0 0
      %874 = vmatpush1.bf16.msra.mxu0 0
      %875 = vmatprep.subr.bf16.mxu0 0
      %876 = vmatpush1.bf16.msra.mxu0 0
      %877 = vmatprep.subr.bf16.mxu0 0
      %878 = vmatpush1.bf16.msra.mxu0 0
      %879 = vmatprep.subr.bf16.mxu0 0
      %880 = vmatpush1.bf16.msra.mxu0 0
      %881 = vmatprep.subr.bf16.mxu0 0
      %882 = vmatpush1.bf16.msra.mxu0 0
      %883 = vmatprep.subr.bf16.mxu0 0
      %884 = vmatpush1.bf16.msra.mxu0 0
      %885 = vmatprep.subr.bf16.mxu0 0
      %886 = vmatpush1.bf16.msra.mxu0 0
      %887 = vmatprep.subr.bf16.mxu0 0
      %888 = vmatpush1.bf16.msra.mxu0 0
      %889 = vmatprep.subr.bf16.mxu0 0
      %890 = vmatpush1.bf16.msra.mxu0 0
      %891 = vmatprep.mubr.bf16.mxu0 0
      %892 = vmatmul.mubr.bf16.gmra.mrb[0].mxu0 %v857
      %v893 = vpop.f32.mrb[0].mxu0
      %v894 = vadd.f32 %v830, %v893
      %v895 = vpop.f32.mrb[0].mxu0
      %v896 = vpop.f32.mrb[0].mxu0
      %v897 = vadd.f32 %v830, %v896
      %v898 = vpop.f32.mrb[0].mxu0
      %899 = vdwg.mxu0
      %vm900 = vcmp.gt.f32.partialorder %v894, 0.0
      %vm901 = vcmp.gt.f32.partialorder %v897, 0.0
      %v902 = vmul.f32 %v894, 0.2
      %v903 = vmul.f32 %v897, 0.2
      %v904 = vsel %vm900, %v894, %v902
      %v905 = vsel %vm901, %v897, %v903
      %v906 = vld [vmem:[%s12] sm:$0x1]
      %v907 = vpack.c.bf16 %v905, %v904
      %v908 = vld [vmem:[%s11] sm:$0xf]
      %v909 = vld [vmem:[%s11 + $0x4] sm:$0xf]
      %v910 = vld [vmem:[%s11 + $0x8] sm:$0xf]
      %v911 = vld [vmem:[%s11 + $0xc] sm:$0xf]
      %v913 = vlaneseq
      %v914 = vshrl.u32 %v913, 7
      %v915 = vsub.s32 0, %v914
      %v916 = vrot.slane %v906, %v915
      %v922 = vunpack.c.l.b16 %v908
      %v923 = vunpack.c.l.b16 %v909
      %v924 = vunpack.c.l.b16 %v910
      %v925 = vunpack.c.l.b16 %v911
      %v926 = vpack.c.b16 %v923, %v922
      %v927 = vpack.c.b16 %v925, %v924
      %vm930 = vcmask 261120
      %v932 = vsel %vm930, %v907, 0
      %934 = vmatprep.subr.bf16.mxu0 0
      %935 = vmatpush1.bf16.msra.mxu0 %v926
      %936 = vmatprep.subr.bf16.mxu0 0
      %937 = vmatpush1.bf16.msra.mxu0 %v927
      %938 = vmatprep.subr.bf16.mxu0 0
      %939 = vmatpush1.bf16.msra.mxu0 0
      %940 = vmatprep.subr.bf16.mxu0 0
      %941 = vmatpush1.bf16.msra.mxu0 0
      %942 = vmatprep.subr.bf16.mxu0 0
      %943 = vmatpush1.bf16.msra.mxu0 0
      %944 = vmatprep.subr.bf16.mxu0 0
      %945 = vmatpush1.bf16.msra.mxu0 0
      %946 = vmatprep.subr.bf16.mxu0 0
      %947 = vmatpush1.bf16.msra.mxu0 0
      %948 = vmatprep.subr.bf16.mxu0 0
      %949 = vmatpush1.bf16.msra.mxu0 0
      %950 = vmatprep.subr.bf16.mxu0 0
      %951 = vmatpush1.bf16.msra.mxu0 0
      %952 = vmatprep.subr.bf16.mxu0 0
      %953 = vmatpush1.bf16.msra.mxu0 0
      %954 = vmatprep.subr.bf16.mxu0 0
      %955 = vmatpush1.bf16.msra.mxu0 0
      %956 = vmatprep.subr.bf16.mxu0 0
      %957 = vmatpush1.bf16.msra.mxu0 0
      %958 = vmatprep.subr.bf16.mxu0 0
      %959 = vmatpush1.bf16.msra.mxu0 0
      %960 = vmatprep.subr.bf16.mxu0 0
      %961 = vmatpush1.bf16.msra.mxu0 0
      %962 = vmatprep.subr.bf16.mxu0 0
      %963 = vmatpush1.bf16.msra.mxu0 0
      %964 = vmatprep.subr.bf16.mxu0 0
      %965 = vmatpush1.bf16.msra.mxu0 0
      %966 = vmatprep.mubr.bf16.mxu0 0
      %967 = vmatmul.mubr.bf16.gmra.mrb[0].mxu0 %v932
      %v968 = vpop.f32.mrb[0].mxu0
      %v969 = vadd.f32 %v916, %v968
      %v970 = vpop.f32.mrb[0].mxu0
      %v971 = vpop.f32.mrb[0].mxu0
      %v972 = vadd.f32 %v916, %v971
      %v973 = vpop.f32.mrb[0].mxu0
      %974 = vdwg.mxu0
      %975 = vst.msk [vmem:[%s486] sm:$0xff] %vm561, %v969
      %976 = vst.msk [vmem:[%s486 + $0x8] sm:$0xff] %vm561, %v972
      %s977 = smul.u32 2, %s24
      %p978 = scmp.lt.s32.totalorder %s977, 3
      %s979 = scalar_select %p978, %s977, 3
      %s980 = smul.addr %s979, 8
      %s981 = scalar_lea.vmem %s13, %s980
      // Predicated region
      $region73: #{trajsnet_forward.21} parent=71 // pred_check
        %p982 = pneg %p330
      $region74: #{trajsnet_forward.21} parent=71 // pred_check_branch
        %984 = sbr.rel (%p982) target = $region76
      $region75: #{trajsnet_forward.21} parent=71 // pred_region
        %s985 = smul.u32 2, %s24
      $region76: #{trajsnet_forward.21} parent=71 // pred_fallthru
        _
    $region72: #{trajsnet_forward.21} parent=5 // pred_fallthru
      _
    %p986 = scmp.le.s32.totalorder 2, %s19
    // Predicated region
    $region77: #{trajsnet_forward.21} parent=5 // pred_check
      %p987 = pneg %p986
    $region78: #{trajsnet_forward.21} parent=5 // pred_check_branch
      %989 = sbr.rel (%p987) target = $region80
    $region79: #{trajsnet_forward.21} parent=5 // pred_region
      %s990 = ssub.s32 %s19, 2
      // Predicated region
      $region81: #{trajsnet_forward.21} parent=79 // pred_check
        %p991 = pneg %p336
      $region82: #{trajsnet_forward.21} parent=79 // pred_check_branch
        %993 = sbr.rel (%p991) target = $region84
      $region83: #{trajsnet_forward.21} parent=79 // pred_region
        %s994 = smul.u32 2, %s25
        %p995 = scmp.lt.s32.totalorder %s994, 3
        %s996 = scalar_select %p995, %s994, 3
        %s997 = smul.addr %s996, 8
        %s998 = scalar_lea.vmem %s13, %s997
      $region84: #{trajsnet_forward.21} parent=79 // pred_fallthru
        _
    $region80: #{trajsnet_forward.21} parent=5 // pred_fallthru
      _
  $region6: #{trajsnet_forward.21} parent=0 // loop_footer
    %s23 = sadd.s32 1, %s19
  $region7: #{trajsnet_forward.21} parent=0 // loop_footer_branch
    %18 = sbr.rel target = $region3
  $region8: #{trajsnet_forward.21} parent=0 // loop_exit
    _

// kernel: trajsnet_forward.22
$region0: #{trajsnet_forward.22}
  #allocation0 [shape = 'u32[]', space=smem, size = 0x4, offset = 0x4, fixed_abs, tag = 'smem constant byte address 0x4 - core index']
  #allocation1 [shape = 'u32[144,128]{1,0:T(1,128)}', space=vmem, size = 0x12000, scoped, tag = 'internal scratch']
  %s0 = inlined_call_operand.vmem [shape: bf16[16,64], index: 0, kind: input, shape index: {}]
  %s1 = inlined_call_operand.vmem [shape: bf16[64,128], index: 1, kind: input, shape index: {}]
  %s2 = inlined_call_operand.vmem [shape: f32[1,128], index: 2, kind: input, shape index: {}]
  %s3 = inlined_call_operand.vmem [shape: bf16[128,64], index: 3, kind: input, shape index: {}]
  %s4 = inlined_call_operand.vmem [shape: f32[1,64], index: 4, kind: input, shape index: {}]
  %s5 = inlined_call_operand.vmem [shape: bf16[64,64], index: 5, kind: input, shape index: {}]
  %s6 = inlined_call_operand.vmem [shape: f32[1,64], index: 6, kind: input, shape index: {}]
  %s7 = inlined_call_operand.vmem [shape: f32[16,64], index: 7, kind: output, shape index: {}]
  %s8 = sld [smem:[#allocation0]]
  $region61: #{trajsnet_forward.22} parent=0
    _
  %s10 = ssub.s32 1, %s8
  %s11 = scalar_select 0, %s10, %s8
  loop: start=0, step=1, limit=4
  $region2: #{trajsnet_forward.22} parent=0 // loop_pre_header
    _
  $region3: #{trajsnet_forward.22} parent=0 // loop_header
    %s13 = sphi 0, %s17
    %p14 = scmp.ge.s32.totalorder %s13, 4
    %s23 = sphi 0, %s25
    %s26 = sphi 0, %s23
    %s27 = sphi 0, %s26
    %s43 = sphi 0, %s27
    %s47 = sphi 0, %s47
    %s49 = sphi 0, %s47
    %s50 = sphi 0, %s49
    %s64 = sphi 0, %s50
    %s68 = sphi 0, %s68
    %s70 = sphi 0, %s68
    %s71 = sphi 0, %s70
    %s85 = sphi 0, %s71
    %s89 = sphi 0, %s89
    %s91 = sphi 0, %s89
    %s92 = sphi 0, %s91
    %s106 = sphi 0, %s92
    %s110 = sphi 0, %s110
    %s112 = sphi 0, %s110
    %s113 = sphi 0, %s112
    %s127 = sphi 0, %s113
    %s131 = sphi 0, %s131
    %s133 = sphi 0, %s131
    %s134 = sphi 0, %s133
    %s148 = sphi 0, %s134
    %s152 = sphi 0, %s152
    %s154 = sphi 0, %s152
    %s155 = sphi 0, %s154
    %s169 = sphi 0, %s155
    %s175 = sphi 0, %s177
    %s178 = sphi 0, %s175
    %s179 = sphi 0, %s178
    %s195 = sphi 0, %s179
  $region4: #{trajsnet_forward.22} parent=0 // loop_header_branch
    %16 = sbr.rel (%p14) target = $region8
  $region5: #{trajsnet_forward.22} parent=0 // loop_body
    %s18 = ssub.s32 %s13, 1
    %s19 = ssub.s32 %s13, 2
    %s20 = sadd.s32 %s13, 1
    %s21 = ssub.s32 %s13, %s20
    %p22 = scmp.eq.s32.totalorder %s21, 0
    %s24 = sadd.s32 %s23, 1
    %s25 = scalar_select %p22, %s23, %s24
    %p28 = pneg %p22
    %p29 = scmp.eq.s32.totalorder %s13, 1
    %p30 = por %p28, %p29
    %p31 = scmp.ne.s32.totalorder %s23, %s26
    %p32 = scmp.eq.s32.totalorder %s13, 0
    %p33 = por %p31, %p32
    %p34 = scmp.ne.s32.totalorder %s23, %s26
    %p35 = scmp.eq.s32.totalorder %s18, 1
    %p36 = por %p34, %p35
    %p37 = scmp.ne.s32.totalorder %s26, %s27
    %p38 = scmp.eq.s32.totalorder %s18, 0
    %p39 = por %p37, %p38
    %p40 = scmp.ne.s32.totalorder %s26, %s27
    %p41 = scmp.eq.s32.totalorder %s19, 1
    %p42 = por %p40, %p41
    %p44 = scmp.ne.s32.totalorder %s27, %s43
    %p45 = scmp.eq.s32.totalorder %s19, 0
    %p46 = por %p44, %p45
    %s48 = sadd.s32 %s47, 1
    %p51 = scmp.eq.s32.totalorder %s13, 1
    %p52 = scmp.ne.s32.totalorder %s47, %s49
    %p53 = scmp.eq.s32.totalorder %s13, 0
    %p54 = por %p52, %p53
    %p55 = scmp.ne.s32.totalorder %s47, %s49
    %p56 = scmp.eq.s32.totalorder %s18, 1
    %p57 = por %p55, %p56
    %p58 = scmp.ne.s32.totalorder %s49, %s50
    %p59 = scmp.eq.s32.totalorder %s18, 0
    %p60 = por %p58, %p59
    %p61 = scmp.ne.s32.totalorder %s49, %s50
    %p62 = scmp.eq.s32.totalorder %s19, 1
    %p63 = por %p61, %p62
    %p65 = scmp.ne.s32.totalorder %s50, %s64
    %p66 = scmp.eq.s32.totalorder %s19, 0
    %p67 = por %p65, %p66
    %s69 = sadd.s32 %s68, 1
    %p72 = scmp.eq.s32.totalorder %s13, 1
    %p73 = scmp.ne.s32.totalorder %s68, %s70
    %p74 = scmp.eq.s32.totalorder %s13, 0
    %p75 = por %p73, %p74
    %p76 = scmp.ne.s32.totalorder %s68, %s70
    %p77 = scmp.eq.s32.totalorder %s18, 1
    %p78 = por %p76, %p77
    %p79 = scmp.ne.s32.totalorder %s70, %s71
    %p80 = scmp.eq.s32.totalorder %s18, 0
    %p81 = por %p79, %p80
    %p82 = scmp.ne.s32.totalorder %s70, %s71
    %p83 = scmp.eq.s32.totalorder %s19, 1
    %p84 = por %p82, %p83
    %p86 = scmp.ne.s32.totalorder %s71, %s85
    %p87 = scmp.eq.s32.totalorder %s19, 0
    %p88 = por %p86, %p87
    %s90 = sadd.s32 %s89, 1
    %p93 = scmp.eq.s32.totalorder %s13, 1
    %p94 = scmp.ne.s32.totalorder %s89, %s91
    %p95 = scmp.eq.s32.totalorder %s13, 0
    %p96 = por %p94, %p95
    %p97 = scmp.ne.s32.totalorder %s89, %s91
    %p98 = scmp.eq.s32.totalorder %s18, 1
    %p99 = por %p97, %p98
    %p100 = scmp.ne.s32.totalorder %s91, %s92
    %p101 = scmp.eq.s32.totalorder %s18, 0
    %p102 = por %p100, %p101
    %p103 = scmp.ne.s32.totalorder %s91, %s92
    %p104 = scmp.eq.s32.totalorder %s19, 1
    %p105 = por %p103, %p104
    %p107 = scmp.ne.s32.totalorder %s92, %s106
    %p108 = scmp.eq.s32.totalorder %s19, 0
    %p109 = por %p107, %p108
    %s111 = sadd.s32 %s110, 1
    %p114 = scmp.eq.s32.totalorder %s13, 1
    %p115 = scmp.ne.s32.totalorder %s110, %s112
    %p116 = scmp.eq.s32.totalorder %s13, 0
    %p117 = por %p115, %p116
    %p118 = scmp.ne.s32.totalorder %s110, %s112
    %p119 = scmp.eq.s32.totalorder %s18, 1
    %p120 = por %p118, %p119
    %p121 = scmp.ne.s32.totalorder %s112, %s113
    %p122 = scmp.eq.s32.totalorder %s18, 0
    %p123 = por %p121, %p122
    %p124 = scmp.ne.s32.totalorder %s112, %s113
    %p125 = scmp.eq.s32.totalorder %s19, 1
    %p126 = por %p124, %p125
    %p128 = scmp.ne.s32.totalorder %s113, %s127
    %p129 = scmp.eq.s32.totalorder %s19, 0
    %p130 = por %p128, %p129
    %s132 = sadd.s32 %s131, 1
    %p135 = scmp.eq.s32.totalorder %s13, 1
    %p136 = scmp.ne.s32.totalorder %s131, %s133
    %p137 = scmp.eq.s32.totalorder %s13, 0
    %p138 = por %p136, %p137
    %p139 = scmp.ne.s32.totalorder %s131, %s133
    %p140 = scmp.eq.s32.totalorder %s18, 1
    %p141 = por %p139, %p140
    %p142 = scmp.ne.s32.totalorder %s133, %s134
    %p143 = scmp.eq.s32.totalorder %s18, 0
    %p144 = por %p142, %p143
    %p145 = scmp.ne.s32.totalorder %s133, %s134
    %p146 = scmp.eq.s32.totalorder %s19, 1
    %p147 = por %p145, %p146
    %p149 = scmp.ne.s32.totalorder %s134, %s148
    %p150 = scmp.eq.s32.totalorder %s19, 0
    %p151 = por %p149, %p150
    %s153 = sadd.s32 %s152, 1
    %p156 = scmp.eq.s32.totalorder %s13, 1
    %p157 = scmp.ne.s32.totalorder %s152, %s154
    %p158 = scmp.eq.s32.totalorder %s13, 0
    %p159 = por %p157, %p158
    %p160 = scmp.ne.s32.totalorder %s152, %s154
    %p161 = scmp.eq.s32.totalorder %s18, 1
    %p162 = por %p160, %p161
    %p163 = scmp.ne.s32.totalorder %s154, %s155
    %p164 = scmp.eq.s32.totalorder %s18, 0
    %p165 = por %p163, %p164
    %p166 = scmp.ne.s32.totalorder %s154, %s155
    %p167 = scmp.eq.s32.totalorder %s19, 1
    %p168 = por %p166, %p167
    %p170 = scmp.ne.s32.totalorder %s155, %s169
    %p171 = scmp.eq.s32.totalorder %s19, 0
    %p172 = por %p170, %p171
    %s173 = ssub.s32 %s13, %s20
    %p174 = scmp.eq.s32.totalorder %s173, 0
    %s176 = sadd.s32 %s175, 1
    %s177 = scalar_select %p174, %s175, %s176
    %p180 = pneg %p174
    %p181 = scmp.eq.s32.totalorder %s13, 1
    %p182 = por %p180, %p181
    %p183 = scmp.ne.s32.totalorder %s175, %s178
    %p184 = scmp.eq.s32.totalorder %s13, 0
    %p185 = por %p183, %p184
    %p186 = scmp.ne.s32.totalorder %s175, %s178
    %p187 = scmp.eq.s32.totalorder %s18, 1
    %p188 = por %p186, %p187
    %p189 = scmp.ne.s32.totalorder %s178, %s179
    %p190 = scmp.eq.s32.totalorder %s18, 0
    %p191 = por %p189, %p190
    %p192 = scmp.ne.s32.totalorder %s178, %s179
    %p193 = scmp.eq.s32.totalorder %s19, 1
    %p194 = por %p192, %p193
    %p196 = scmp.ne.s32.totalorder %s179, %s195
    %p197 = scmp.eq.s32.totalorder %s19, 0
    %p198 = por %p196, %p197
    %p199 = scmp.le.s32.totalorder 1, %s13
    %p200 = scmp.lt.s32.totalorder %s13, 3
    %p201 = pnand %p199, %p200
    %p202 = pneg %p201
    // Predicated region
    $region9: #{trajsnet_forward.22} parent=5 // pred_check
      _
    $region10: #{trajsnet_forward.22} parent=5 // pred_check_branch
      %204 = sbr.rel (%p201) target = $region12
    $region11: #{trajsnet_forward.22} parent=5 // pred_region
      %s205 = ssub.s32 %s13, 1
      // Predicated region
      $region13: #{trajsnet_forward.22} parent=11 // pred_check
        %p206 = pneg %p60
      $region14: #{trajsnet_forward.22} parent=11 // pred_check_branch
        %208 = sbr.rel (%p206) target = $region16
      $region15: #{trajsnet_forward.22} parent=11 // pred_region
        _
      $region16: #{trajsnet_forward.22} parent=11 // pred_fallthru
        _
      // Predicated region
      $region17: #{trajsnet_forward.22} parent=11 // pred_check
        %p209 = pneg %p81
      $region18: #{trajsnet_forward.22} parent=11 // pred_check_branch
        %211 = sbr.rel (%p209) target = $region20
      $region19: #{trajsnet_forward.22} parent=11 // pred_region
        _
      $region20: #{trajsnet_forward.22} parent=11 // pred_fallthru
        _
      // Predicated region
      $region21: #{trajsnet_forward.22} parent=11 // pred_check
        %p212 = pneg %p102
      $region22: #{trajsnet_forward.22} parent=11 // pred_check_branch
        %214 = sbr.rel (%p212) target = $region24
      $region23: #{trajsnet_forward.22} parent=11 // pred_region
        _
      $region24: #{trajsnet_forward.22} parent=11 // pred_fallthru
        _
      // Predicated region
      $region25: #{trajsnet_forward.22} parent=11 // pred_check
        %p215 = pneg %p123
      $region26: #{trajsnet_forward.22} parent=11 // pred_check_branch
        %217 = sbr.rel (%p215) target = $region28
      $region27: #{trajsnet_forward.22} parent=11 // pred_region
        _
      $region28: #{trajsnet_forward.22} parent=11 // pred_fallthru
        _
      // Predicated region
      $region29: #{trajsnet_forward.22} parent=11 // pred_check
        %p218 = pneg %p144
      $region30: #{trajsnet_forward.22} parent=11 // pred_check_branch
        %220 = sbr.rel (%p218) target = $region32
      $region31: #{trajsnet_forward.22} parent=11 // pred_region
        _
      $region32: #{trajsnet_forward.22} parent=11 // pred_fallthru
        _
      // Predicated region
      $region33: #{trajsnet_forward.22} parent=11 // pred_check
        %p221 = pneg %p165
      $region34: #{trajsnet_forward.22} parent=11 // pred_check_branch
        %223 = sbr.rel (%p221) target = $region36
      $region35: #{trajsnet_forward.22} parent=11 // pred_region
        _
      $region36: #{trajsnet_forward.22} parent=11 // pred_fallthru
        _
    $region12: #{trajsnet_forward.22} parent=5 // pred_fallthru
      _
    %p224 = scmp.lt.s32.totalorder %s13, 2
    // Predicated region
    $region37: #{trajsnet_forward.22} parent=5 // pred_check
      %p225 = pneg %p224
    $region38: #{trajsnet_forward.22} parent=5 // pred_check_branch
      %227 = sbr.rel (%p225) target = $region40
    $region39: #{trajsnet_forward.22} parent=5 // pred_region
      // Predicated region
      $region41: #{trajsnet_forward.22} parent=39 // pred_check
        %p228 = pneg %p33
      $region42: #{trajsnet_forward.22} parent=39 // pred_check_branch
        %230 = sbr.rel (%p228) target = $region44
      $region43: #{trajsnet_forward.22} parent=39 // pred_region
        %p231 = scmp.lt.s32.totalorder %s13, 1
        %s232 = scalar_select %p231, %s13, 1
        %s233 = smul.addr %s232, 4
        %s234 = scalar_lea.vmem %s0, %s233
      $region44: #{trajsnet_forward.22} parent=39 // pred_fallthru
        _
    $region40: #{trajsnet_forward.22} parent=5 // pred_fallthru
      _
    %p235 = scmp.le.s32.totalorder 1, %s13
    %p236 = scmp.lt.s32.totalorder %s13, 3
    %p237 = pnand %p235, %p236
    %p238 = pneg %p237
    // Predicated region
    $region45: #{trajsnet_forward.22} parent=5 // pred_check
      _
    $region46: #{trajsnet_forward.22} parent=5 // pred_check_branch
      %240 = sbr.rel (%p237) target = $region48
    $region47: #{trajsnet_forward.22} parent=5 // pred_region
      %s241 = ssub.s32 %s13, 1
      %p242 = scmp.lt.s32.totalorder %s18, 1
      %s243 = scalar_select %p242, %s18, 1
      %s244 = smul.addr %s243, 4
      %s245 = scalar_lea.vmem %s0, %s244
      %p246 = pneg %p39
      %p247 = pneg %p36
      %p248 = pneg %p60
      %p249 = pneg %p57
      %p250 = pneg %p81
      %p251 = pneg %p78
      %p252 = pneg %p102
      %p253 = pneg %p99
      %p254 = pneg %p123
      %p255 = pneg %p120
      %p256 = pneg %p144
      %p257 = pneg %p141
      %p258 = pneg %p165
      %p259 = pneg %p162
      %p260 = pneg %p191
      %p261 = pneg %p188
      %p262 = scmp.lt.s32.totalorder %s18, 1
      %s263 = scalar_select %p262, %s18, 1
      %s264 = smul.addr %s263, 8
      %s265 = scalar_lea.vmem %s7, %s264
      %p266 = scmp.lt.s32.totalorder %s18, 1
      %s267 = scalar_select %p266, %s18, 1
      %s268 = smul.addr %s267, 4
      %s269 = scalar_lea.vmem %s0, %s268
      %p270 = scmp.lt.s32.totalorder %s18, 1
      %s271 = scalar_select %p270, %s18, 1
      %s272 = smul.addr %s271, 8
      %s273 = scalar_lea.vmem %s7, %s272
      %v275 = vld [vmem:[%s269] sm:$0xf]
      %v276 = vld [vmem:[%s2] sm:$0x1]
      %v277 = vld [vmem:[%s1] sm:$0xf]
      %v278 = vld [vmem:[%s1 + $0x4] sm:$0xf]
      %v279 = vld [vmem:[%s1 + $0x8] sm:$0xf]
      %v280 = vld [vmem:[%s1 + $0xc] sm:$0xf]
      %v281 = vld [vmem:[%s1 + $0x10] sm:$0xf]
      %v282 = vld [vmem:[%s1 + $0x14] sm:$0xf]
      %v283 = vld [vmem:[%s1 + $0x18] sm:$0xf]
      %v284 = vld [vmem:[%s1 + $0x1c] sm:$0xf]
      %v293 = vunpack.c.l.b16 %v277
      %v294 = vunpack.c.l.b16 %v278
      %v295 = vunpack.c.l.b16 %v279
      %v296 = vunpack.c.l.b16 %v280
      %v297 = vunpack.c.l.b16 %v281
      %v298 = vunpack.c.l.b16 %v282
      %v299 = vunpack.c.l.b16 %v283
      %v300 = vunpack.c.l.b16 %v284
      %v301 = vpack.c.b16 %v294, %v293
      %v302 = vpack.c.b16 %v296, %v295
      %v303 = vpack.c.b16 %v298, %v297
      %v304 = vpack.c.b16 %v300, %v299
      %vm309 = vcmask 523264
      %v311 = vsel %vm309, %v275, 0
      %313 = vmatprep.subr.bf16.mxu0 0
      %314 = vmatpush1.bf16.msra.mxu0 %v301
      %315 = vmatprep.subr.bf16.mxu0 0
      %316 = vmatpush1.bf16.msra.mxu0 %v302
      %317 = vmatprep.subr.bf16.mxu0 0
      %318 = vmatpush1.bf16.msra.mxu0 %v303
      %319 = vmatprep.subr.bf16.mxu0 0
      %320 = vmatpush1.bf16.msra.mxu0 %v304
      %321 = vmatprep.subr.bf16.mxu0 0
      %322 = vmatpush1.bf16.msra.mxu0 0
      %323 = vmatprep.subr.bf16.mxu0 0
      %324 = vmatpush1.bf16.msra.mxu0 0
      %325 = vmatprep.subr.bf16.mxu0 0
      %326 = vmatpush1.bf16.msra.mxu0 0
      %327 = vmatprep.subr.bf16.mxu0 0
      %328 = vmatpush1.bf16.msra.mxu0 0
      %329 = vmatprep.subr.bf16.mxu0 0
      %330 = vmatpush1.bf16.msra.mxu0 0
      %331 = vmatprep.subr.bf16.mxu0 0
      %332 = vmatpush1.bf16.msra.mxu0 0
      %333 = vmatprep.subr.bf16.mxu0 0
      %334 = vmatpush1.bf16.msra.mxu0 0
      %335 = vmatprep.subr.bf16.mxu0 0
      %336 = vmatpush1.bf16.msra.mxu0 0
      %337 = vmatprep.subr.bf16.mxu0 0
      %338 = vmatpush1.bf16.msra.mxu0 0
      %339 = vmatprep.subr.bf16.mxu0 0
      %340 = vmatpush1.bf16.msra.mxu0 0
      %341 = vmatprep.subr.bf16.mxu0 0
      %342 = vmatpush1.bf16.msra.mxu0 0
      %343 = vmatprep.subr.bf16.mxu0 0
      %344 = vmatpush1.bf16.msra.mxu0 0
      %345 = vmatprep.mubr.bf16.mxu0 0
      %346 = vmatmul.mubr.bf16.gmra.mrb[0].mxu0 %v311
      %v347 = vpop.f32.mrb[0].mxu0
      %v348 = vadd.f32 0.0, %v347
      %v349 = vpop.f32.mrb[0].mxu0
      %v350 = vpop.f32.mrb[0].mxu0
      %v351 = vpop.f32.mrb[0].mxu0
      %352 = vdwg.mxu0
      %v354 = vlaneseq
      %v355 = vshrl.u32 %v354, 7
      %v356 = vsub.s32 0, %v355
      %v357 = vrot.slane %v276, %v356
      %v359 = vadd.f32 %v357, %v348
      %vm360 = vcmp.gt.f32.partialorder %v359, 0.0
      %v361 = vmul.f32 %v359, 0.2
      %v362 = vsel %vm360, %v359, %v361
      %v363 = vld [vmem:[%s4] sm:$0x1]
      %v364 = vpack.c.bf16 %v362, %v362
      %v365 = vld [vmem:[%s3] sm:$0xf]
      %v366 = vld [vmem:[%s3 + $0x4] sm:$0xf]
      %v367 = vld [vmem:[%s3 + $0x8] sm:$0xf]
      %v368 = vld [vmem:[%s3 + $0xc] sm:$0xf]
      %v369 = vld [vmem:[%s3 + $0x10] sm:$0xf]
      %v370 = vld [vmem:[%s3 + $0x14] sm:$0xf]
      %v371 = vld [vmem:[%s3 + $0x18] sm:$0xf]
      %v372 = vld [vmem:[%s3 + $0x1c] sm:$0xf]
      %v373 = vld [vmem:[%s3 + $0x20] sm:$0xf]
      %v374 = vld [vmem:[%s3 + $0x24] sm:$0xf]
      %v375 = vld [vmem:[%s3 + $0x28] sm:$0xf]
      %v376 = vld [vmem:[%s3 + $0x2c] sm:$0xf]
      %v377 = vld [vmem:[%s3 + $0x30] sm:$0xf]
      %v378 = vld [vmem:[%s3 + $0x34] sm:$0xf]
      %v379 = vld [vmem:[%s3 + $0x38] sm:$0xf]
      %v380 = vld [vmem:[%s3 + $0x3c] sm:$0xf]
      %v382 = vlaneseq
      %v383 = vshrl.u32 %v382, 7
      %v384 = vsub.s32 0, %v383
      %v385 = vrot.slane %v363, %v384
      %v403 = vunpack.c.l.b16 %v365
      %v404 = vunpack.c.l.b16 %v366
      %v405 = vunpack.c.l.b16 %v367
      %v406 = vunpack.c.l.b16 %v368
      %v407 = vunpack.c.l.b16 %v369
      %v408 = vunpack.c.l.b16 %v370
      %v409 = vunpack.c.l.b16 %v371
      %v410 = vunpack.c.l.b16 %v372
      %v411 = vunpack.c.l.b16 %v373
      %v412 = vunpack.c.l.b16 %v374
      %v413 = vunpack.c.l.b16 %v375
      %v414 = vunpack.c.l.b16 %v376
      %v415 = vunpack.c.l.b16 %v377
      %v416 = vunpack.c.l.b16 %v378
      %v417 = vunpack.c.l.b16 %v379
      %v418 = vunpack.c.l.b16 %v380
      %v419 = vpack.c.b16 %v404, %v403
      %v420 = vpack.c.b16 %v406, %v405
      %v421 = vpack.c.b16 %v408, %v407
      %v422 = vpack.c.b16 %v410, %v409
      %v423 = vpack.c.b16 %v412, %v411
      %v424 = vpack.c.b16 %v414, %v413
      %v425 = vpack.c.b16 %v416, %v415
      %v426 = vpack.c.b16 %v418, %v417
      %435 = vmatprep.subr.bf16.mxu0 0
      %436 = vmatpush1.bf16.msra.mxu0 %v419
      %437 = vmatprep.subr.bf16.mxu0 0
      %438 = vmatpush1.bf16.msra.mxu0 %v420
      %439 = vmatprep.subr.bf16.mxu0 0
      %440 = vmatpush1.bf16.msra.mxu0 %v421
      %441 = vmatprep.subr.bf16.mxu0 0
      %442 = vmatpush1.bf16.msra.mxu0 %v422
      %443 = vmatprep.subr.bf16.mxu0 0
      %444 = vmatpush1.bf16.msra.mxu0 %v423
      %445 = vmatprep.subr.bf16.mxu0 0
      %446 = vmatpush1.bf16.msra.mxu0 %v424
      %447 = vmatprep.subr.bf16.mxu0 0
      %448 = vmatpush1.bf16.msra.mxu0 %v425
      %449 = vmatprep.subr.bf16.mxu0 0
      %450 = vmatpush1.bf16.msra.mxu0 %v426
      %451 = vmatprep.subr.bf16.mxu0 0
      %452 = vmatpush1.bf16.msra.mxu0 0
      %453 = vmatprep.subr.bf16.mxu0 0
      %454 = vmatpush1.bf16.msra.mxu0 0
      %455 = vmatprep.subr.bf16.mxu0 0
      %456 = vmatpush1.bf16.msra.mxu0 0
      %457 = vmatprep.subr.bf16.mxu0 0
      %458 = vmatpush1.bf16.msra.mxu0 0
      %459 = vmatprep.subr.bf16.mxu0 0
      %460 = vmatpush1.bf16.msra.mxu0 0
      %461 = vmatprep.subr.bf16.mxu0 0
      %462 = vmatpush1.bf16.msra.mxu0 0
      %463 = vmatprep.subr.bf16.mxu0 0
      %464 = vmatpush1.bf16.msra.mxu0 0
      %465 = vmatprep.subr.bf16.mxu0 0
      %466 = vmatpush1.bf16.msra.mxu0 0
      %467 = vmatprep.mubr.bf16.mxu0 0
      %468 = vmatmul.mubr.bf16.gmra.mrb[0].mxu0 %v364
      %v469 = vpop.f32.mrb[0].mxu0
      %v470 = vadd.f32 %v385, %v469
      %v471 = vpop.f32.mrb[0].mxu0
      %v472 = vpop.f32.mrb[0].mxu0
      %v473 = vpop.f32.mrb[0].mxu0
      %474 = vdwg.mxu0
      %vm475 = vcmp.gt.f32.partialorder %v470, 0.0
      %v476 = vmul.f32 %v470, 0.2
      %v477 = vsel %vm475, %v470, %v476
      %v478 = vld [vmem:[%s6] sm:$0x1]
      %v479 = vpack.c.bf16 %v477, %v477
      %v480 = vld [vmem:[%s5] sm:$0xf]
      %v481 = vld [vmem:[%s5 + $0x4] sm:$0xf]
      %v482 = vld [vmem:[%s5 + $0x8] sm:$0xf]
      %v483 = vld [vmem:[%s5 + $0xc] sm:$0xf]
      %v484 = vld [vmem:[%s5 + $0x10] sm:$0xf]
      %v485 = vld [vmem:[%s5 + $0x14] sm:$0xf]
      %v486 = vld [vmem:[%s5 + $0x18] sm:$0xf]
      %v487 = vld [vmem:[%s5 + $0x1c] sm:$0xf]
      %v489 = vlaneseq
      %v490 = vshrl.u32 %v489, 7
      %v491 = vsub.s32 0, %v490
      %v492 = vrot.slane %v478, %v491
      %v502 = vunpack.c.l.b16 %v480
      %v503 = vunpack.c.l.b16 %v481
      %v504 = vunpack.c.l.b16 %v482
      %v505 = vunpack.c.l.b16 %v483
      %v506 = vunpack.c.l.b16 %v484
      %v507 = vunpack.c.l.b16 %v485
      %v508 = vunpack.c.l.b16 %v486
      %v509 = vunpack.c.l.b16 %v487
      %v510 = vpack.c.b16 %v503, %v502
      %v511 = vpack.c.b16 %v505, %v504
      %v512 = vpack.c.b16 %v507, %v506
      %v513 = vpack.c.b16 %v509, %v508
      %v519 = vsel %vm309, %v479, 0
      %521 = vmatprep.subr.bf16.mxu0 0
      %522 = vmatpush1.bf16.msra.mxu0 %v510
      %523 = vmatprep.subr.bf16.mxu0 0
      %524 = vmatpush1.bf16.msra.mxu0 %v511
      %525 = vmatprep.subr.bf16.mxu0 0
      %526 = vmatpush1.bf16.msra.mxu0 %v512
      %527 = vmatprep.subr.bf16.mxu0 0
      %528 = vmatpush1.bf16.msra.mxu0 %v513
      %529 = vmatprep.subr.bf16.mxu0 0
      %530 = vmatpush1.bf16.msra.mxu0 0
      %531 = vmatprep.subr.bf16.mxu0 0
      %532 = vmatpush1.bf16.msra.mxu0 0
      %533 = vmatprep.subr.bf16.mxu0 0
      %534 = vmatpush1.bf16.msra.mxu0 0
      %535 = vmatprep.subr.bf16.mxu0 0
      %536 = vmatpush1.bf16.msra.mxu0 0
      %537 = vmatprep.subr.bf16.mxu0 0
      %538 = vmatpush1.bf16.msra.mxu0 0
      %539 = vmatprep.subr.bf16.mxu0 0
      %540 = vmatpush1.bf16.msra.mxu0 0
      %541 = vmatprep.subr.bf16.mxu0 0
      %542 = vmatpush1.bf16.msra.mxu0 0
      %543 = vmatprep.subr.bf16.mxu0 0
      %544 = vmatpush1.bf16.msra.mxu0 0
      %545 = vmatprep.subr.bf16.mxu0 0
      %546 = vmatpush1.bf16.msra.mxu0 0
      %547 = vmatprep.subr.bf16.mxu0 0
      %548 = vmatpush1.bf16.msra.mxu0 0
      %549 = vmatprep.subr.bf16.mxu0 0
      %550 = vmatpush1.bf16.msra.mxu0 0
      %551 = vmatprep.subr.bf16.mxu0 0
      %552 = vmatpush1.bf16.msra.mxu0 0
      %553 = vmatprep.mubr.bf16.mxu0 0
      %554 = vmatmul.mubr.bf16.gmra.mrb[0].mxu0 %v519
      %v555 = vpop.f32.mrb[0].mxu0
      %v556 = vadd.f32 %v492, %v555
      %v557 = vpop.f32.mrb[0].mxu0
      %v558 = vpop.f32.mrb[0].mxu0
      %v559 = vpop.f32.mrb[0].mxu0
      %560 = vdwg.mxu0
      %561 = vst.msk [vmem:[%s273] sm:$0xff] %vm309, %v556
      %p562 = scmp.lt.s32.totalorder %s18, 1
      %s563 = scalar_select %p562, %s18, 1
      %s564 = smul.addr %s563, 8
      %s565 = scalar_lea.vmem %s7, %s564
      // Predicated region
      $region49: #{trajsnet_forward.22} parent=47 // pred_check
        %p566 = pneg %p188
      $region50: #{trajsnet_forward.22} parent=47 // pred_check_branch
        %568 = sbr.rel (%p566) target = $region52
      $region51: #{trajsnet_forward.22} parent=47 // pred_region
        _
      $region52: #{trajsnet_forward.22} parent=47 // pred_fallthru
        _
    $region48: #{trajsnet_forward.22} parent=5 // pred_fallthru
      _
    %p569 = scmp.le.s32.totalorder 2, %s13
    // Predicated region
    $region53: #{trajsnet_forward.22} parent=5 // pred_check
      %p570 = pneg %p569
    $region54: #{trajsnet_forward.22} parent=5 // pred_check_branch
      %572 = sbr.rel (%p570) target = $region56
    $region55: #{trajsnet_forward.22} parent=5 // pred_region
      %s573 = ssub.s32 %s13, 2
      // Predicated region
      $region57: #{trajsnet_forward.22} parent=55 // pred_check
        %p574 = pneg %p194
      $region58: #{trajsnet_forward.22} parent=55 // pred_check_branch
        %576 = sbr.rel (%p574) target = $region60
      $region59: #{trajsnet_forward.22} parent=55 // pred_region
        %p577 = scmp.lt.s32.totalorder %s19, 1
        %s578 = scalar_select %p577, %s19, 1
        %s579 = smul.addr %s578, 8
        %s580 = scalar_lea.vmem %s7, %s579
      $region60: #{trajsnet_forward.22} parent=55 // pred_fallthru
        _
    $region56: #{trajsnet_forward.22} parent=5 // pred_fallthru
      _
  $region6: #{trajsnet_forward.22} parent=0 // loop_footer
    %s17 = sadd.s32 1, %s13
  $region7: #{trajsnet_forward.22} parent=0 // loop_footer_branch
    %12 = sbr.rel target = $region3
  $region8: #{trajsnet_forward.22} parent=0 // loop_exit
    _

// kernel: trajsnet_forward.23
$region0: #{trajsnet_forward.23}
  #allocation0 [shape = 'u32[]', space=smem, size = 0x4, offset = 0x4, fixed_abs, tag = 'smem constant byte address 0x4 - core index']
  #allocation1 [shape = 'u32[144,128]{1,0:T(1,128)}', space=vmem, size = 0x12000, scoped, tag = 'internal scratch']
  %s0 = inlined_call_operand.vmem [shape: bf16[16,64], index: 0, kind: input, shape index: {}]
  %s1 = inlined_call_operand.vmem [shape: bf16[16,64], index: 1, kind: input, shape index: {}]
  %s2 = inlined_call_operand.vmem [shape: bf16[64,256], index: 2, kind: input, shape index: {}]
  %s3 = inlined_call_operand.vmem [shape: bf16[64,256], index: 3, kind: input, shape index: {}]
  %s4 = inlined_call_operand.vmem [shape: bf16[64,256], index: 4, kind: input, shape index: {}]
  %s5 = inlined_call_operand.vmem [shape: bf16[64,256], index: 5, kind: input, shape index: {}]
  %s6 = inlined_call_operand.vmem [shape: f32[1,256], index: 6, kind: input, shape index: {}]
  %s7 = inlined_call_operand.vmem [shape: bf16[256,128], index: 7, kind: input, shape index: {}]
  %s8 = inlined_call_operand.vmem [shape: f32[1,128], index: 8, kind: input, shape index: {}]
  %s9 = inlined_call_operand.vmem [shape: f32[16,128], index: 9, kind: output, shape index: {}]
  %s10 = sld [smem:[#allocation0]]
  $region69: #{trajsnet_forward.23} parent=0
    _
  %s12 = ssub.s32 1, %s10
  %s13 = scalar_select 0, %s12, %s10
  loop: start=0, step=1, limit=4
  $region2: #{trajsnet_forward.23} parent=0 // loop_pre_header
    _
  $region3: #{trajsnet_forward.23} parent=0 // loop_header
    %s15 = sphi 0, %s19
    %p16 = scmp.ge.s32.totalorder %s15, 4
    %s25 = sphi 0, %s27
    %s28 = sphi 0, %s25
    %s29 = sphi 0, %s28
    %s45 = sphi 0, %s29
    %s51 = sphi 0, %s53
    %s54 = sphi 0, %s51
    %s55 = sphi 0, %s54
    %s71 = sphi 0, %s55
    %s75 = sphi 0, %s75
    %s77 = sphi 0, %s75
    %s78 = sphi 0, %s77
    %s92 = sphi 0, %s78
    %s96 = sphi 0, %s96
    %s98 = sphi 0, %s96
    %s99 = sphi 0, %s98
    %s113 = sphi 0, %s99
    %s117 = sphi 0, %s117
    %s119 = sphi 0, %s117
    %s120 = sphi 0, %s119
    %s134 = sphi 0, %s120
    %s138 = sphi 0, %s138
    %s140 = sphi 0, %s138
    %s141 = sphi 0, %s140
    %s155 = sphi 0, %s141
    %s159 = sphi 0, %s159
    %s161 = sphi 0, %s159
    %s162 = sphi 0, %s161
    %s176 = sphi 0, %s162
    %s180 = sphi 0, %s180
    %s182 = sphi 0, %s180
    %s183 = sphi 0, %s182
    %s197 = sphi 0, %s183
    %s201 = sphi 0, %s201
    %s203 = sphi 0, %s201
    %s204 = sphi 0, %s203
    %s218 = sphi 0, %s204
    %s224 = sphi 0, %s226
    %s227 = sphi 0, %s224
    %s228 = sphi 0, %s227
    %s244 = sphi 0, %s228
  $region4: #{trajsnet_forward.23} parent=0 // loop_header_branch
    %18 = sbr.rel (%p16) target = $region8
  $region5: #{trajsnet_forward.23} parent=0 // loop_body
    %s20 = ssub.s32 %s15, 1
    %s21 = ssub.s32 %s15, 2
    %s22 = sadd.s32 %s15, 1
    %s23 = ssub.s32 %s15, %s22
    %p24 = scmp.eq.s32.totalorder %s23, 0
    %s26 = sadd.s32 %s25, 1
    %s27 = scalar_select %p24, %s25, %s26
    %p30 = pneg %p24
    %p31 = scmp.eq.s32.totalorder %s15, 1
    %p32 = por %p30, %p31
    %p33 = scmp.ne.s32.totalorder %s25, %s28
    %p34 = scmp.eq.s32.totalorder %s15, 0
    %p35 = por %p33, %p34
    %p36 = scmp.ne.s32.totalorder %s25, %s28
    %p37 = scmp.eq.s32.totalorder %s20, 1
    %p38 = por %p36, %p37
    %p39 = scmp.ne.s32.totalorder %s28, %s29
    %p40 = scmp.eq.s32.totalorder %s20, 0
    %p41 = por %p39, %p40
    %p42 = scmp.ne.s32.totalorder %s28, %s29
    %p43 = scmp.eq.s32.totalorder %s21, 1
    %p44 = por %p42, %p43
    %p46 = scmp.ne.s32.totalorder %s29, %s45
    %p47 = scmp.eq.s32.totalorder %s21, 0
    %p48 = por %p46, %p47
    %s49 = ssub.s32 %s15, %s22
    %p50 = scmp.eq.s32.totalorder %s49, 0
    %s52 = sadd.s32 %s51, 1
    %s53 = scalar_select %p50, %s51, %s52
    %p56 = pneg %p50
    %p57 = scmp.eq.s32.totalorder %s15, 1
    %p58 = por %p56, %p57
    %p59 = scmp.ne.s32.totalorder %s51, %s54
    %p60 = scmp.eq.s32.totalorder %s15, 0
    %p61 = por %p59, %p60
    %p62 = scmp.ne.s32.totalorder %s51, %s54
    %p63 = scmp.eq.s32.totalorder %s20, 1
    %p64 = por %p62, %p63
    %p65 = scmp.ne.s32.totalorder %s54, %s55
    %p66 = scmp.eq.s32.totalorder %s20, 0
    %p67 = por %p65, %p66
    %p68 = scmp.ne.s32.totalorder %s54, %s55
    %p69 = scmp.eq.s32.totalorder %s21, 1
    %p70 = por %p68, %p69
    %p72 = scmp.ne.s32.totalorder %s55, %s71
    %p73 = scmp.eq.s32.totalorder %s21, 0
    %p74 = por %p72, %p73
    %s76 = sadd.s32 %s75, 1
    %p79 = scmp.eq.s32.totalorder %s15, 1
    %p80 = scmp.ne.s32.totalorder %s75, %s77
    %p81 = scmp.eq.s32.totalorder %s15, 0
    %p82 = por %p80, %p81
    %p83 = scmp.ne.s32.totalorder %s75, %s77
    %p84 = scmp.eq.s32.totalorder %s20, 1
    %p85 = por %p83, %p84
    %p86 = scmp.ne.s32.totalorder %s77, %s78
    %p87 = scmp.eq.s32.totalorder %s20, 0
    %p88 = por %p86, %p87
    %p89 = scmp.ne.s32.totalorder %s77, %s78
    %p90 = scmp.eq.s32.totalorder %s21, 1
    %p91 = por %p89, %p90
    %p93 = scmp.ne.s32.totalorder %s78, %s92
    %p94 = scmp.eq.s32.totalorder %s21, 0
    %p95 = por %p93, %p94
    %s97 = sadd.s32 %s96, 1
    %p100 = scmp.eq.s32.totalorder %s15, 1
    %p101 = scmp.ne.s32.totalorder %s96, %s98
    %p102 = scmp.eq.s32.totalorder %s15, 0
    %p103 = por %p101, %p102
    %p104 = scmp.ne.s32.totalorder %s96, %s98
    %p105 = scmp.eq.s32.totalorder %s20, 1
    %p106 = por %p104, %p105
    %p107 = scmp.ne.s32.totalorder %s98, %s99
    %p108 = scmp.eq.s32.totalorder %s20, 0
    %p109 = por %p107, %p108
    %p110 = scmp.ne.s32.totalorder %s98, %s99
    %p111 = scmp.eq.s32.totalorder %s21, 1
    %p112 = por %p110, %p111
    %p114 = scmp.ne.s32.totalorder %s99, %s113
    %p115 = scmp.eq.s32.totalorder %s21, 0
    %p116 = por %p114, %p115
    %s118 = sadd.s32 %s117, 1
    %p121 = scmp.eq.s32.totalorder %s15, 1
    %p122 = scmp.ne.s32.totalorder %s117, %s119
    %p123 = scmp.eq.s32.totalorder %s15, 0
    %p124 = por %p122, %p123
    %p125 = scmp.ne.s32.totalorder %s117, %s119
    %p126 = scmp.eq.s32.totalorder %s20, 1
    %p127 = por %p125, %p126
    %p128 = scmp.ne.s32.totalorder %s119, %s120
    %p129 = scmp.eq.s32.totalorder %s20, 0
    %p130 = por %p128, %p129
    %p131 = scmp.ne.s32.totalorder %s119, %s120
    %p132 = scmp.eq.s32.totalorder %s21, 1
    %p133 = por %p131, %p132
    %p135 = scmp.ne.s32.totalorder %s120, %s134
    %p136 = scmp.eq.s32.totalorder %s21, 0
    %p137 = por %p135, %p136
    %s139 = sadd.s32 %s138, 1
    %p142 = scmp.eq.s32.totalorder %s15, 1
    %p143 = scmp.ne.s32.totalorder %s138, %s140
    %p144 = scmp.eq.s32.totalorder %s15, 0
    %p145 = por %p143, %p144
    %p146 = scmp.ne.s32.totalorder %s138, %s140
    %p147 = scmp.eq.s32.totalorder %s20, 1
    %p148 = por %p146, %p147
    %p149 = scmp.ne.s32.totalorder %s140, %s141
    %p150 = scmp.eq.s32.totalorder %s20, 0
    %p151 = por %p149, %p150
    %p152 = scmp.ne.s32.totalorder %s140, %s141
    %p153 = scmp.eq.s32.totalorder %s21, 1
    %p154 = por %p152, %p153
    %p156 = scmp.ne.s32.totalorder %s141, %s155
    %p157 = scmp.eq.s32.totalorder %s21, 0
    %p158 = por %p156, %p157
    %s160 = sadd.s32 %s159, 1
    %p163 = scmp.eq.s32.totalorder %s15, 1
    %p164 = scmp.ne.s32.totalorder %s159, %s161
    %p165 = scmp.eq.s32.totalorder %s15, 0
    %p166 = por %p164, %p165
    %p167 = scmp.ne.s32.totalorder %s159, %s161
    %p168 = scmp.eq.s32.totalorder %s20, 1
    %p169 = por %p167, %p168
    %p170 = scmp.ne.s32.totalorder %s161, %s162
    %p171 = scmp.eq.s32.totalorder %s20, 0
    %p172 = por %p170, %p171
    %p173 = scmp.ne.s32.totalorder %s161, %s162
    %p174 = scmp.eq.s32.totalorder %s21, 1
    %p175 = por %p173, %p174
    %p177 = scmp.ne.s32.totalorder %s162, %s176
    %p178 = scmp.eq.s32.totalorder %s21, 0
    %p179 = por %p177, %p178
    %s181 = sadd.s32 %s180, 1
    %p184 = scmp.eq.s32.totalorder %s15, 1
    %p185 = scmp.ne.s32.totalorder %s180, %s182
    %p186 = scmp.eq.s32.totalorder %s15, 0
    %p187 = por %p185, %p186
    %p188 = scmp.ne.s32.totalorder %s180, %s182
    %p189 = scmp.eq.s32.totalorder %s20, 1
    %p190 = por %p188, %p189
    %p191 = scmp.ne.s32.totalorder %s182, %s183
    %p192 = scmp.eq.s32.totalorder %s20, 0
    %p193 = por %p191, %p192
    %p194 = scmp.ne.s32.totalorder %s182, %s183
    %p195 = scmp.eq.s32.totalorder %s21, 1
    %p196 = por %p194, %p195
    %p198 = scmp.ne.s32.totalorder %s183, %s197
    %p199 = scmp.eq.s32.totalorder %s21, 0
    %p200 = por %p198, %p199
    %s202 = sadd.s32 %s201, 1
    %p205 = scmp.eq.s32.totalorder %s15, 1
    %p206 = scmp.ne.s32.totalorder %s201, %s203
    %p207 = scmp.eq.s32.totalorder %s15, 0
    %p208 = por %p206, %p207
    %p209 = scmp.ne.s32.totalorder %s201, %s203
    %p210 = scmp.eq.s32.totalorder %s20, 1
    %p211 = por %p209, %p210
    %p212 = scmp.ne.s32.totalorder %s203, %s204
    %p213 = scmp.eq.s32.totalorder %s20, 0
    %p214 = por %p212, %p213
    %p215 = scmp.ne.s32.totalorder %s203, %s204
    %p216 = scmp.eq.s32.totalorder %s21, 1
    %p217 = por %p215, %p216
    %p219 = scmp.ne.s32.totalorder %s204, %s218
    %p220 = scmp.eq.s32.totalorder %s21, 0
    %p221 = por %p219, %p220
    %s222 = ssub.s32 %s15, %s22
    %p223 = scmp.eq.s32.totalorder %s222, 0
    %s225 = sadd.s32 %s224, 1
    %s226 = scalar_select %p223, %s224, %s225
    %p229 = pneg %p223
    %p230 = scmp.eq.s32.totalorder %s15, 1
    %p231 = por %p229, %p230
    %p232 = scmp.ne.s32.totalorder %s224, %s227
    %p233 = scmp.eq.s32.totalorder %s15, 0
    %p234 = por %p232, %p233
    %p235 = scmp.ne.s32.totalorder %s224, %s227
    %p236 = scmp.eq.s32.totalorder %s20, 1
    %p237 = por %p235, %p236
    %p238 = scmp.ne.s32.totalorder %s227, %s228
    %p239 = scmp.eq.s32.totalorder %s20, 0
    %p240 = por %p238, %p239
    %p241 = scmp.ne.s32.totalorder %s227, %s228
    %p242 = scmp.eq.s32.totalorder %s21, 1
    %p243 = por %p241, %p242
    %p245 = scmp.ne.s32.totalorder %s228, %s244
    %p246 = scmp.eq.s32.totalorder %s21, 0
    %p247 = por %p245, %p246
    %p248 = scmp.le.s32.totalorder 1, %s15
    %p249 = scmp.lt.s32.totalorder %s15, 3
    %p250 = pnand %p248, %p249
    %p251 = pneg %p250
    // Predicated region
    $region9: #{trajsnet_forward.23} parent=5 // pred_check
      _
    $region10: #{trajsnet_forward.23} parent=5 // pred_check_branch
      %253 = sbr.rel (%p250) target = $region12
    $region11: #{trajsnet_forward.23} parent=5 // pred_region
      %s254 = ssub.s32 %s15, 1
      // Predicated region
      $region13: #{trajsnet_forward.23} parent=11 // pred_check
        %p255 = pneg %p88
      $region14: #{trajsnet_forward.23} parent=11 // pred_check_branch
        %257 = sbr.rel (%p255) target = $region16
      $region15: #{trajsnet_forward.23} parent=11 // pred_region
        _
      $region16: #{trajsnet_forward.23} parent=11 // pred_fallthru
        _
      // Predicated region
      $region17: #{trajsnet_forward.23} parent=11 // pred_check
        %p258 = pneg %p109
      $region18: #{trajsnet_forward.23} parent=11 // pred_check_branch
        %260 = sbr.rel (%p258) target = $region20
      $region19: #{trajsnet_forward.23} parent=11 // pred_region
        _
      $region20: #{trajsnet_forward.23} parent=11 // pred_fallthru
        _
      // Predicated region
      $region21: #{trajsnet_forward.23} parent=11 // pred_check
        %p261 = pneg %p130
      $region22: #{trajsnet_forward.23} parent=11 // pred_check_branch
        %263 = sbr.rel (%p261) target = $region24
      $region23: #{trajsnet_forward.23} parent=11 // pred_region
        _
      $region24: #{trajsnet_forward.23} parent=11 // pred_fallthru
        _
      // Predicated region
      $region25: #{trajsnet_forward.23} parent=11 // pred_check
        %p264 = pneg %p151
      $region26: #{trajsnet_forward.23} parent=11 // pred_check_branch
        %266 = sbr.rel (%p264) target = $region28
      $region27: #{trajsnet_forward.23} parent=11 // pred_region
        _
      $region28: #{trajsnet_forward.23} parent=11 // pred_fallthru
        _
      // Predicated region
      $region29: #{trajsnet_forward.23} parent=11 // pred_check
        %p267 = pneg %p172
      $region30: #{trajsnet_forward.23} parent=11 // pred_check_branch
        %269 = sbr.rel (%p267) target = $region32
      $region31: #{trajsnet_forward.23} parent=11 // pred_region
        _
      $region32: #{trajsnet_forward.23} parent=11 // pred_fallthru
        _
      // Predicated region
      $region33: #{trajsnet_forward.23} parent=11 // pred_check
        %p270 = pneg %p193
      $region34: #{trajsnet_forward.23} parent=11 // pred_check_branch
        %272 = sbr.rel (%p270) target = $region36
      $region35: #{trajsnet_forward.23} parent=11 // pred_region
        _
      $region36: #{trajsnet_forward.23} parent=11 // pred_fallthru
        _
      // Predicated region
      $region37: #{trajsnet_forward.23} parent=11 // pred_check
        %p273 = pneg %p214
      $region38: #{trajsnet_forward.23} parent=11 // pred_check_branch
        %275 = sbr.rel (%p273) target = $region40
      $region39: #{trajsnet_forward.23} parent=11 // pred_region
        _
      $region40: #{trajsnet_forward.23} parent=11 // pred_fallthru
        _
    $region12: #{trajsnet_forward.23} parent=5 // pred_fallthru
      _
    %p276 = scmp.lt.s32.totalorder %s15, 2
    // Predicated region
    $region41: #{trajsnet_forward.23} parent=5 // pred_check
      %p277 = pneg %p276
    $region42: #{trajsnet_forward.23} parent=5 // pred_check_branch
      %279 = sbr.rel (%p277) target = $region44
    $region43: #{trajsnet_forward.23} parent=5 // pred_region
      // Predicated region
      $region45: #{trajsnet_forward.23} parent=43 // pred_check
        %p280 = pneg %p35
      $region46: #{trajsnet_forward.23} parent=43 // pred_check_branch
        %282 = sbr.rel (%p280) target = $region48
      $region47: #{trajsnet_forward.23} parent=43 // pred_region
        %p283 = scmp.lt.s32.totalorder %s15, 1
        %s284 = scalar_select %p283, %s15, 1
        %s285 = smul.addr %s284, 4
        %s286 = scalar_lea.vmem %s0, %s285
      $region48: #{trajsnet_forward.23} parent=43 // pred_fallthru
        _
      // Predicated region
      $region49: #{trajsnet_forward.23} parent=43 // pred_check
        %p287 = pneg %p61
      $region50: #{trajsnet_forward.23} parent=43 // pred_check_branch
        %289 = sbr.rel (%p287) target = $region52
      $region51: #{trajsnet_forward.23} parent=43 // pred_region
        %p290 = scmp.lt.s32.totalorder %s15, 1
        %s291 = scalar_select %p290, %s15, 1
        %s292 = smul.addr %s291, 4
        %s293 = scalar_lea.vmem %s1, %s292
      $region52: #{trajsnet_forward.23} parent=43 // pred_fallthru
        _
    $region44: #{trajsnet_forward.23} parent=5 // pred_fallthru
      _
    %p294 = scmp.le.s32.totalorder 1, %s15
    %p295 = scmp.lt.s32.totalorder %s15, 3
    %p296 = pnand %p294, %p295
    %p297 = pneg %p296
    // Predicated region
    $region53: #{trajsnet_forward.23} parent=5 // pred_check
      _
    $region54: #{trajsnet_forward.23} parent=5 // pred_check_branch
      %299 = sbr.rel (%p296) target = $region56
    $region55: #{trajsnet_forward.23} parent=5 // pred_region
      %s300 = ssub.s32 %s15, 1
      %p301 = scmp.lt.s32.totalorder %s20, 1
      %s302 = scalar_select %p301, %s20, 1
      %s303 = smul.addr %s302, 4
      %s304 = scalar_lea.vmem %s0, %s303
      %p305 = pneg %p41
      %p306 = pneg %p38
      %p307 = scmp.lt.s32.totalorder %s20, 1
      %s308 = scalar_select %p307, %s20, 1
      %s309 = smul.addr %s308, 4
      %s310 = scalar_lea.vmem %s1, %s309
      %p311 = pneg %p67
      %p312 = pneg %p64
      %p313 = pneg %p88
      %p314 = pneg %p85
      %p315 = pneg %p109
      %p316 = pneg %p106
      %p317 = pneg %p130
      %p318 = pneg %p127
      %p319 = pneg %p151
      %p320 = pneg %p148
      %p321 = pneg %p172
      %p322 = pneg %p169
      %p323 = pneg %p193
      %p324 = pneg %p190
      %p325 = pneg %p214
      %p326 = pneg %p211
      %p327 = pneg %p240
      %p328 = pneg %p237
      %p329 = scmp.lt.s32.totalorder %s20, 1
      %s330 = scalar_select %p329, %s20, 1
      %s331 = smul.addr %s330, 8
      %s332 = scalar_lea.vmem %s9, %s331
      %p333 = scmp.lt.s32.totalorder %s20, 1
      %s334 = scalar_select %p333, %s20, 1
      %s335 = smul.addr %s334, 4
      %s336 = scalar_lea.vmem %s0, %s335
      %p337 = scmp.lt.s32.totalorder %s20, 1
      %s338 = scalar_select %p337, %s20, 1
      %s339 = smul.addr %s338, 4
      %s340 = scalar_lea.vmem %s1, %s339
      %p341 = scmp.lt.s32.totalorder %s20, 1
      %s342 = scalar_select %p341, %s20, 1
      %s343 = smul.addr %s342, 8
      %s344 = scalar_lea.vmem %s9, %s343
      %v346 = vld [vmem:[%s336] sm:$0xf]
      %v347 = vld [vmem:[%s340] sm:$0xf]
      %v348 = vld [vmem:[%s6] sm:$0x3]
      %v349 = vld [vmem:[%s2] sm:$0xff]
      %v350 = vld [vmem:[%s2 + $0x8] sm:$0xff]
      %v351 = vld [vmem:[%s2 + $0x10] sm:$0xff]
      %v352 = vld [vmem:[%s2 + $0x18] sm:$0xff]
      %v353 = vld [vmem:[%s2 + $0x20] sm:$0xff]
      %v354 = vld [vmem:[%s2 + $0x28] sm:$0xff]
      %v355 = vld [vmem:[%s2 + $0x30] sm:$0xff]
      %v356 = vld [vmem:[%s2 + $0x38] sm:$0xff]
      %v365 = vunpack.c.l.b16 %v349
      %v366 = vunpack.c.h.b16 %v349
      %v367 = vunpack.c.l.b16 %v350
      %v368 = vunpack.c.h.b16 %v350
      %v369 = vunpack.c.l.b16 %v351
      %v370 = vunpack.c.h.b16 %v351
      %v371 = vunpack.c.l.b16 %v352
      %v372 = vunpack.c.h.b16 %v352
      %v373 = vunpack.c.l.b16 %v353
      %v374 = vunpack.c.h.b16 %v353
      %v375 = vunpack.c.l.b16 %v354
      %v376 = vunpack.c.h.b16 %v354
      %v377 = vunpack.c.l.b16 %v355
      %v378 = vunpack.c.h.b16 %v355
      %v379 = vunpack.c.l.b16 %v356
      %v380 = vunpack.c.h.b16 %v356
      %v381 = vpack.c.b16 %v367, %v365
      %v382 = vpack.c.b16 %v368, %v366
      %v383 = vpack.c.b16 %v371, %v369
      %v384 = vpack.c.b16 %v372, %v370
      %v385 = vpack.c.b16 %v375, %v373
      %v386 = vpack.c.b16 %v376, %v374
      %v387 = vpack.c.b16 %v379, %v377
      %v388 = vpack.c.b16 %v380, %v378
      %vm397 = vcmask 523264
      %v399 = vsel %vm397, %v346, 0
      %401 = vmatprep.subr.bf16.mxu0 %v382
      %402 = vmatpush1.bf16.msra.mxu0 %v381
      %403 = vmatprep.subr.bf16.mxu0 %v384
      %404 = vmatpush1.bf16.msra.mxu0 %v383
      %405 = vmatprep.subr.bf16.mxu0 %v386
      %406 = vmatpush1.bf16.msra.mxu0 %v385
      %407 = vmatprep.subr.bf16.mxu0 %v388
      %408 = vmatpush1.bf16.msra.mxu0 %v387
      %409 = vmatprep.subr.bf16.mxu0 0
      %410 = vmatpush1.bf16.msra.mxu0 0
      %411 = vmatprep.subr.bf16.mxu0 0
      %412 = vmatpush1.bf16.msra.mxu0 0
      %413 = vmatprep.subr.bf16.mxu0 0
      %414 = vmatpush1.bf16.msra.mxu0 0
      %415 = vmatprep.subr.bf16.mxu0 0
      %416 = vmatpush1.bf16.msra.mxu0 0
      %417 = vmatprep.subr.bf16.mxu0 0
      %418 = vmatpush1.bf16.msra.mxu0 0
      %419 = vmatprep.subr.bf16.mxu0 0
      %420 = vmatpush1.bf16.msra.mxu0 0
      %421 = vmatprep.subr.bf16.mxu0 0
      %422 = vmatpush1.bf16.msra.mxu0 0
      %423 = vmatprep.subr.bf16.mxu0 0
      %424 = vmatpush1.bf16.msra.mxu0 0
      %425 = vmatprep.subr.bf16.mxu0 0
      %426 = vmatpush1.bf16.msra.mxu0 0
      %427 = vmatprep.subr.bf16.mxu0 0
      %428 = vmatpush1.bf16.msra.mxu0 0
      %429 = vmatprep.subr.bf16.mxu0 0
      %430 = vmatpush1.bf16.msra.mxu0 0
      %431 = vmatprep.subr.bf16.mxu0 0
      %432 = vmatpush1.bf16.msra.mxu0 0
      %433 = vmatprep.mubr.bf16.mxu0 0
      %434 = vmatmul.mubr.bf16.gmra.mrb[0].mxu0 %v399
      %v435 = vpop.f32.mrb[0].mxu0
      %v436 = vadd.f32 0.0, %v435
      %v437 = vpop.f32.mrb[0].mxu0
      %v438 = vadd.f32 0.0, %v437
      %v439 = vpop.f32.mrb[0].mxu0
      %v440 = vpop.f32.mrb[0].mxu0
      %441 = vdwg.mxu0
      %v443 = vlaneseq
      %v444 = vshrl.u32 %v443, 7
      %v445 = vsub.s32 0, %v444
      %v446 = vrot.slane %v348, %v445
      %v447 = vlaneseq
      %v448 = vshrl.u32 %v447, 7
      %v449 = vsub.s32 1, %v448
      %v450 = vrot.slane %v348, %v449
      %v453 = vadd.f32 %v446, %v436
      %v454 = vadd.f32 %v450, %v438
      %v455 = vld [vmem:[%s3] sm:$0xff]
      %v456 = vld [vmem:[%s3 + $0x8] sm:$0xff]
      %v457 = vld [vmem:[%s3 + $0x10] sm:$0xff]
      %v458 = vld [vmem:[%s3 + $0x18] sm:$0xff]
      %v459 = vld [vmem:[%s3 + $0x20] sm:$0xff]
      %v460 = vld [vmem:[%s3 + $0x28] sm:$0xff]
      %v461 = vld [vmem:[%s3 + $0x30] sm:$0xff]
      %v462 = vld [vmem:[%s3 + $0x38] sm:$0xff]
      %v471 = vunpack.c.l.b16 %v455
      %v472 = vunpack.c.h.b16 %v455
      %v473 = vunpack.c.l.b16 %v456
      %v474 = vunpack.c.h.b16 %v456
      %v475 = vunpack.c.l.b16 %v457
      %v476 = vunpack.c.h.b16 %v457
      %v477 = vunpack.c.l.b16 %v458
      %v478 = vunpack.c.h.b16 %v458
      %v479 = vunpack.c.l.b16 %v459
      %v480 = vunpack.c.h.b16 %v459
      %v481 = vunpack.c.l.b16 %v460
      %v482 = vunpack.c.h.b16 %v460
      %v483 = vunpack.c.l.b16 %v461
      %v484 = vunpack.c.h.b16 %v461
      %v485 = vunpack.c.l.b16 %v462
      %v486 = vunpack.c.h.b16 %v462
      %v487 = vpack.c.b16 %v473, %v471
      %v488 = vpack.c.b16 %v474, %v472
      %v489 = vpack.c.b16 %v477, %v475
      %v490 = vpack.c.b16 %v478, %v476
      %v491 = vpack.c.b16 %v481, %v479
      %v492 = vpack.c.b16 %v482, %v480
      %v493 = vpack.c.b16 %v485, %v483
      %v494 = vpack.c.b16 %v486, %v484
      %v504 = vsel %vm397, %v347, 0
      %506 = vmatprep.subr.bf16.mxu0 %v488
      %507 = vmatpush1.bf16.msra.mxu0 %v487
      %508 = vmatprep.subr.bf16.mxu0 %v490
      %509 = vmatpush1.bf16.msra.mxu0 %v489
      %510 = vmatprep.subr.bf16.mxu0 %v492
      %511 = vmatpush1.bf16.msra.mxu0 %v491
      %512 = vmatprep.subr.bf16.mxu0 %v494
      %513 = vmatpush1.bf16.msra.mxu0 %v493
      %514 = vmatprep.subr.bf16.mxu0 0
      %515 = vmatpush1.bf16.msra.mxu0 0
      %516 = vmatprep.subr.bf16.mxu0 0
      %517 = vmatpush1.bf16.msra.mxu0 0
      %518 = vmatprep.subr.bf16.mxu0 0
      %519 = vmatpush1.bf16.msra.mxu0 0
      %520 = vmatprep.subr.bf16.mxu0 0
      %521 = vmatpush1.bf16.msra.mxu0 0
      %522 = vmatprep.subr.bf16.mxu0 0
      %523 = vmatpush1.bf16.msra.mxu0 0
      %524 = vmatprep.subr.bf16.mxu0 0
      %525 = vmatpush1.bf16.msra.mxu0 0
      %526 = vmatprep.subr.bf16.mxu0 0
      %527 = vmatpush1.bf16.msra.mxu0 0
      %528 = vmatprep.subr.bf16.mxu0 0
      %529 = vmatpush1.bf16.msra.mxu0 0
      %530 = vmatprep.subr.bf16.mxu0 0
      %531 = vmatpush1.bf16.msra.mxu0 0
      %532 = vmatprep.subr.bf16.mxu0 0
      %533 = vmatpush1.bf16.msra.mxu0 0
      %534 = vmatprep.subr.bf16.mxu0 0
      %535 = vmatpush1.bf16.msra.mxu0 0
      %536 = vmatprep.subr.bf16.mxu0 0
      %537 = vmatpush1.bf16.msra.mxu0 0
      %538 = vmatprep.mubr.bf16.mxu0 0
      %539 = vmatmul.mubr.bf16.gmra.mrb[0].mxu0 %v504
      %v540 = vpop.f32.mrb[0].mxu0
      %v541 = vadd.f32 0.0, %v540
      %v542 = vpop.f32.mrb[0].mxu0
      %v543 = vadd.f32 0.0, %v542
      %v544 = vpop.f32.mrb[0].mxu0
      %v545 = vpop.f32.mrb[0].mxu0
      %546 = vdwg.mxu0
      %v547 = vadd.f32 %v453, %v541
      %v548 = vadd.f32 %v454, %v543
      %v549 = vunpack.c.l.bf16 %v346
      %v550 = vmul.f32 %v549, %v549
      %v551 = vpack.c.bf16 %v550, %v550
      %v552 = vld [vmem:[%s4] sm:$0xff]
      %v553 = vld [vmem:[%s4 + $0x8] sm:$0xff]
      %v554 = vld [vmem:[%s4 + $0x10] sm:$0xff]
      %v555 = vld [vmem:[%s4 + $0x18] sm:$0xff]
      %v556 = vld [vmem:[%s4 + $0x20] sm:$0xff]
      %v557 = vld [vmem:[%s4 + $0x28] sm:$0xff]
      %v558 = vld [vmem:[%s4 + $0x30] sm:$0xff]
      %v559 = vld [vmem:[%s4 + $0x38] sm:$0xff]
      %v568 = vunpack.c.l.b16 %v552
      %v569 = vunpack.c.h.b16 %v552
      %v570 = vunpack.c.l.b16 %v553
      %v571 = vunpack.c.h.b16 %v553
      %v572 = vunpack.c.l.b16 %v554
      %v573 = vunpack.c.h.b16 %v554
      %v574 = vunpack.c.l.b16 %v555
      %v575 = vunpack.c.h.b16 %v555
      %v576 = vunpack.c.l.b16 %v556
      %v577 = vunpack.c.h.b16 %v556
      %v578 = vunpack.c.l.b16 %v557
      %v579 = vunpack.c.h.b16 %v557
      %v580 = vunpack.c.l.b16 %v558
      %v581 = vunpack.c.h.b16 %v558
      %v582 = vunpack.c.l.b16 %v559
      %v583 = vunpack.c.h.b16 %v559
      %v584 = vpack.c.b16 %v570, %v568
      %v585 = vpack.c.b16 %v571, %v569
      %v586 = vpack.c.b16 %v574, %v572
      %v587 = vpack.c.b16 %v575, %v573
      %v588 = vpack.c.b16 %v578, %v576
      %v589 = vpack.c.b16 %v579, %v577
      %v590 = vpack.c.b16 %v582, %v580
      %v591 = vpack.c.b16 %v583, %v581
      %v601 = vsel %vm397, %v551, 0
      %603 = vmatprep.subr.bf16.mxu0 %v585
      %604 = vmatpush1.bf16.msra.mxu0 %v584
      %605 = vmatprep.subr.bf16.mxu0 %v587
      %606 = vmatpush1.bf16.msra.mxu0 %v586
      %607 = vmatprep.subr.bf16.mxu0 %v589
      %608 = vmatpush1.bf16.msra.mxu0 %v588
      %609 = vmatprep.subr.bf16.mxu0 %v591
      %610 = vmatpush1.bf16.msra.mxu0 %v590
      %611 = vmatprep.subr.bf16.mxu0 0
      %612 = vmatpush1.bf16.msra.mxu0 0
      %613 = vmatprep.subr.bf16.mxu0 0
      %614 = vmatpush1.bf16.msra.mxu0 0
      %615 = vmatprep.subr.bf16.mxu0 0
      %616 = vmatpush1.bf16.msra.mxu0 0
      %617 = vmatprep.subr.bf16.mxu0 0
      %618 = vmatpush1.bf16.msra.mxu0 0
      %619 = vmatprep.subr.bf16.mxu0 0
      %620 = vmatpush1.bf16.msra.mxu0 0
      %621 = vmatprep.subr.bf16.mxu0 0
      %622 = vmatpush1.bf16.msra.mxu0 0
      %623 = vmatprep.subr.bf16.mxu0 0
      %624 = vmatpush1.bf16.msra.mxu0 0
      %625 = vmatprep.subr.bf16.mxu0 0
      %626 = vmatpush1.bf16.msra.mxu0 0
      %627 = vmatprep.subr.bf16.mxu0 0
      %628 = vmatpush1.bf16.msra.mxu0 0
      %629 = vmatprep.subr.bf16.mxu0 0
      %630 = vmatpush1.bf16.msra.mxu0 0
      %631 = vmatprep.subr.bf16.mxu0 0
      %632 = vmatpush1.bf16.msra.mxu0 0
      %633 = vmatprep.subr.bf16.mxu0 0
      %634 = vmatpush1.bf16.msra.mxu0 0
      %635 = vmatprep.mubr.bf16.mxu0 0
      %636 = vmatmul.mubr.bf16.gmra.mrb[0].mxu0 %v601
      %v637 = vpop.f32.mrb[0].mxu0
      %v638 = vadd.f32 0.0, %v637
      %v639 = vpop.f32.mrb[0].mxu0
      %v640 = vadd.f32 0.0, %v639
      %v641 = vpop.f32.mrb[0].mxu0
      %v642 = vpop.f32.mrb[0].mxu0
      %643 = vdwg.mxu0
      %v644 = vadd.f32 %v547, %v638
      %v645 = vadd.f32 %v548, %v640
      %v646 = vunpack.c.l.bf16 %v347
      %v647 = vmul.f32 %v646, %v646
      %v648 = vpack.c.bf16 %v647, %v647
      %v649 = vld [vmem:[%s5] sm:$0xff]
      %v650 = vld [vmem:[%s5 + $0x8] sm:$0xff]
      %v651 = vld [vmem:[%s5 + $0x10] sm:$0xff]
      %v652 = vld [vmem:[%s5 + $0x18] sm:$0xff]
      %v653 = vld [vmem:[%s5 + $0x20] sm:$0xff]
      %v654 = vld [vmem:[%s5 + $0x28] sm:$0xff]
      %v655 = vld [vmem:[%s5 + $0x30] sm:$0xff]
      %v656 = vld [vmem:[%s5 + $0x38] sm:$0xff]
      %v665 = vunpack.c.l.b16 %v649
      %v666 = vunpack.c.h.b16 %v649
      %v667 = vunpack.c.l.b16 %v650
      %v668 = vunpack.c.h.b16 %v650
      %v669 = vunpack.c.l.b16 %v651
      %v670 = vunpack.c.h.b16 %v651
      %v671 = vunpack.c.l.b16 %v652
      %v672 = vunpack.c.h.b16 %v652
      %v673 = vunpack.c.l.b16 %v653
      %v674 = vunpack.c.h.b16 %v653
      %v675 = vunpack.c.l.b16 %v654
      %v676 = vunpack.c.h.b16 %v654
      %v677 = vunpack.c.l.b16 %v655
      %v678 = vunpack.c.h.b16 %v655
      %v679 = vunpack.c.l.b16 %v656
      %v680 = vunpack.c.h.b16 %v656
      %v681 = vpack.c.b16 %v667, %v665
      %v682 = vpack.c.b16 %v668, %v666
      %v683 = vpack.c.b16 %v671, %v669
      %v684 = vpack.c.b16 %v672, %v670
      %v685 = vpack.c.b16 %v675, %v673
      %v686 = vpack.c.b16 %v676, %v674
      %v687 = vpack.c.b16 %v679, %v677
      %v688 = vpack.c.b16 %v680, %v678
      %v698 = vsel %vm397, %v648, 0
      %700 = vmatprep.subr.bf16.mxu0 %v682
      %701 = vmatpush1.bf16.msra.mxu0 %v681
      %702 = vmatprep.subr.bf16.mxu0 %v684
      %703 = vmatpush1.bf16.msra.mxu0 %v683
      %704 = vmatprep.subr.bf16.mxu0 %v686
      %705 = vmatpush1.bf16.msra.mxu0 %v685
      %706 = vmatprep.subr.bf16.mxu0 %v688
      %707 = vmatpush1.bf16.msra.mxu0 %v687
      %708 = vmatprep.subr.bf16.mxu0 0
      %709 = vmatpush1.bf16.msra.mxu0 0
      %710 = vmatprep.subr.bf16.mxu0 0
      %711 = vmatpush1.bf16.msra.mxu0 0
      %712 = vmatprep.subr.bf16.mxu0 0
      %713 = vmatpush1.bf16.msra.mxu0 0
      %714 = vmatprep.subr.bf16.mxu0 0
      %715 = vmatpush1.bf16.msra.mxu0 0
      %716 = vmatprep.subr.bf16.mxu0 0
      %717 = vmatpush1.bf16.msra.mxu0 0
      %718 = vmatprep.subr.bf16.mxu0 0
      %719 = vmatpush1.bf16.msra.mxu0 0
      %720 = vmatprep.subr.bf16.mxu0 0
      %721 = vmatpush1.bf16.msra.mxu0 0
      %722 = vmatprep.subr.bf16.mxu0 0
      %723 = vmatpush1.bf16.msra.mxu0 0
      %724 = vmatprep.subr.bf16.mxu0 0
      %725 = vmatpush1.bf16.msra.mxu0 0
      %726 = vmatprep.subr.bf16.mxu0 0
      %727 = vmatpush1.bf16.msra.mxu0 0
      %728 = vmatprep.subr.bf16.mxu0 0
      %729 = vmatpush1.bf16.msra.mxu0 0
      %730 = vmatprep.subr.bf16.mxu0 0
      %731 = vmatpush1.bf16.msra.mxu0 0
      %732 = vmatprep.mubr.bf16.mxu0 0
      %733 = vmatmul.mubr.bf16.gmra.mrb[0].mxu0 %v698
      %v734 = vpop.f32.mrb[0].mxu0
      %v735 = vadd.f32 0.0, %v734
      %v736 = vpop.f32.mrb[0].mxu0
      %v737 = vadd.f32 0.0, %v736
      %v738 = vpop.f32.mrb[0].mxu0
      %v739 = vpop.f32.mrb[0].mxu0
      %740 = vdwg.mxu0
      %v741 = vadd.f32 %v644, %v735
      %v742 = vadd.f32 %v645, %v737
      %vm743 = vcmp.gt.f32.partialorder %v741, 0.0
      %vm744 = vcmp.gt.f32.partialorder %v742, 0.0
      %v745 = vmul.f32 %v741, 0.2
      %v746 = vmul.f32 %v742, 0.2
      %v747 = vsel %vm743, %v741, %v745
      %v748 = vsel %vm744, %v742, %v746
      %v749 = vld [vmem:[%s8] sm:$0x1]
      %v750 = vpack.c.bf16 %v747, %v747
      %v751 = vpack.c.bf16 %v748, %v748
      %v752 = vld [vmem:[%s7] sm:$0xf]
      %v753 = vld [vmem:[%s7 + $0x4] sm:$0xf]
      %v754 = vld [vmem:[%s7 + $0x8] sm:$0xf]
      %v755 = vld [vmem:[%s7 + $0xc] sm:$0xf]
      %v756 = vld [vmem:[%s7 + $0x10] sm:$0xf]
      %v757 = vld [vmem:[%s7 + $0x14] sm:$0xf]
      %v758 = vld [vmem:[%s7 + $0x18] sm:$0xf]
      %v759 = vld [vmem:[%s7 + $0x1c] sm:$0xf]
      %v760 = vld [vmem:[%s7 + $0x20] sm:$0xf]
      %v761 = vld [vmem:[%s7 + $0x24] sm:$0xf]
      %v762 = vld [vmem:[%s7 + $0x28] sm:$0xf]
      %v763 = vld [vmem:[%s7 + $0x2c] sm:$0xf]
      %v764 = vld [vmem:[%s7 + $0x30] sm:$0xf]
      %v765 = vld [vmem:[%s7 + $0x34] sm:$0xf]
      %v766 = vld [vmem:[%s7 + $0x38] sm:$0xf]
      %v767 = vld [vmem:[%s7 + $0x3c] sm:$0xf]
      %v768 = vld [vmem:[%s7 + $0x40] sm:$0xf]
      %v769 = vld [vmem:[%s7 + $0x44] sm:$0xf]
      %v770 = vld [vmem:[%s7 + $0x48] sm:$0xf]
      %v771 = vld [vmem:[%s7 + $0x4c] sm:$0xf]
      %v772 = vld [vmem:[%s7 + $0x50] sm:$0xf]
      %v773 = vld [vmem:[%s7 + $0x54] sm:$0xf]
      %v774 = vld [vmem:[%s7 + $0x58] sm:$0xf]
      %v775 = vld [vmem:[%s7 + $0x5c] sm:$0xf]
      %v776 = vld [vmem:[%s7 + $0x60] sm:$0xf]
      %v777 = vld [vmem:[%s7 + $0x64] sm:$0xf]
      %v778 = vld [vmem:[%s7 + $0x68] sm:$0xf]
      %v779 = vld [vmem:[%s7 + $0x6c] sm:$0xf]
      %v780 = vld [vmem:[%s7 + $0x70] sm:$0xf]
      %v781 = vld [vmem:[%s7 + $0x74] sm:$0xf]
      %v782 = vld [vmem:[%s7 + $0x78] sm:$0xf]
      %v783 = vld [vmem:[%s7 + $0x7c] sm:$0xf]
      %v785 = vlaneseq
      %v786 = vshrl.u32 %v785, 7
      %v787 = vsub.s32 0, %v786
      %v788 = vrot.slane %v749, %v787
      %v822 = vunpack.c.l.b16 %v752
      %v823 = vunpack.c.l.b16 %v753
      %v824 = vunpack.c.l.b16 %v754
      %v825 = vunpack.c.l.b16 %v755
      %v826 = vunpack.c.l.b16 %v756
      %v827 = vunpack.c.l.b16 %v757
      %v828 = vunpack.c.l.b16 %v758
      %v829 = vunpack.c.l.b16 %v759
      %v830 = vunpack.c.l.b16 %v760
      %v831 = vunpack.c.l.b16 %v761
      %v832 = vunpack.c.l.b16 %v762
      %v833 = vunpack.c.l.b16 %v763
      %v834 = vunpack.c.l.b16 %v764
      %v835 = vunpack.c.l.b16 %v765
      %v836 = vunpack.c.l.b16 %v766
      %v837 = vunpack.c.l.b16 %v767
      %v838 = vunpack.c.l.b16 %v768
      %v839 = vunpack.c.l.b16 %v769
      %v840 = vunpack.c.l.b16 %v770
      %v841 = vunpack.c.l.b16 %v771
      %v842 = vunpack.c.l.b16 %v772
      %v843 = vunpack.c.l.b16 %v773
      %v844 = vunpack.c.l.b16 %v774
      %v845 = vunpack.c.l.b16 %v775
      %v846 = vunpack.c.l.b16 %v776
      %v847 = vunpack.c.l.b16 %v777
      %v848 = vunpack.c.l.b16 %v778
      %v849 = vunpack.c.l.b16 %v779
      %v850 = vunpack.c.l.b16 %v780
      %v851 = vunpack.c.l.b16 %v781
      %v852 = vunpack.c.l.b16 %v782
      %v853 = vunpack.c.l.b16 %v783
      %v854 = vpack.c.b16 %v823, %v822
      %v855 = vpack.c.b16 %v825, %v824
      %v856 = vpack.c.b16 %v827, %v826
      %v857 = vpack.c.b16 %v829, %v828
      %v858 = vpack.c.b16 %v831, %v830
      %v859 = vpack.c.b16 %v833, %v832
      %v860 = vpack.c.b16 %v835, %v834
      %v861 = vpack.c.b16 %v837, %v836
      %v862 = vpack.c.b16 %v839, %v838
      %v863 = vpack.c.b16 %v841, %v840
      %v864 = vpack.c.b16 %v843, %v842
      %v865 = vpack.c.b16 %v845, %v844
      %v866 = vpack.c.b16 %v847, %v846
      %v867 = vpack.c.b16 %v849, %v848
      %v868 = vpack.c.b16 %v851, %v850
      %v869 = vpack.c.b16 %v853, %v852
      %886 = vmatprep.subr.bf16.mxu0 0
      %887 = vmatpush1.bf16.msra.mxu0 %v854
      %888 = vmatprep.subr.bf16.mxu0 0
      %889 = vmatpush1.bf16.msra.mxu0 %v855
      %890 = vmatprep.subr.bf16.mxu0 0
      %891 = vmatpush1.bf16.msra.mxu0 %v856
      %892 = vmatprep.subr.bf16.mxu0 0
      %893 = vmatpush1.bf16.msra.mxu0 %v857
      %894 = vmatprep.subr.bf16.mxu0 0
      %895 = vmatpush1.bf16.msra.mxu0 %v858
      %896 = vmatprep.subr.bf16.mxu0 0
      %897 = vmatpush1.bf16.msra.mxu0 %v859
      %898 = vmatprep.subr.bf16.mxu0 0
      %899 = vmatpush1.bf16.msra.mxu0 %v860
      %900 = vmatprep.subr.bf16.mxu0 0
      %901 = vmatpush1.bf16.msra.mxu0 %v861
      %902 = vmatprep.subr.bf16.mxu0 0
      %903 = vmatpush1.bf16.msra.mxu0 %v862
      %904 = vmatprep.subr.bf16.mxu0 0
      %905 = vmatpush1.bf16.msra.mxu0 %v863
      %906 = vmatprep.subr.bf16.mxu0 0
      %907 = vmatpush1.bf16.msra.mxu0 %v864
      %908 = vmatprep.subr.bf16.mxu0 0
      %909 = vmatpush1.bf16.msra.mxu0 %v865
      %910 = vmatprep.subr.bf16.mxu0 0
      %911 = vmatpush1.bf16.msra.mxu0 %v866
      %912 = vmatprep.subr.bf16.mxu0 0
      %913 = vmatpush1.bf16.msra.mxu0 %v867
      %914 = vmatprep.subr.bf16.mxu0 0
      %915 = vmatpush1.bf16.msra.mxu0 %v868
      %916 = vmatprep.subr.bf16.mxu0 0
      %917 = vmatpush1.bf16.msra.mxu0 %v869
      %918 = vmatprep.mubr.bf16.mxu0 %v751
      %919 = vmatmul.mubr.bf16.gmra.mrb[0].mxu0 %v750
      %v920 = vpop.f32.mrb[0].mxu0
      %v921 = vadd.f32 %v788, %v920
      %v922 = vpop.f32.mrb[0].mxu0
      %v923 = vpop.f32.mrb[0].mxu0
      %v924 = vpop.f32.mrb[0].mxu0
      %925 = vdwg.mxu0
      %926 = vst [vmem:[%s344] sm:$0xff] %v921
      %p927 = scmp.lt.s32.totalorder %s20, 1
      %s928 = scalar_select %p927, %s20, 1
      %s929 = smul.addr %s928, 8
      %s930 = scalar_lea.vmem %s9, %s929
      // Predicated region
      $region57: #{trajsnet_forward.23} parent=55 // pred_check
        %p931 = pneg %p237
      $region58: #{trajsnet_forward.23} parent=55 // pred_check_branch
        %933 = sbr.rel (%p931) target = $region60
      $region59: #{trajsnet_forward.23} parent=55 // pred_region
        _
      $region60: #{trajsnet_forward.23} parent=55 // pred_fallthru
        _
    $region56: #{trajsnet_forward.23} parent=5 // pred_fallthru
      _
    %p934 = scmp.le.s32.totalorder 2, %s15
    // Predicated region
    $region61: #{trajsnet_forward.23} parent=5 // pred_check
      %p935 = pneg %p934
    $region62: #{trajsnet_forward.23} parent=5 // pred_check_branch
      %937 = sbr.rel (%p935) target = $region64
    $region63: #{trajsnet_forward.23} parent=5 // pred_region
      %s938 = ssub.s32 %s15, 2
      // Predicated region
      $region65: #{trajsnet_forward.23} parent=63 // pred_check
        %p939 = pneg %p243
      $region66: #{trajsnet_forward.23} parent=63 // pred_check_branch
        %941 = sbr.rel (%p939) target = $region68
      $region67: #{trajsnet_forward.23} parent=63 // pred_region
        %p942 = scmp.lt.s32.totalorder %s21, 1
        %s943 = scalar_select %p942, %s21, 1
        %s944 = smul.addr %s943, 8
        %s945 = scalar_lea.vmem %s9, %s944
      $region68: #{trajsnet_forward.23} parent=63 // pred_fallthru
        _
    $region64: #{trajsnet_forward.23} parent=5 // pred_fallthru
      _
  $region6: #{trajsnet_forward.23} parent=0 // loop_footer
    %s19 = sadd.s32 1, %s15
  $region7: #{trajsnet_forward.23} parent=0 // loop_footer_branch
    %14 = sbr.rel target = $region3
  $region8: #{trajsnet_forward.23} parent=0 // loop_exit
    _

// kernel: trajsnet_forward.27
$region0: #{trajsnet_forward.27}
  #allocation0 [shape = 'u32[]', space=smem, size = 0x4, offset = 0x4, fixed_abs, tag = 'smem constant byte address 0x4 - core index']
  #allocation1 [shape = 'u32[144,128]{1,0:T(1,128)}', space=vmem, size = 0x12000, scoped, tag = 'internal scratch']
  #allocation2 [shape = 'f32[1,1]{1,0:T(1,128)S(1)}', space=vmem, size = 0x200, scoped, tag = 'scoped memory for trajsnet_forward.27']
  %s0 = inlined_call_operand.vmem [shape: bf16[16,64], index: 0, kind: input, shape index: {}]
  %s1 = inlined_call_operand.vmem [shape: bf16[16,64], index: 1, kind: input, shape index: {}]
  %s2 = inlined_call_operand.vmem [shape: bf16[16,64], index: 2, kind: input, shape index: {}]
  %s3 = inlined_call_operand.vmem [shape: bf16[64,64], index: 3, kind: input, shape index: {}]
  %s4 = inlined_call_operand.vmem [shape: bf16[64,64], index: 4, kind: input, shape index: {}]
  %s5 = inlined_call_operand.vmem [shape: bf16[64,64], index: 5, kind: input, shape index: {}]
  %s6 = inlined_call_operand.vmem [shape: f32[1,64], index: 6, kind: input, shape index: {}]
  %s7 = inlined_call_operand.vmem [shape: bf16[64,32], index: 7, kind: input, shape index: {}]
  %s8 = inlined_call_operand.vmem [shape: f32[1,32], index: 8, kind: input, shape index: {}]
  %s9 = inlined_call_operand.vmem [shape: bf16[32,1], index: 9, kind: input, shape index: {}]
  %s10 = inlined_call_operand.<no memory space> [shape: f32[1,1], index: 10, kind: input, shape index: {}]
  %s11 = inlined_call_operand.vmem [shape: f32[16,1], index: 11, kind: output, shape index: {}]
  %s12 = sld [smem:[#allocation0]]
  $region77: #{trajsnet_forward.27} parent=0
    _
  %s14 = ssub.s32 1, %s12
  %s15 = scalar_select 0, %s14, %s12
  %v16 = vstv %s10
  %17 = vst [vmem:[#allocation2] sm:$0x1] %v16
  loop: start=0, step=1, limit=4
  $region2: #{trajsnet_forward.27} parent=0 // loop_pre_header
    _
  $region3: #{trajsnet_forward.27} parent=0 // loop_header
    %s19 = sphi 0, %s23
    %p20 = scmp.ge.s32.totalorder %s19, 4
    %s29 = sphi 0, %s31
    %s32 = sphi 0, %s29
    %s33 = sphi 0, %s32
    %s49 = sphi 0, %s33
    %s55 = sphi 0, %s57
    %s58 = sphi 0, %s55
    %s59 = sphi 0, %s58
    %s75 = sphi 0, %s59
    %s81 = sphi 0, %s83
    %s84 = sphi 0, %s81
    %s85 = sphi 0, %s84
    %s101 = sphi 0, %s85
    %s105 = sphi 0, %s105
    %s107 = sphi 0, %s105
    %s108 = sphi 0, %s107
    %s122 = sphi 0, %s108
    %s126 = sphi 0, %s126
    %s128 = sphi 0, %s126
    %s129 = sphi 0, %s128
    %s143 = sphi 0, %s129
    %s147 = sphi 0, %s147
    %s149 = sphi 0, %s147
    %s150 = sphi 0, %s149
    %s164 = sphi 0, %s150
    %s168 = sphi 0, %s168
    %s170 = sphi 0, %s168
    %s171 = sphi 0, %s170
    %s185 = sphi 0, %s171
    %s189 = sphi 0, %s189
    %s191 = sphi 0, %s189
    %s192 = sphi 0, %s191
    %s206 = sphi 0, %s192
    %s210 = sphi 0, %s210
    %s212 = sphi 0, %s210
    %s213 = sphi 0, %s212
    %s227 = sphi 0, %s213
    %s231 = sphi 0, %s231
    %s233 = sphi 0, %s231
    %s234 = sphi 0, %s233
    %s248 = sphi 0, %s234
    %s252 = sphi 0, %s252
    %s254 = sphi 0, %s252
    %s255 = sphi 0, %s254
    %s269 = sphi 0, %s255
    %s275 = sphi 0, %s277
    %s278 = sphi 0, %s275
    %s279 = sphi 0, %s278
    %s295 = sphi 0, %s279
  $region4: #{trajsnet_forward.27} parent=0 // loop_header_branch
    %22 = sbr.rel (%p20) target = $region8
  $region5: #{trajsnet_forward.27} parent=0 // loop_body
    %s24 = ssub.s32 %s19, 1
    %s25 = ssub.s32 %s19, 2
    %s26 = sadd.s32 %s19, 1
    %s27 = ssub.s32 %s19, %s26
    %p28 = scmp.eq.s32.totalorder %s27, 0
    %s30 = sadd.s32 %s29, 1
    %s31 = scalar_select %p28, %s29, %s30
    %p34 = pneg %p28
    %p35 = scmp.eq.s32.totalorder %s19, 1
    %p36 = por %p34, %p35
    %p37 = scmp.ne.s32.totalorder %s29, %s32
    %p38 = scmp.eq.s32.totalorder %s19, 0
    %p39 = por %p37, %p38
    %p40 = scmp.ne.s32.totalorder %s29, %s32
    %p41 = scmp.eq.s32.totalorder %s24, 1
    %p42 = por %p40, %p41
    %p43 = scmp.ne.s32.totalorder %s32, %s33
    %p44 = scmp.eq.s32.totalorder %s24, 0
    %p45 = por %p43, %p44
    %p46 = scmp.ne.s32.totalorder %s32, %s33
    %p47 = scmp.eq.s32.totalorder %s25, 1
    %p48 = por %p46, %p47
    %p50 = scmp.ne.s32.totalorder %s33, %s49
    %p51 = scmp.eq.s32.totalorder %s25, 0
    %p52 = por %p50, %p51
    %s53 = ssub.s32 %s19, %s26
    %p54 = scmp.eq.s32.totalorder %s53, 0
    %s56 = sadd.s32 %s55, 1
    %s57 = scalar_select %p54, %s55, %s56
    %p60 = pneg %p54
    %p61 = scmp.eq.s32.totalorder %s19, 1
    %p62 = por %p60, %p61
    %p63 = scmp.ne.s32.totalorder %s55, %s58
    %p64 = scmp.eq.s32.totalorder %s19, 0
    %p65 = por %p63, %p64
    %p66 = scmp.ne.s32.totalorder %s55, %s58
    %p67 = scmp.eq.s32.totalorder %s24, 1
    %p68 = por %p66, %p67
    %p69 = scmp.ne.s32.totalorder %s58, %s59
    %p70 = scmp.eq.s32.totalorder %s24, 0
    %p71 = por %p69, %p70
    %p72 = scmp.ne.s32.totalorder %s58, %s59
    %p73 = scmp.eq.s32.totalorder %s25, 1
    %p74 = por %p72, %p73
    %p76 = scmp.ne.s32.totalorder %s59, %s75
    %p77 = scmp.eq.s32.totalorder %s25, 0
    %p78 = por %p76, %p77
    %s79 = ssub.s32 %s19, %s26
    %p80 = scmp.eq.s32.totalorder %s79, 0
    %s82 = sadd.s32 %s81, 1
    %s83 = scalar_select %p80, %s81, %s82
    %p86 = pneg %p80
    %p87 = scmp.eq.s32.totalorder %s19, 1
    %p88 = por %p86, %p87
    %p89 = scmp.ne.s32.totalorder %s81, %s84
    %p90 = scmp.eq.s32.totalorder %s19, 0
    %p91 = por %p89, %p90
    %p92 = scmp.ne.s32.totalorder %s81, %s84
    %p93 = scmp.eq.s32.totalorder %s24, 1
    %p94 = por %p92, %p93
    %p95 = scmp.ne.s32.totalorder %s84, %s85
    %p96 = scmp.eq.s32.totalorder %s24, 0
    %p97 = por %p95, %p96
    %p98 = scmp.ne.s32.totalorder %s84, %s85
    %p99 = scmp.eq.s32.totalorder %s25, 1
    %p100 = por %p98, %p99
    %p102 = scmp.ne.s32.totalorder %s85, %s101
    %p103 = scmp.eq.s32.totalorder %s25, 0
    %p104 = por %p102, %p103
    %s106 = sadd.s32 %s105, 1
    %p109 = scmp.eq.s32.totalorder %s19, 1
    %p110 = scmp.ne.s32.totalorder %s105, %s107
    %p111 = scmp.eq.s32.totalorder %s19, 0
    %p112 = por %p110, %p111
    %p113 = scmp.ne.s32.totalorder %s105, %s107
    %p114 = scmp.eq.s32.totalorder %s24, 1
    %p115 = por %p113, %p114
    %p116 = scmp.ne.s32.totalorder %s107, %s108
    %p117 = scmp.eq.s32.totalorder %s24, 0
    %p118 = por %p116, %p117
    %p119 = scmp.ne.s32.totalorder %s107, %s108
    %p120 = scmp.eq.s32.totalorder %s25, 1
    %p121 = por %p119, %p120
    %p123 = scmp.ne.s32.totalorder %s108, %s122
    %p124 = scmp.eq.s32.totalorder %s25, 0
    %p125 = por %p123, %p124
    %s127 = sadd.s32 %s126, 1
    %p130 = scmp.eq.s32.totalorder %s19, 1
    %p131 = scmp.ne.s32.totalorder %s126, %s128
    %p132 = scmp.eq.s32.totalorder %s19, 0
    %p133 = por %p131, %p132
    %p134 = scmp.ne.s32.totalorder %s126, %s128
    %p135 = scmp.eq.s32.totalorder %s24, 1
    %p136 = por %p134, %p135
    %p137 = scmp.ne.s32.totalorder %s128, %s129
    %p138 = scmp.eq.s32.totalorder %s24, 0
    %p139 = por %p137, %p138
    %p140 = scmp.ne.s32.totalorder %s128, %s129
    %p141 = scmp.eq.s32.totalorder %s25, 1
    %p142 = por %p140, %p141
    %p144 = scmp.ne.s32.totalorder %s129, %s143
    %p145 = scmp.eq.s32.totalorder %s25, 0
    %p146 = por %p144, %p145
    %s148 = sadd.s32 %s147, 1
    %p151 = scmp.eq.s32.totalorder %s19, 1
    %p152 = scmp.ne.s32.totalorder %s147, %s149
    %p153 = scmp.eq.s32.totalorder %s19, 0
    %p154 = por %p152, %p153
    %p155 = scmp.ne.s32.totalorder %s147, %s149
    %p156 = scmp.eq.s32.totalorder %s24, 1
    %p157 = por %p155, %p156
    %p158 = scmp.ne.s32.totalorder %s149, %s150
    %p159 = scmp.eq.s32.totalorder %s24, 0
    %p160 = por %p158, %p159
    %p161 = scmp.ne.s32.totalorder %s149, %s150
    %p162 = scmp.eq.s32.totalorder %s25, 1
    %p163 = por %p161, %p162
    %p165 = scmp.ne.s32.totalorder %s150, %s164
    %p166 = scmp.eq.s32.totalorder %s25, 0
    %p167 = por %p165, %p166
    %s169 = sadd.s32 %s168, 1
    %p172 = scmp.eq.s32.totalorder %s19, 1
    %p173 = scmp.ne.s32.totalorder %s168, %s170
    %p174 = scmp.eq.s32.totalorder %s19, 0
    %p175 = por %p173, %p174
    %p176 = scmp.ne.s32.totalorder %s168, %s170
    %p177 = scmp.eq.s32.totalorder %s24, 1
    %p178 = por %p176, %p177
    %p179 = scmp.ne.s32.totalorder %s170, %s171
    %p180 = scmp.eq.s32.totalorder %s24, 0
    %p181 = por %p179, %p180
    %p182 = scmp.ne.s32.totalorder %s170, %s171
    %p183 = scmp.eq.s32.totalorder %s25, 1
    %p184 = por %p182, %p183
    %p186 = scmp.ne.s32.totalorder %s171, %s185
    %p187 = scmp.eq.s32.totalorder %s25, 0
    %p188 = por %p186, %p187
    %s190 = sadd.s32 %s189, 1
    %p193 = scmp.eq.s32.totalorder %s19, 1
    %p194 = scmp.ne.s32.totalorder %s189, %s191
    %p195 = scmp.eq.s32.totalorder %s19, 0
    %p196 = por %p194, %p195
    %p197 = scmp.ne.s32.totalorder %s189, %s191
    %p198 = scmp.eq.s32.totalorder %s24, 1
    %p199 = por %p197, %p198
    %p200 = scmp.ne.s32.totalorder %s191, %s192
    %p201 = scmp.eq.s32.totalorder %s24, 0
    %p202 = por %p200, %p201
    %p203 = scmp.ne.s32.totalorder %s191, %s192
    %p204 = scmp.eq.s32.totalorder %s25, 1
    %p205 = por %p203, %p204
    %p207 = scmp.ne.s32.totalorder %s192, %s206
    %p208 = scmp.eq.s32.totalorder %s25, 0
    %p209 = por %p207, %p208
    %s211 = sadd.s32 %s210, 1
    %p214 = scmp.eq.s32.totalorder %s19, 1
    %p215 = scmp.ne.s32.totalorder %s210, %s212
    %p216 = scmp.eq.s32.totalorder %s19, 0
    %p217 = por %p215, %p216
    %p218 = scmp.ne.s32.totalorder %s210, %s212
    %p219 = scmp.eq.s32.totalorder %s24, 1
    %p220 = por %p218, %p219
    %p221 = scmp.ne.s32.totalorder %s212, %s213
    %p222 = scmp.eq.s32.totalorder %s24, 0
    %p223 = por %p221, %p222
    %p224 = scmp.ne.s32.totalorder %s212, %s213
    %p225 = scmp.eq.s32.totalorder %s25, 1
    %p226 = por %p224, %p225
    %p228 = scmp.ne.s32.totalorder %s213, %s227
    %p229 = scmp.eq.s32.totalorder %s25, 0
    %p230 = por %p228, %p229
    %s232 = sadd.s32 %s231, 1
    %p235 = scmp.eq.s32.totalorder %s19, 1
    %p236 = scmp.ne.s32.totalorder %s231, %s233
    %p237 = scmp.eq.s32.totalorder %s19, 0
    %p238 = por %p236, %p237
    %p239 = scmp.ne.s32.totalorder %s231, %s233
    %p240 = scmp.eq.s32.totalorder %s24, 1
    %p241 = por %p239, %p240
    %p242 = scmp.ne.s32.totalorder %s233, %s234
    %p243 = scmp.eq.s32.totalorder %s24, 0
    %p244 = por %p242, %p243
    %p245 = scmp.ne.s32.totalorder %s233, %s234
    %p246 = scmp.eq.s32.totalorder %s25, 1
    %p247 = por %p245, %p246
    %p249 = scmp.ne.s32.totalorder %s234, %s248
    %p250 = scmp.eq.s32.totalorder %s25, 0
    %p251 = por %p249, %p250
    %s253 = sadd.s32 %s252, 1
    %p256 = scmp.eq.s32.totalorder %s19, 1
    %p257 = scmp.ne.s32.totalorder %s252, %s254
    %p258 = scmp.eq.s32.totalorder %s19, 0
    %p259 = por %p257, %p258
    %p260 = scmp.ne.s32.totalorder %s252, %s254
    %p261 = scmp.eq.s32.totalorder %s24, 1
    %p262 = por %p260, %p261
    %p263 = scmp.ne.s32.totalorder %s254, %s255
    %p264 = scmp.eq.s32.totalorder %s24, 0
    %p265 = por %p263, %p264
    %p266 = scmp.ne.s32.totalorder %s254, %s255
    %p267 = scmp.eq.s32.totalorder %s25, 1
    %p268 = por %p266, %p267
    %p270 = scmp.ne.s32.totalorder %s255, %s269
    %p271 = scmp.eq.s32.totalorder %s25, 0
    %p272 = por %p270, %p271
    %s273 = ssub.s32 %s19, %s26
    %p274 = scmp.eq.s32.totalorder %s273, 0
    %s276 = sadd.s32 %s275, 1
    %s277 = scalar_select %p274, %s275, %s276
    %p280 = pneg %p274
    %p281 = scmp.eq.s32.totalorder %s19, 1
    %p282 = por %p280, %p281
    %p283 = scmp.ne.s32.totalorder %s275, %s278
    %p284 = scmp.eq.s32.totalorder %s19, 0
    %p285 = por %p283, %p284
    %p286 = scmp.ne.s32.totalorder %s275, %s278
    %p287 = scmp.eq.s32.totalorder %s24, 1
    %p288 = por %p286, %p287
    %p289 = scmp.ne.s32.totalorder %s278, %s279
    %p290 = scmp.eq.s32.totalorder %s24, 0
    %p291 = por %p289, %p290
    %p292 = scmp.ne.s32.totalorder %s278, %s279
    %p293 = scmp.eq.s32.totalorder %s25, 1
    %p294 = por %p292, %p293
    %p296 = scmp.ne.s32.totalorder %s279, %s295
    %p297 = scmp.eq.s32.totalorder %s25, 0
    %p298 = por %p296, %p297
    %p299 = scmp.le.s32.totalorder 1, %s19
    %p300 = scmp.lt.s32.totalorder %s19, 3
    %p301 = pnand %p299, %p300
    %p302 = pneg %p301
    // Predicated region
    $region9: #{trajsnet_forward.27} parent=5 // pred_check
      _
    $region10: #{trajsnet_forward.27} parent=5 // pred_check_branch
      %304 = sbr.rel (%p301) target = $region12
    $region11: #{trajsnet_forward.27} parent=5 // pred_region
      %s305 = ssub.s32 %s19, 1
      // Predicated region
      $region13: #{trajsnet_forward.27} parent=11 // pred_check
        %p306 = pneg %p118
      $region14: #{trajsnet_forward.27} parent=11 // pred_check_branch
        %308 = sbr.rel (%p306) target = $region16
      $region15: #{trajsnet_forward.27} parent=11 // pred_region
        _
      $region16: #{trajsnet_forward.27} parent=11 // pred_fallthru
        _
      // Predicated region
      $region17: #{trajsnet_forward.27} parent=11 // pred_check
        %p309 = pneg %p139
      $region18: #{trajsnet_forward.27} parent=11 // pred_check_branch
        %311 = sbr.rel (%p309) target = $region20
      $region19: #{trajsnet_forward.27} parent=11 // pred_region
        _
      $region20: #{trajsnet_forward.27} parent=11 // pred_fallthru
        _
      // Predicated region
      $region21: #{trajsnet_forward.27} parent=11 // pred_check
        %p312 = pneg %p160
      $region22: #{trajsnet_forward.27} parent=11 // pred_check_branch
        %314 = sbr.rel (%p312) target = $region24
      $region23: #{trajsnet_forward.27} parent=11 // pred_region
        _
      $region24: #{trajsnet_forward.27} parent=11 // pred_fallthru
        _
      // Predicated region
      $region25: #{trajsnet_forward.27} parent=11 // pred_check
        %p315 = pneg %p181
      $region26: #{trajsnet_forward.27} parent=11 // pred_check_branch
        %317 = sbr.rel (%p315) target = $region28
      $region27: #{trajsnet_forward.27} parent=11 // pred_region
        _
      $region28: #{trajsnet_forward.27} parent=11 // pred_fallthru
        _
      // Predicated region
      $region29: #{trajsnet_forward.27} parent=11 // pred_check
        %p318 = pneg %p202
      $region30: #{trajsnet_forward.27} parent=11 // pred_check_branch
        %320 = sbr.rel (%p318) target = $region32
      $region31: #{trajsnet_forward.27} parent=11 // pred_region
        _
      $region32: #{trajsnet_forward.27} parent=11 // pred_fallthru
        _
      // Predicated region
      $region33: #{trajsnet_forward.27} parent=11 // pred_check
        %p321 = pneg %p223
      $region34: #{trajsnet_forward.27} parent=11 // pred_check_branch
        %323 = sbr.rel (%p321) target = $region36
      $region35: #{trajsnet_forward.27} parent=11 // pred_region
        _
      $region36: #{trajsnet_forward.27} parent=11 // pred_fallthru
        _
      // Predicated region
      $region37: #{trajsnet_forward.27} parent=11 // pred_check
        %p324 = pneg %p244
      $region38: #{trajsnet_forward.27} parent=11 // pred_check_branch
        %326 = sbr.rel (%p324) target = $region40
      $region39: #{trajsnet_forward.27} parent=11 // pred_region
        _
      $region40: #{trajsnet_forward.27} parent=11 // pred_fallthru
        _
      // Predicated region
      $region41: #{trajsnet_forward.27} parent=11 // pred_check
        %p327 = pneg %p265
      $region42: #{trajsnet_forward.27} parent=11 // pred_check_branch
        %329 = sbr.rel (%p327) target = $region44
      $region43: #{trajsnet_forward.27} parent=11 // pred_region
        _
      $region44: #{trajsnet_forward.27} parent=11 // pred_fallthru
        _
    $region12: #{trajsnet_forward.27} parent=5 // pred_fallthru
      _
    %p330 = scmp.lt.s32.totalorder %s19, 2
    // Predicated region
    $region45: #{trajsnet_forward.27} parent=5 // pred_check
      %p331 = pneg %p330
    $region46: #{trajsnet_forward.27} parent=5 // pred_check_branch
      %333 = sbr.rel (%p331) target = $region48
    $region47: #{trajsnet_forward.27} parent=5 // pred_region
      // Predicated region
      $region49: #{trajsnet_forward.27} parent=47 // pred_check
        %p334 = pneg %p39
      $region50: #{trajsnet_forward.27} parent=47 // pred_check_branch
        %336 = sbr.rel (%p334) target = $region52
      $region51: #{trajsnet_forward.27} parent=47 // pred_region
        %p337 = scmp.lt.s32.totalorder %s19, 1
        %s338 = scalar_select %p337, %s19, 1
        %s339 = smul.addr %s338, 4
        %s340 = scalar_lea.vmem %s0, %s339
      $region52: #{trajsnet_forward.27} parent=47 // pred_fallthru
        _
      // Predicated region
      $region53: #{trajsnet_forward.27} parent=47 // pred_check
        %p341 = pneg %p65
      $region54: #{trajsnet_forward.27} parent=47 // pred_check_branch
        %343 = sbr.rel (%p341) target = $region56
      $region55: #{trajsnet_forward.27} parent=47 // pred_region
        %p344 = scmp.lt.s32.totalorder %s19, 1
        %s345 = scalar_select %p344, %s19, 1
        %s346 = smul.addr %s345, 4
        %s347 = scalar_lea.vmem %s1, %s346
      $region56: #{trajsnet_forward.27} parent=47 // pred_fallthru
        _
      // Predicated region
      $region57: #{trajsnet_forward.27} parent=47 // pred_check
        %p348 = pneg %p91
      $region58: #{trajsnet_forward.27} parent=47 // pred_check_branch
        %350 = sbr.rel (%p348) target = $region60
      $region59: #{trajsnet_forward.27} parent=47 // pred_region
        %p351 = scmp.lt.s32.totalorder %s19, 1
        %s352 = scalar_select %p351, %s19, 1
        %s353 = smul.addr %s352, 4
        %s354 = scalar_lea.vmem %s2, %s353
      $region60: #{trajsnet_forward.27} parent=47 // pred_fallthru
        _
    $region48: #{trajsnet_forward.27} parent=5 // pred_fallthru
      _
    %p355 = scmp.le.s32.totalorder 1, %s19
    %p356 = scmp.lt.s32.totalorder %s19, 3
    %p357 = pnand %p355, %p356
    %p358 = pneg %p357
    // Predicated region
    $region61: #{trajsnet_forward.27} parent=5 // pred_check
      _
    $region62: #{trajsnet_forward.27} parent=5 // pred_check_branch
      %360 = sbr.rel (%p357) target = $region64
    $region63: #{trajsnet_forward.27} parent=5 // pred_region
      %s361 = ssub.s32 %s19, 1
      %p362 = scmp.lt.s32.totalorder %s24, 1
      %s363 = scalar_select %p362, %s24, 1
      %s364 = smul.addr %s363, 4
      %s365 = scalar_lea.vmem %s0, %s364
      %p366 = pneg %p45
      %p367 = pneg %p42
      %p368 = scmp.lt.s32.totalorder %s24, 1
      %s369 = scalar_select %p368, %s24, 1
      %s370 = smul.addr %s369, 4
      %s371 = scalar_lea.vmem %s1, %s370
      %p372 = pneg %p71
      %p373 = pneg %p68
      %p374 = scmp.lt.s32.totalorder %s24, 1
      %s375 = scalar_select %p374, %s24, 1
      %s376 = smul.addr %s375, 4
      %s377 = scalar_lea.vmem %s2, %s376
      %p378 = pneg %p97
      %p379 = pneg %p94
      %p380 = pneg %p118
      %p381 = pneg %p115
      %p382 = pneg %p139
      %p383 = pneg %p136
      %p384 = pneg %p160
      %p385 = pneg %p157
      %p386 = pneg %p181
      %p387 = pneg %p178
      %p388 = pneg %p202
      %p389 = pneg %p199
      %p390 = pneg %p223
      %p391 = pneg %p220
      %p392 = pneg %p244
      %p393 = pneg %p241
      %p394 = pneg %p265
      %p395 = pneg %p262
      %p396 = pneg %p291
      %p397 = pneg %p288
      %p398 = scmp.lt.s32.totalorder %s24, 1
      %s399 = scalar_select %p398, %s24, 1
      %s400 = smul.addr %s399, 8
      %s401 = scalar_lea.vmem %s11, %s400
      %p402 = scmp.lt.s32.totalorder %s24, 1
      %s403 = scalar_select %p402, %s24, 1
      %s404 = smul.addr %s403, 4
      %s405 = scalar_lea.vmem %s0, %s404
      %p406 = scmp.lt.s32.totalorder %s24, 1
      %s407 = scalar_select %p406, %s24, 1
      %s408 = smul.addr %s407, 4
      %s409 = scalar_lea.vmem %s1, %s408
      %p410 = scmp.lt.s32.totalorder %s24, 1
      %s411 = scalar_select %p410, %s24, 1
      %s412 = smul.addr %s411, 4
      %s413 = scalar_lea.vmem %s2, %s412
      %p414 = scmp.lt.s32.totalorder %s24, 1
      %s415 = scalar_select %p414, %s24, 1
      %s416 = smul.addr %s415, 8
      %s417 = scalar_lea.vmem %s11, %s416
      %v419 = vld [vmem:[%s405] sm:$0xf]
      %v420 = vld [vmem:[%s409] sm:$0xf]
      %v421 = vld [vmem:[%s413] sm:$0xf]
      %v422 = vld [vmem:[%s6] sm:$0x1]
      %v423 = vld [vmem:[%s3] sm:$0xf]
      %v424 = vld [vmem:[%s3 + $0x4] sm:$0xf]
      %v425 = vld [vmem:[%s3 + $0x8] sm:$0xf]
      %v426 = vld [vmem:[%s3 + $0xc] sm:$0xf]
      %v427 = vld [vmem:[%s3 + $0x10] sm:$0xf]
      %v428 = vld [vmem:[%s3 + $0x14] sm:$0xf]
      %v429 = vld [vmem:[%s3 + $0x18] sm:$0xf]
      %v430 = vld [vmem:[%s3 + $0x1c] sm:$0xf]
      %v439 = vunpack.c.l.b16 %v423
      %v440 = vunpack.c.l.b16 %v424
      %v441 = vunpack.c.l.b16 %v425
      %v442 = vunpack.c.l.b16 %v426
      %v443 = vunpack.c.l.b16 %v427
      %v444 = vunpack.c.l.b16 %v428
      %v445 = vunpack.c.l.b16 %v429
      %v446 = vunpack.c.l.b16 %v430
      %v447 = vpack.c.b16 %v440, %v439
      %v448 = vpack.c.b16 %v442, %v441
      %v449 = vpack.c.b16 %v444, %v443
      %v450 = vpack.c.b16 %v446, %v445
      %vm455 = vcmask 523264
      %v457 = vsel %vm455, %v419, 0
      %459 = vmatprep.subr.bf16.mxu0 0
      %460 = vmatpush1.bf16.msra.mxu0 %v447
      %461 = vmatprep.subr.bf16.mxu0 0
      %462 = vmatpush1.bf16.msra.mxu0 %v448
      %463 = vmatprep.subr.bf16.mxu0 0
      %464 = vmatpush1.bf16.msra.mxu0 %v449
      %465 = vmatprep.subr.bf16.mxu0 0
      %466 = vmatpush1.bf16.msra.mxu0 %v450
      %467 = vmatprep.subr.bf16.mxu0 0
      %468 = vmatpush1.bf16.msra.mxu0 0
      %469 = vmatprep.subr.bf16.mxu0 0
      %470 = vmatpush1.bf16.msra.mxu0 0
      %471 = vmatprep.subr.bf16.mxu0 0
      %472 = vmatpush1.bf16.msra.mxu0 0
      %473 = vmatprep.subr.bf16.mxu0 0
      %474 = vmatpush1.bf16.msra.mxu0 0
      %475 = vmatprep.subr.bf16.mxu0 0
      %476 = vmatpush1.bf16.msra.mxu0 0
      %477 = vmatprep.subr.bf16.mxu0 0
      %478 = vmatpush1.bf16.msra.mxu0 0
      %479 = vmatprep.subr.bf16.mxu0 0
      %480 = vmatpush1.bf16.msra.mxu0 0
      %481 = vmatprep.subr.bf16.mxu0 0
      %482 = vmatpush1.bf16.msra.mxu0 0
      %483 = vmatprep.subr.bf16.mxu0 0
      %484 = vmatpush1.bf16.msra.mxu0 0
      %485 = vmatprep.subr.bf16.mxu0 0
      %486 = vmatpush1.bf16.msra.mxu0 0
      %487 = vmatprep.subr.bf16.mxu0 0
      %488 = vmatpush1.bf16.msra.mxu0 0
      %489 = vmatprep.subr.bf16.mxu0 0
      %490 = vmatpush1.bf16.msra.mxu0 0
      %491 = vmatprep.mubr.bf16.mxu0 0
      %492 = vmatmul.mubr.bf16.gmra.mrb[0].mxu0 %v457
      %v493 = vpop.f32.mrb[0].mxu0
      %v494 = vadd.f32 0.0, %v493
      %v495 = vpop.f32.mrb[0].mxu0
      %v496 = vpop.f32.mrb[0].mxu0
      %v497 = vpop.f32.mrb[0].mxu0
      %498 = vdwg.mxu0
      %v500 = vlaneseq
      %v501 = vshrl.u32 %v500, 7
      %v502 = vsub.s32 0, %v501
      %v503 = vrot.slane %v422, %v502
      %v505 = vadd.f32 %v503, %v494
      %v506 = vld [vmem:[%s4] sm:$0xf]
      %v507 = vld [vmem:[%s4 + $0x4] sm:$0xf]
      %v508 = vld [vmem:[%s4 + $0x8] sm:$0xf]
      %v509 = vld [vmem:[%s4 + $0xc] sm:$0xf]
      %v510 = vld [vmem:[%s4 + $0x10] sm:$0xf]
      %v511 = vld [vmem:[%s4 + $0x14] sm:$0xf]
      %v512 = vld [vmem:[%s4 + $0x18] sm:$0xf]
      %v513 = vld [vmem:[%s4 + $0x1c] sm:$0xf]
      %v522 = vunpack.c.l.b16 %v506
      %v523 = vunpack.c.l.b16 %v507
      %v524 = vunpack.c.l.b16 %v508
      %v525 = vunpack.c.l.b16 %v509
      %v526 = vunpack.c.l.b16 %v510
      %v527 = vunpack.c.l.b16 %v511
      %v528 = vunpack.c.l.b16 %v512
      %v529 = vunpack.c.l.b16 %v513
      %v530 = vpack.c.b16 %v523, %v522
      %v531 = vpack.c.b16 %v525, %v524
      %v532 = vpack.c.b16 %v527, %v526
      %v533 = vpack.c.b16 %v529, %v528
      %v539 = vsel %vm455, %v420, 0
      %541 = vmatprep.subr.bf16.mxu0 0
      %542 = vmatpush1.bf16.msra.mxu0 %v530
      %543 = vmatprep.subr.bf16.mxu0 0
      %544 = vmatpush1.bf16.msra.mxu0 %v531
      %545 = vmatprep.subr.bf16.mxu0 0
      %546 = vmatpush1.bf16.msra.mxu0 %v532
      %547 = vmatprep.subr.bf16.mxu0 0
      %548 = vmatpush1.bf16.msra.mxu0 %v533
      %549 = vmatprep.subr.bf16.mxu0 0
      %550 = vmatpush1.bf16.msra.mxu0 0
      %551 = vmatprep.subr.bf16.mxu0 0
      %552 = vmatpush1.bf16.msra.mxu0 0
      %553 = vmatprep.subr.bf16.mxu0 0
      %554 = vmatpush1.bf16.msra.mxu0 0
      %555 = vmatprep.subr.bf16.mxu0 0
      %556 = vmatpush1.bf16.msra.mxu0 0
      %557 = vmatprep.subr.bf16.mxu0 0
      %558 = vmatpush1.bf16.msra.mxu0 0
      %559 = vmatprep.subr.bf16.mxu0 0
      %560 = vmatpush1.bf16.msra.mxu0 0
      %561 = vmatprep.subr.bf16.mxu0 0
      %562 = vmatpush1.bf16.msra.mxu0 0
      %563 = vmatprep.subr.bf16.mxu0 0
      %564 = vmatpush1.bf16.msra.mxu0 0
      %565 = vmatprep.subr.bf16.mxu0 0
      %566 = vmatpush1.bf16.msra.mxu0 0
      %567 = vmatprep.subr.bf16.mxu0 0
      %568 = vmatpush1.bf16.msra.mxu0 0
      %569 = vmatprep.subr.bf16.mxu0 0
      %570 = vmatpush1.bf16.msra.mxu0 0
      %571 = vmatprep.subr.bf16.mxu0 0
      %572 = vmatpush1.bf16.msra.mxu0 0
      %573 = vmatprep.mubr.bf16.mxu0 0
      %574 = vmatmul.mubr.bf16.gmra.mrb[0].mxu0 %v539
      %v575 = vpop.f32.mrb[0].mxu0
      %v576 = vadd.f32 0.0, %v575
      %v577 = vpop.f32.mrb[0].mxu0
      %v578 = vpop.f32.mrb[0].mxu0
      %v579 = vpop.f32.mrb[0].mxu0
      %580 = vdwg.mxu0
      %v581 = vadd.f32 %v505, %v576
      %v582 = vld [vmem:[%s5] sm:$0xf]
      %v583 = vld [vmem:[%s5 + $0x4] sm:$0xf]
      %v584 = vld [vmem:[%s5 + $0x8] sm:$0xf]
      %v585 = vld [vmem:[%s5 + $0xc] sm:$0xf]
      %v586 = vld [vmem:[%s5 + $0x10] sm:$0xf]
      %v587 = vld [vmem:[%s5 + $0x14] sm:$0xf]
      %v588 = vld [vmem:[%s5 + $0x18] sm:$0xf]
      %v589 = vld [vmem:[%s5 + $0x1c] sm:$0xf]
      %v598 = vunpack.c.l.b16 %v582
      %v599 = vunpack.c.l.b16 %v583
      %v600 = vunpack.c.l.b16 %v584
      %v601 = vunpack.c.l.b16 %v585
      %v602 = vunpack.c.l.b16 %v586
      %v603 = vunpack.c.l.b16 %v587
      %v604 = vunpack.c.l.b16 %v588
      %v605 = vunpack.c.l.b16 %v589
      %v606 = vpack.c.b16 %v599, %v598
      %v607 = vpack.c.b16 %v601, %v600
      %v608 = vpack.c.b16 %v603, %v602
      %v609 = vpack.c.b16 %v605, %v604
      %v615 = vsel %vm455, %v421, 0
      %617 = vmatprep.subr.bf16.mxu0 0
      %618 = vmatpush1.bf16.msra.mxu0 %v606
      %619 = vmatprep.subr.bf16.mxu0 0
      %620 = vmatpush1.bf16.msra.mxu0 %v607
      %621 = vmatprep.subr.bf16.mxu0 0
      %622 = vmatpush1.bf16.msra.mxu0 %v608
      %623 = vmatprep.subr.bf16.mxu0 0
      %624 = vmatpush1.bf16.msra.mxu0 %v609
      %625 = vmatprep.subr.bf16.mxu0 0
      %626 = vmatpush1.bf16.msra.mxu0 0
      %627 = vmatprep.subr.bf16.mxu0 0
      %628 = vmatpush1.bf16.msra.mxu0 0
      %629 = vmatprep.subr.bf16.mxu0 0
      %630 = vmatpush1.bf16.msra.mxu0 0
      %631 = vmatprep.subr.bf16.mxu0 0
      %632 = vmatpush1.bf16.msra.mxu0 0
      %633 = vmatprep.subr.bf16.mxu0 0
      %634 = vmatpush1.bf16.msra.mxu0 0
      %635 = vmatprep.subr.bf16.mxu0 0
      %636 = vmatpush1.bf16.msra.mxu0 0
      %637 = vmatprep.subr.bf16.mxu0 0
      %638 = vmatpush1.bf16.msra.mxu0 0
      %639 = vmatprep.subr.bf16.mxu0 0
      %640 = vmatpush1.bf16.msra.mxu0 0
      %641 = vmatprep.subr.bf16.mxu0 0
      %642 = vmatpush1.bf16.msra.mxu0 0
      %643 = vmatprep.subr.bf16.mxu0 0
      %644 = vmatpush1.bf16.msra.mxu0 0
      %645 = vmatprep.subr.bf16.mxu0 0
      %646 = vmatpush1.bf16.msra.mxu0 0
      %647 = vmatprep.subr.bf16.mxu0 0
      %648 = vmatpush1.bf16.msra.mxu0 0
      %649 = vmatprep.mubr.bf16.mxu0 0
      %650 = vmatmul.mubr.bf16.gmra.mrb[0].mxu0 %v615
      %v651 = vpop.f32.mrb[0].mxu0
      %v652 = vadd.f32 0.0, %v651
      %v653 = vpop.f32.mrb[0].mxu0
      %v654 = vpop.f32.mrb[0].mxu0
      %v655 = vpop.f32.mrb[0].mxu0
      %656 = vdwg.mxu0
      %v657 = vadd.f32 %v581, %v652
      %vm658 = vcmp.gt.f32.partialorder %v657, 0.0
      %v659 = vmul.f32 %v657, 0.2
      %v660 = vsel %vm658, %v657, %v659
      %v661 = vld [vmem:[%s8] sm:$0x1]
      %v662 = vpack.c.bf16 %v660, %v660
      %v663 = vld [vmem:[%s7] sm:$0xf]
      %v664 = vld [vmem:[%s7 + $0x4] sm:$0xf]
      %v665 = vld [vmem:[%s7 + $0x8] sm:$0xf]
      %v666 = vld [vmem:[%s7 + $0xc] sm:$0xf]
      %v667 = vld [vmem:[%s7 + $0x10] sm:$0xf]
      %v668 = vld [vmem:[%s7 + $0x14] sm:$0xf]
      %v669 = vld [vmem:[%s7 + $0x18] sm:$0xf]
      %v670 = vld [vmem:[%s7 + $0x1c] sm:$0xf]
      %v672 = vlaneseq
      %v673 = vshrl.u32 %v672, 7
      %v674 = vsub.s32 0, %v673
      %v675 = vrot.slane %v661, %v674
      %v685 = vunpack.c.l.b16 %v663
      %v686 = vunpack.c.l.b16 %v664
      %v687 = vunpack.c.l.b16 %v665
      %v688 = vunpack.c.l.b16 %v666
      %v689 = vunpack.c.l.b16 %v667
      %v690 = vunpack.c.l.b16 %v668
      %v691 = vunpack.c.l.b16 %v669
      %v692 = vunpack.c.l.b16 %v670
      %v693 = vpack.c.b16 %v686, %v685
      %v694 = vpack.c.b16 %v688, %v687
      %v695 = vpack.c.b16 %v690, %v689
      %v696 = vpack.c.b16 %v692, %v691
      %v702 = vsel %vm455, %v662, 0
      %704 = vmatprep.subr.bf16.mxu0 0
      %705 = vmatpush1.bf16.msra.mxu0 %v693
      %706 = vmatprep.subr.bf16.mxu0 0
      %707 = vmatpush1.bf16.msra.mxu0 %v694
      %708 = vmatprep.subr.bf16.mxu0 0
      %709 = vmatpush1.bf16.msra.mxu0 %v695
      %710 = vmatprep.subr.bf16.mxu0 0
      %711 = vmatpush1.bf16.msra.mxu0 %v696
      %712 = vmatprep.subr.bf16.mxu0 0
      %713 = vmatpush1.bf16.msra.mxu0 0
      %714 = vmatprep.subr.bf16.mxu0 0
      %715 = vmatpush1.bf16.msra.mxu0 0
      %716 = vmatprep.subr.bf16.mxu0 0
      %717 = vmatpush1.bf16.msra.mxu0 0
      %718 = vmatprep.subr.bf16.mxu0 0
      %719 = vmatpush1.bf16.msra.mxu0 0
      %720 = vmatprep.subr.bf16.mxu0 0
      %721 = vmatpush1.bf16.msra.mxu0 0
      %722 = vmatprep.subr.bf16.mxu0 0
      %723 = vmatpush1.bf16.msra.mxu0 0
      %724 = vmatprep.subr.bf16.mxu0 0
      %725 = vmatpush1.bf16.msra.mxu0 0
      %726 = vmatprep.subr.bf16.mxu0 0
      %727 = vmatpush1.bf16.msra.mxu0 0
      %728 = vmatprep.subr.bf16.mxu0 0
      %729 = vmatpush1.bf16.msra.mxu0 0
      %730 = vmatprep.subr.bf16.mxu0 0
      %731 = vmatpush1.bf16.msra.mxu0 0
      %732 = vmatprep.subr.bf16.mxu0 0
      %733 = vmatpush1.bf16.msra.mxu0 0
      %734 = vmatprep.subr.bf16.mxu0 0
      %735 = vmatpush1.bf16.msra.mxu0 0
      %736 = vmatprep.mubr.bf16.mxu0 0
      %737 = vmatmul.mubr.bf16.gmra.mrb[0].mxu0 %v702
      %v738 = vpop.f32.mrb[0].mxu0
      %v739 = vadd.f32 %v675, %v738
      %v740 = vpop.f32.mrb[0].mxu0
      %v741 = vpop.f32.mrb[0].mxu0
      %v742 = vpop.f32.mrb[0].mxu0
      %743 = vdwg.mxu0
      %vm744 = vcmp.gt.f32.partialorder %v739, 0.0
      %v745 = vmul.f32 %v739, 0.2
      %v746 = vsel %vm744, %v739, %v745
      %v747 = vld [vmem:[#allocation2] sm:$0x1]
      %v748 = vpack.c.bf16 %v746, %v746
      %v749 = vld [vmem:[%s9] sm:$0xf]
      %v750 = vld [vmem:[%s9 + $0x4] sm:$0xf]
      %v751 = vld [vmem:[%s9 + $0x8] sm:$0xf]
      %v752 = vld [vmem:[%s9 + $0xc] sm:$0xf]
      %v754 = vlaneseq
      %v755 = vshrl.u32 %v754, 7
      %v756 = vsub.s32 0, %v755
      %v757 = vrot.slane %v747, %v756
      %v763 = vunpack.c.l.b16 %v749
      %v764 = vunpack.c.l.b16 %v750
      %v765 = vunpack.c.l.b16 %v751
      %v766 = vunpack.c.l.b16 %v752
      %v767 = vpack.c.b16 %v764, %v763
      %v768 = vpack.c.b16 %v766, %v765
      %vm771 = vcmask 261120
      %v773 = vsel %vm771, %v748, 0
      %775 = vmatprep.subr.bf16.mxu0 0
      %776 = vmatpush1.bf16.msra.mxu0 %v767
      %777 = vmatprep.subr.bf16.mxu0 0
      %778 = vmatpush1.bf16.msra.mxu0 %v768
      %779 = vmatprep.subr.bf16.mxu0 0
      %780 = vmatpush1.bf16.msra.mxu0 0
      %781 = vmatprep.subr.bf16.mxu0 0
      %782 = vmatpush1.bf16.msra.mxu0 0
      %783 = vmatprep.subr.bf16.mxu0 0
      %784 = vmatpush1.bf16.msra.mxu0 0
      %785 = vmatprep.subr.bf16.mxu0 0
      %786 = vmatpush1.bf16.msra.mxu0 0
      %787 = vmatprep.subr.bf16.mxu0 0
      %788 = vmatpush1.bf16.msra.mxu0 0
      %789 = vmatprep.subr.bf16.mxu0 0
      %790 = vmatpush1.bf16.msra.mxu0 0
      %791 = vmatprep.subr.bf16.mxu0 0
      %792 = vmatpush1.bf16.msra.mxu0 0
      %793 = vmatprep.subr.bf16.mxu0 0
      %794 = vmatpush1.bf16.msra.mxu0 0
      %795 = vmatprep.subr.bf16.mxu0 0
      %796 = vmatpush1.bf16.msra.mxu0 0
      %797 = vmatprep.subr.bf16.mxu0 0
      %798 = vmatpush1.bf16.msra.mxu0 0
      %799 = vmatprep.subr.bf16.mxu0 0
      %800 = vmatpush1.bf16.msra.mxu0 0
      %801 = vmatprep.subr.bf16.mxu0 0
      %802 = vmatpush1.bf16.msra.mxu0 0
      %803 = vmatprep.subr.bf16.mxu0 0
      %804 = vmatpush1.bf16.msra.mxu0 0
      %805 = vmatprep.subr.bf16.mxu0 0
      %806 = vmatpush1.bf16.msra.mxu0 0
      %807 = vmatprep.mubr.bf16.mxu0 0
      %808 = vmatmul.mubr.bf16.gmra.mrb[0].mxu0 %v773
      %v809 = vpop.f32.mrb[0].mxu0
      %v810 = vadd.f32 %v757, %v809
      %v811 = vpop.f32.mrb[0].mxu0
      %v812 = vpop.f32.mrb[0].mxu0
      %v813 = vpop.f32.mrb[0].mxu0
      %814 = vdwg.mxu0
      %vm815 = vcmask 7168
      %816 = vst.msk [vmem:[%s417] sm:$0xff] %vm815, %v810
      %p817 = scmp.lt.s32.totalorder %s24, 1
      %s818 = scalar_select %p817, %s24, 1
      %s819 = smul.addr %s818, 8
      %s820 = scalar_lea.vmem %s11, %s819
      // Predicated region
      $region65: #{trajsnet_forward.27} parent=63 // pred_check
        %p821 = pneg %p288
      $region66: #{trajsnet_forward.27} parent=63 // pred_check_branch
        %823 = sbr.rel (%p821) target = $region68
      $region67: #{trajsnet_forward.27} parent=63 // pred_region
        _
      $region68: #{trajsnet_forward.27} parent=63 // pred_fallthru
        _
    $region64: #{trajsnet_forward.27} parent=5 // pred_fallthru
      _
    %p824 = scmp.le.s32.totalorder 2, %s19
    // Predicated region
    $region69: #{trajsnet_forward.27} parent=5 // pred_check
      %p825 = pneg %p824
    $region70: #{trajsnet_forward.27} parent=5 // pred_check_branch
      %827 = sbr.rel (%p825) target = $region72
    $region71: #{trajsnet_forward.27} parent=5 // pred_region
      %s828 = ssub.s32 %s19, 2
      // Predicated region
      $region73: #{trajsnet_forward.27} parent=71 // pred_check
        %p829 = pneg %p294
      $region74: #{trajsnet_forward.27} parent=71 // pred_check_branch
        %831 = sbr.rel (%p829) target = $region76
      $region75: #{trajsnet_forward.27} parent=71 // pred_region
        %p832 = scmp.lt.s32.totalorder %s25, 1
        %s833 = scalar_select %p832, %s25, 1
        %s834 = smul.addr %s833, 8
        %s835 = scalar_lea.vmem %s11, %s834
      $region76: #{trajsnet_forward.27} parent=71 // pred_fallthru
        _
    $region72: #{trajsnet_forward.27} parent=5 // pred_fallthru
      _
  $region6: #{trajsnet_forward.27} parent=0 // loop_footer
    %s23 = sadd.s32 1, %s19
  $region7: #{trajsnet_forward.27} parent=0 // loop_footer_branch
    %18 = sbr.rel target = $region3
  $region8: #{trajsnet_forward.27} parent=0 // loop_exit
    _

// kernel: trajsnet_forward.25
$region0: #{trajsnet_forward.25}
  #allocation0 [shape = 'u32[]', space=smem, size = 0x4, offset = 0x4, fixed_abs, tag = 'smem constant byte address 0x4 - core index']
  #allocation1 [shape = 'u32[144,128]{1,0:T(1,128)}', space=vmem, size = 0x12000, scoped, tag = 'internal scratch']
  %s0 = inlined_call_operand.vmem [shape: bf16[32,1], index: 0, kind: input, shape index: {}]
  %s1 = inlined_call_operand.vmem [shape: bf16[32,128], index: 1, kind: input, shape index: {}]
  %s2 = inlined_call_operand.vmem [shape: bf16[32,128], index: 2, kind: input, shape index: {}]
  %s3 = inlined_call_operand.vmem [shape: bf16[1,128], index: 3, kind: input, shape index: {}]
  %s4 = inlined_call_operand.vmem [shape: bf16[128,128], index: 4, kind: input, shape index: {}]
  %s5 = inlined_call_operand.vmem [shape: bf16[128,128], index: 5, kind: input, shape index: {}]
  %s6 = inlined_call_operand.vmem [shape: f32[1,128], index: 6, kind: input, shape index: {}]
  %s7 = inlined_call_operand.vmem [shape: bf16[128,64], index: 7, kind: input, shape index: {}]
  %s8 = inlined_call_operand.vmem [shape: f32[1,64], index: 8, kind: input, shape index: {}]
  %s9 = inlined_call_operand.vmem [shape: bf16[64,32], index: 9, kind: input, shape index: {}]
  %s10 = inlined_call_operand.vmem [shape: f32[1,32], index: 10, kind: input, shape index: {}]
  %s11 = inlined_call_operand.vmem [shape: bf16[32,64], index: 11, kind: input, shape index: {}]
  %s12 = inlined_call_operand.vmem [shape: f32[1,64], index: 12, kind: input, shape index: {}]
  %s13 = inlined_call_operand.vmem [shape: f32[32,64], index: 13, kind: output, shape index: {}]
  %s14 = sld [smem:[#allocation0]]
  $region85: #{trajsnet_forward.25} parent=0
    _
  %s16 = ssub.s32 1, %s14
  %s17 = scalar_select 0, %s16, %s14
  loop: start=0, step=1, limit=4
  $region2: #{trajsnet_forward.25} parent=0 // loop_pre_header
    _
  $region3: #{trajsnet_forward.25} parent=0 // loop_header
    %s19 = sphi 0, %s23
    %p20 = scmp.ge.s32.totalorder %s19, 4
    %s29 = sphi 0, %s31
    %s32 = sphi 0, %s29
    %s33 = sphi 0, %s32
    %s49 = sphi 0, %s33
    %s55 = sphi 0, %s57
    %s58 = sphi 0, %s55
    %s59 = sphi 0, %s58
    %s75 = sphi 0, %s59
    %s81 = sphi 0, %s83
    %s84 = sphi 0, %s81
    %s85 = sphi 0, %s84
    %s101 = sphi 0, %s85
    %s105 = sphi 0, %s105
    %s107 = sphi 0, %s105
    %s108 = sphi 0, %s107
    %s122 = sphi 0, %s108
    %s126 = sphi 0, %s126
    %s128 = sphi 0, %s126
    %s129 = sphi 0, %s128
    %s143 = sphi 0, %s129
    %s147 = sphi 0, %s147
    %s149 = sphi 0, %s147
    %s150 = sphi 0, %s149
    %s164 = sphi 0, %s150
    %s168 = sphi 0, %s168
    %s170 = sphi 0, %s168
    %s171 = sphi 0, %s170
    %s185 = sphi 0, %s171
    %s189 = sphi 0, %s189
    %s191 = sphi 0, %s189
    %s192 = sphi 0, %s191
    %s206 = sphi 0, %s192
    %s210 = sphi 0, %s210
    %s212 = sphi 0, %s210
    %s213 = sphi 0, %s212
    %s227 = sphi 0, %s213
    %s231 = sphi 0, %s231
    %s233 = sphi 0, %s231
    %s234 = sphi 0, %s233
    %s248 = sphi 0, %s234
    %s252 = sphi 0, %s252
    %s254 = sphi 0, %s252
    %s255 = sphi 0, %s254
    %s269 = sphi 0, %s255
    %s273 = sphi 0, %s273
    %s275 = sphi 0, %s273
    %s276 = sphi 0, %s275
    %s290 = sphi 0, %s276
    %s294 = sphi 0, %s294
    %s296 = sphi 0, %s294
    %s297 = sphi 0, %s296
    %s311 = sphi 0, %s297
    %s317 = sphi 0, %s319
    %s320 = sphi 0, %s317
    %s321 = sphi 0, %s320
    %s337 = sphi 0, %s321
  $region4: #{trajsnet_forward.25} parent=0 // loop_header_branch
    %22 = sbr.rel (%p20) target = $region8
  $region5: #{trajsnet_forward.25} parent=0 // loop_body
    %s24 = ssub.s32 %s19, 1
    %s25 = ssub.s32 %s19, 2
    %s26 = sadd.s32 %s19, 1
    %s27 = ssub.s32 %s19, %s26
    %p28 = scmp.eq.s32.totalorder %s27, 0
    %s30 = sadd.s32 %s29, 1
    %s31 = scalar_select %p28, %s29, %s30
    %p34 = pneg %p28
    %p35 = scmp.eq.s32.totalorder %s19, 1
    %p36 = por %p34, %p35
    %p37 = scmp.ne.s32.totalorder %s29, %s32
    %p38 = scmp.eq.s32.totalorder %s19, 0
    %p39 = por %p37, %p38
    %p40 = scmp.ne.s32.totalorder %s29, %s32
    %p41 = scmp.eq.s32.totalorder %s24, 1
    %p42 = por %p40, %p41
    %p43 = scmp.ne.s32.totalorder %s32, %s33
    %p44 = scmp.eq.s32.totalorder %s24, 0
    %p45 = por %p43, %p44
    %p46 = scmp.ne.s32.totalorder %s32, %s33
    %p47 = scmp.eq.s32.totalorder %s25, 1
    %p48 = por %p46, %p47
    %p50 = scmp.ne.s32.totalorder %s33, %s49
    %p51 = scmp.eq.s32.totalorder %s25, 0
    %p52 = por %p50, %p51
    %s53 = ssub.s32 %s19, %s26
    %p54 = scmp.eq.s32.totalorder %s53, 0
    %s56 = sadd.s32 %s55, 1
    %s57 = scalar_select %p54, %s55, %s56
    %p60 = pneg %p54
    %p61 = scmp.eq.s32.totalorder %s19, 1
    %p62 = por %p60, %p61
    %p63 = scmp.ne.s32.totalorder %s55, %s58
    %p64 = scmp.eq.s32.totalorder %s19, 0
    %p65 = por %p63, %p64
    %p66 = scmp.ne.s32.totalorder %s55, %s58
    %p67 = scmp.eq.s32.totalorder %s24, 1
    %p68 = por %p66, %p67
    %p69 = scmp.ne.s32.totalorder %s58, %s59
    %p70 = scmp.eq.s32.totalorder %s24, 0
    %p71 = por %p69, %p70
    %p72 = scmp.ne.s32.totalorder %s58, %s59
    %p73 = scmp.eq.s32.totalorder %s25, 1
    %p74 = por %p72, %p73
    %p76 = scmp.ne.s32.totalorder %s59, %s75
    %p77 = scmp.eq.s32.totalorder %s25, 0
    %p78 = por %p76, %p77
    %s79 = ssub.s32 %s19, %s26
    %p80 = scmp.eq.s32.totalorder %s79, 0
    %s82 = sadd.s32 %s81, 1
    %s83 = scalar_select %p80, %s81, %s82
    %p86 = pneg %p80
    %p87 = scmp.eq.s32.totalorder %s19, 1
    %p88 = por %p86, %p87
    %p89 = scmp.ne.s32.totalorder %s81, %s84
    %p90 = scmp.eq.s32.totalorder %s19, 0
    %p91 = por %p89, %p90
    %p92 = scmp.ne.s32.totalorder %s81, %s84
    %p93 = scmp.eq.s32.totalorder %s24, 1
    %p94 = por %p92, %p93
    %p95 = scmp.ne.s32.totalorder %s84, %s85
    %p96 = scmp.eq.s32.totalorder %s24, 0
    %p97 = por %p95, %p96
    %p98 = scmp.ne.s32.totalorder %s84, %s85
    %p99 = scmp.eq.s32.totalorder %s25, 1
    %p100 = por %p98, %p99
    %p102 = scmp.ne.s32.totalorder %s85, %s101
    %p103 = scmp.eq.s32.totalorder %s25, 0
    %p104 = por %p102, %p103
    %s106 = sadd.s32 %s105, 1
    %p109 = scmp.eq.s32.totalorder %s19, 1
    %p110 = scmp.ne.s32.totalorder %s105, %s107
    %p111 = scmp.eq.s32.totalorder %s19, 0
    %p112 = por %p110, %p111
    %p113 = scmp.ne.s32.totalorder %s105, %s107
    %p114 = scmp.eq.s32.totalorder %s24, 1
    %p115 = por %p113, %p114
    %p116 = scmp.ne.s32.totalorder %s107, %s108
    %p117 = scmp.eq.s32.totalorder %s24, 0
    %p118 = por %p116, %p117
    %p119 = scmp.ne.s32.totalorder %s107, %s108
    %p120 = scmp.eq.s32.totalorder %s25, 1
    %p121 = por %p119, %p120
    %p123 = scmp.ne.s32.totalorder %s108, %s122
    %p124 = scmp.eq.s32.totalorder %s25, 0
    %p125 = por %p123, %p124
    %s127 = sadd.s32 %s126, 1
    %p130 = scmp.eq.s32.totalorder %s19, 1
    %p131 = scmp.ne.s32.totalorder %s126, %s128
    %p132 = scmp.eq.s32.totalorder %s19, 0
    %p133 = por %p131, %p132
    %p134 = scmp.ne.s32.totalorder %s126, %s128
    %p135 = scmp.eq.s32.totalorder %s24, 1
    %p136 = por %p134, %p135
    %p137 = scmp.ne.s32.totalorder %s128, %s129
    %p138 = scmp.eq.s32.totalorder %s24, 0
    %p139 = por %p137, %p138
    %p140 = scmp.ne.s32.totalorder %s128, %s129
    %p141 = scmp.eq.s32.totalorder %s25, 1
    %p142 = por %p140, %p141
    %p144 = scmp.ne.s32.totalorder %s129, %s143
    %p145 = scmp.eq.s32.totalorder %s25, 0
    %p146 = por %p144, %p145
    %s148 = sadd.s32 %s147, 1
    %p151 = scmp.eq.s32.totalorder %s19, 1
    %p152 = scmp.ne.s32.totalorder %s147, %s149
    %p153 = scmp.eq.s32.totalorder %s19, 0
    %p154 = por %p152, %p153
    %p155 = scmp.ne.s32.totalorder %s147, %s149
    %p156 = scmp.eq.s32.totalorder %s24, 1
    %p157 = por %p155, %p156
    %p158 = scmp.ne.s32.totalorder %s149, %s150
    %p159 = scmp.eq.s32.totalorder %s24, 0
    %p160 = por %p158, %p159
    %p161 = scmp.ne.s32.totalorder %s149, %s150
    %p162 = scmp.eq.s32.totalorder %s25, 1
    %p163 = por %p161, %p162
    %p165 = scmp.ne.s32.totalorder %s150, %s164
    %p166 = scmp.eq.s32.totalorder %s25, 0
    %p167 = por %p165, %p166
    %s169 = sadd.s32 %s168, 1
    %p172 = scmp.eq.s32.totalorder %s19, 1
    %p173 = scmp.ne.s32.totalorder %s168, %s170
    %p174 = scmp.eq.s32.totalorder %s19, 0
    %p175 = por %p173, %p174
    %p176 = scmp.ne.s32.totalorder %s168, %s170
    %p177 = scmp.eq.s32.totalorder %s24, 1
    %p178 = por %p176, %p177
    %p179 = scmp.ne.s32.totalorder %s170, %s171
    %p180 = scmp.eq.s32.totalorder %s24, 0
    %p181 = por %p179, %p180
    %p182 = scmp.ne.s32.totalorder %s170, %s171
    %p183 = scmp.eq.s32.totalorder %s25, 1
    %p184 = por %p182, %p183
    %p186 = scmp.ne.s32.totalorder %s171, %s185
    %p187 = scmp.eq.s32.totalorder %s25, 0
    %p188 = por %p186, %p187
    %s190 = sadd.s32 %s189, 1
    %p193 = scmp.eq.s32.totalorder %s19, 1
    %p194 = scmp.ne.s32.totalorder %s189, %s191
    %p195 = scmp.eq.s32.totalorder %s19, 0
    %p196 = por %p194, %p195
    %p197 = scmp.ne.s32.totalorder %s189, %s191
    %p198 = scmp.eq.s32.totalorder %s24, 1
    %p199 = por %p197, %p198
    %p200 = scmp.ne.s32.totalorder %s191, %s192
    %p201 = scmp.eq.s32.totalorder %s24, 0
    %p202 = por %p200, %p201
    %p203 = scmp.ne.s32.totalorder %s191, %s192
    %p204 = scmp.eq.s32.totalorder %s25, 1
    %p205 = por %p203, %p204
    %p207 = scmp.ne.s32.totalorder %s192, %s206
    %p208 = scmp.eq.s32.totalorder %s25, 0
    %p209 = por %p207, %p208
    %s211 = sadd.s32 %s210, 1
    %p214 = scmp.eq.s32.totalorder %s19, 1
    %p215 = scmp.ne.s32.totalorder %s210, %s212
    %p216 = scmp.eq.s32.totalorder %s19, 0
    %p217 = por %p215, %p216
    %p218 = scmp.ne.s32.totalorder %s210, %s212
    %p219 = scmp.eq.s32.totalorder %s24, 1
    %p220 = por %p218, %p219
    %p221 = scmp.ne.s32.totalorder %s212, %s213
    %p222 = scmp.eq.s32.totalorder %s24, 0
    %p223 = por %p221, %p222
    %p224 = scmp.ne.s32.totalorder %s212, %s213
    %p225 = scmp.eq.s32.totalorder %s25, 1
    %p226 = por %p224, %p225
    %p228 = scmp.ne.s32.totalorder %s213, %s227
    %p229 = scmp.eq.s32.totalorder %s25, 0
    %p230 = por %p228, %p229
    %s232 = sadd.s32 %s231, 1
    %p235 = scmp.eq.s32.totalorder %s19, 1
    %p236 = scmp.ne.s32.totalorder %s231, %s233
    %p237 = scmp.eq.s32.totalorder %s19, 0
    %p238 = por %p236, %p237
    %p239 = scmp.ne.s32.totalorder %s231, %s233
    %p240 = scmp.eq.s32.totalorder %s24, 1
    %p241 = por %p239, %p240
    %p242 = scmp.ne.s32.totalorder %s233, %s234
    %p243 = scmp.eq.s32.totalorder %s24, 0
    %p244 = por %p242, %p243
    %p245 = scmp.ne.s32.totalorder %s233, %s234
    %p246 = scmp.eq.s32.totalorder %s25, 1
    %p247 = por %p245, %p246
    %p249 = scmp.ne.s32.totalorder %s234, %s248
    %p250 = scmp.eq.s32.totalorder %s25, 0
    %p251 = por %p249, %p250
    %s253 = sadd.s32 %s252, 1
    %p256 = scmp.eq.s32.totalorder %s19, 1
    %p257 = scmp.ne.s32.totalorder %s252, %s254
    %p258 = scmp.eq.s32.totalorder %s19, 0
    %p259 = por %p257, %p258
    %p260 = scmp.ne.s32.totalorder %s252, %s254
    %p261 = scmp.eq.s32.totalorder %s24, 1
    %p262 = por %p260, %p261
    %p263 = scmp.ne.s32.totalorder %s254, %s255
    %p264 = scmp.eq.s32.totalorder %s24, 0
    %p265 = por %p263, %p264
    %p266 = scmp.ne.s32.totalorder %s254, %s255
    %p267 = scmp.eq.s32.totalorder %s25, 1
    %p268 = por %p266, %p267
    %p270 = scmp.ne.s32.totalorder %s255, %s269
    %p271 = scmp.eq.s32.totalorder %s25, 0
    %p272 = por %p270, %p271
    %s274 = sadd.s32 %s273, 1
    %p277 = scmp.eq.s32.totalorder %s19, 1
    %p278 = scmp.ne.s32.totalorder %s273, %s275
    %p279 = scmp.eq.s32.totalorder %s19, 0
    %p280 = por %p278, %p279
    %p281 = scmp.ne.s32.totalorder %s273, %s275
    %p282 = scmp.eq.s32.totalorder %s24, 1
    %p283 = por %p281, %p282
    %p284 = scmp.ne.s32.totalorder %s275, %s276
    %p285 = scmp.eq.s32.totalorder %s24, 0
    %p286 = por %p284, %p285
    %p287 = scmp.ne.s32.totalorder %s275, %s276
    %p288 = scmp.eq.s32.totalorder %s25, 1
    %p289 = por %p287, %p288
    %p291 = scmp.ne.s32.totalorder %s276, %s290
    %p292 = scmp.eq.s32.totalorder %s25, 0
    %p293 = por %p291, %p292
    %s295 = sadd.s32 %s294, 1
    %p298 = scmp.eq.s32.totalorder %s19, 1
    %p299 = scmp.ne.s32.totalorder %s294, %s296
    %p300 = scmp.eq.s32.totalorder %s19, 0
    %p301 = por %p299, %p300
    %p302 = scmp.ne.s32.totalorder %s294, %s296
    %p303 = scmp.eq.s32.totalorder %s24, 1
    %p304 = por %p302, %p303
    %p305 = scmp.ne.s32.totalorder %s296, %s297
    %p306 = scmp.eq.s32.totalorder %s24, 0
    %p307 = por %p305, %p306
    %p308 = scmp.ne.s32.totalorder %s296, %s297
    %p309 = scmp.eq.s32.totalorder %s25, 1
    %p310 = por %p308, %p309
    %p312 = scmp.ne.s32.totalorder %s297, %s311
    %p313 = scmp.eq.s32.totalorder %s25, 0
    %p314 = por %p312, %p313
    %s315 = ssub.s32 %s19, %s26
    %p316 = scmp.eq.s32.totalorder %s315, 0
    %s318 = sadd.s32 %s317, 1
    %s319 = scalar_select %p316, %s317, %s318
    %p322 = pneg %p316
    %p323 = scmp.eq.s32.totalorder %s19, 1
    %p324 = por %p322, %p323
    %p325 = scmp.ne.s32.totalorder %s317, %s320
    %p326 = scmp.eq.s32.totalorder %s19, 0
    %p327 = por %p325, %p326
    %p328 = scmp.ne.s32.totalorder %s317, %s320
    %p329 = scmp.eq.s32.totalorder %s24, 1
    %p330 = por %p328, %p329
    %p331 = scmp.ne.s32.totalorder %s320, %s321
    %p332 = scmp.eq.s32.totalorder %s24, 0
    %p333 = por %p331, %p332
    %p334 = scmp.ne.s32.totalorder %s320, %s321
    %p335 = scmp.eq.s32.totalorder %s25, 1
    %p336 = por %p334, %p335
    %p338 = scmp.ne.s32.totalorder %s321, %s337
    %p339 = scmp.eq.s32.totalorder %s25, 0
    %p340 = por %p338, %p339
    %p341 = scmp.le.s32.totalorder 1, %s19
    %p342 = scmp.lt.s32.totalorder %s19, 3
    %p343 = pnand %p341, %p342
    %p344 = pneg %p343
    // Predicated region
    $region9: #{trajsnet_forward.25} parent=5 // pred_check
      _
    $region10: #{trajsnet_forward.25} parent=5 // pred_check_branch
      %346 = sbr.rel (%p343) target = $region12
    $region11: #{trajsnet_forward.25} parent=5 // pred_region
      %s347 = ssub.s32 %s19, 1
      // Predicated region
      $region13: #{trajsnet_forward.25} parent=11 // pred_check
        %p348 = pneg %p118
      $region14: #{trajsnet_forward.25} parent=11 // pred_check_branch
        %350 = sbr.rel (%p348) target = $region16
      $region15: #{trajsnet_forward.25} parent=11 // pred_region
        _
      $region16: #{trajsnet_forward.25} parent=11 // pred_fallthru
        _
      // Predicated region
      $region17: #{trajsnet_forward.25} parent=11 // pred_check
        %p351 = pneg %p139
      $region18: #{trajsnet_forward.25} parent=11 // pred_check_branch
        %353 = sbr.rel (%p351) target = $region20
      $region19: #{trajsnet_forward.25} parent=11 // pred_region
        _
      $region20: #{trajsnet_forward.25} parent=11 // pred_fallthru
        _
      // Predicated region
      $region21: #{trajsnet_forward.25} parent=11 // pred_check
        %p354 = pneg %p160
      $region22: #{trajsnet_forward.25} parent=11 // pred_check_branch
        %356 = sbr.rel (%p354) target = $region24
      $region23: #{trajsnet_forward.25} parent=11 // pred_region
        _
      $region24: #{trajsnet_forward.25} parent=11 // pred_fallthru
        _
      // Predicated region
      $region25: #{trajsnet_forward.25} parent=11 // pred_check
        %p357 = pneg %p181
      $region26: #{trajsnet_forward.25} parent=11 // pred_check_branch
        %359 = sbr.rel (%p357) target = $region28
      $region27: #{trajsnet_forward.25} parent=11 // pred_region
        _
      $region28: #{trajsnet_forward.25} parent=11 // pred_fallthru
        _
      // Predicated region
      $region29: #{trajsnet_forward.25} parent=11 // pred_check
        %p360 = pneg %p202
      $region30: #{trajsnet_forward.25} parent=11 // pred_check_branch
        %362 = sbr.rel (%p360) target = $region32
      $region31: #{trajsnet_forward.25} parent=11 // pred_region
        _
      $region32: #{trajsnet_forward.25} parent=11 // pred_fallthru
        _
      // Predicated region
      $region33: #{trajsnet_forward.25} parent=11 // pred_check
        %p363 = pneg %p223
      $region34: #{trajsnet_forward.25} parent=11 // pred_check_branch
        %365 = sbr.rel (%p363) target = $region36
      $region35: #{trajsnet_forward.25} parent=11 // pred_region
        _
      $region36: #{trajsnet_forward.25} parent=11 // pred_fallthru
        _
      // Predicated region
      $region37: #{trajsnet_forward.25} parent=11 // pred_check
        %p366 = pneg %p244
      $region38: #{trajsnet_forward.25} parent=11 // pred_check_branch
        %368 = sbr.rel (%p366) target = $region40
      $region39: #{trajsnet_forward.25} parent=11 // pred_region
        _
      $region40: #{trajsnet_forward.25} parent=11 // pred_fallthru
        _
      // Predicated region
      $region41: #{trajsnet_forward.25} parent=11 // pred_check
        %p369 = pneg %p265
      $region42: #{trajsnet_forward.25} parent=11 // pred_check_branch
        %371 = sbr.rel (%p369) target = $region44
      $region43: #{trajsnet_forward.25} parent=11 // pred_region
        _
      $region44: #{trajsnet_forward.25} parent=11 // pred_fallthru
        _
      // Predicated region
      $region45: #{trajsnet_forward.25} parent=11 // pred_check
        %p372 = pneg %p286
      $region46: #{trajsnet_forward.25} parent=11 // pred_check_branch
        %374 = sbr.rel (%p372) target = $region48
      $region47: #{trajsnet_forward.25} parent=11 // pred_region
        _
      $region48: #{trajsnet_forward.25} parent=11 // pred_fallthru
        _
      // Predicated region
      $region49: #{trajsnet_forward.25} parent=11 // pred_check
        %p375 = pneg %p307
      $region50: #{trajsnet_forward.25} parent=11 // pred_check_branch
        %377 = sbr.rel (%p375) target = $region52
      $region51: #{trajsnet_forward.25} parent=11 // pred_region
        _
      $region52: #{trajsnet_forward.25} parent=11 // pred_fallthru
        _
    $region12: #{trajsnet_forward.25} parent=5 // pred_fallthru
      _
    %p378 = scmp.lt.s32.totalorder %s19, 2
    // Predicated region
    $region53: #{trajsnet_forward.25} parent=5 // pred_check
      %p379 = pneg %p378
    $region54: #{trajsnet_forward.25} parent=5 // pred_check_branch
      %381 = sbr.rel (%p379) target = $region56
    $region55: #{trajsnet_forward.25} parent=5 // pred_region
      // Predicated region
      $region57: #{trajsnet_forward.25} parent=55 // pred_check
        %p382 = pneg %p39
      $region58: #{trajsnet_forward.25} parent=55 // pred_check_branch
        %384 = sbr.rel (%p382) target = $region60
      $region59: #{trajsnet_forward.25} parent=55 // pred_region
        %s385 = smul.u32 2, %s19
        %p386 = scmp.lt.s32.totalorder %s385, 3
        %s387 = scalar_select %p386, %s385, 3
        %s388 = smul.addr %s387, 4
        %s389 = scalar_lea.vmem %s0, %s388
        %s390 = smul.u32 2, %s19
      $region60: #{trajsnet_forward.25} parent=55 // pred_fallthru
        _
      // Predicated region
      $region61: #{trajsnet_forward.25} parent=55 // pred_check
        %p391 = pneg %p65
      $region62: #{trajsnet_forward.25} parent=55 // pred_check_branch
        %393 = sbr.rel (%p391) target = $region64
      $region63: #{trajsnet_forward.25} parent=55 // pred_region
        %s394 = smul.u32 2, %s19
        %p395 = scmp.lt.s32.totalorder %s394, 3
        %s396 = scalar_select %p395, %s394, 3
        %s397 = smul.addr %s396, 4
        %s398 = scalar_lea.vmem %s1, %s397
        %s399 = smul.u32 2, %s19
      $region64: #{trajsnet_forward.25} parent=55 // pred_fallthru
        _
      // Predicated region
      $region65: #{trajsnet_forward.25} parent=55 // pred_check
        %p400 = pneg %p91
      $region66: #{trajsnet_forward.25} parent=55 // pred_check_branch
        %402 = sbr.rel (%p400) target = $region68
      $region67: #{trajsnet_forward.25} parent=55 // pred_region
        %s403 = smul.u32 2, %s19
        %p404 = scmp.lt.s32.totalorder %s403, 3
        %s405 = scalar_select %p404, %s403, 3
        %s406 = smul.addr %s405, 4
        %s407 = scalar_lea.vmem %s2, %s406
        %s408 = smul.u32 2, %s19
      $region68: #{trajsnet_forward.25} parent=55 // pred_fallthru
        _
    $region56: #{trajsnet_forward.25} parent=5 // pred_fallthru
      _
    %p409 = scmp.le.s32.totalorder 1, %s19
    %p410 = scmp.lt.s32.totalorder %s19, 3
    %p411 = pnand %p409, %p410
    %p412 = pneg %p411
    // Predicated region
    $region69: #{trajsnet_forward.25} parent=5 // pred_check
      _
    $region70: #{trajsnet_forward.25} parent=5 // pred_check_branch
      %414 = sbr.rel (%p411) target = $region72
    $region71: #{trajsnet_forward.25} parent=5 // pred_region
      %s415 = ssub.s32 %s19, 1
      %s416 = smul.u32 2, %s24
      %p417 = scmp.lt.s32.totalorder %s416, 3
      %s418 = scalar_select %p417, %s416, 3
      %s419 = smul.addr %s418, 4
      %s420 = scalar_lea.vmem %s0, %s419
      %p421 = pneg %p45
      %p422 = pneg %p42
      %s423 = smul.u32 2, %s24
      %p424 = scmp.lt.s32.totalorder %s423, 3
      %s425 = scalar_select %p424, %s423, 3
      %s426 = smul.addr %s425, 4
      %s427 = scalar_lea.vmem %s1, %s426
      %p428 = pneg %p71
      %p429 = pneg %p68
      %s430 = smul.u32 2, %s24
      %p431 = scmp.lt.s32.totalorder %s430, 3
      %s432 = scalar_select %p431, %s430, 3
      %s433 = smul.addr %s432, 4
      %s434 = scalar_lea.vmem %s2, %s433
      %p435 = pneg %p97
      %p436 = pneg %p94
      %p437 = pneg %p118
      %p438 = pneg %p115
      %p439 = pneg %p139
      %p440 = pneg %p136
      %p441 = pneg %p160
      %p442 = pneg %p157
      %p443 = pneg %p181
      %p444 = pneg %p178
      %p445 = pneg %p202
      %p446 = pneg %p199
      %p447 = pneg %p223
      %p448 = pneg %p220
      %p449 = pneg %p244
      %p450 = pneg %p241
      %p451 = pneg %p265
      %p452 = pneg %p262
      %p453 = pneg %p286
      %p454 = pneg %p283
      %p455 = pneg %p307
      %p456 = pneg %p304
      %p457 = pneg %p333
      %p458 = pneg %p330
      %s459 = smul.u32 2, %s24
      %p460 = scmp.lt.s32.totalorder %s459, 3
      %s461 = scalar_select %p460, %s459, 3
      %s462 = smul.addr %s461, 8
      %s463 = scalar_lea.vmem %s13, %s462
      %s464 = smul.u32 2, %s24
      %p465 = scmp.lt.s32.totalorder %s464, 3
      %s466 = scalar_select %p465, %s464, 3
      %s467 = smul.addr %s466, 4
      %s468 = scalar_lea.vmem %s0, %s467
      %s469 = smul.u32 2, %s24
      %s470 = smul.u32 2, %s24
      %p471 = scmp.lt.s32.totalorder %s470, 3
      %s472 = scalar_select %p471, %s470, 3
      %s473 = smul.addr %s472, 4
      %s474 = scalar_lea.vmem %s1, %s473
      %s475 = smul.u32 2, %s24
      %s476 = smul.u32 2, %s24
      %p477 = scmp.lt.s32.totalorder %s476, 3
      %s478 = scalar_select %p477, %s476, 3
      %s479 = smul.addr %s478, 4
      %s480 = scalar_lea.vmem %s2, %s479
      %s481 = smul.u32 2, %s24
      %s482 = smul.u32 2, %s24
      %p483 = scmp.lt.s32.totalorder %s482, 3
      %s484 = scalar_select %p483, %s482, 3
      %s485 = smul.addr %s484, 8
      %s486 = scalar_lea.vmem %s13, %s485
      %s487 = smul.u32 2, %s24
      %v489 = vld [vmem:[%s468] sm:$0xf]
      %v490 = vld [vmem:[%s468 + $0x4] sm:$0xf]
      %v491 = vld [vmem:[%s474] sm:$0xf]
      %v492 = vld [vmem:[%s474 + $0x4] sm:$0xf]
      %v493 = vld [vmem:[%s480] sm:$0xf]
      %v494 = vld [vmem:[%s480 + $0x4] sm:$0xf]
      %v495 = vld [vmem:[%s6] sm:$0x1]
      %v496 = vunpack.c.l.bf16 %v489
      %v497 = vunpack.c.l.bf16 %v490
      %v498 = vld [vmem:[%s3] sm:$0x1]
      %v499 = vunpack.c.l.bf16 %v498
      %501 = vset.pattern.permute.xlu0 0
      %502 = vperm.xlu0 %501, %v496
      %v503 = vpop.permute.xlu0 %502
      %506 = vset.pattern.permute.xlu0 0
      %507 = vperm.xlu0 %506, %v497
      %v508 = vpop.permute.xlu0 %507
      %v510 = vlaneseq
      %v511 = vshrl.u32 %v510, 7
      %v512 = vsub.s32 0, %v511
      %v513 = vrot.slane %v499, %v512
      %v514 = vmul.f32 %v503, %v513
      %v515 = vmul.f32 %v508, %v513
      %v517 = vlaneseq
      %v518 = vshrl.u32 %v517, 7
      %v519 = vsub.s32 0, %v518
      %v520 = vrot.slane %v495, %v519
      %v522 = vadd.f32 %v520, %v514
      %v523 = vadd.f32 %v520, %v515
      %v524 = vld [vmem:[%s4] sm:$0xf]
      %v525 = vld [vmem:[%s4 + $0x4] sm:$0xf]
      %v526 = vld [vmem:[%s4 + $0x8] sm:$0xf]
      %v527 = vld [vmem:[%s4 + $0xc] sm:$0xf]
      %v528 = vld [vmem:[%s4 + $0x10] sm:$0xf]
      %v529 = vld [vmem:[%s4 + $0x14] sm:$0xf]
      %v530 = vld [vmem:[%s4 + $0x18] sm:$0xf]
      %v531 = vld [vmem:[%s4 + $0x1c] sm:$0xf]
      %v532 = vld [vmem:[%s4 + $0x20] sm:$0xf]
      %v533 = vld [vmem:[%s4 + $0x24] sm:$0xf]
      %v534 = vld [vmem:[%s4 + $0x28] sm:$0xf]
      %v535 = vld [vmem:[%s4 + $0x2c] sm:$0xf]
      %v536 = vld [vmem:[%s4 + $0x30] sm:$0xf]
      %v537 = vld [vmem:[%s4 + $0x34] sm:$0xf]
      %v538 = vld [vmem:[%s4 + $0x38] sm:$0xf]
      %v539 = vld [vmem:[%s4 + $0x3c] sm:$0xf]
      %v542 = vunpack.c.l.b16 %v491
      %v543 = vunpack.c.l.b16 %v492
      %v544 = vpack.c.b16 %v543, %v542
      %v562 = vunpack.c.l.b16 %v524
      %v563 = vunpack.c.l.b16 %v525
      %v564 = vunpack.c.l.b16 %v526
      %v565 = vunpack.c.l.b16 %v527
      %v566 = vunpack.c.l.b16 %v528
      %v567 = vunpack.c.l.b16 %v529
      %v568 = vunpack.c.l.b16 %v530
      %v569 = vunpack.c.l.b16 %v531
      %v570 = vunpack.c.l.b16 %v532
      %v571 = vunpack.c.l.b16 %v533
      %v572 = vunpack.c.l.b16 %v534
      %v573 = vunpack.c.l.b16 %v535
      %v574 = vunpack.c.l.b16 %v536
      %v575 = vunpack.c.l.b16 %v537
      %v576 = vunpack.c.l.b16 %v538
      %v577 = vunpack.c.l.b16 %v539
      %v578 = vpack.c.b16 %v563, %v562
      %v579 = vpack.c.b16 %v565, %v564
      %v580 = vpack.c.b16 %v567, %v566
      %v581 = vpack.c.b16 %v569, %v568
      %v582 = vpack.c.b16 %v571, %v570
      %v583 = vpack.c.b16 %v573, %v572
      %v584 = vpack.c.b16 %v575, %v574
      %v585 = vpack.c.b16 %v577, %v576
      %594 = vmatprep.subr.bf16.mxu0 0
      %595 = vmatpush1.bf16.msra.mxu0 %v578
      %596 = vmatprep.subr.bf16.mxu0 0
      %597 = vmatpush1.bf16.msra.mxu0 %v579
      %598 = vmatprep.subr.bf16.mxu0 0
      %599 = vmatpush1.bf16.msra.mxu0 %v580
      %600 = vmatprep.subr.bf16.mxu0 0
      %601 = vmatpush1.bf16.msra.mxu0 %v581
      %602 = vmatprep.subr.bf16.mxu0 0
      %603 = vmatpush1.bf16.msra.mxu0 %v582
      %604 = vmatprep.subr.bf16.mxu0 0
      %605 = vmatpush1.bf16.msra.mxu0 %v583
      %606 = vmatprep.subr.bf16.mxu0 0
      %607 = vmatpush1.bf16.msra.mxu0 %v584
      %608 = vmatprep.subr.bf16.mxu0 0
      %609 = vmatpush1.bf16.msra.mxu0 %v585
      %610 = vmatprep.subr.bf16.mxu0 0
      %611 = vmatpush1.bf16.msra.mxu0 0
      %612 = vmatprep.subr.bf16.mxu0 0
      %613 = vmatpush1.bf16.msra.mxu0 0
      %614 = vmatprep.subr.bf16.mxu0 0
      %615 = vmatpush1.bf16.msra.mxu0 0
      %616 = vmatprep.subr.bf16.mxu0 0
      %617 = vmatpush1.bf16.msra.mxu0 0
      %618 = vmatprep.subr.bf16.mxu0 0
      %619 = vmatpush1.bf16.msra.mxu0 0
      %620 = vmatprep.subr.bf16.mxu0 0
      %621 = vmatpush1.bf16.msra.mxu0 0
      %622 = vmatprep.subr.bf16.mxu0 0
      %623 = vmatpush1.bf16.msra.mxu0 0
      %624 = vmatprep.subr.bf16.mxu0 0
      %625 = vmatpush1.bf16.msra.mxu0 0
      %626 = vmatprep.mubr.bf16.mxu0 0
      %627 = vmatmul.mubr.bf16.gmra.mrb[0].mxu0 %v544
      %v628 = vpop.f32.mrb[0].mxu0
      %v629 = vadd.f32 0.0, %v628
      %v630 = vpop.f32.mrb[0].mxu0
      %v631 = vpop.f32.mrb[0].mxu0
      %v632 = vadd.f32 0.0, %v631
      %v633 = vpop.f32.mrb[0].mxu0
      %634 = vdwg.mxu0
      %v635 = vadd.f32 %v522, %v629
      %v636 = vadd.f32 %v523, %v632
      %v637 = vld [vmem:[%s5] sm:$0xf]
      %v638 = vld [vmem:[%s5 + $0x4] sm:$0xf]
      %v639 = vld [vmem:[%s5 + $0x8] sm:$0xf]
      %v640 = vld [vmem:[%s5 + $0xc] sm:$0xf]
      %v641 = vld [vmem:[%s5 + $0x10] sm:$0xf]
      %v642 = vld [vmem:[%s5 + $0x14] sm:$0xf]
      %v643 = vld [vmem:[%s5 + $0x18] sm:$0xf]
      %v644 = vld [vmem:[%s5 + $0x1c] sm:$0xf]
      %v645 = vld [vmem:[%s5 + $0x20] sm:$0xf]
      %v646 = vld [vmem:[%s5 + $0x24] sm:$0xf]
      %v647 = vld [vmem:[%s5 + $0x28] sm:$0xf]
      %v648 = vld [vmem:[%s5 + $0x2c] sm:$0xf]
      %v649 = vld [vmem:[%s5 + $0x30] sm:$0xf]
      %v650 = vld [vmem:[%s5 + $0x34] sm:$0xf]
      %v651 = vld [vmem:[%s5 + $0x38] sm:$0xf]
      %v652 = vld [vmem:[%s5 + $0x3c] sm:$0xf]
      %v655 = vunpack.c.l.b16 %v493
      %v656 = vunpack.c.l.b16 %v494
      %v657 = vpack.c.b16 %v656, %v655
      %v675 = vunpack.c.l.b16 %v637
      %v676 = vunpack.c.l.b16 %v638
      %v677 = vunpack.c.l.b16 %v639
      %v678 = vunpack.c.l.b16 %v640
      %v679 = vunpack.c.l.b16 %v641
      %v680 = vunpack.c.l.b16 %v642
      %v681 = vunpack.c.l.b16 %v643
      %v682 = vunpack.c.l.b16 %v644
      %v683 = vunpack.c.l.b16 %v645
      %v684 = vunpack.c.l.b16 %v646
      %v685 = vunpack.c.l.b16 %v647
      %v686 = vunpack.c.l.b16 %v648
      %v687 = vunpack.c.l.b16 %v649
      %v688 = vunpack.c.l.b16 %v650
      %v689 = vunpack.c.l.b16 %v651
      %v690 = vunpack.c.l.b16 %v652
      %v691 = vpack.c.b16 %v676, %v675
      %v692 = vpack.c.b16 %v678, %v677
      %v693 = vpack.c.b16 %v680, %v679
      %v694 = vpack.c.b16 %v682, %v681
      %v695 = vpack.c.b16 %v684, %v683
      %v696 = vpack.c.b16 %v686, %v685
      %v697 = vpack.c.b16 %v688, %v687
      %v698 = vpack.c.b16 %v690, %v689
      %707 = vmatprep.subr.bf16.mxu0 0
      %708 = vmatpush1.bf16.msra.mxu0 %v691
      %709 = vmatprep.subr.bf16.mxu0 0
      %710 = vmatpush1.bf16.msra.mxu0 %v692
      %711 = vmatprep.subr.bf16.mxu0 0
      %712 = vmatpush1.bf16.msra.mxu0 %v693
      %713 = vmatprep.subr.bf16.mxu0 0
      %714 = vmatpush1.bf16.msra.mxu0 %v694
      %715 = vmatprep.subr.bf16.mxu0 0
      %716 = vmatpush1.bf16.msra.mxu0 %v695
      %717 = vmatprep.subr.bf16.mxu0 0
      %718 = vmatpush1.bf16.msra.mxu0 %v696
      %719 = vmatprep.subr.bf16.mxu0 0
      %720 = vmatpush1.bf16.msra.mxu0 %v697
      %721 = vmatprep.subr.bf16.mxu0 0
      %722 = vmatpush1.bf16.msra.mxu0 %v698
      %723 = vmatprep.subr.bf16.mxu0 0
      %724 = vmatpush1.bf16.msra.mxu0 0
      %725 = vmatprep.subr.bf16.mxu0 0
      %726 = vmatpush1.bf16.msra.mxu0 0
      %727 = vmatprep.subr.bf16.mxu0 0
      %728 = vmatpush1.bf16.msra.mxu0 0
      %729 = vmatprep.subr.bf16.mxu0 0
      %730 = vmatpush1.bf16.msra.mxu0 0
      %731 = vmatprep.subr.bf16.mxu0 0
      %732 = vmatpush1.bf16.msra.mxu0 0
      %733 = vmatprep.subr.bf16.mxu0 0
      %734 = vmatpush1.bf16.msra.mxu0 0
      %735 = vmatprep.subr.bf16.mxu0 0
      %736 = vmatpush1.bf16.msra.mxu0 0
      %737 = vmatprep.subr.bf16.mxu0 0
      %738 = vmatpush1.bf16.msra.mxu0 0
      %739 = vmatprep.mubr.bf16.mxu0 0
      %740 = vmatmul.mubr.bf16.gmra.mrb[0].mxu0 %v657
      %v741 = vpop.f32.mrb[0].mxu0
      %v742 = vadd.f32 0.0, %v741
      %v743 = vpop.f32.mrb[0].mxu0
      %v744 = vpop.f32.mrb[0].mxu0
      %v745 = vadd.f32 0.0, %v744
      %v746 = vpop.f32.mrb[0].mxu0
      %747 = vdwg.mxu0
      %v748 = vadd.f32 %v635, %v742
      %v749 = vadd.f32 %v636, %v745
      %vm750 = vcmp.gt.f32.partialorder %v748, 0.0
      %vm751 = vcmp.gt.f32.partialorder %v749, 0.0
      %v752 = vmul.f32 %v748, 0.2
      %v753 = vmul.f32 %v749, 0.2
      %v754 = vsel %vm750, %v748, %v752
      %v755 = vsel %vm751, %v749, %v753
      %v756 = vld [vmem:[%s8] sm:$0x1]
      %v757 = vpack.c.bf16 %v755, %v754
      %v758 = vld [vmem:[%s7] sm:$0xf]
      %v759 = vld [vmem:[%s7 + $0x4] sm:$0xf]
      %v760 = vld [vmem:[%s7 + $0x8] sm:$0xf]
      %v761 = vld [vmem:[%s7 + $0xc] sm:$0xf]
      %v762 = vld [vmem:[%s7 + $0x10] sm:$0xf]
      %v763 = vld [vmem:[%s7 + $0x14] sm:$0xf]
      %v764 = vld [vmem:[%s7 + $0x18] sm:$0xf]
      %v765 = vld [vmem:[%s7 + $0x1c] sm:$0xf]
      %v766 = vld [vmem:[%s7 + $0x20] sm:$0xf]
      %v767 = vld [vmem:[%s7 + $0x24] sm:$0xf]
      %v768 = vld [vmem:[%s7 + $0x28] sm:$0xf]
      %v769 = vld [vmem:[%s7 + $0x2c] sm:$0xf]
      %v770 = vld [vmem:[%s7 + $0x30] sm:$0xf]
      %v771 = vld [vmem:[%s7 + $0x34] sm:$0xf]
      %v772 = vld [vmem:[%s7 + $0x38] sm:$0xf]
      %v773 = vld [vmem:[%s7 + $0x3c] sm:$0xf]
      %v775 = vlaneseq
      %v776 = vshrl.u32 %v775, 7
      %v777 = vsub.s32 0, %v776
      %v778 = vrot.slane %v756, %v777
      %v796 = vunpack.c.l.b16 %v758
      %v797 = vunpack.c.l.b16 %v759
      %v798 = vunpack.c.l.b16 %v760
      %v799 = vunpack.c.l.b16 %v761
      %v800 = vunpack.c.l.b16 %v762
      %v801 = vunpack.c.l.b16 %v763
      %v802 = vunpack.c.l.b16 %v764
      %v803 = vunpack.c.l.b16 %v765
      %v804 = vunpack.c.l.b16 %v766
      %v805 = vunpack.c.l.b16 %v767
      %v806 = vunpack.c.l.b16 %v768
      %v807 = vunpack.c.l.b16 %v769
      %v808 = vunpack.c.l.b16 %v770
      %v809 = vunpack.c.l.b16 %v771
      %v810 = vunpack.c.l.b16 %v772
      %v811 = vunpack.c.l.b16 %v773
      %v812 = vpack.c.b16 %v797, %v796
      %v813 = vpack.c.b16 %v799, %v798
      %v814 = vpack.c.b16 %v801, %v800
      %v815 = vpack.c.b16 %v803, %v802
      %v816 = vpack.c.b16 %v805, %v804
      %v817 = vpack.c.b16 %v807, %v806
      %v818 = vpack.c.b16 %v809, %v808
      %v819 = vpack.c.b16 %v811, %v810
      %828 = vmatprep.subr.bf16.mxu0 0
      %829 = vmatpush1.bf16.msra.mxu0 %v812
      %830 = vmatprep.subr.bf16.mxu0 0
      %831 = vmatpush1.bf16.msra.mxu0 %v813
      %832 = vmatprep.subr.bf16.mxu0 0
      %833 = vmatpush1.bf16.msra.mxu0 %v814
      %834 = vmatprep.subr.bf16.mxu0 0
      %835 = vmatpush1.bf16.msra.mxu0 %v815
      %836 = vmatprep.subr.bf16.mxu0 0
      %837 = vmatpush1.bf16.msra.mxu0 %v816
      %838 = vmatprep.subr.bf16.mxu0 0
      %839 = vmatpush1.bf16.msra.mxu0 %v817
      %840 = vmatprep.subr.bf16.mxu0 0
      %841 = vmatpush1.bf16.msra.mxu0 %v818
      %842 = vmatprep.subr.bf16.mxu0 0
      %843 = vmatpush1.bf16.msra.mxu0 %v819
      %844 = vmatprep.subr.bf16.mxu0 0
      %845 = vmatpush1.bf16.msra.mxu0 0
      %846 = vmatprep.subr.bf16.mxu0 0
      %847 = vmatpush1.bf16.msra.mxu0 0
      %848 = vmatprep.subr.bf16.mxu0 0
      %849 = vmatpush1.bf16.msra.mxu0 0
      %850 = vmatprep.subr.bf16.mxu0 0
      %851 = vmatpush1.bf16.msra.mxu0 0
      %852 = vmatprep.subr.bf16.mxu0 0
      %853 = vmatpush1.bf16.msra.mxu0 0
      %854 = vmatprep.subr.bf16.mxu0 0
      %855 = vmatpush1.bf16.msra.mxu0 0
      %856 = vmatprep.subr.bf16.mxu0 0
      %857 = vmatpush1.bf16.msra.mxu0 0
      %858 = vmatprep.subr.bf16.mxu0 0
      %859 = vmatpush1.bf16.msra.mxu0 0
      %860 = vmatprep.mubr.bf16.mxu0 0
      %861 = vmatmul.mubr.bf16.gmra.mrb[0].mxu0 %v757
      %v862 = vpop.f32.mrb[0].mxu0
      %v863 = vadd.f32 %v778, %v862
      %v864 = vpop.f32.mrb[0].mxu0
      %v865 = vpop.f32.mrb[0].mxu0
      %v866 = vadd.f32 %v778, %v865
      %v867 = vpop.f32.mrb[0].mxu0
      %868 = vdwg.mxu0
      %vm869 = vcmp.gt.f32.partialorder %v863, 0.0
      %vm870 = vcmp.gt.f32.partialorder %v866, 0.0
      %v871 = vmul.f32 %v863, 0.2
      %v872 = vmul.f32 %v866, 0.2
      %v873 = vsel %vm869, %v863, %v871
      %v874 = vsel %vm870, %v866, %v872
      %v875 = vld [vmem:[%s10] sm:$0x1]
      %v876 = vpack.c.bf16 %v874, %v873
      %v877 = vld [vmem:[%s9] sm:$0xf]
      %v878 = vld [vmem:[%s9 + $0x4] sm:$0xf]
      %v879 = vld [vmem:[%s9 + $0x8] sm:$0xf]
      %v880 = vld [vmem:[%s9 + $0xc] sm:$0xf]
      %v881 = vld [vmem:[%s9 + $0x10] sm:$0xf]
      %v882 = vld [vmem:[%s9 + $0x14] sm:$0xf]
      %v883 = vld [vmem:[%s9 + $0x18] sm:$0xf]
      %v884 = vld [vmem:[%s9 + $0x1c] sm:$0xf]
      %v886 = vlaneseq
      %v887 = vshrl.u32 %v886, 7
      %v888 = vsub.s32 0, %v887
      %v889 = vrot.slane %v875, %v888
      %v899 = vunpack.c.l.b16 %v877
      %v900 = vunpack.c.l.b16 %v878
      %v901 = vunpack.c.l.b16 %v879
      %v902 = vunpack.c.l.b16 %v880
      %v903 = vunpack.c.l.b16 %v881
      %v904 = vunpack.c.l.b16 %v882
      %v905 = vunpack.c.l.b16 %v883
      %v906 = vunpack.c.l.b16 %v884
      %v907 = vpack.c.b16 %v900, %v899
      %v908 = vpack.c.b16 %v902, %v901
      %v909 = vpack.c.b16 %v904, %v903
      %v910 = vpack.c.b16 %v906, %v905
      %vm915 = vcmask 523264
      %v917 = vsel %vm915, %v876, 0
      %919 = vmatprep.subr.bf16.mxu0 0
      %920 = vmatpush1.bf16.msra.mxu0 %v907
      %921 = vmatprep.subr.bf16.mxu0 0
      %922 = vmatpush1.bf16.msra.mxu0 %v908
      %923 = vmatprep.subr.bf16.mxu0 0
      %924 = vmatpush1.bf16.msra.mxu0 %v909
      %925 = vmatprep.subr.bf16.mxu0 0
      %926 = vmatpush1.bf16.msra.mxu0 %v910
      %927 = vmatprep.subr.bf16.mxu0 0
      %928 = vmatpush1.bf16.msra.mxu0 0
      %929 = vmatprep.subr.bf16.mxu0 0
      %930 = vmatpush1.bf16.msra.mxu0 0
      %931 = vmatprep.subr.bf16.mxu0 0
      %932 = vmatpush1.bf16.msra.mxu0 0
      %933 = vmatprep.subr.bf16.mxu0 0
      %934 = vmatpush1.bf16.msra.mxu0 0
      %935 = vmatprep.subr.bf16.mxu0 0
      %936 = vmatpush1.bf16.msra.mxu0 0
      %937 = vmatprep.subr.bf16.mxu0 0
      %938 = vmatpush1.bf16.msra.mxu0 0
      %939 = vmatprep.subr.bf16.mxu0 0
      %940 = vmatpush1.bf16.msra.mxu0 0
      %941 = vmatprep.subr.bf16.mxu0 0
      %942 = vmatpush1.bf16.msra.mxu0 0
      %943 = vmatprep.subr.bf16.mxu0 0
      %944 = vmatpush1.bf16.msra.mxu0 0
      %945 = vmatprep.subr.bf16.mxu0 0
      %946 = vmatpush1.bf16.msra.mxu0 0
      %947 = vmatprep.subr.bf16.mxu0 0
      %948 = vmatpush1.bf16.msra.mxu0 0
      %949 = vmatprep.subr.bf16.mxu0 0
      %950 = vmatpush1.bf16.msra.mxu0 0
      %951 = vmatprep.mubr.bf16.mxu0 0
      %952 = vmatmul.mubr.bf16.gmra.mrb[0].mxu0 %v917
      %v953 = vpop.f32.mrb[0].mxu0
      %v954 = vadd.f32 %v889, %v953
      %v955 = vpop.f32.mrb[0].mxu0
      %v956 = vpop.f32.mrb[0].mxu0
      %v957 = vadd.f32 %v889, %v956
      %v958 = vpop.f32.mrb[0].mxu0
      %959 = vdwg.mxu0
      %vm960 = vcmp.gt.f32.partialorder %v954, 0.0
      %vm961 = vcmp.gt.f32.partialorder %v957, 0.0
      %v962 = vmul.f32 %v954, 0.2
      %v963 = vmul.f32 %v957, 0.2
      %v964 = vsel %vm960, %v954, %v962
      %v965 = vsel %vm961, %v957, %v963
      %v966 = vld [vmem:[%s12] sm:$0x1]
      %v967 = vpack.c.bf16 %v965, %v964
      %v968 = vld [vmem:[%s11] sm:$0xf]
      %v969 = vld [vmem:[%s11 + $0x4] sm:$0xf]
      %v970 = vld [vmem:[%s11 + $0x8] sm:$0xf]
      %v971 = vld [vmem:[%s11 + $0xc] sm:$0xf]
      %v973 = vlaneseq
      %v974 = vshrl.u32 %v973, 7
      %v975 = vsub.s32 0, %v974
      %v976 = vrot.slane %v966, %v975
      %v982 = vunpack.c.l.b16 %v968
      %v983 = vunpack.c.l.b16 %v969
      %v984 = vunpack.c.l.b16 %v970
      %v985 = vunpack.c.l.b16 %v971
      %v986 = vpack.c.b16 %v983, %v982
      %v987 = vpack.c.b16 %v985, %v984
      %vm990 = vcmask 261120
      %v992 = vsel %vm990, %v967, 0
      %994 = vmatprep.subr.bf16.mxu0 0
      %995 = vmatpush1.bf16.msra.mxu0 %v986
      %996 = vmatprep.subr.bf16.mxu0 0
      %997 = vmatpush1.bf16.msra.mxu0 %v987
      %998 = vmatprep.subr.bf16.mxu0 0
      %999 = vmatpush1.bf16.msra.mxu0 0
      %1000 = vmatprep.subr.bf16.mxu0 0
      %1001 = vmatpush1.bf16.msra.mxu0 0
      %1002 = vmatprep.subr.bf16.mxu0 0
      %1003 = vmatpush1.bf16.msra.mxu0 0
      %1004 = vmatprep.subr.bf16.mxu0 0
      %1005 = vmatpush1.bf16.msra.mxu0 0
      %1006 = vmatprep.subr.bf16.mxu0 0
      %1007 = vmatpush1.bf16.msra.mxu0 0
      %1008 = vmatprep.subr.bf16.mxu0 0
      %1009 = vmatpush1.bf16.msra.mxu0 0
      %1010 = vmatprep.subr.bf16.mxu0 0
      %1011 = vmatpush1.bf16.msra.mxu0 0
      %1012 = vmatprep.subr.bf16.mxu0 0
      %1013 = vmatpush1.bf16.msra.mxu0 0
      %1014 = vmatprep.subr.bf16.mxu0 0
      %1015 = vmatpush1.bf16.msra.mxu0 0
      %1016 = vmatprep.subr.bf16.mxu0 0
      %1017 = vmatpush1.bf16.msra.mxu0 0
      %1018 = vmatprep.subr.bf16.mxu0 0
      %1019 = vmatpush1.bf16.msra.mxu0 0
      %1020 = vmatprep.subr.bf16.mxu0 0
      %1021 = vmatpush1.bf16.msra.mxu0 0
      %1022 = vmatprep.subr.bf16.mxu0 0
      %1023 = vmatpush1.bf16.msra.mxu0 0
      %1024 = vmatprep.subr.bf16.mxu0 0
      %1025 = vmatpush1.bf16.msra.mxu0 0
      %1026 = vmatprep.mubr.bf16.mxu0 0
      %1027 = vmatmul.mubr.bf16.gmra.mrb[0].mxu0 %v992
      %v1028 = vpop.f32.mrb[0].mxu0
      %v1029 = vadd.f32 %v976, %v1028
      %v1030 = vpop.f32.mrb[0].mxu0
      %v1031 = vpop.f32.mrb[0].mxu0
      %v1032 = vadd.f32 %v976, %v1031
      %v1033 = vpop.f32.mrb[0].mxu0
      %1034 = vdwg.mxu0
      %1035 = vst.msk [vmem:[%s486] sm:$0xff] %vm915, %v1029
      %1036 = vst.msk [vmem:[%s486 + $0x8] sm:$0xff] %vm915, %v1032
      %s1037 = smul.u32 2, %s24
      %p1038 = scmp.lt.s32.totalorder %s1037, 3
      %s1039 = scalar_select %p1038, %s1037, 3
      %s1040 = smul.addr %s1039, 8
      %s1041 = scalar_lea.vmem %s13, %s1040
      // Predicated region
      $region73: #{trajsnet_forward.25} parent=71 // pred_check
        %p1042 = pneg %p330
      $region74: #{trajsnet_forward.25} parent=71 // pred_check_branch
        %1044 = sbr.rel (%p1042) target = $region76
      $region75: #{trajsnet_forward.25} parent=71 // pred_region
        %s1045 = smul.u32 2, %s24
      $region76: #{trajsnet_forward.25} parent=71 // pred_fallthru
        _
    $region72: #{trajsnet_forward.25} parent=5 // pred_fallthru
      _
    %p1046 = scmp.le.s32.totalorder 2, %s19
    // Predicated region
    $region77: #{trajsnet_forward.25} parent=5 // pred_check
      %p1047 = pneg %p1046
    $region78: #{trajsnet_forward.25} parent=5 // pred_check_branch
      %1049 = sbr.rel (%p1047) target = $region80
    $region79: #{trajsnet_forward.25} parent=5 // pred_region
      %s1050 = ssub.s32 %s19, 2
      // Predicated region
      $region81: #{trajsnet_forward.25} parent=79 // pred_check
        %p1051 = pneg %p336
      $region82: #{trajsnet_forward.25} parent=79 // pred_check_branch
        %1053 = sbr.rel (%p1051) target = $region84
      $region83: #{trajsnet_forward.25} parent=79 // pred_region
        %s1054 = smul.u32 2, %s25
        %p1055 = scmp.lt.s32.totalorder %s1054, 3
        %s1056 = scalar_select %p1055, %s1054, 3
        %s1057 = smul.addr %s1056, 8
        %s1058 = scalar_lea.vmem %s13, %s1057
      $region84: #{trajsnet_forward.25} parent=79 // pred_fallthru
        _
    $region80: #{trajsnet_forward.25} parent=5 // pred_fallthru
      _
  $region6: #{trajsnet_forward.25} parent=0 // loop_footer
    %s23 = sadd.s32 1, %s19
  $region7: #{trajsnet_forward.25} parent=0 // loop_footer_branch
    %18 = sbr.rel target = $region3
  $region8: #{trajsnet_forward.25} parent=0 // loop_exit
    _

// kernel: trajsnet_forward.29
$region0: #{trajsnet_forward.29}
  #allocation0 [shape = 'u32[]', space=smem, size = 0x4, offset = 0x4, fixed_abs, tag = 'smem constant byte address 0x4 - core index']
  #allocation1 [shape = 'u32[144,128]{1,0:T(1,128)}', space=vmem, size = 0x12000, scoped, tag = 'internal scratch']
  #allocation2 [shape = 'f32[1,1]{1,0:T(1,128)S(1)}', space=vmem, size = 0x200, scoped, tag = 'scoped memory for trajsnet_forward.29']
  %s0 = inlined_call_operand.vmem [shape: bf16[8,128], index: 0, kind: input, shape index: {}]
  %s1 = inlined_call_operand.vmem [shape: bf16[128,128], index: 1, kind: input, shape index: {}]
  %s2 = inlined_call_operand.vmem [shape: f32[1,128], index: 2, kind: input, shape index: {}]
  %s3 = inlined_call_operand.vmem [shape: bf16[128,128], index: 3, kind: input, shape index: {}]
  %s4 = inlined_call_operand.vmem [shape: f32[1,128], index: 4, kind: input, shape index: {}]
  %s5 = inlined_call_operand.vmem [shape: bf16[128,64], index: 5, kind: input, shape index: {}]
  %s6 = inlined_call_operand.vmem [shape: f32[1,64], index: 6, kind: input, shape index: {}]
  %s7 = inlined_call_operand.vmem [shape: bf16[64,16], index: 7, kind: input, shape index: {}]
  %s8 = inlined_call_operand.vmem [shape: f32[1,16], index: 8, kind: input, shape index: {}]
  %s9 = inlined_call_operand.vmem [shape: bf16[16,1], index: 9, kind: input, shape index: {}]
  %s10 = inlined_call_operand.<no memory space> [shape: f32[1,1], index: 10, kind: input, shape index: {}]
  %s11 = inlined_call_operand.vmem [shape: f32[8,1], index: 11, kind: output, shape index: {}]
  %s12 = sld [smem:[#allocation0]]
  $region54: #{trajsnet_forward.29} parent=0
    _
  %s14 = ssub.s32 1, %s12
  %s15 = scalar_select 0, %s14, %s12
  %v16 = vstv %s10
  %17 = vst [vmem:[#allocation2] sm:$0x1] %v16
  // Predicated region
  $region2: #{trajsnet_forward.29} parent=0 // pred_check
    _
  $region3: #{trajsnet_forward.29} parent=0 // pred_check_branch
    %19 = sbr.rel (0) target = $region5
  $region4: #{trajsnet_forward.29} parent=0 // pred_region
    _
  $region5: #{trajsnet_forward.29} parent=0 // pred_fallthru
    _
  // Predicated region
  $region6: #{trajsnet_forward.29} parent=0 // pred_check
    _
  $region7: #{trajsnet_forward.29} parent=0 // pred_check_branch
    %21 = sbr.rel (0) target = $region9
  $region8: #{trajsnet_forward.29} parent=0 // pred_region
    _
  $region9: #{trajsnet_forward.29} parent=0 // pred_fallthru
    _
  // Predicated region
  $region10: #{trajsnet_forward.29} parent=0 // pred_check
    _
  $region11: #{trajsnet_forward.29} parent=0 // pred_check_branch
    %23 = sbr.rel (0) target = $region13
  $region12: #{trajsnet_forward.29} parent=0 // pred_region
    _
  $region13: #{trajsnet_forward.29} parent=0 // pred_fallthru
    _
  // Predicated region
  $region14: #{trajsnet_forward.29} parent=0 // pred_check
    _
  $region15: #{trajsnet_forward.29} parent=0 // pred_check_branch
    %25 = sbr.rel (0) target = $region17
  $region16: #{trajsnet_forward.29} parent=0 // pred_region
    _
  $region17: #{trajsnet_forward.29} parent=0 // pred_fallthru
    _
  // Predicated region
  $region18: #{trajsnet_forward.29} parent=0 // pred_check
    _
  $region19: #{trajsnet_forward.29} parent=0 // pred_check_branch
    %27 = sbr.rel (0) target = $region21
  $region20: #{trajsnet_forward.29} parent=0 // pred_region
    _
  $region21: #{trajsnet_forward.29} parent=0 // pred_fallthru
    _
  // Predicated region
  $region22: #{trajsnet_forward.29} parent=0 // pred_check
    _
  $region23: #{trajsnet_forward.29} parent=0 // pred_check_branch
    %29 = sbr.rel (0) target = $region25
  $region24: #{trajsnet_forward.29} parent=0 // pred_region
    _
  $region25: #{trajsnet_forward.29} parent=0 // pred_fallthru
    _
  // Predicated region
  $region26: #{trajsnet_forward.29} parent=0 // pred_check
    _
  $region27: #{trajsnet_forward.29} parent=0 // pred_check_branch
    %31 = sbr.rel (0) target = $region29
  $region28: #{trajsnet_forward.29} parent=0 // pred_region
    _
  $region29: #{trajsnet_forward.29} parent=0 // pred_fallthru
    _
  // Predicated region
  $region30: #{trajsnet_forward.29} parent=0 // pred_check
    _
  $region31: #{trajsnet_forward.29} parent=0 // pred_check_branch
    %33 = sbr.rel (0) target = $region33
  $region32: #{trajsnet_forward.29} parent=0 // pred_region
    _
  $region33: #{trajsnet_forward.29} parent=0 // pred_fallthru
    _
  // Predicated region
  $region34: #{trajsnet_forward.29} parent=0 // pred_check
    _
  $region35: #{trajsnet_forward.29} parent=0 // pred_check_branch
    %35 = sbr.rel (0) target = $region37
  $region36: #{trajsnet_forward.29} parent=0 // pred_region
    _
  $region37: #{trajsnet_forward.29} parent=0 // pred_fallthru
    _
  // Predicated region
  $region38: #{trajsnet_forward.29} parent=0 // pred_check
    _
  $region39: #{trajsnet_forward.29} parent=0 // pred_check_branch
    %37 = sbr.rel (0) target = $region41
  $region40: #{trajsnet_forward.29} parent=0 // pred_region
    _
  $region41: #{trajsnet_forward.29} parent=0 // pred_fallthru
    _
  // Predicated region
  $region42: #{trajsnet_forward.29} parent=0 // pred_check
    _
  $region43: #{trajsnet_forward.29} parent=0 // pred_check_branch
    %39 = sbr.rel (0) target = $region45
  $region44: #{trajsnet_forward.29} parent=0 // pred_region
    _
  $region45: #{trajsnet_forward.29} parent=0 // pred_fallthru
    _
  %v41 = vld [vmem:[%s0] sm:$0xf]
  %v42 = vld [vmem:[%s2] sm:$0x1]
  %v43 = vld [vmem:[%s1] sm:$0xf]
  %v44 = vld [vmem:[%s1 + $0x4] sm:$0xf]
  %v45 = vld [vmem:[%s1 + $0x8] sm:$0xf]
  %v46 = vld [vmem:[%s1 + $0xc] sm:$0xf]
  %v47 = vld [vmem:[%s1 + $0x10] sm:$0xf]
  %v48 = vld [vmem:[%s1 + $0x14] sm:$0xf]
  %v49 = vld [vmem:[%s1 + $0x18] sm:$0xf]
  %v50 = vld [vmem:[%s1 + $0x1c] sm:$0xf]
  %v51 = vld [vmem:[%s1 + $0x20] sm:$0xf]
  %v52 = vld [vmem:[%s1 + $0x24] sm:$0xf]
  %v53 = vld [vmem:[%s1 + $0x28] sm:$0xf]
  %v54 = vld [vmem:[%s1 + $0x2c] sm:$0xf]
  %v55 = vld [vmem:[%s1 + $0x30] sm:$0xf]
  %v56 = vld [vmem:[%s1 + $0x34] sm:$0xf]
  %v57 = vld [vmem:[%s1 + $0x38] sm:$0xf]
  %v58 = vld [vmem:[%s1 + $0x3c] sm:$0xf]
  %v75 = vunpack.c.l.b16 %v43
  %v76 = vunpack.c.l.b16 %v44
  %v77 = vunpack.c.l.b16 %v45
  %v78 = vunpack.c.l.b16 %v46
  %v79 = vunpack.c.l.b16 %v47
  %v80 = vunpack.c.l.b16 %v48
  %v81 = vunpack.c.l.b16 %v49
  %v82 = vunpack.c.l.b16 %v50
  %v83 = vunpack.c.l.b16 %v51
  %v84 = vunpack.c.l.b16 %v52
  %v85 = vunpack.c.l.b16 %v53
  %v86 = vunpack.c.l.b16 %v54
  %v87 = vunpack.c.l.b16 %v55
  %v88 = vunpack.c.l.b16 %v56
  %v89 = vunpack.c.l.b16 %v57
  %v90 = vunpack.c.l.b16 %v58
  %v91 = vpack.c.b16 %v76, %v75
  %v92 = vpack.c.b16 %v78, %v77
  %v93 = vpack.c.b16 %v80, %v79
  %v94 = vpack.c.b16 %v82, %v81
  %v95 = vpack.c.b16 %v84, %v83
  %v96 = vpack.c.b16 %v86, %v85
  %v97 = vpack.c.b16 %v88, %v87
  %v98 = vpack.c.b16 %v90, %v89
  %107 = vmatprep.subr.bf16.mxu0 0
  %108 = vmatpush1.bf16.msra.mxu0 %v91
  %109 = vmatprep.subr.bf16.mxu0 0
  %110 = vmatpush1.bf16.msra.mxu0 %v92
  %111 = vmatprep.subr.bf16.mxu0 0
  %112 = vmatpush1.bf16.msra.mxu0 %v93
  %113 = vmatprep.subr.bf16.mxu0 0
  %114 = vmatpush1.bf16.msra.mxu0 %v94
  %115 = vmatprep.subr.bf16.mxu0 0
  %116 = vmatpush1.bf16.msra.mxu0 %v95
  %117 = vmatprep.subr.bf16.mxu0 0
  %118 = vmatpush1.bf16.msra.mxu0 %v96
  %119 = vmatprep.subr.bf16.mxu0 0
  %120 = vmatpush1.bf16.msra.mxu0 %v97
  %121 = vmatprep.subr.bf16.mxu0 0
  %122 = vmatpush1.bf16.msra.mxu0 %v98
  %123 = vmatprep.subr.bf16.mxu0 0
  %124 = vmatpush1.bf16.msra.mxu0 0
  %125 = vmatprep.subr.bf16.mxu0 0
  %126 = vmatpush1.bf16.msra.mxu0 0
  %127 = vmatprep.subr.bf16.mxu0 0
  %128 = vmatpush1.bf16.msra.mxu0 0
  %129 = vmatprep.subr.bf16.mxu0 0
  %130 = vmatpush1.bf16.msra.mxu0 0
  %131 = vmatprep.subr.bf16.mxu0 0
  %132 = vmatpush1.bf16.msra.mxu0 0
  %133 = vmatprep.subr.bf16.mxu0 0
  %134 = vmatpush1.bf16.msra.mxu0 0
  %135 = vmatprep.subr.bf16.mxu0 0
  %136 = vmatpush1.bf16.msra.mxu0 0
  %137 = vmatprep.subr.bf16.mxu0 0
  %138 = vmatpush1.bf16.msra.mxu0 0
  %139 = vmatprep.mubr.bf16.mxu0 0
  %140 = vmatmul.mubr.bf16.gmra.mrb[0].mxu0 %v41
  %v141 = vpop.f32.mrb[0].mxu0
  %v142 = vadd.f32 0.0, %v141
  %v143 = vpop.f32.mrb[0].mxu0
  %v144 = vpop.f32.mrb[0].mxu0
  %v145 = vpop.f32.mrb[0].mxu0
  %146 = vdwg.mxu0
  %v148 = vlaneseq
  %v149 = vshrl.u32 %v148, 7
  %v150 = vsub.s32 0, %v149
  %v151 = vrot.slane %v42, %v150
  %v153 = vadd.f32 %v151, %v142
  %vm154 = vcmp.gt.f32.partialorder %v153, 0.0
  %v155 = vmul.f32 %v153, 0.2
  %v156 = vsel %vm154, %v153, %v155
  %v157 = vld [vmem:[%s4] sm:$0x1]
  %v158 = vpack.c.bf16 %v156, %v156
  %v159 = vld [vmem:[%s3] sm:$0xf]
  %v160 = vld [vmem:[%s3 + $0x4] sm:$0xf]
  %v161 = vld [vmem:[%s3 + $0x8] sm:$0xf]
  %v162 = vld [vmem:[%s3 + $0xc] sm:$0xf]
  %v163 = vld [vmem:[%s3 + $0x10] sm:$0xf]
  %v164 = vld [vmem:[%s3 + $0x14] sm:$0xf]
  %v165 = vld [vmem:[%s3 + $0x18] sm:$0xf]
  %v166 = vld [vmem:[%s3 + $0x1c] sm:$0xf]
  %v167 = vld [vmem:[%s3 + $0x20] sm:$0xf]
  %v168 = vld [vmem:[%s3 + $0x24] sm:$0xf]
  %v169 = vld [vmem:[%s3 + $0x28] sm:$0xf]
  %v170 = vld [vmem:[%s3 + $0x2c] sm:$0xf]
  %v171 = vld [vmem:[%s3 + $0x30] sm:$0xf]
  %v172 = vld [vmem:[%s3 + $0x34] sm:$0xf]
  %v173 = vld [vmem:[%s3 + $0x38] sm:$0xf]
  %v174 = vld [vmem:[%s3 + $0x3c] sm:$0xf]
  %v176 = vlaneseq
  %v177 = vshrl.u32 %v176, 7
  %v178 = vsub.s32 0, %v177
  %v179 = vrot.slane %v157, %v178
  %v197 = vunpack.c.l.b16 %v159
  %v198 = vunpack.c.l.b16 %v160
  %v199 = vunpack.c.l.b16 %v161
  %v200 = vunpack.c.l.b16 %v162
  %v201 = vunpack.c.l.b16 %v163
  %v202 = vunpack.c.l.b16 %v164
  %v203 = vunpack.c.l.b16 %v165
  %v204 = vunpack.c.l.b16 %v166
  %v205 = vunpack.c.l.b16 %v167
  %v206 = vunpack.c.l.b16 %v168
  %v207 = vunpack.c.l.b16 %v169
  %v208 = vunpack.c.l.b16 %v170
  %v209 = vunpack.c.l.b16 %v171
  %v210 = vunpack.c.l.b16 %v172
  %v211 = vunpack.c.l.b16 %v173
  %v212 = vunpack.c.l.b16 %v174
  %v213 = vpack.c.b16 %v198, %v197
  %v214 = vpack.c.b16 %v200, %v199
  %v215 = vpack.c.b16 %v202, %v201
  %v216 = vpack.c.b16 %v204, %v203
  %v217 = vpack.c.b16 %v206, %v205
  %v218 = vpack.c.b16 %v208, %v207
  %v219 = vpack.c.b16 %v210, %v209
  %v220 = vpack.c.b16 %v212, %v211
  %229 = vmatprep.subr.bf16.mxu0 0
  %230 = vmatpush1.bf16.msra.mxu0 %v213
  %231 = vmatprep.subr.bf16.mxu0 0
  %232 = vmatpush1.bf16.msra.mxu0 %v214
  %233 = vmatprep.subr.bf16.mxu0 0
  %234 = vmatpush1.bf16.msra.mxu0 %v215
  %235 = vmatprep.subr.bf16.mxu0 0
  %236 = vmatpush1.bf16.msra.mxu0 %v216
  %237 = vmatprep.subr.bf16.mxu0 0
  %238 = vmatpush1.bf16.msra.mxu0 %v217
  %239 = vmatprep.subr.bf16.mxu0 0
  %240 = vmatpush1.bf16.msra.mxu0 %v218
  %241 = vmatprep.subr.bf16.mxu0 0
  %242 = vmatpush1.bf16.msra.mxu0 %v219
  %243 = vmatprep.subr.bf16.mxu0 0
  %244 = vmatpush1.bf16.msra.mxu0 %v220
  %245 = vmatprep.subr.bf16.mxu0 0
  %246 = vmatpush1.bf16.msra.mxu0 0
  %247 = vmatprep.subr.bf16.mxu0 0
  %248 = vmatpush1.bf16.msra.mxu0 0
  %249 = vmatprep.subr.bf16.mxu0 0
  %250 = vmatpush1.bf16.msra.mxu0 0
  %251 = vmatprep.subr.bf16.mxu0 0
  %252 = vmatpush1.bf16.msra.mxu0 0
  %253 = vmatprep.subr.bf16.mxu0 0
  %254 = vmatpush1.bf16.msra.mxu0 0
  %255 = vmatprep.subr.bf16.mxu0 0
  %256 = vmatpush1.bf16.msra.mxu0 0
  %257 = vmatprep.subr.bf16.mxu0 0
  %258 = vmatpush1.bf16.msra.mxu0 0
  %259 = vmatprep.subr.bf16.mxu0 0
  %260 = vmatpush1.bf16.msra.mxu0 0
  %261 = vmatprep.mubr.bf16.mxu0 0
  %262 = vmatmul.mubr.bf16.gmra.mrb[0].mxu0 %v158
  %v263 = vpop.f32.mrb[0].mxu0
  %v264 = vadd.f32 %v179, %v263
  %v265 = vpop.f32.mrb[0].mxu0
  %v266 = vpop.f32.mrb[0].mxu0
  %v267 = vpop.f32.mrb[0].mxu0
  %268 = vdwg.mxu0
  %vm269 = vcmp.gt.f32.partialorder %v264, 0.0
  %v270 = vmul.f32 %v264, 0.2
  %v271 = vsel %vm269, %v264, %v270
  %v272 = vld [vmem:[%s6] sm:$0x1]
  %v273 = vpack.c.bf16 %v271, %v271
  %v274 = vld [vmem:[%s5] sm:$0xf]
  %v275 = vld [vmem:[%s5 + $0x4] sm:$0xf]
  %v276 = vld [vmem:[%s5 + $0x8] sm:$0xf]
  %v277 = vld [vmem:[%s5 + $0xc] sm:$0xf]
  %v278 = vld [vmem:[%s5 + $0x10] sm:$0xf]
  %v279 = vld [vmem:[%s5 + $0x14] sm:$0xf]
  %v280 = vld [vmem:[%s5 + $0x18] sm:$0xf]
  %v281 = vld [vmem:[%s5 + $0x1c] sm:$0xf]
  %v282 = vld [vmem:[%s5 + $0x20] sm:$0xf]
  %v283 = vld [vmem:[%s5 + $0x24] sm:$0xf]
  %v284 = vld [vmem:[%s5 + $0x28] sm:$0xf]
  %v285 = vld [vmem:[%s5 + $0x2c] sm:$0xf]
  %v286 = vld [vmem:[%s5 + $0x30] sm:$0xf]
  %v287 = vld [vmem:[%s5 + $0x34] sm:$0xf]
  %v288 = vld [vmem:[%s5 + $0x38] sm:$0xf]
  %v289 = vld [vmem:[%s5 + $0x3c] sm:$0xf]
  %v291 = vlaneseq
  %v292 = vshrl.u32 %v291, 7
  %v293 = vsub.s32 0, %v292
  %v294 = vrot.slane %v272, %v293
  %v312 = vunpack.c.l.b16 %v274
  %v313 = vunpack.c.l.b16 %v275
  %v314 = vunpack.c.l.b16 %v276
  %v315 = vunpack.c.l.b16 %v277
  %v316 = vunpack.c.l.b16 %v278
  %v317 = vunpack.c.l.b16 %v279
  %v318 = vunpack.c.l.b16 %v280
  %v319 = vunpack.c.l.b16 %v281
  %v320 = vunpack.c.l.b16 %v282
  %v321 = vunpack.c.l.b16 %v283
  %v322 = vunpack.c.l.b16 %v284
  %v323 = vunpack.c.l.b16 %v285
  %v324 = vunpack.c.l.b16 %v286
  %v325 = vunpack.c.l.b16 %v287
  %v326 = vunpack.c.l.b16 %v288
  %v327 = vunpack.c.l.b16 %v289
  %v328 = vpack.c.b16 %v313, %v312
  %v329 = vpack.c.b16 %v315, %v314
  %v330 = vpack.c.b16 %v317, %v316
  %v331 = vpack.c.b16 %v319, %v318
  %v332 = vpack.c.b16 %v321, %v320
  %v333 = vpack.c.b16 %v323, %v322
  %v334 = vpack.c.b16 %v325, %v324
  %v335 = vpack.c.b16 %v327, %v326
  %344 = vmatprep.subr.bf16.mxu0 0
  %345 = vmatpush1.bf16.msra.mxu0 %v328
  %346 = vmatprep.subr.bf16.mxu0 0
  %347 = vmatpush1.bf16.msra.mxu0 %v329
  %348 = vmatprep.subr.bf16.mxu0 0
  %349 = vmatpush1.bf16.msra.mxu0 %v330
  %350 = vmatprep.subr.bf16.mxu0 0
  %351 = vmatpush1.bf16.msra.mxu0 %v331
  %352 = vmatprep.subr.bf16.mxu0 0
  %353 = vmatpush1.bf16.msra.mxu0 %v332
  %354 = vmatprep.subr.bf16.mxu0 0
  %355 = vmatpush1.bf16.msra.mxu0 %v333
  %356 = vmatprep.subr.bf16.mxu0 0
  %357 = vmatpush1.bf16.msra.mxu0 %v334
  %358 = vmatprep.subr.bf16.mxu0 0
  %359 = vmatpush1.bf16.msra.mxu0 %v335
  %360 = vmatprep.subr.bf16.mxu0 0
  %361 = vmatpush1.bf16.msra.mxu0 0
  %362 = vmatprep.subr.bf16.mxu0 0
  %363 = vmatpush1.bf16.msra.mxu0 0
  %364 = vmatprep.subr.bf16.mxu0 0
  %365 = vmatpush1.bf16.msra.mxu0 0
  %366 = vmatprep.subr.bf16.mxu0 0
  %367 = vmatpush1.bf16.msra.mxu0 0
  %368 = vmatprep.subr.bf16.mxu0 0
  %369 = vmatpush1.bf16.msra.mxu0 0
  %370 = vmatprep.subr.bf16.mxu0 0
  %371 = vmatpush1.bf16.msra.mxu0 0
  %372 = vmatprep.subr.bf16.mxu0 0
  %373 = vmatpush1.bf16.msra.mxu0 0
  %374 = vmatprep.subr.bf16.mxu0 0
  %375 = vmatpush1.bf16.msra.mxu0 0
  %376 = vmatprep.mubr.bf16.mxu0 0
  %377 = vmatmul.mubr.bf16.gmra.mrb[0].mxu0 %v273
  %v378 = vpop.f32.mrb[0].mxu0
  %v379 = vadd.f32 %v294, %v378
  %v380 = vpop.f32.mrb[0].mxu0
  %v381 = vpop.f32.mrb[0].mxu0
  %v382 = vpop.f32.mrb[0].mxu0
  %383 = vdwg.mxu0
  %vm384 = vcmp.gt.f32.partialorder %v379, 0.0
  %v385 = vmul.f32 %v379, 0.2
  %v386 = vsel %vm384, %v379, %v385
  %v387 = vld [vmem:[%s8] sm:$0x1]
  %v388 = vpack.c.bf16 %v386, %v386
  %v389 = vld [vmem:[%s7] sm:$0xf]
  %v390 = vld [vmem:[%s7 + $0x4] sm:$0xf]
  %v391 = vld [vmem:[%s7 + $0x8] sm:$0xf]
  %v392 = vld [vmem:[%s7 + $0xc] sm:$0xf]
  %v393 = vld [vmem:[%s7 + $0x10] sm:$0xf]
  %v394 = vld [vmem:[%s7 + $0x14] sm:$0xf]
  %v395 = vld [vmem:[%s7 + $0x18] sm:$0xf]
  %v396 = vld [vmem:[%s7 + $0x1c] sm:$0xf]
  %v398 = vlaneseq
  %v399 = vshrl.u32 %v398, 7
  %v400 = vsub.s32 0, %v399
  %v401 = vrot.slane %v387, %v400
  %v411 = vunpack.c.l.b16 %v389
  %v412 = vunpack.c.l.b16 %v390
  %v413 = vunpack.c.l.b16 %v391
  %v414 = vunpack.c.l.b16 %v392
  %v415 = vunpack.c.l.b16 %v393
  %v416 = vunpack.c.l.b16 %v394
  %v417 = vunpack.c.l.b16 %v395
  %v418 = vunpack.c.l.b16 %v396
  %v419 = vpack.c.b16 %v412, %v411
  %v420 = vpack.c.b16 %v414, %v413
  %v421 = vpack.c.b16 %v416, %v415
  %v422 = vpack.c.b16 %v418, %v417
  %vm427 = vcmask 523264
  %v429 = vsel %vm427, %v388, 0
  %431 = vmatprep.subr.bf16.mxu0 0
  %432 = vmatpush1.bf16.msra.mxu0 %v419
  %433 = vmatprep.subr.bf16.mxu0 0
  %434 = vmatpush1.bf16.msra.mxu0 %v420
  %435 = vmatprep.subr.bf16.mxu0 0
  %436 = vmatpush1.bf16.msra.mxu0 %v421
  %437 = vmatprep.subr.bf16.mxu0 0
  %438 = vmatpush1.bf16.msra.mxu0 %v422
  %439 = vmatprep.subr.bf16.mxu0 0
  %440 = vmatpush1.bf16.msra.mxu0 0
  %441 = vmatprep.subr.bf16.mxu0 0
  %442 = vmatpush1.bf16.msra.mxu0 0
  %443 = vmatprep.subr.bf16.mxu0 0
  %444 = vmatpush1.bf16.msra.mxu0 0
  %445 = vmatprep.subr.bf16.mxu0 0
  %446 = vmatpush1.bf16.msra.mxu0 0
  %447 = vmatprep.subr.bf16.mxu0 0
  %448 = vmatpush1.bf16.msra.mxu0 0
  %449 = vmatprep.subr.bf16.mxu0 0
  %450 = vmatpush1.bf16.msra.mxu0 0
  %451 = vmatprep.subr.bf16.mxu0 0
  %452 = vmatpush1.bf16.msra.mxu0 0
  %453 = vmatprep.subr.bf16.mxu0 0
  %454 = vmatpush1.bf16.msra.mxu0 0
  %455 = vmatprep.subr.bf16.mxu0 0
  %456 = vmatpush1.bf16.msra.mxu0 0
  %457 = vmatprep.subr.bf16.mxu0 0
  %458 = vmatpush1.bf16.msra.mxu0 0
  %459 = vmatprep.subr.bf16.mxu0 0
  %460 = vmatpush1.bf16.msra.mxu0 0
  %461 = vmatprep.subr.bf16.mxu0 0
  %462 = vmatpush1.bf16.msra.mxu0 0
  %463 = vmatprep.mubr.bf16.mxu0 0
  %464 = vmatmul.mubr.bf16.gmra.mrb[0].mxu0 %v429
  %v465 = vpop.f32.mrb[0].mxu0
  %v466 = vadd.f32 %v401, %v465
  %v467 = vpop.f32.mrb[0].mxu0
  %v468 = vpop.f32.mrb[0].mxu0
  %v469 = vpop.f32.mrb[0].mxu0
  %470 = vdwg.mxu0
  %vm471 = vcmp.gt.f32.partialorder %v466, 0.0
  %v472 = vmul.f32 %v466, 0.2
  %v473 = vsel %vm471, %v466, %v472
  %v474 = vld [vmem:[#allocation2] sm:$0x1]
  %v475 = vpack.c.bf16 %v473, %v473
  %v476 = vld [vmem:[%s9] sm:$0xf]
  %v477 = vld [vmem:[%s9 + $0x4] sm:$0xf]
  %v479 = vlaneseq
  %v480 = vshrl.u32 %v479, 7
  %v481 = vsub.s32 0, %v480
  %v482 = vrot.slane %v474, %v481
  %v486 = vunpack.c.l.b16 %v476
  %v487 = vunpack.c.l.b16 %v477
  %v488 = vpack.c.b16 %v487, %v486
  %vm490 = vcmask 130048
  %v492 = vsel %vm490, %v475, 0
  %494 = vmatprep.subr.bf16.mxu0 0
  %495 = vmatpush1.bf16.msra.mxu0 %v488
  %496 = vmatprep.subr.bf16.mxu0 0
  %497 = vmatpush1.bf16.msra.mxu0 0
  %498 = vmatprep.subr.bf16.mxu0 0
  %499 = vmatpush1.bf16.msra.mxu0 0
  %500 = vmatprep.subr.bf16.mxu0 0
  %501 = vmatpush1.bf16.msra.mxu0 0
  %502 = vmatprep.subr.bf16.mxu0 0
  %503 = vmatpush1.bf16.msra.mxu0 0
  %504 = vmatprep.subr.bf16.mxu0 0
  %505 = vmatpush1.bf16.msra.mxu0 0
  %506 = vmatprep.subr.bf16.mxu0 0
  %507 = vmatpush1.bf16.msra.mxu0 0
  %508 = vmatprep.subr.bf16.mxu0 0
  %509 = vmatpush1.bf16.msra.mxu0 0
  %510 = vmatprep.subr.bf16.mxu0 0
  %511 = vmatpush1.bf16.msra.mxu0 0
  %512 = vmatprep.subr.bf16.mxu0 0
  %513 = vmatpush1.bf16.msra.mxu0 0
  %514 = vmatprep.subr.bf16.mxu0 0
  %515 = vmatpush1.bf16.msra.mxu0 0
  %516 = vmatprep.subr.bf16.mxu0 0
  %517 = vmatpush1.bf16.msra.mxu0 0
  %518 = vmatprep.subr.bf16.mxu0 0
  %519 = vmatpush1.bf16.msra.mxu0 0
  %520 = vmatprep.subr.bf16.mxu0 0
  %521 = vmatpush1.bf16.msra.mxu0 0
  %522 = vmatprep.subr.bf16.mxu0 0
  %523 = vmatpush1.bf16.msra.mxu0 0
  %524 = vmatprep.subr.bf16.mxu0 0
  %525 = vmatpush1.bf16.msra.mxu0 0
  %526 = vmatprep.mubr.bf16.mxu0 0
  %527 = vmatmul.mubr.bf16.gmra.mrb[0].mxu0 %v492
  %v528 = vpop.f32.mrb[0].mxu0
  %v529 = vadd.f32 %v482, %v528
  %v530 = vpop.f32.mrb[0].mxu0
  %v531 = vpop.f32.mrb[0].mxu0
  %v532 = vpop.f32.mrb[0].mxu0
  %533 = vdwg.mxu0
  %v534 = vunpack.c.l.bf16 %v41
  %v535 = vsub.f32 %v529, 1.0
  %537 = vrot.lane.b32.xlu0 %v534, 1
  %v538 = vpop.permute.xlu0 %537
  %v540 = vadd.f32 %v535, %v538
  %v541 = vtanh.pop %v540
  %v542 = vadd.f32 %v541, 1.0
  %vm543 = vcmask 7168
  %544 = vst.msk [vmem:[%s11] sm:$0xff] %vm543, %v542
  // Predicated region
  $region46: #{trajsnet_forward.29} parent=0 // pred_check
    _
  $region47: #{trajsnet_forward.29} parent=0 // pred_check_branch
    %546 = sbr.rel (0) target = $region49
  $region48: #{trajsnet_forward.29} parent=0 // pred_region
    _
  $region49: #{trajsnet_forward.29} parent=0 // pred_fallthru
    _
  // Predicated region
  $region50: #{trajsnet_forward.29} parent=0 // pred_check
    _
  $region51: #{trajsnet_forward.29} parent=0 // pred_check_branch
    %548 = sbr.rel (0) target = $region53
  $region52: #{trajsnet_forward.29} parent=0 // pred_region
    _
  $region53: #{trajsnet_forward.29} parent=0 // pred_fallthru
    _

// kernel: trajsnet_forward.28
$region0: #{trajsnet_forward.28}
  #allocation0 [shape = 'u32[]', space=smem, size = 0x4, offset = 0x4, fixed_abs, tag = 'smem constant byte address 0x4 - core index']
  #allocation1 [shape = 'u32[144,128]{1,0:T(1,128)}', space=vmem, size = 0x12000, scoped, tag = 'internal scratch']
  %s0 = inlined_call_operand.vmem [shape: bf16[8,64], index: 0, kind: input, shape index: {}]
  %s1 = inlined_call_operand.vmem [shape: bf16[8,64], index: 1, kind: input, shape index: {}]
  %s2 = inlined_call_operand.vmem [shape: bf16[8,64], index: 2, kind: input, shape index: {}]
  %s3 = inlined_call_operand.vmem [shape: bf16[64,128], index: 3, kind: input, shape index: {}]
  %s4 = inlined_call_operand.vmem [shape: bf16[64,128], index: 4, kind: input, shape index: {}]
  %s5 = inlined_call_operand.vmem [shape: bf16[64,128], index: 5, kind: input, shape index: {}]
  %s6 = inlined_call_operand.vmem [shape: f32[1,128], index: 6, kind: input, shape index: {}]
  %s7 = inlined_call_operand.vmem [shape: bf16[128,256], index: 7, kind: input, shape index: {}]
  %s8 = inlined_call_operand.vmem [shape: f32[1,256], index: 8, kind: input, shape index: {}]
  %s9 = inlined_call_operand.vmem [shape: bf16[256,128], index: 9, kind: input, shape index: {}]
  %s10 = inlined_call_operand.vmem [shape: f32[1,128], index: 10, kind: input, shape index: {}]
  %s11 = inlined_call_operand.vmem [shape: f32[8,128], index: 11, kind: output, shape index: {}]
  %s12 = sld [smem:[#allocation0]]
  $region54: #{trajsnet_forward.28} parent=0
    _
  %s14 = ssub.s32 1, %s12
  %s15 = scalar_select 0, %s14, %s12
  // Predicated region
  $region2: #{trajsnet_forward.28} parent=0 // pred_check
    _
  $region3: #{trajsnet_forward.28} parent=0 // pred_check_branch
    %17 = sbr.rel (0) target = $region5
  $region4: #{trajsnet_forward.28} parent=0 // pred_region
    _
  $region5: #{trajsnet_forward.28} parent=0 // pred_fallthru
    _
  // Predicated region
  $region6: #{trajsnet_forward.28} parent=0 // pred_check
    _
  $region7: #{trajsnet_forward.28} parent=0 // pred_check_branch
    %19 = sbr.rel (0) target = $region9
  $region8: #{trajsnet_forward.28} parent=0 // pred_region
    _
  $region9: #{trajsnet_forward.28} parent=0 // pred_fallthru
    _
  // Predicated region
  $region10: #{trajsnet_forward.28} parent=0 // pred_check
    _
  $region11: #{trajsnet_forward.28} parent=0 // pred_check_branch
    %21 = sbr.rel (0) target = $region13
  $region12: #{trajsnet_forward.28} parent=0 // pred_region
    _
  $region13: #{trajsnet_forward.28} parent=0 // pred_fallthru
    _
  // Predicated region
  $region14: #{trajsnet_forward.28} parent=0 // pred_check
    _
  $region15: #{trajsnet_forward.28} parent=0 // pred_check_branch
    %23 = sbr.rel (0) target = $region17
  $region16: #{trajsnet_forward.28} parent=0 // pred_region
    _
  $region17: #{trajsnet_forward.28} parent=0 // pred_fallthru
    _
  // Predicated region
  $region18: #{trajsnet_forward.28} parent=0 // pred_check
    _
  $region19: #{trajsnet_forward.28} parent=0 // pred_check_branch
    %25 = sbr.rel (0) target = $region21
  $region20: #{trajsnet_forward.28} parent=0 // pred_region
    _
  $region21: #{trajsnet_forward.28} parent=0 // pred_fallthru
    _
  // Predicated region
  $region22: #{trajsnet_forward.28} parent=0 // pred_check
    _
  $region23: #{trajsnet_forward.28} parent=0 // pred_check_branch
    %27 = sbr.rel (0) target = $region25
  $region24: #{trajsnet_forward.28} parent=0 // pred_region
    _
  $region25: #{trajsnet_forward.28} parent=0 // pred_fallthru
    _
  // Predicated region
  $region26: #{trajsnet_forward.28} parent=0 // pred_check
    _
  $region27: #{trajsnet_forward.28} parent=0 // pred_check_branch
    %29 = sbr.rel (0) target = $region29
  $region28: #{trajsnet_forward.28} parent=0 // pred_region
    _
  $region29: #{trajsnet_forward.28} parent=0 // pred_fallthru
    _
  // Predicated region
  $region30: #{trajsnet_forward.28} parent=0 // pred_check
    _
  $region31: #{trajsnet_forward.28} parent=0 // pred_check_branch
    %31 = sbr.rel (0) target = $region33
  $region32: #{trajsnet_forward.28} parent=0 // pred_region
    _
  $region33: #{trajsnet_forward.28} parent=0 // pred_fallthru
    _
  // Predicated region
  $region34: #{trajsnet_forward.28} parent=0 // pred_check
    _
  $region35: #{trajsnet_forward.28} parent=0 // pred_check_branch
    %33 = sbr.rel (0) target = $region37
  $region36: #{trajsnet_forward.28} parent=0 // pred_region
    _
  $region37: #{trajsnet_forward.28} parent=0 // pred_fallthru
    _
  // Predicated region
  $region38: #{trajsnet_forward.28} parent=0 // pred_check
    _
  $region39: #{trajsnet_forward.28} parent=0 // pred_check_branch
    %35 = sbr.rel (0) target = $region41
  $region40: #{trajsnet_forward.28} parent=0 // pred_region
    _
  $region41: #{trajsnet_forward.28} parent=0 // pred_fallthru
    _
  // Predicated region
  $region42: #{trajsnet_forward.28} parent=0 // pred_check
    _
  $region43: #{trajsnet_forward.28} parent=0 // pred_check_branch
    %37 = sbr.rel (0) target = $region45
  $region44: #{trajsnet_forward.28} parent=0 // pred_region
    _
  $region45: #{trajsnet_forward.28} parent=0 // pred_fallthru
    _
  %v39 = vld [vmem:[%s0] sm:$0xf]
  %v40 = vld [vmem:[%s1] sm:$0xf]
  %v41 = vld [vmem:[%s2] sm:$0xf]
  %v42 = vld [vmem:[%s6] sm:$0x1]
  %v43 = vld [vmem:[%s3] sm:$0xf]
  %v44 = vld [vmem:[%s3 + $0x4] sm:$0xf]
  %v45 = vld [vmem:[%s3 + $0x8] sm:$0xf]
  %v46 = vld [vmem:[%s3 + $0xc] sm:$0xf]
  %v47 = vld [vmem:[%s3 + $0x10] sm:$0xf]
  %v48 = vld [vmem:[%s3 + $0x14] sm:$0xf]
  %v49 = vld [vmem:[%s3 + $0x18] sm:$0xf]
  %v50 = vld [vmem:[%s3 + $0x1c] sm:$0xf]
  %v59 = vunpack.c.l.b16 %v43
  %v60 = vunpack.c.l.b16 %v44
  %v61 = vunpack.c.l.b16 %v45
  %v62 = vunpack.c.l.b16 %v46
  %v63 = vunpack.c.l.b16 %v47
  %v64 = vunpack.c.l.b16 %v48
  %v65 = vunpack.c.l.b16 %v49
  %v66 = vunpack.c.l.b16 %v50
  %v67 = vpack.c.b16 %v60, %v59
  %v68 = vpack.c.b16 %v62, %v61
  %v69 = vpack.c.b16 %v64, %v63
  %v70 = vpack.c.b16 %v66, %v65
  %vm75 = vcmask 523264
  %v77 = vsel %vm75, %v39, 0
  %79 = vmatprep.subr.bf16.mxu0 0
  %80 = vmatpush1.bf16.msra.mxu0 %v67
  %81 = vmatprep.subr.bf16.mxu0 0
  %82 = vmatpush1.bf16.msra.mxu0 %v68
  %83 = vmatprep.subr.bf16.mxu0 0
  %84 = vmatpush1.bf16.msra.mxu0 %v69
  %85 = vmatprep.subr.bf16.mxu0 0
  %86 = vmatpush1.bf16.msra.mxu0 %v70
  %87 = vmatprep.subr.bf16.mxu0 0
  %88 = vmatpush1.bf16.msra.mxu0 0
  %89 = vmatprep.subr.bf16.mxu0 0
  %90 = vmatpush1.bf16.msra.mxu0 0
  %91 = vmatprep.subr.bf16.mxu0 0
  %92 = vmatpush1.bf16.msra.mxu0 0
  %93 = vmatprep.subr.bf16.mxu0 0
  %94 = vmatpush1.bf16.msra.mxu0 0
  %95 = vmatprep.subr.bf16.mxu0 0
  %96 = vmatpush1.bf16.msra.mxu0 0
  %97 = vmatprep.subr.bf16.mxu0 0
  %98 = vmatpush1.bf16.msra.mxu0 0
  %99 = vmatprep.subr.bf16.mxu0 0
  %100 = vmatpush1.bf16.msra.mxu0 0
  %101 = vmatprep.subr.bf16.mxu0 0
  %102 = vmatpush1.bf16.msra.mxu0 0
  %103 = vmatprep.subr.bf16.mxu0 0
  %104 = vmatpush1.bf16.msra.mxu0 0
  %105 = vmatprep.subr.bf16.mxu0 0
  %106 = vmatpush1.bf16.msra.mxu0 0
  %107 = vmatprep.subr.bf16.mxu0 0
  %108 = vmatpush1.bf16.msra.mxu0 0
  %109 = vmatprep.subr.bf16.mxu0 0
  %110 = vmatpush1.bf16.msra.mxu0 0
  %111 = vmatprep.mubr.bf16.mxu0 0
  %112 = vmatmul.mubr.bf16.gmra.mrb[0].mxu0 %v77
  %v113 = vpop.f32.mrb[0].mxu0
  %v114 = vadd.f32 0.0, %v113
  %v115 = vpop.f32.mrb[0].mxu0
  %v116 = vpop.f32.mrb[0].mxu0
  %v117 = vpop.f32.mrb[0].mxu0
  %118 = vdwg.mxu0
  %v120 = vlaneseq
  %v121 = vshrl.u32 %v120, 7
  %v122 = vsub.s32 0, %v121
  %v123 = vrot.slane %v42, %v122
  %v125 = vadd.f32 %v123, %v114
  %v126 = vld [vmem:[%s4] sm:$0xf]
  %v127 = vld [vmem:[%s4 + $0x4] sm:$0xf]
  %v128 = vld [vmem:[%s4 + $0x8] sm:$0xf]
  %v129 = vld [vmem:[%s4 + $0xc] sm:$0xf]
  %v130 = vld [vmem:[%s4 + $0x10] sm:$0xf]
  %v131 = vld [vmem:[%s4 + $0x14] sm:$0xf]
  %v132 = vld [vmem:[%s4 + $0x18] sm:$0xf]
  %v133 = vld [vmem:[%s4 + $0x1c] sm:$0xf]
  %v142 = vunpack.c.l.b16 %v126
  %v143 = vunpack.c.l.b16 %v127
  %v144 = vunpack.c.l.b16 %v128
  %v145 = vunpack.c.l.b16 %v129
  %v146 = vunpack.c.l.b16 %v130
  %v147 = vunpack.c.l.b16 %v131
  %v148 = vunpack.c.l.b16 %v132
  %v149 = vunpack.c.l.b16 %v133
  %v150 = vpack.c.b16 %v143, %v142
  %v151 = vpack.c.b16 %v145, %v144
  %v152 = vpack.c.b16 %v147, %v146
  %v153 = vpack.c.b16 %v149, %v148
  %v159 = vsel %vm75, %v40, 0
  %161 = vmatprep.subr.bf16.mxu0 0
  %162 = vmatpush1.bf16.msra.mxu0 %v150
  %163 = vmatprep.subr.bf16.mxu0 0
  %164 = vmatpush1.bf16.msra.mxu0 %v151
  %165 = vmatprep.subr.bf16.mxu0 0
  %166 = vmatpush1.bf16.msra.mxu0 %v152
  %167 = vmatprep.subr.bf16.mxu0 0
  %168 = vmatpush1.bf16.msra.mxu0 %v153
  %169 = vmatprep.subr.bf16.mxu0 0
  %170 = vmatpush1.bf16.msra.mxu0 0
  %171 = vmatprep.subr.bf16.mxu0 0
  %172 = vmatpush1.bf16.msra.mxu0 0
  %173 = vmatprep.subr.bf16.mxu0 0
  %174 = vmatpush1.bf16.msra.mxu0 0
  %175 = vmatprep.subr.bf16.mxu0 0
  %176 = vmatpush1.bf16.msra.mxu0 0
  %177 = vmatprep.subr.bf16.mxu0 0
  %178 = vmatpush1.bf16.msra.mxu0 0
  %179 = vmatprep.subr.bf16.mxu0 0
  %180 = vmatpush1.bf16.msra.mxu0 0
  %181 = vmatprep.subr.bf16.mxu0 0
  %182 = vmatpush1.bf16.msra.mxu0 0
  %183 = vmatprep.subr.bf16.mxu0 0
  %184 = vmatpush1.bf16.msra.mxu0 0
  %185 = vmatprep.subr.bf16.mxu0 0
  %186 = vmatpush1.bf16.msra.mxu0 0
  %187 = vmatprep.subr.bf16.mxu0 0
  %188 = vmatpush1.bf16.msra.mxu0 0
  %189 = vmatprep.subr.bf16.mxu0 0
  %190 = vmatpush1.bf16.msra.mxu0 0
  %191 = vmatprep.subr.bf16.mxu0 0
  %192 = vmatpush1.bf16.msra.mxu0 0
  %193 = vmatprep.mubr.bf16.mxu0 0
  %194 = vmatmul.mubr.bf16.gmra.mrb[0].mxu0 %v159
  %v195 = vpop.f32.mrb[0].mxu0
  %v196 = vadd.f32 0.0, %v195
  %v197 = vpop.f32.mrb[0].mxu0
  %v198 = vpop.f32.mrb[0].mxu0
  %v199 = vpop.f32.mrb[0].mxu0
  %200 = vdwg.mxu0
  %v201 = vadd.f32 %v125, %v196
  %v202 = vld [vmem:[%s5] sm:$0xf]
  %v203 = vld [vmem:[%s5 + $0x4] sm:$0xf]
  %v204 = vld [vmem:[%s5 + $0x8] sm:$0xf]
  %v205 = vld [vmem:[%s5 + $0xc] sm:$0xf]
  %v206 = vld [vmem:[%s5 + $0x10] sm:$0xf]
  %v207 = vld [vmem:[%s5 + $0x14] sm:$0xf]
  %v208 = vld [vmem:[%s5 + $0x18] sm:$0xf]
  %v209 = vld [vmem:[%s5 + $0x1c] sm:$0xf]
  %v218 = vunpack.c.l.b16 %v202
  %v219 = vunpack.c.l.b16 %v203
  %v220 = vunpack.c.l.b16 %v204
  %v221 = vunpack.c.l.b16 %v205
  %v222 = vunpack.c.l.b16 %v206
  %v223 = vunpack.c.l.b16 %v207
  %v224 = vunpack.c.l.b16 %v208
  %v225 = vunpack.c.l.b16 %v209
  %v226 = vpack.c.b16 %v219, %v218
  %v227 = vpack.c.b16 %v221, %v220
  %v228 = vpack.c.b16 %v223, %v222
  %v229 = vpack.c.b16 %v225, %v224
  %v235 = vsel %vm75, %v41, 0
  %237 = vmatprep.subr.bf16.mxu0 0
  %238 = vmatpush1.bf16.msra.mxu0 %v226
  %239 = vmatprep.subr.bf16.mxu0 0
  %240 = vmatpush1.bf16.msra.mxu0 %v227
  %241 = vmatprep.subr.bf16.mxu0 0
  %242 = vmatpush1.bf16.msra.mxu0 %v228
  %243 = vmatprep.subr.bf16.mxu0 0
  %244 = vmatpush1.bf16.msra.mxu0 %v229
  %245 = vmatprep.subr.bf16.mxu0 0
  %246 = vmatpush1.bf16.msra.mxu0 0
  %247 = vmatprep.subr.bf16.mxu0 0
  %248 = vmatpush1.bf16.msra.mxu0 0
  %249 = vmatprep.subr.bf16.mxu0 0
  %250 = vmatpush1.bf16.msra.mxu0 0
  %251 = vmatprep.subr.bf16.mxu0 0
  %252 = vmatpush1.bf16.msra.mxu0 0
  %253 = vmatprep.subr.bf16.mxu0 0
  %254 = vmatpush1.bf16.msra.mxu0 0
  %255 = vmatprep.subr.bf16.mxu0 0
  %256 = vmatpush1.bf16.msra.mxu0 0
  %257 = vmatprep.subr.bf16.mxu0 0
  %258 = vmatpush1.bf16.msra.mxu0 0
  %259 = vmatprep.subr.bf16.mxu0 0
  %260 = vmatpush1.bf16.msra.mxu0 0
  %261 = vmatprep.subr.bf16.mxu0 0
  %262 = vmatpush1.bf16.msra.mxu0 0
  %263 = vmatprep.subr.bf16.mxu0 0
  %264 = vmatpush1.bf16.msra.mxu0 0
  %265 = vmatprep.subr.bf16.mxu0 0
  %266 = vmatpush1.bf16.msra.mxu0 0
  %267 = vmatprep.subr.bf16.mxu0 0
  %268 = vmatpush1.bf16.msra.mxu0 0
  %269 = vmatprep.mubr.bf16.mxu0 0
  %270 = vmatmul.mubr.bf16.gmra.mrb[0].mxu0 %v235
  %v271 = vpop.f32.mrb[0].mxu0
  %v272 = vadd.f32 0.0, %v271
  %v273 = vpop.f32.mrb[0].mxu0
  %v274 = vpop.f32.mrb[0].mxu0
  %v275 = vpop.f32.mrb[0].mxu0
  %276 = vdwg.mxu0
  %v277 = vadd.f32 %v201, %v272
  %vm278 = vcmp.gt.f32.partialorder %v277, 0.0
  %v279 = vmul.f32 %v277, 0.2
  %v280 = vsel %vm278, %v277, %v279
  %v281 = vld [vmem:[%s8] sm:$0x3]
  %v282 = vpack.c.bf16 %v280, %v280
  %v283 = vld [vmem:[%s7] sm:$0xff]
  %v284 = vld [vmem:[%s7 + $0x8] sm:$0xff]
  %v285 = vld [vmem:[%s7 + $0x10] sm:$0xff]
  %v286 = vld [vmem:[%s7 + $0x18] sm:$0xff]
  %v287 = vld [vmem:[%s7 + $0x20] sm:$0xff]
  %v288 = vld [vmem:[%s7 + $0x28] sm:$0xff]
  %v289 = vld [vmem:[%s7 + $0x30] sm:$0xff]
  %v290 = vld [vmem:[%s7 + $0x38] sm:$0xff]
  %v291 = vld [vmem:[%s7 + $0x40] sm:$0xff]
  %v292 = vld [vmem:[%s7 + $0x48] sm:$0xff]
  %v293 = vld [vmem:[%s7 + $0x50] sm:$0xff]
  %v294 = vld [vmem:[%s7 + $0x58] sm:$0xff]
  %v295 = vld [vmem:[%s7 + $0x60] sm:$0xff]
  %v296 = vld [vmem:[%s7 + $0x68] sm:$0xff]
  %v297 = vld [vmem:[%s7 + $0x70] sm:$0xff]
  %v298 = vld [vmem:[%s7 + $0x78] sm:$0xff]
  %v300 = vlaneseq
  %v301 = vshrl.u32 %v300, 7
  %v302 = vsub.s32 0, %v301
  %v303 = vrot.slane %v281, %v302
  %v304 = vlaneseq
  %v305 = vshrl.u32 %v304, 7
  %v306 = vsub.s32 1, %v305
  %v307 = vrot.slane %v281, %v306
  %v326 = vunpack.c.l.b16 %v283
  %v327 = vunpack.c.h.b16 %v283
  %v328 = vunpack.c.l.b16 %v284
  %v329 = vunpack.c.h.b16 %v284
  %v330 = vunpack.c.l.b16 %v285
  %v331 = vunpack.c.h.b16 %v285
  %v332 = vunpack.c.l.b16 %v286
  %v333 = vunpack.c.h.b16 %v286
  %v334 = vunpack.c.l.b16 %v287
  %v335 = vunpack.c.h.b16 %v287
  %v336 = vunpack.c.l.b16 %v288
  %v337 = vunpack.c.h.b16 %v288
  %v338 = vunpack.c.l.b16 %v289
  %v339 = vunpack.c.h.b16 %v289
  %v340 = vunpack.c.l.b16 %v290
  %v341 = vunpack.c.h.b16 %v290
  %v342 = vunpack.c.l.b16 %v291
  %v343 = vunpack.c.h.b16 %v291
  %v344 = vunpack.c.l.b16 %v292
  %v345 = vunpack.c.h.b16 %v292
  %v346 = vunpack.c.l.b16 %v293
  %v347 = vunpack.c.h.b16 %v293
  %v348 = vunpack.c.l.b16 %v294
  %v349 = vunpack.c.h.b16 %v294
  %v350 = vunpack.c.l.b16 %v295
  %v351 = vunpack.c.h.b16 %v295
  %v352 = vunpack.c.l.b16 %v296
  %v353 = vunpack.c.h.b16 %v296
  %v354 = vunpack.c.l.b16 %v297
  %v355 = vunpack.c.h.b16 %v297
  %v356 = vunpack.c.l.b16 %v298
  %v357 = vunpack.c.h.b16 %v298
  %v358 = vpack.c.b16 %v328, %v326
  %v359 = vpack.c.b16 %v329, %v327
  %v360 = vpack.c.b16 %v332, %v330
  %v361 = vpack.c.b16 %v333, %v331
  %v362 = vpack.c.b16 %v336, %v334
  %v363 = vpack.c.b16 %v337, %v335
  %v364 = vpack.c.b16 %v340, %v338
  %v365 = vpack.c.b16 %v341, %v339
  %v366 = vpack.c.b16 %v344, %v342
  %v367 = vpack.c.b16 %v345, %v343
  %v368 = vpack.c.b16 %v348, %v346
  %v369 = vpack.c.b16 %v349, %v347
  %v370 = vpack.c.b16 %v352, %v350
  %v371 = vpack.c.b16 %v353, %v351
  %v372 = vpack.c.b16 %v356, %v354
  %v373 = vpack.c.b16 %v357, %v355
  %390 = vmatprep.subr.bf16.mxu0 %v359
  %391 = vmatpush1.bf16.msra.mxu0 %v358
  %392 = vmatprep.subr.bf16.mxu0 %v361
  %393 = vmatpush1.bf16.msra.mxu0 %v360
  %394 = vmatprep.subr.bf16.mxu0 %v363
  %395 = vmatpush1.bf16.msra.mxu0 %v362
  %396 = vmatprep.subr.bf16.mxu0 %v365
  %397 = vmatpush1.bf16.msra.mxu0 %v364
  %398 = vmatprep.subr.bf16.mxu0 %v367
  %399 = vmatpush1.bf16.msra.mxu0 %v366
  %400 = vmatprep.subr.bf16.mxu0 %v369
  %401 = vmatpush1.bf16.msra.mxu0 %v368
  %402 = vmatprep.subr.bf16.mxu0 %v371
  %403 = vmatpush1.bf16.msra.mxu0 %v370
  %404 = vmatprep.subr.bf16.mxu0 %v373
  %405 = vmatpush1.bf16.msra.mxu0 %v372
  %406 = vmatprep.subr.bf16.mxu0 0
  %407 = vmatpush1.bf16.msra.mxu0 0
  %408 = vmatprep.subr.bf16.mxu0 0
  %409 = vmatpush1.bf16.msra.mxu0 0
  %410 = vmatprep.subr.bf16.mxu0 0
  %411 = vmatpush1.bf16.msra.mxu0 0
  %412 = vmatprep.subr.bf16.mxu0 0
  %413 = vmatpush1.bf16.msra.mxu0 0
  %414 = vmatprep.subr.bf16.mxu0 0
  %415 = vmatpush1.bf16.msra.mxu0 0
  %416 = vmatprep.subr.bf16.mxu0 0
  %417 = vmatpush1.bf16.msra.mxu0 0
  %418 = vmatprep.subr.bf16.mxu0 0
  %419 = vmatpush1.bf16.msra.mxu0 0
  %420 = vmatprep.subr.bf16.mxu0 0
  %421 = vmatpush1.bf16.msra.mxu0 0
  %422 = vmatprep.mubr.bf16.mxu0 0
  %423 = vmatmul.mubr.bf16.gmra.mrb[0].mxu0 %v282
  %v424 = vpop.f32.mrb[0].mxu0
  %v425 = vadd.f32 %v303, %v424
  %v426 = vpop.f32.mrb[0].mxu0
  %v427 = vadd.f32 %v307, %v426
  %v428 = vpop.f32.mrb[0].mxu0
  %v429 = vpop.f32.mrb[0].mxu0
  %430 = vdwg.mxu0
  %vm431 = vcmp.gt.f32.partialorder %v425, 0.0
  %vm432 = vcmp.gt.f32.partialorder %v427, 0.0
  %v433 = vmul.f32 %v425, 0.2
  %v434 = vmul.f32 %v427, 0.2
  %v435 = vsel %vm431, %v425, %v433
  %v436 = vsel %vm432, %v427, %v434
  %v437 = vld [vmem:[%s10] sm:$0x1]
  %v438 = vpack.c.bf16 %v435, %v435
  %v439 = vpack.c.bf16 %v436, %v436
  %v440 = vld [vmem:[%s9] sm:$0xf]
  %v441 = vld [vmem:[%s9 + $0x4] sm:$0xf]
  %v442 = vld [vmem:[%s9 + $0x8] sm:$0xf]
  %v443 = vld [vmem:[%s9 + $0xc] sm:$0xf]
  %v444 = vld [vmem:[%s9 + $0x10] sm:$0xf]
  %v445 = vld [vmem:[%s9 + $0x14] sm:$0xf]
  %v446 = vld [vmem:[%s9 + $0x18] sm:$0xf]
  %v447 = vld [vmem:[%s9 + $0x1c] sm:$0xf]
  %v448 = vld [vmem:[%s9 + $0x20] sm:$0xf]
  %v449 = vld [vmem:[%s9 + $0x24] sm:$0xf]
  %v450 = vld [vmem:[%s9 + $0x28] sm:$0xf]
  %v451 = vld [vmem:[%s9 + $0x2c] sm:$0xf]
  %v452 = vld [vmem:[%s9 + $0x30] sm:$0xf]
  %v453 = vld [vmem:[%s9 + $0x34] sm:$0xf]
  %v454 = vld [vmem:[%s9 + $0x38] sm:$0xf]
  %v455 = vld [vmem:[%s9 + $0x3c] sm:$0xf]
  %v456 = vld [vmem:[%s9 + $0x40] sm:$0xf]
  %v457 = vld [vmem:[%s9 + $0x44] sm:$0xf]
  %v458 = vld [vmem:[%s9 + $0x48] sm:$0xf]
  %v459 = vld [vmem:[%s9 + $0x4c] sm:$0xf]
  %v460 = vld [vmem:[%s9 + $0x50] sm:$0xf]
  %v461 = vld [vmem:[%s9 + $0x54] sm:$0xf]
  %v462 = vld [vmem:[%s9 + $0x58] sm:$0xf]
  %v463 = vld [vmem:[%s9 + $0x5c] sm:$0xf]
  %v464 = vld [vmem:[%s9 + $0x60] sm:$0xf]
  %v465 = vld [vmem:[%s9 + $0x64] sm:$0xf]
  %v466 = vld [vmem:[%s9 + $0x68] sm:$0xf]
  %v467 = vld [vmem:[%s9 + $0x6c] sm:$0xf]
  %v468 = vld [vmem:[%s9 + $0x70] sm:$0xf]
  %v469 = vld [vmem:[%s9 + $0x74] sm:$0xf]
  %v470 = vld [vmem:[%s9 + $0x78] sm:$0xf]
  %v471 = vld [vmem:[%s9 + $0x7c] sm:$0xf]
  %v473 = vlaneseq
  %v474 = vshrl.u32 %v473, 7
  %v475 = vsub.s32 0, %v474
  %v476 = vrot.slane %v437, %v475
  %v510 = vunpack.c.l.b16 %v440
  %v511 = vunpack.c.l.b16 %v441
  %v512 = vunpack.c.l.b16 %v442
  %v513 = vunpack.c.l.b16 %v443
  %v514 = vunpack.c.l.b16 %v444
  %v515 = vunpack.c.l.b16 %v445
  %v516 = vunpack.c.l.b16 %v446
  %v517 = vunpack.c.l.b16 %v447
  %v518 = vunpack.c.l.b16 %v448
  %v519 = vunpack.c.l.b16 %v449
  %v520 = vunpack.c.l.b16 %v450
  %v521 = vunpack.c.l.b16 %v451
  %v522 = vunpack.c.l.b16 %v452
  %v523 = vunpack.c.l.b16 %v453
  %v524 = vunpack.c.l.b16 %v454
  %v525 = vunpack.c.l.b16 %v455
  %v526 = vunpack.c.l.b16 %v456
  %v527 = vunpack.c.l.b16 %v457
  %v528 = vunpack.c.l.b16 %v458
  %v529 = vunpack.c.l.b16 %v459
  %v530 = vunpack.c.l.b16 %v460
  %v531 = vunpack.c.l.b16 %v461
  %v532 = vunpack.c.l.b16 %v462
  %v533 = vunpack.c.l.b16 %v463
  %v534 = vunpack.c.l.b16 %v464
  %v535 = vunpack.c.l.b16 %v465
  %v536 = vunpack.c.l.b16 %v466
  %v537 = vunpack.c.l.b16 %v467
  %v538 = vunpack.c.l.b16 %v468
  %v539 = vunpack.c.l.b16 %v469
  %v540 = vunpack.c.l.b16 %v470
  %v541 = vunpack.c.l.b16 %v471
  %v542 = vpack.c.b16 %v511, %v510
  %v543 = vpack.c.b16 %v513, %v512
  %v544 = vpack.c.b16 %v515, %v514
  %v545 = vpack.c.b16 %v517, %v516
  %v546 = vpack.c.b16 %v519, %v518
  %v547 = vpack.c.b16 %v521, %v520
  %v548 = vpack.c.b16 %v523, %v522
  %v549 = vpack.c.b16 %v525, %v524
  %v550 = vpack.c.b16 %v527, %v526
  %v551 = vpack.c.b16 %v529, %v528
  %v552 = vpack.c.b16 %v531, %v530
  %v553 = vpack.c.b16 %v533, %v532
  %v554 = vpack.c.b16 %v535, %v534
  %v555 = vpack.c.b16 %v537, %v536
  %v556 = vpack.c.b16 %v539, %v538
  %v557 = vpack.c.b16 %v541, %v540
  %574 = vmatprep.subr.bf16.mxu0 0
  %575 = vmatpush1.bf16.msra.mxu0 %v542
  %576 = vmatprep.subr.bf16.mxu0 0
  %577 = vmatpush1.bf16.msra.mxu0 %v543
  %578 = vmatprep.subr.bf16.mxu0 0
  %579 = vmatpush1.bf16.msra.mxu0 %v544
  %580 = vmatprep.subr.bf16.mxu0 0
  %581 = vmatpush1.bf16.msra.mxu0 %v545
  %582 = vmatprep.subr.bf16.mxu0 0
  %583 = vmatpush1.bf16.msra.mxu0 %v546
  %584 = vmatprep.subr.bf16.mxu0 0
  %585 = vmatpush1.bf16.msra.mxu0 %v547
  %586 = vmatprep.subr.bf16.mxu0 0
  %587 = vmatpush1.bf16.msra.mxu0 %v548
  %588 = vmatprep.subr.bf16.mxu0 0
  %589 = vmatpush1.bf16.msra.mxu0 %v549
  %590 = vmatprep.subr.bf16.mxu0 0
  %591 = vmatpush1.bf16.msra.mxu0 %v550
  %592 = vmatprep.subr.bf16.mxu0 0
  %593 = vmatpush1.bf16.msra.mxu0 %v551
  %594 = vmatprep.subr.bf16.mxu0 0
  %595 = vmatpush1.bf16.msra.mxu0 %v552
  %596 = vmatprep.subr.bf16.mxu0 0
  %597 = vmatpush1.bf16.msra.mxu0 %v553
  %598 = vmatprep.subr.bf16.mxu0 0
  %599 = vmatpush1.bf16.msra.mxu0 %v554
  %600 = vmatprep.subr.bf16.mxu0 0
  %601 = vmatpush1.bf16.msra.mxu0 %v555
  %602 = vmatprep.subr.bf16.mxu0 0
  %603 = vmatpush1.bf16.msra.mxu0 %v556
  %604 = vmatprep.subr.bf16.mxu0 0
  %605 = vmatpush1.bf16.msra.mxu0 %v557
  %606 = vmatprep.mubr.bf16.mxu0 %v439
  %607 = vmatmul.mubr.bf16.gmra.mrb[0].mxu0 %v438
  %v608 = vpop.f32.mrb[0].mxu0
  %v609 = vadd.f32 %v476, %v608
  %v610 = vpop.f32.mrb[0].mxu0
  %v611 = vpop.f32.mrb[0].mxu0
  %v612 = vpop.f32.mrb[0].mxu0
  %613 = vdwg.mxu0
  %614 = vst [vmem:[%s11] sm:$0xff] %v609
  // Predicated region
  $region46: #{trajsnet_forward.28} parent=0 // pred_check
    _
  $region47: #{trajsnet_forward.28} parent=0 // pred_check_branch
    %616 = sbr.rel (0) target = $region49
  $region48: #{trajsnet_forward.28} parent=0 // pred_region
    _
  $region49: #{trajsnet_forward.28} parent=0 // pred_fallthru
    _
  // Predicated region
  $region50: #{trajsnet_forward.28} parent=0 // pred_check
    _
  $region51: #{trajsnet_forward.28} parent=0 // pred_check_branch
    %618 = sbr.rel (0) target = $region53
  $region52: #{trajsnet_forward.28} parent=0 // pred_region
    _
  $region53: #{trajsnet_forward.28} parent=0 // pred_fallthru
    _

</llo_original>
